<compile_context>
chip_gen: v7x
topology: tpu7x:2x2x1
jax: 0.10.0
libtpu: 0.0.40
codegen_flags: <defaults>
</compile_context>

<pallas_src>
import jax
import jax.numpy as jnp
from jax.experimental import pallas as pl
from jax.experimental.pallas import tpu as pltpu

K_IN = 512 * 7 * 7      # 25088
HIDDEN = 128
N_REG = 4
N_CLS = 2
N_HEADS = 8             # fused head width (4 + 2, zero-padded to 8 lanes)
TK = 12544              # 2 K-steps; multiple of 128 (lane aligned)


def _round_up(a, b):
    return (a + b - 1) // b * b


def roi_classifier_kernel(x_ref, w1_ref, b1_ref, wh_ref, bh_ref,
                          out_ref, acc_ref):
    k = pl.program_id(1)

    @pl.when(k == 0)
    def _():
        acc_ref[...] = jnp.zeros_like(acc_ref)

    # fc1 partial product over the K (=25088) reduction axis.
    # x arrives as f32 and is cast to bf16 in VMEM (free on the VPU; kernel is
    # DMA bound).  w1 is VMEM-resident bf16 (fetched once), sliced per K step.
    # f32 accumulation on the MXU.
    k_off = pl.multiple_of(k * TK, 128)
    x_blk = x_ref[...].astype(jnp.bfloat16)
    w1_blk = w1_ref[pl.ds(k_off, TK), :]
    acc_ref[...] += jnp.dot(x_blk, w1_blk, preferred_element_type=jnp.float32)

    @pl.when(k == pl.num_programs(1) - 1)
    def _():
        # fc1 bias + ReLU
        h = jnp.maximum(acc_ref[...] + b1_ref[...], 0.0)
        # fused regression + classification heads (128 -> 8), one narrow store.
        out_ref[...] = (jnp.dot(h, wh_ref[...],
                                preferred_element_type=jnp.float32)
                        + bh_ref[...]).astype(out_ref.dtype)


def roi_classifier(x, w1, b1, wreg, breg, wcls, bcls):
    """x: (N, 512, 7, 7) f32.  w1 preferably already bf16 (stored at init).

    Returns (pred_locs (N, 4), pred_score (N, 2))."""
    n = x.shape[0]
    x2d = x.reshape(n, K_IN)      # NCHW flatten, same as torch .view (no copy)

    # fc1 weight streamed as bf16 (no-op if already stored bf16 at init).
    w1_bf16 = w1 if w1.dtype == jnp.bfloat16 else w1.astype(jnp.bfloat16)

    # Fuse the two heads into one (128, 8) weight / (1, 8) bias (tiny).
    w_heads = jnp.pad(jnp.concatenate([wreg, wcls], axis=1),
                      ((0, 0), (0, N_HEADS - (N_REG + N_CLS))))
    b_heads = jnp.pad(jnp.concatenate([breg, bcls], axis=1),
                      ((0, 0), (0, N_HEADS - (N_REG + N_CLS))))

    # Batch tile: no padding of x; ragged last block is masked by Pallas.
    if n <= 8:
        tm = _round_up(max(n, 1), 8)
    elif n <= 256:
        # Aim for >= 2 M tiles so v7x's second TensorCore gets work.
        tm = min(128, _round_up((n + 1) // 2, 8))
    else:
        tm = 128

    n_mtiles = pl.cdiv(n, tm)
    n_ksteps = K_IN // TK

    grid_spec = pltpu.PrefetchScalarGridSpec(
        num_scalar_prefetch=0,
        grid=(n_mtiles, n_ksteps),
        in_specs=[
            # x tile, streamed f32 (cast to bf16 in-kernel).
            pl.BlockSpec((tm, TK), lambda i, k: (i, k)),
            # fc1 weight: full array, constant index -> VMEM-resident,
            # DMA'd from HBM exactly once for the whole grid.
            pl.BlockSpec((K_IN, HIDDEN), lambda i, k: (0, 0)),
            pl.BlockSpec((1, HIDDEN), lambda i, k: (0, 0)),        # fc1 bias
            pl.BlockSpec((HIDDEN, N_HEADS), lambda i, k: (0, 0)),  # fused head w
            pl.BlockSpec((1, N_HEADS), lambda i, k: (0, 0)),       # fused head b
        ],
        out_specs=pl.BlockSpec((tm, N_HEADS), lambda i, k: (i, 0)),
        scratch_shapes=[pltpu.VMEM((tm, HIDDEN), jnp.float32)],
    )

    fused = pl.pallas_call(
        roi_classifier_kernel,
        out_shape=jax.ShapeDtypeStruct((n, N_HEADS), jnp.float32),
        grid_spec=grid_spec,
        compiler_params=pltpu.CompilerParams(
            dimension_semantics=("parallel", "arbitrary"),
            vmem_limit_bytes=32 * 1024 * 1024,
        ),
    )(x2d, w1_bf16, b1, w_heads, b_heads)

    pred_locs = fused[:, :N_REG]
    pred_score = fused[:, N_REG:N_REG + N_CLS]
    return pred_locs, pred_score


def init_params(key):
    """Deterministic synthetic init (PyTorch-Linear-style uniform fan_in bound).

    fc1 weight is stored as bf16 once here (hoisted out of the per-call path)."""
    k1, k2, k3, k4, k5, k6 = jax.random.split(key, 6)

    def lin(kw, kb, fan_in, fan_out):
        bound = 1.0 / jnp.sqrt(fan_in)
        w = jax.random.uniform(kw, (fan_in, fan_out), jnp.float32, -bound, bound)
        b = jax.random.uniform(kb, (1, fan_out), jnp.float32, -bound, bound)
        return w, b

    w1, b1 = lin(k1, k2, K_IN, HIDDEN)
    w1 = w1.astype(jnp.bfloat16)          # stored bf16; no per-call convert
    wreg, breg = lin(k3, k4, HIDDEN, N_REG)
    wcls, bcls = lin(k5, k6, HIDDEN, N_CLS)
    return w1, b1, wreg, breg, wcls, bcls


def reference(x, w1, b1, wreg, breg, wcls, bcls):
    # Mirrors the kernel's bf16 MXU operands (f32 accumulation) so the
    # comparison tolerance can stay tight despite the low-precision matmul.
    xb = x.reshape(x.shape[0], K_IN).astype(jnp.bfloat16).astype(jnp.float32)
    w1b = w1.astype(jnp.bfloat16).astype(jnp.float32)
    h = jnp.maximum(xb @ w1b + b1, 0.0)
    return h @ wreg + breg, h @ wcls + bcls


if __name__ == "__main__":
    key = jax.random.PRNGKey(0)
    kx, kp = jax.random.split(key)

    # Small batch; feature dims (512, 7, 7) are fixed by the module definition.
    x = jax.random.normal(kx, (2, 512, 7, 7), jnp.float32)
    params = init_params(kp)

    pred_locs, pred_score = roi_classifier(x, *params)
    jax.block_until_ready((pred_locs, pred_score))

    ref_locs, ref_score = reference(x, *params)
    assert pred_locs.shape == (2, 4) and pred_score.shape == (2, 2)
    # Loosened vs pure-f32 because the fc1 matmul runs with bf16 operands.
    assert jnp.allclose(pred_locs, ref_locs, atol=2e-2, rtol=2e-2)
    assert jnp.allclose(pred_score, ref_score, atol=2e-2, rtol=2e-2)

    print("KERNEL_OK")
</pallas_src>

<mosaic_0001>
module attributes {stable_mosaic.version = 11 : i64} {
  func.func @roi_classifier_kernel(%arg0: i32, %arg1: i32, %arg2: memref<8x12544xf32, #tpu.memory_space<vmem>>, %arg3: memref<25088x128xbf16, #tpu.memory_space<vmem>>, %arg4: memref<1x128xf32, #tpu.memory_space<vmem>>, %arg5: memref<128x8xf32, #tpu.memory_space<vmem>>, %arg6: memref<1x8xf32, #tpu.memory_space<vmem>>, %arg7: memref<8x8xf32, #tpu.memory_space<vmem>>, %arg8: memref<8x128xf32, #tpu.memory_space<vmem>>) attributes {dimension_semantics = [#tpu.dimension_semantics<parallel>, #tpu.dimension_semantics<arbitrary>], iteration_bounds = array<i64: 1, 2>, scalar_prefetch = 0 : i64, scratch_operands = 1 : i64, tpu.core_type = #tpu.core_type<tc>, window_params = [{transform_indices = @transform_0, window_bounds = array<i64: 8, 12544>}, {pipeline_mode = #tpu.pipeline_mode<synchronous>, transform_indices = @transform_1, window_bounds = array<i64: 25088, 128>}, {pipeline_mode = #tpu.pipeline_mode<synchronous>, transform_indices = @transform_2, window_bounds = array<i64: 1, 128>}, {pipeline_mode = #tpu.pipeline_mode<synchronous>, transform_indices = @transform_3, window_bounds = array<i64: 128, 8>}, {pipeline_mode = #tpu.pipeline_mode<synchronous>, transform_indices = @transform_4, window_bounds = array<i64: 1, 8>}, {transform_indices = @transform_5, window_bounds = array<i64: 8, 8>}]} {
    %c0_i32 = arith.constant 0 : i32
    %0 = arith.cmpi eq, %arg1, %c0_i32 : i32
    %1 = arith.extui %0 : i1 to i32
    %c0_i32_0 = arith.constant 0 : i32
    %2 = arith.cmpi ne, %1, %c0_i32_0 : i32
    scf.if %2 {
      %cst_8 = arith.constant 0.000000e+00 : f32
      %16 = vector.broadcast %cst_8 : f32 to vector<8x128xf32>
      %c0_9 = arith.constant 0 : index
      %c0_10 = arith.constant 0 : index
      %17 = vector.load %arg8[%c0_9, %c0_10] : memref<8x128xf32, #tpu.memory_space<vmem>>, vector<8x128xf32>
      tpu.vector_store %arg8[%c0_9, %c0_10], %16 {strides = array<i32>} : memref<8x128xf32, #tpu.memory_space<vmem>>, vector<8x128xf32>,
    } else {
    }
    %c12544_i32 = arith.constant 12544 : i32
    %3 = arith.muli %arg1, %c12544_i32 : i32
    %4 = tpu.assume_multiple %3, 128 : i32
    %c0 = arith.constant 0 : index
    %c0_1 = arith.constant 0 : index
    %5 = vector.load %arg2[%c0, %c0_1] : memref<8x12544xf32, #tpu.memory_space<vmem>>, vector<8x12544xf32>
    %6 = arith.truncf %5 : vector<8x12544xf32> to vector<8x12544xbf16>
    %7 = arith.index_cast %4 : i32 to index
    %c0_2 = arith.constant 0 : index
    %8 = vector.load %arg3[%7, %c0_2] : memref<25088x128xbf16, #tpu.memory_space<vmem>>, vector<12544x128xbf16>
    %c0_3 = arith.constant 0 : index
    %c0_4 = arith.constant 0 : index
    %9 = vector.load %arg8[%c0_3, %c0_4] : memref<8x128xf32, #tpu.memory_space<vmem>>, vector<8x128xf32>
    %cst = arith.constant dense<0.000000e+00> : vector<8x128xf32>
    %10 = tpu.matmul %6, %8, %cst {dimension_numbers = #tpu.dot_dimension_numbers<[1], [0], [0], [1], [0, 0, 1, 1], [], []>} : vector<8x12544xbf16>, vector<12544x128xbf16>, vector<8x128xf32> -> vector<8x128xf32>
    %11 = arith.addf %9, %10 : vector<8x128xf32>
    %c0_5 = arith.constant 0 : index
    %c0_6 = arith.constant 0 : index
    %12 = vector.load %arg8[%c0_5, %c0_6] : memref<8x128xf32, #tpu.memory_space<vmem>>, vector<8x128xf32>
    tpu.vector_store %arg8[%c0_5, %c0_6], %11 {strides = array<i32>} : memref<8x128xf32, #tpu.memory_space<vmem>>, vector<8x128xf32>,
    %c1_i32 = arith.constant 1 : i32
    %13 = arith.cmpi eq, %arg1, %c1_i32 : i32
    %14 = arith.extui %13 : i1 to i32
    %c0_i32_7 = arith.constant 0 : i32
    %15 = arith.cmpi ne, %14, %c0_i32_7 : i32
    scf.if %15 {
      %c0_8 = arith.constant 0 : index
      %c0_9 = arith.constant 0 : index
      %16 = vector.load %arg8[%c0_8, %c0_9] : memref<8x128xf32, #tpu.memory_space<vmem>>, vector<8x128xf32>
      %c0_10 = arith.constant 0 : index
      %c0_11 = arith.constant 0 : index
      %17 = vector.load %arg4[%c0_10, %c0_11] : memref<1x128xf32, #tpu.memory_space<vmem>>, vector<1x128xf32>
      %18 = vector.broadcast %17 : vector<1x128xf32> to vector<8x128xf32>
      %19 = arith.addf %16, %18 : vector<8x128xf32>
      %cst_12 = arith.constant 0.000000e+00 : f32
      %20 = vector.broadcast %cst_12 : f32 to vector<8x128xf32>
      %21 = arith.maximumf %19, %20 : vector<8x128xf32>
      %c0_13 = arith.constant 0 : index
      %c0_14 = arith.constant 0 : index
      %22 = vector.load %arg5[%c0_13, %c0_14] : memref<128x8xf32, #tpu.memory_space<vmem>>, vector<128x8xf32>
      %cst_15 = arith.constant dense<0.000000e+00> : vector<8x8xf32>
      %23 = tpu.matmul %21, %22, %cst_15 {dimension_numbers = #tpu.dot_dimension_numbers<[1], [0], [0], [1], [0, 0, 1, 1], [], []>} : vector<8x128xf32>, vector<128x8xf32>, vector<8x8xf32> -> vector<8x8xf32>
      %c0_16 = arith.constant 0 : index
      %c0_17 = arith.constant 0 : index
      %24 = vector.load %arg6[%c0_16, %c0_17] : memref<1x8xf32, #tpu.memory_space<vmem>>, vector<1x8xf32>
      %25 = vector.broadcast %24 : vector<1x8xf32> to vector<8x8xf32>
      %26 = arith.addf %23, %25 : vector<8x8xf32>
      %c0_18 = arith.constant 0 : index
      %c0_19 = arith.constant 0 : index
      %27 = vector.load %arg7[%c0_18, %c0_19] : memref<8x8xf32, #tpu.memory_space<vmem>>, vector<8x8xf32>
      tpu.vector_store %arg7[%c0_18, %c0_19], %26 {strides = array<i32>} : memref<8x8xf32, #tpu.memory_space<vmem>>, vector<8x8xf32>,
    } else {
    }
    return
  }
  func.func @transform_0(%arg0: i32, %arg1: i32) -> (i32, i32) {
    %c0_i32 = arith.constant 0 : i32
    return %arg0, %arg1 : i32, i32
  }
  func.func @transform_1(%arg0: i32, %arg1: i32) -> (i32, i32) {
    %c0_i32 = arith.constant 0 : i32
    %c0_i32_0 = arith.constant 0 : i32
    %c0_i32_1 = arith.constant 0 : i32
    return %c0_i32, %c0_i32_0 : i32, i32
  }
  func.func @transform_2(%arg0: i32, %arg1: i32) -> (i32, i32) {
    %c0_i32 = arith.constant 0 : i32
    %c0_i32_0 = arith.constant 0 : i32
    %c0_i32_1 = arith.constant 0 : i32
    return %c0_i32, %c0_i32_0 : i32, i32
  }
  func.func @transform_3(%arg0: i32, %arg1: i32) -> (i32, i32) {
    %c0_i32 = arith.constant 0 : i32
    %c0_i32_0 = arith.constant 0 : i32
    %c0_i32_1 = arith.constant 0 : i32
    return %c0_i32, %c0_i32_0 : i32, i32
  }
  func.func @transform_4(%arg0: i32, %arg1: i32) -> (i32, i32) {
    %c0_i32 = arith.constant 0 : i32
    %c0_i32_0 = arith.constant 0 : i32
    %c0_i32_1 = arith.constant 0 : i32
    return %c0_i32, %c0_i32_0 : i32, i32
  }
  func.func @transform_5(%arg0: i32, %arg1: i32) -> (i32, i32) {
    %c0_i32 = arith.constant 0 : i32
    %c0_i32_0 = arith.constant 0 : i32
    return %arg0, %c0_i32 : i32, i32
  }
}

</mosaic_0001>

<llo_original>
// kernel: tpu_custom_call.1
$region0: #{tpu_custom_call.1}
  #allocation0 [shape = 'u32[]', space=smem, size = 0x4, offset = 0x4, fixed_abs, tag = 'smem constant byte address 0x4 - core index']
  #allocation1 [shape = 'u32[144,128]{1,0:T(1,128)}', space=vmem, size = 0x12000, scoped, tag = 'internal scratch']
  #allocation2 [shape = 'f32[8,128]{1,0:T(8,128)}', space=vmem, size = 0x1000, scoped, tag = 'scratch operand']
  %s0 = inlined_call_operand.hbm [shape: f32[2,25088], index: 0, kind: input, shape index: {}]
  %s1 = inlined_call_operand.hbm [shape: bf16[25088,128], index: 1, kind: input, shape index: {}]
  %s2 = inlined_call_operand.hbm [shape: f32[1,128], index: 2, kind: input, shape index: {}]
  %s3 = inlined_call_operand.vmem [shape: f32[128,8], index: 3, kind: input, shape index: {}]
  %s4 = inlined_call_operand.hbm [shape: f32[1,8], index: 4, kind: input, shape index: {}]
  %s5 = inlined_call_operand.hbm [shape: f32[2,8], index: 5, kind: output, shape index: {}]
  %s6 = sld [smem:[#allocation0]]
  $region77: #{tpu_custom_call.1} parent=0
    _
  %s8 = ssub.s32 1, %s6
  %s9 = scalar_select 0, %s8, %s6
  $region1: #{tpu_custom_call.1} parent=0
    #allocation3 [shape = 'u8[802816]{0}', space=vmem, size = 0xc4000, scoped, tag = 'input window, operand 0']
    #allocation4 [shape = 's32[2]{0}', space=sflag, size = 0x8, scoped, tag = 'scoped memory for tpu_custom_call.1']
    #allocation5 [shape = 's32[2]{0}', space=sflag, size = 0x8, scoped, tag = 'scoped memory for tpu_custom_call.1']
    #allocation6 [shape = 'u8[6422528]{0}', space=vmem, size = 0x620000, scoped, tag = 'input window, operand 1, single buffered']
    #allocation7 [shape = 's32[1]{0}', space=sflag, size = 0x4, scoped, tag = 'scoped memory for tpu_custom_call.1']
    #allocation8 [shape = 'u8[512]{0}', space=vmem, size = 0x400, scoped, tag = 'input window, operand 2, single buffered']
    #allocation9 [shape = 'u8[512]{0}', space=vmem, size = 0x400, scoped, tag = 'input window, operand 4, single buffered']
    #allocation10 [shape = 's32[1]{0}', space=sflag, size = 0x4, scoped, tag = 'scoped memory for tpu_custom_call.1']
    #allocation11 [shape = 'u8[4096]{0}', space=vmem, size = 0x1000, scoped, tag = 'output window, operand 0, single buffered']
    %10 = vsyncpa [#allocation4], 0
    %s11 = scalar_lea.sflag [#allocation4], 1
    %12 = vsyncpa %s11, 0
    %13 = vsyncpa [#allocation7], 0
    %14 = vsyncpa [#allocation10], 0
    %15 = vsyncpa [#allocation5], 0
    loop: start=0, step=1, limit=4
    $region2: #{tpu_custom_call.1} parent=1 // loop_pre_header
      _
    $region3: #{tpu_custom_call.1} parent=1 // loop_header
      %s17 = sphi 0, %s21
      %p18 = scmp.ge.s32.totalorder %s17, 4
      %s24 = sphi 0, %s36
      %s25 = sphi 0, %s32
      %s26 = sphi 0, %s24
      %s27 = sphi 0, %s25
      %s28 = sphi 0, %s26
      %s29 = sphi 0, %s27
      %s41 = sphi 0, %s43
      %s44 = sphi 0, %s41
      %s45 = sphi 0, %s44
      %s61 = sphi 0, %s45
      %s65 = sphi 0, %s65
      %s67 = sphi 0, %s65
      %s68 = sphi 0, %s67
      %s82 = sphi 0, %s68
      %s86 = sphi 0, %s86
      %s88 = sphi 0, %s86
      %s89 = sphi 0, %s88
      %s103 = sphi 0, %s89
      %s107 = sphi 0, %s107
      %s109 = sphi 0, %s107
      %s110 = sphi 0, %s109
      %s124 = sphi 0, %s110
      %s128 = sphi 0, %s128
      %s130 = sphi 0, %s128
      %s131 = sphi 0, %s130
      %s145 = sphi 0, %s131
      %s151 = sphi 0, %s153
      %s154 = sphi 0, %s151
      %s155 = sphi 0, %s154
      %s171 = sphi 0, %s155
    $region4: #{tpu_custom_call.1} parent=1 // loop_header_branch
      %20 = sbr.rel (%p18) target = $region8
    $region5: #{tpu_custom_call.1} parent=1 // loop_body
      %s22 = ssub.s32 %s17, 1
      %s23 = ssub.s32 %s17, 2
      %s30 = sadd.s32 1, %s25
      %p31 = scmp.ge.s32.totalorder %s30, 2
      %s32 = scalar_select %p31, 0, %s30
      %s33 = sadd.s32 1, %s24
      %s34 = scalar_select %p31, %s33, %s24
      %p35 = scmp.ge.s32.totalorder %s34, 1
      %s36 = scalar_select %p35, 0, %s34
      %s37 = ssub.s32 %s24, %s36
      %s38 = ssub.s32 %s25, %s32
      %s39 = sor.u32 %s37, %s38
      %p40 = scmp.eq.s32.totalorder %s39, 0
      %s42 = sadd.s32 %s41, 1
      %s43 = scalar_select %p40, %s41, %s42
      %p46 = pneg %p40
      %p47 = scmp.eq.s32.totalorder %s17, 1
      %p48 = por %p46, %p47
      %p49 = scmp.ne.s32.totalorder %s41, %s44
      %p50 = scmp.eq.s32.totalorder %s17, 0
      %p51 = por %p49, %p50
      %p52 = scmp.ne.s32.totalorder %s41, %s44
      %p53 = scmp.eq.s32.totalorder %s22, 1
      %p54 = por %p52, %p53
      %p55 = scmp.ne.s32.totalorder %s44, %s45
      %p56 = scmp.eq.s32.totalorder %s22, 0
      %p57 = por %p55, %p56
      %p58 = scmp.ne.s32.totalorder %s44, %s45
      %p59 = scmp.eq.s32.totalorder %s23, 1
      %p60 = por %p58, %p59
      %p62 = scmp.ne.s32.totalorder %s45, %s61
      %p63 = scmp.eq.s32.totalorder %s23, 0
      %p64 = por %p62, %p63
      %s66 = sadd.s32 %s65, 1
      %p69 = scmp.eq.s32.totalorder %s17, 1
      %p70 = scmp.ne.s32.totalorder %s65, %s67
      %p71 = scmp.eq.s32.totalorder %s17, 0
      %p72 = por %p70, %p71
      %p73 = scmp.ne.s32.totalorder %s65, %s67
      %p74 = scmp.eq.s32.totalorder %s22, 1
      %p75 = por %p73, %p74
      %p76 = scmp.ne.s32.totalorder %s67, %s68
      %p77 = scmp.eq.s32.totalorder %s22, 0
      %p78 = por %p76, %p77
      %p79 = scmp.ne.s32.totalorder %s67, %s68
      %p80 = scmp.eq.s32.totalorder %s23, 1
      %p81 = por %p79, %p80
      %p83 = scmp.ne.s32.totalorder %s68, %s82
      %p84 = scmp.eq.s32.totalorder %s23, 0
      %p85 = por %p83, %p84
      %s87 = sadd.s32 %s86, 1
      %p90 = scmp.eq.s32.totalorder %s17, 1
      %p91 = scmp.ne.s32.totalorder %s86, %s88
      %p92 = scmp.eq.s32.totalorder %s17, 0
      %p93 = por %p91, %p92
      %p94 = scmp.ne.s32.totalorder %s86, %s88
      %p95 = scmp.eq.s32.totalorder %s22, 1
      %p96 = por %p94, %p95
      %p97 = scmp.ne.s32.totalorder %s88, %s89
      %p98 = scmp.eq.s32.totalorder %s22, 0
      %p99 = por %p97, %p98
      %p100 = scmp.ne.s32.totalorder %s88, %s89
      %p101 = scmp.eq.s32.totalorder %s23, 1
      %p102 = por %p100, %p101
      %p104 = scmp.ne.s32.totalorder %s89, %s103
      %p105 = scmp.eq.s32.totalorder %s23, 0
      %p106 = por %p104, %p105
      %s108 = sadd.s32 %s107, 1
      %p111 = scmp.eq.s32.totalorder %s17, 1
      %p112 = scmp.ne.s32.totalorder %s107, %s109
      %p113 = scmp.eq.s32.totalorder %s17, 0
      %p114 = por %p112, %p113
      %p115 = scmp.ne.s32.totalorder %s107, %s109
      %p116 = scmp.eq.s32.totalorder %s22, 1
      %p117 = por %p115, %p116
      %p118 = scmp.ne.s32.totalorder %s109, %s110
      %p119 = scmp.eq.s32.totalorder %s22, 0
      %p120 = por %p118, %p119
      %p121 = scmp.ne.s32.totalorder %s109, %s110
      %p122 = scmp.eq.s32.totalorder %s23, 1
      %p123 = por %p121, %p122
      %p125 = scmp.ne.s32.totalorder %s110, %s124
      %p126 = scmp.eq.s32.totalorder %s23, 0
      %p127 = por %p125, %p126
      %s129 = sadd.s32 %s128, 1
      %p132 = scmp.eq.s32.totalorder %s17, 1
      %p133 = scmp.ne.s32.totalorder %s128, %s130
      %p134 = scmp.eq.s32.totalorder %s17, 0
      %p135 = por %p133, %p134
      %p136 = scmp.ne.s32.totalorder %s128, %s130
      %p137 = scmp.eq.s32.totalorder %s22, 1
      %p138 = por %p136, %p137
      %p139 = scmp.ne.s32.totalorder %s130, %s131
      %p140 = scmp.eq.s32.totalorder %s22, 0
      %p141 = por %p139, %p140
      %p142 = scmp.ne.s32.totalorder %s130, %s131
      %p143 = scmp.eq.s32.totalorder %s23, 1
      %p144 = por %p142, %p143
      %p146 = scmp.ne.s32.totalorder %s131, %s145
      %p147 = scmp.eq.s32.totalorder %s23, 0
      %p148 = por %p146, %p147
      %s149 = ssub.s32 %s24, %s36
      %p150 = scmp.eq.s32.totalorder %s149, 0
      %s152 = sadd.s32 %s151, 1
      %s153 = scalar_select %p150, %s151, %s152
      %p156 = pneg %p150
      %p157 = scmp.eq.s32.totalorder %s17, 1
      %p158 = por %p156, %p157
      %p159 = scmp.ne.s32.totalorder %s151, %s154
      %p160 = scmp.eq.s32.totalorder %s17, 0
      %p161 = por %p159, %p160
      %p162 = scmp.ne.s32.totalorder %s151, %s154
      %p163 = scmp.eq.s32.totalorder %s22, 1
      %p164 = por %p162, %p163
      %p165 = scmp.ne.s32.totalorder %s154, %s155
      %p166 = scmp.eq.s32.totalorder %s22, 0
      %p167 = por %p165, %p166
      %p168 = scmp.ne.s32.totalorder %s154, %s155
      %p169 = scmp.eq.s32.totalorder %s23, 1
      %p170 = por %p168, %p169
      %p172 = scmp.ne.s32.totalorder %s155, %s171
      %p173 = scmp.eq.s32.totalorder %s23, 0
      %p174 = por %p172, %p173
      %p175 = scmp.le.s32.totalorder 1, %s17
      %p176 = scmp.lt.s32.totalorder %s17, 3
      %p177 = pnand %p175, %p176
      %p178 = pneg %p177
      // Predicated region
      $region9: #{tpu_custom_call.1} parent=5 // pred_check
        _
      $region10: #{tpu_custom_call.1} parent=5 // pred_check_branch
        %180 = sbr.rel (%p177) target = $region12
      $region11: #{tpu_custom_call.1} parent=5 // pred_region
        %s181 = ssub.s32 %s17, 1
        // Predicated region
        $region13: #{tpu_custom_call.1} parent=11 // pred_check
          %p182 = pneg %p78
        $region14: #{tpu_custom_call.1} parent=11 // pred_check_branch
          %184 = sbr.rel (%p182) target = $region16
        $region15: #{tpu_custom_call.1} parent=11 // pred_region
          %s186 = ssub.s32 200704, 200704
          %187 = vsyncadd [#allocation7], %s186
          %s188 = sshll.u32 [#allocation6], 4
          %s189 = int_to_ptr.vmem [resolvable:$true] %s188
          %194 = dma.hbm_to_vmem [thread:$0]  %s1, 200704, %s189, [#allocation7], 64, 64, 4
        $region16: #{tpu_custom_call.1} parent=11 // pred_fallthru
          _
        // Predicated region
        $region17: #{tpu_custom_call.1} parent=11 // pred_check
          %p195 = pneg %p99
        $region18: #{tpu_custom_call.1} parent=11 // pred_check_branch
          %197 = sbr.rel (%p195) target = $region20
        $region19: #{tpu_custom_call.1} parent=11 // pred_region
          %s199 = ssub.s32 16, 16
          %200 = vsyncadd [#allocation7], %s199
          %s202 = sshll.u32 [#allocation8], 4
          %s203 = int_to_ptr.vmem [resolvable:$true] %s202
          %205 = dma.hbm_to_vmem [thread:$0]  %s2, 16, %s203, [#allocation7]
        $region20: #{tpu_custom_call.1} parent=11 // pred_fallthru
          _
        // Predicated region
        $region21: #{tpu_custom_call.1} parent=11 // pred_check
          %p206 = pneg %p120
        $region22: #{tpu_custom_call.1} parent=11 // pred_check_branch
          %208 = sbr.rel (%p206) target = $region24
        $region23: #{tpu_custom_call.1} parent=11 // pred_region
          _
        $region24: #{tpu_custom_call.1} parent=11 // pred_fallthru
          _
        // Predicated region
        $region25: #{tpu_custom_call.1} parent=11 // pred_check
          %p209 = pneg %p141
        $region26: #{tpu_custom_call.1} parent=11 // pred_check_branch
          %211 = sbr.rel (%p209) target = $region28
        $region27: #{tpu_custom_call.1} parent=11 // pred_region
          %s213 = ssub.s32 16, 16
          %214 = vsyncadd [#allocation10], %s213
          %s216 = sshll.u32 [#allocation9], 4
          %s217 = int_to_ptr.vmem [resolvable:$true] %s216
          %219 = dma.hbm_to_vmem [thread:$0]  %s4, 16, %s217, [#allocation10]
        $region28: #{tpu_custom_call.1} parent=11 // pred_fallthru
          _
      $region12: #{tpu_custom_call.1} parent=5 // pred_fallthru
        _
      %p220 = scmp.lt.s32.totalorder %s17, 2
      // Predicated region
      $region29: #{tpu_custom_call.1} parent=5 // pred_check
        %p221 = pneg %p220
      $region30: #{tpu_custom_call.1} parent=5 // pred_check_branch
        %223 = sbr.rel (%p221) target = $region32
      $region31: #{tpu_custom_call.1} parent=5 // pred_region
        // Predicated region
        $region33: #{tpu_custom_call.1} parent=31 // pred_check
          %p224 = pneg %p51
        $region34: #{tpu_custom_call.1} parent=31 // pred_check_branch
          %226 = sbr.rel (%p224) target = $region36
        $region35: #{tpu_custom_call.1} parent=31 // pred_region
          %s227 = sand.u32 %s41, 1
          %s228 = scalar_lea.sflag [#allocation4], %s227
          %s229 = sand.u32 %s41, 1
          %s230 = smul.addr %s229, 784
          %s231 = scalar_lea.vmem [#allocation3], %s230
          %s232 = smul.u32 4, %s24
          %s233 = smul.u32 98, %s25
          %s234 = ssub.s32 1, %s232
          %s235 = smul.u32 32, %s234
          %s236 = smul.u32 %s235, 98
          %s238 = ssub.s32 12544, %s236
          %239 = vsyncadd %s228, %s238
          %p240 = scmp.ne.s32.totalorder 0, %s236
          %s241 = smul.addr %s232, 196
          %s242 = sadd.s32 %s233, %s241
          %s243 = smul.addr %s242, 32
          %s244 = scalar_lea.hbm %s0, %s243
          %s245 = smul.u32 196, %s234
          %s246 = sshll.u32 %s231, 4
          %s247 = int_to_ptr.vmem [resolvable:$true] %s246
          %s248 = sshll.u32 %s245, 4
          %252 = dma.hbm_to_vmem [thread:$0]  (%p240), %s244, %s248, %s247, %s228, 6272, 3136, 196
        $region36: #{tpu_custom_call.1} parent=31 // pred_fallthru
          _
      $region32: #{tpu_custom_call.1} parent=5 // pred_fallthru
        _
      %p253 = scmp.le.s32.totalorder 1, %s17
      %p254 = scmp.lt.s32.totalorder %s17, 3
      %p255 = pnand %p253, %p254
      %p256 = pneg %p255
      // Predicated region
      $region37: #{tpu_custom_call.1} parent=5 // pred_check
        _
      $region38: #{tpu_custom_call.1} parent=5 // pred_check_branch
        %258 = sbr.rel (%p255) target = $region40
      $region39: #{tpu_custom_call.1} parent=5 // pred_region
        %s259 = ssub.s32 %s17, 1
        %s260 = sand.u32 %s44, 1
        %s261 = scalar_lea.sflag [#allocation4], %s260
        %s262 = sand.u32 %s44, 1
        %s263 = smul.addr %s262, 784
        %s264 = scalar_lea.vmem [#allocation3], %s263
        // Predicated region
        $region41: #{tpu_custom_call.1} parent=39 // pred_check
          %p265 = pneg %p57
        $region42: #{tpu_custom_call.1} parent=39 // pred_check_branch
          %267 = sbr.rel (%p265) target = $region44
        $region43: #{tpu_custom_call.1} parent=39 // pred_region
          %268 = dma.done %s261, 12544
        $region44: #{tpu_custom_call.1} parent=39 // pred_fallthru
          _
        // Predicated region
        $region45: #{tpu_custom_call.1} parent=39 // pred_check
          %p269 = pneg %p78
        $region46: #{tpu_custom_call.1} parent=39 // pred_check_branch
          %271 = sbr.rel (%p269) target = $region48
        $region47: #{tpu_custom_call.1} parent=39 // pred_region
          %272 = dma.done [#allocation7], 200704
        $region48: #{tpu_custom_call.1} parent=39 // pred_fallthru
          _
        // Predicated region
        $region49: #{tpu_custom_call.1} parent=39 // pred_check
          %p273 = pneg %p99
        $region50: #{tpu_custom_call.1} parent=39 // pred_check_branch
          %275 = sbr.rel (%p273) target = $region52
        $region51: #{tpu_custom_call.1} parent=39 // pred_region
          %276 = dma.done [#allocation7], 16
        $region52: #{tpu_custom_call.1} parent=39 // pred_fallthru
          _
        // Predicated region
        $region53: #{tpu_custom_call.1} parent=39 // pred_check
          %p277 = pneg %p141
        $region54: #{tpu_custom_call.1} parent=39 // pred_check_branch
          %279 = sbr.rel (%p277) target = $region56
        $region55: #{tpu_custom_call.1} parent=39 // pred_region
          %280 = dma.done [#allocation10], 16
        $region56: #{tpu_custom_call.1} parent=39 // pred_fallthru
          _
        %s281 = sand.u32 %s44, 1
        %s282 = scalar_lea.sflag [#allocation4], %s281
        %s283 = sand.u32 %s44, 1
        %s284 = smul.addr %s283, 784
        %s285 = scalar_lea.vmem [#allocation3], %s284
        %p286 = pneg %p57
        %p287 = pneg %p54
        %p288 = pneg %p78
        %p289 = pneg %p75
        %p290 = pneg %p99
        %p291 = pneg %p96
        %p292 = pneg %p120
        %p293 = pneg %p117
        %p294 = pneg %p141
        %p295 = pneg %p138
        %p296 = pneg %p167
        %p297 = pneg %p164
        %s298 = smul.u32 4, %s26
        %s299 = smul.u32 98, %s27
        %s300 = ssub.s32 1, %s298
        %s301 = smul.u32 32, %s300
        %s302 = smul.u32 %s301, 98
        %s303 = smul.u32 4, %s26
        %s304 = ssub.s32 1, %s303
        %s305 = smul.u32 32, %s304
        %p307 = scmp.eq.s32.totalorder %s27, 0
        // Predicated region
        $region57: #{tpu_custom_call.1} parent=39 // pred_check
          %p308 = pneg %p307
        $region58: #{tpu_custom_call.1} parent=39 // pred_check_branch
          %310 = sbr.rel (%p308) target = $region60
        $region59: #{tpu_custom_call.1} parent=39 // pred_region
          %311 = vst [vmem:[#allocation2] sm:$0xff] 0.0
        $region60: #{tpu_custom_call.1} parent=39 // pred_fallthru
          _
        %s312 = smul.u32 %s27, 12544
        %v313 = vld [vmem:[%s264] sm:$0xff]
        %v314 = vld [vmem:[%s264 + $0x8] sm:$0xff]
        %v315 = vld [vmem:[%s264 + $0x10] sm:$0xff]
        %v316 = vld [vmem:[%s264 + $0x18] sm:$0xff]
        %v317 = vld [vmem:[%s264 + $0x20] sm:$0xff]
        %v318 = vld [vmem:[%s264 + $0x28] sm:$0xff]
        %v319 = vld [vmem:[%s264 + $0x30] sm:$0xff]
        %v320 = vld [vmem:[%s264 + $0x38] sm:$0xff]
        %v321 = vld [vmem:[%s264 + $0x40] sm:$0xff]
        %v322 = vld [vmem:[%s264 + $0x48] sm:$0xff]
        %v323 = vld [vmem:[%s264 + $0x50] sm:$0xff]
        %v324 = vld [vmem:[%s264 + $0x58] sm:$0xff]
        %v325 = vld [vmem:[%s264 + $0x60] sm:$0xff]
        %v326 = vld [vmem:[%s264 + $0x68] sm:$0xff]
        %v327 = vld [vmem:[%s264 + $0x70] sm:$0xff]
        %v328 = vld [vmem:[%s264 + $0x78] sm:$0xff]
        %v329 = vld [vmem:[%s264 + $0x80] sm:$0xff]
        %v330 = vld [vmem:[%s264 + $0x88] sm:$0xff]
        %v331 = vld [vmem:[%s264 + $0x90] sm:$0xff]
        %v332 = vld [vmem:[%s264 + $0x98] sm:$0xff]
        %v333 = vld [vmem:[%s264 + $0xa0] sm:$0xff]
        %v334 = vld [vmem:[%s264 + $0xa8] sm:$0xff]
        %v335 = vld [vmem:[%s264 + $0xb0] sm:$0xff]
        %v336 = vld [vmem:[%s264 + $0xb8] sm:$0xff]
        %v337 = vld [vmem:[%s264 + $0xc0] sm:$0xf]
        %v338 = vld [vmem:[%s264 + $0xc4] sm:$0xff]
        %v339 = vld [vmem:[%s264 + $0xcc] sm:$0xff]
        %v340 = vld [vmem:[%s264 + $0xd4] sm:$0xff]
        %v341 = vld [vmem:[%s264 + $0xdc] sm:$0xff]
        %v342 = vld [vmem:[%s264 + $0xe4] sm:$0xff]
        %v343 = vld [vmem:[%s264 + $0xec] sm:$0xff]
        %v344 = vld [vmem:[%s264 + $0xf4] sm:$0xff]
        %v345 = vld [vmem:[%s264 + $0xfc] sm:$0xff]
        %v346 = vld [vmem:[%s264 + $0x104] sm:$0xff]
        %v347 = vld [vmem:[%s264 + $0x10c] sm:$0xff]
        %v348 = vld [vmem:[%s264 + $0x114] sm:$0xff]
        %v349 = vld [vmem:[%s264 + $0x11c] sm:$0xff]
        %v350 = vld [vmem:[%s264 + $0x124] sm:$0xff]
        %v351 = vld [vmem:[%s264 + $0x12c] sm:$0xff]
        %v352 = vld [vmem:[%s264 + $0x134] sm:$0xff]
        %v353 = vld [vmem:[%s264 + $0x13c] sm:$0xff]
        %v354 = vld [vmem:[%s264 + $0x144] sm:$0xff]
        %v355 = vld [vmem:[%s264 + $0x14c] sm:$0xff]
        %v356 = vld [vmem:[%s264 + $0x154] sm:$0xff]
        %v357 = vld [vmem:[%s264 + $0x15c] sm:$0xff]
        %v358 = vld [vmem:[%s264 + $0x164] sm:$0xff]
        %v359 = vld [vmem:[%s264 + $0x16c] sm:$0xff]
        %v360 = vld [vmem:[%s264 + $0x174] sm:$0xff]
        %v361 = vld [vmem:[%s264 + $0x17c] sm:$0xff]
        %v362 = vld [vmem:[%s264 + $0x184] sm:$0xf]
        %v363 = vld [vmem:[%s264 + $0x188] sm:$0xff]
        %v364 = vld [vmem:[%s264 + $0x190] sm:$0xff]
        %v365 = vld [vmem:[%s264 + $0x198] sm:$0xff]
        %v366 = vld [vmem:[%s264 + $0x1a0] sm:$0xff]
        %v367 = vld [vmem:[%s264 + $0x1a8] sm:$0xff]
        %v368 = vld [vmem:[%s264 + $0x1b0] sm:$0xff]
        %v369 = vld [vmem:[%s264 + $0x1b8] sm:$0xff]
        %v370 = vld [vmem:[%s264 + $0x1c0] sm:$0xff]
        %v371 = vld [vmem:[%s264 + $0x1c8] sm:$0xff]
        %v372 = vld [vmem:[%s264 + $0x1d0] sm:$0xff]
        %v373 = vld [vmem:[%s264 + $0x1d8] sm:$0xff]
        %v374 = vld [vmem:[%s264 + $0x1e0] sm:$0xff]
        %v375 = vld [vmem:[%s264 + $0x1e8] sm:$0xff]
        %v376 = vld [vmem:[%s264 + $0x1f0] sm:$0xff]
        %v377 = vld [vmem:[%s264 + $0x1f8] sm:$0xff]
        %v378 = vld [vmem:[%s264 + $0x200] sm:$0xff]
        %v379 = vld [vmem:[%s264 + $0x208] sm:$0xff]
        %v380 = vld [vmem:[%s264 + $0x210] sm:$0xff]
        %v381 = vld [vmem:[%s264 + $0x218] sm:$0xff]
        %v382 = vld [vmem:[%s264 + $0x220] sm:$0xff]
        %v383 = vld [vmem:[%s264 + $0x228] sm:$0xff]
        %v384 = vld [vmem:[%s264 + $0x230] sm:$0xff]
        %v385 = vld [vmem:[%s264 + $0x238] sm:$0xff]
        %v386 = vld [vmem:[%s264 + $0x240] sm:$0xff]
        %v387 = vld [vmem:[%s264 + $0x248] sm:$0xf]
        %v388 = vld [vmem:[%s264 + $0x24c] sm:$0xff]
        %v389 = vld [vmem:[%s264 + $0x254] sm:$0xff]
        %v390 = vld [vmem:[%s264 + $0x25c] sm:$0xff]
        %v391 = vld [vmem:[%s264 + $0x264] sm:$0xff]
        %v392 = vld [vmem:[%s264 + $0x26c] sm:$0xff]
        %v393 = vld [vmem:[%s264 + $0x274] sm:$0xff]
        %v394 = vld [vmem:[%s264 + $0x27c] sm:$0xff]
        %v395 = vld [vmem:[%s264 + $0x284] sm:$0xff]
        %v396 = vld [vmem:[%s264 + $0x28c] sm:$0xff]
        %v397 = vld [vmem:[%s264 + $0x294] sm:$0xff]
        %v398 = vld [vmem:[%s264 + $0x29c] sm:$0xff]
        %v399 = vld [vmem:[%s264 + $0x2a4] sm:$0xff]
        %v400 = vld [vmem:[%s264 + $0x2ac] sm:$0xff]
        %v401 = vld [vmem:[%s264 + $0x2b4] sm:$0xff]
        %v402 = vld [vmem:[%s264 + $0x2bc] sm:$0xff]
        %v403 = vld [vmem:[%s264 + $0x2c4] sm:$0xff]
        %v404 = vld [vmem:[%s264 + $0x2cc] sm:$0xff]
        %v405 = vld [vmem:[%s264 + $0x2d4] sm:$0xff]
        %v406 = vld [vmem:[%s264 + $0x2dc] sm:$0xff]
        %v407 = vld [vmem:[%s264 + $0x2e4] sm:$0xff]
        %v408 = vld [vmem:[%s264 + $0x2ec] sm:$0xff]
        %v409 = vld [vmem:[%s264 + $0x2f4] sm:$0xff]
        %v410 = vld [vmem:[%s264 + $0x2fc] sm:$0xff]
        %v411 = vld [vmem:[%s264 + $0x304] sm:$0xff]
        %v412 = vld [vmem:[%s264 + $0x30c] sm:$0xf]
        %v513 = vcombine.low %v313, %v338
        %v514 = vcombine.high %v313, %v338
        %v515 = vcombine.low %v363, %v388
        %v516 = vcombine.high %v363, %v388
        %v518 = vunpack.c.l.s4 1983009808
        %v519 = vunpack.c.0.s8 %v518
        %v520 = vlaneseq
        %v521 = vshrl.u32 %v520, 7
        %v522 = vsub.s32 %v519, %v521
        %v523 = vrot.slane %v513, %v522
        %v525 = vunpack.c.l.s4 1983009808
        %v526 = vunpack.c.0.s8 %v525
        %v527 = vlaneseq
        %v528 = vshrl.u32 %v527, 7
        %v529 = vsub.s32 %v526, %v528
        %v530 = vrot.slane %v514, %v529
        %v532 = vunpack.c.l.s4 1983009808
        %v533 = vunpack.c.0.s8 %v532
        %v534 = vlaneseq
        %v535 = vshrl.u32 %v534, 7
        %v536 = vsub.s32 %v533, %v535
        %v537 = vrot.slane %v515, %v536
        %v539 = vunpack.c.l.s4 1983009808
        %v540 = vunpack.c.0.s8 %v539
        %v541 = vlaneseq
        %v542 = vshrl.u32 %v541, 7
        %v543 = vsub.s32 %v540, %v542
        %v544 = vrot.slane %v516, %v543
        %v545 = vcombine.low %v523, %v537
        %v546 = vcombine.high %v523, %v537
        %v547 = vcombine.low %v530, %v544
        %v548 = vcombine.high %v530, %v544
        %v549 = vcombine.low %v314, %v339
        %v550 = vcombine.high %v314, %v339
        %v551 = vcombine.low %v364, %v389
        %v552 = vcombine.high %v364, %v389
        %v554 = vunpack.c.l.s4 1983009808
        %v555 = vunpack.c.0.s8 %v554
        %v556 = vlaneseq
        %v557 = vshrl.u32 %v556, 7
        %v558 = vsub.s32 %v555, %v557
        %v559 = vrot.slane %v549, %v558
        %v561 = vunpack.c.l.s4 1983009808
        %v562 = vunpack.c.0.s8 %v561
        %v563 = vlaneseq
        %v564 = vshrl.u32 %v563, 7
        %v565 = vsub.s32 %v562, %v564
        %v566 = vrot.slane %v550, %v565
        %v568 = vunpack.c.l.s4 1983009808
        %v569 = vunpack.c.0.s8 %v568
        %v570 = vlaneseq
        %v571 = vshrl.u32 %v570, 7
        %v572 = vsub.s32 %v569, %v571
        %v573 = vrot.slane %v551, %v572
        %v575 = vunpack.c.l.s4 1983009808
        %v576 = vunpack.c.0.s8 %v575
        %v577 = vlaneseq
        %v578 = vshrl.u32 %v577, 7
        %v579 = vsub.s32 %v576, %v578
        %v580 = vrot.slane %v552, %v579
        %v581 = vcombine.low %v559, %v573
        %v582 = vcombine.high %v559, %v573
        %v583 = vcombine.low %v566, %v580
        %v584 = vcombine.high %v566, %v580
        %v585 = vcombine.low %v315, %v340
        %v586 = vcombine.high %v315, %v340
        %v587 = vcombine.low %v365, %v390
        %v588 = vcombine.high %v365, %v390
        %v590 = vunpack.c.l.s4 1983009808
        %v591 = vunpack.c.0.s8 %v590
        %v592 = vlaneseq
        %v593 = vshrl.u32 %v592, 7
        %v594 = vsub.s32 %v591, %v593
        %v595 = vrot.slane %v585, %v594
        %v597 = vunpack.c.l.s4 1983009808
        %v598 = vunpack.c.0.s8 %v597
        %v599 = vlaneseq
        %v600 = vshrl.u32 %v599, 7
        %v601 = vsub.s32 %v598, %v600
        %v602 = vrot.slane %v586, %v601
        %v604 = vunpack.c.l.s4 1983009808
        %v605 = vunpack.c.0.s8 %v604
        %v606 = vlaneseq
        %v607 = vshrl.u32 %v606, 7
        %v608 = vsub.s32 %v605, %v607
        %v609 = vrot.slane %v587, %v608
        %v611 = vunpack.c.l.s4 1983009808
        %v612 = vunpack.c.0.s8 %v611
        %v613 = vlaneseq
        %v614 = vshrl.u32 %v613, 7
        %v615 = vsub.s32 %v612, %v614
        %v616 = vrot.slane %v588, %v615
        %v617 = vcombine.low %v595, %v609
        %v618 = vcombine.high %v595, %v609
        %v619 = vcombine.low %v602, %v616
        %v620 = vcombine.high %v602, %v616
        %v621 = vcombine.low %v316, %v341
        %v622 = vcombine.high %v316, %v341
        %v623 = vcombine.low %v366, %v391
        %v624 = vcombine.high %v366, %v391
        %v626 = vunpack.c.l.s4 1983009808
        %v627 = vunpack.c.0.s8 %v626
        %v628 = vlaneseq
        %v629 = vshrl.u32 %v628, 7
        %v630 = vsub.s32 %v627, %v629
        %v631 = vrot.slane %v621, %v630
        %v633 = vunpack.c.l.s4 1983009808
        %v634 = vunpack.c.0.s8 %v633
        %v635 = vlaneseq
        %v636 = vshrl.u32 %v635, 7
        %v637 = vsub.s32 %v634, %v636
        %v638 = vrot.slane %v622, %v637
        %v640 = vunpack.c.l.s4 1983009808
        %v641 = vunpack.c.0.s8 %v640
        %v642 = vlaneseq
        %v643 = vshrl.u32 %v642, 7
        %v644 = vsub.s32 %v641, %v643
        %v645 = vrot.slane %v623, %v644
        %v647 = vunpack.c.l.s4 1983009808
        %v648 = vunpack.c.0.s8 %v647
        %v649 = vlaneseq
        %v650 = vshrl.u32 %v649, 7
        %v651 = vsub.s32 %v648, %v650
        %v652 = vrot.slane %v624, %v651
        %v653 = vcombine.low %v631, %v645
        %v654 = vcombine.high %v631, %v645
        %v655 = vcombine.low %v638, %v652
        %v656 = vcombine.high %v638, %v652
        %v657 = vcombine.low %v317, %v342
        %v658 = vcombine.high %v317, %v342
        %v659 = vcombine.low %v367, %v392
        %v660 = vcombine.high %v367, %v392
        %v662 = vunpack.c.l.s4 1983009808
        %v663 = vunpack.c.0.s8 %v662
        %v664 = vlaneseq
        %v665 = vshrl.u32 %v664, 7
        %v666 = vsub.s32 %v663, %v665
        %v667 = vrot.slane %v657, %v666
        %v669 = vunpack.c.l.s4 1983009808
        %v670 = vunpack.c.0.s8 %v669
        %v671 = vlaneseq
        %v672 = vshrl.u32 %v671, 7
        %v673 = vsub.s32 %v670, %v672
        %v674 = vrot.slane %v658, %v673
        %v676 = vunpack.c.l.s4 1983009808
        %v677 = vunpack.c.0.s8 %v676
        %v678 = vlaneseq
        %v679 = vshrl.u32 %v678, 7
        %v680 = vsub.s32 %v677, %v679
        %v681 = vrot.slane %v659, %v680
        %v683 = vunpack.c.l.s4 1983009808
        %v684 = vunpack.c.0.s8 %v683
        %v685 = vlaneseq
        %v686 = vshrl.u32 %v685, 7
        %v687 = vsub.s32 %v684, %v686
        %v688 = vrot.slane %v660, %v687
        %v689 = vcombine.low %v667, %v681
        %v690 = vcombine.high %v667, %v681
        %v691 = vcombine.low %v674, %v688
        %v692 = vcombine.high %v674, %v688
        %v693 = vcombine.low %v318, %v343
        %v694 = vcombine.high %v318, %v343
        %v695 = vcombine.low %v368, %v393
        %v696 = vcombine.high %v368, %v393
        %v698 = vunpack.c.l.s4 1983009808
        %v699 = vunpack.c.0.s8 %v698
        %v700 = vlaneseq
        %v701 = vshrl.u32 %v700, 7
        %v702 = vsub.s32 %v699, %v701
        %v703 = vrot.slane %v693, %v702
        %v705 = vunpack.c.l.s4 1983009808
        %v706 = vunpack.c.0.s8 %v705
        %v707 = vlaneseq
        %v708 = vshrl.u32 %v707, 7
        %v709 = vsub.s32 %v706, %v708
        %v710 = vrot.slane %v694, %v709
        %v712 = vunpack.c.l.s4 1983009808
        %v713 = vunpack.c.0.s8 %v712
        %v714 = vlaneseq
        %v715 = vshrl.u32 %v714, 7
        %v716 = vsub.s32 %v713, %v715
        %v717 = vrot.slane %v695, %v716
        %v719 = vunpack.c.l.s4 1983009808
        %v720 = vunpack.c.0.s8 %v719
        %v721 = vlaneseq
        %v722 = vshrl.u32 %v721, 7
        %v723 = vsub.s32 %v720, %v722
        %v724 = vrot.slane %v696, %v723
        %v725 = vcombine.low %v703, %v717
        %v726 = vcombine.high %v703, %v717
        %v727 = vcombine.low %v710, %v724
        %v728 = vcombine.high %v710, %v724
        %v729 = vcombine.low %v319, %v344
        %v730 = vcombine.high %v319, %v344
        %v731 = vcombine.low %v369, %v394
        %v732 = vcombine.high %v369, %v394
        %v734 = vunpack.c.l.s4 1983009808
        %v735 = vunpack.c.0.s8 %v734
        %v736 = vlaneseq
        %v737 = vshrl.u32 %v736, 7
        %v738 = vsub.s32 %v735, %v737
        %v739 = vrot.slane %v729, %v738
        %v741 = vunpack.c.l.s4 1983009808
        %v742 = vunpack.c.0.s8 %v741
        %v743 = vlaneseq
        %v744 = vshrl.u32 %v743, 7
        %v745 = vsub.s32 %v742, %v744
        %v746 = vrot.slane %v730, %v745
        %v748 = vunpack.c.l.s4 1983009808
        %v749 = vunpack.c.0.s8 %v748
        %v750 = vlaneseq
        %v751 = vshrl.u32 %v750, 7
        %v752 = vsub.s32 %v749, %v751
        %v753 = vrot.slane %v731, %v752
        %v755 = vunpack.c.l.s4 1983009808
        %v756 = vunpack.c.0.s8 %v755
        %v757 = vlaneseq
        %v758 = vshrl.u32 %v757, 7
        %v759 = vsub.s32 %v756, %v758
        %v760 = vrot.slane %v732, %v759
        %v761 = vcombine.low %v739, %v753
        %v762 = vcombine.high %v739, %v753
        %v763 = vcombine.low %v746, %v760
        %v764 = vcombine.high %v746, %v760
        %v765 = vcombine.low %v320, %v345
        %v766 = vcombine.high %v320, %v345
        %v767 = vcombine.low %v370, %v395
        %v768 = vcombine.high %v370, %v395
        %v770 = vunpack.c.l.s4 1983009808
        %v771 = vunpack.c.0.s8 %v770
        %v772 = vlaneseq
        %v773 = vshrl.u32 %v772, 7
        %v774 = vsub.s32 %v771, %v773
        %v775 = vrot.slane %v765, %v774
        %v777 = vunpack.c.l.s4 1983009808
        %v778 = vunpack.c.0.s8 %v777
        %v779 = vlaneseq
        %v780 = vshrl.u32 %v779, 7
        %v781 = vsub.s32 %v778, %v780
        %v782 = vrot.slane %v766, %v781
        %v784 = vunpack.c.l.s4 1983009808
        %v785 = vunpack.c.0.s8 %v784
        %v786 = vlaneseq
        %v787 = vshrl.u32 %v786, 7
        %v788 = vsub.s32 %v785, %v787
        %v789 = vrot.slane %v767, %v788
        %v791 = vunpack.c.l.s4 1983009808
        %v792 = vunpack.c.0.s8 %v791
        %v793 = vlaneseq
        %v794 = vshrl.u32 %v793, 7
        %v795 = vsub.s32 %v792, %v794
        %v796 = vrot.slane %v768, %v795
        %v797 = vcombine.low %v775, %v789
        %v798 = vcombine.high %v775, %v789
        %v799 = vcombine.low %v782, %v796
        %v800 = vcombine.high %v782, %v796
        %v801 = vcombine.low %v321, %v346
        %v802 = vcombine.high %v321, %v346
        %v803 = vcombine.low %v371, %v396
        %v804 = vcombine.high %v371, %v396
        %v806 = vunpack.c.l.s4 1983009808
        %v807 = vunpack.c.0.s8 %v806
        %v808 = vlaneseq
        %v809 = vshrl.u32 %v808, 7
        %v810 = vsub.s32 %v807, %v809
        %v811 = vrot.slane %v801, %v810
        %v813 = vunpack.c.l.s4 1983009808
        %v814 = vunpack.c.0.s8 %v813
        %v815 = vlaneseq
        %v816 = vshrl.u32 %v815, 7
        %v817 = vsub.s32 %v814, %v816
        %v818 = vrot.slane %v802, %v817
        %v820 = vunpack.c.l.s4 1983009808
        %v821 = vunpack.c.0.s8 %v820
        %v822 = vlaneseq
        %v823 = vshrl.u32 %v822, 7
        %v824 = vsub.s32 %v821, %v823
        %v825 = vrot.slane %v803, %v824
        %v827 = vunpack.c.l.s4 1983009808
        %v828 = vunpack.c.0.s8 %v827
        %v829 = vlaneseq
        %v830 = vshrl.u32 %v829, 7
        %v831 = vsub.s32 %v828, %v830
        %v832 = vrot.slane %v804, %v831
        %v833 = vcombine.low %v811, %v825
        %v834 = vcombine.high %v811, %v825
        %v835 = vcombine.low %v818, %v832
        %v836 = vcombine.high %v818, %v832
        %v837 = vcombine.low %v322, %v347
        %v838 = vcombine.high %v322, %v347
        %v839 = vcombine.low %v372, %v397
        %v840 = vcombine.high %v372, %v397
        %v842 = vunpack.c.l.s4 1983009808
        %v843 = vunpack.c.0.s8 %v842
        %v844 = vlaneseq
        %v845 = vshrl.u32 %v844, 7
        %v846 = vsub.s32 %v843, %v845
        %v847 = vrot.slane %v837, %v846
        %v849 = vunpack.c.l.s4 1983009808
        %v850 = vunpack.c.0.s8 %v849
        %v851 = vlaneseq
        %v852 = vshrl.u32 %v851, 7
        %v853 = vsub.s32 %v850, %v852
        %v854 = vrot.slane %v838, %v853
        %v856 = vunpack.c.l.s4 1983009808
        %v857 = vunpack.c.0.s8 %v856
        %v858 = vlaneseq
        %v859 = vshrl.u32 %v858, 7
        %v860 = vsub.s32 %v857, %v859
        %v861 = vrot.slane %v839, %v860
        %v863 = vunpack.c.l.s4 1983009808
        %v864 = vunpack.c.0.s8 %v863
        %v865 = vlaneseq
        %v866 = vshrl.u32 %v865, 7
        %v867 = vsub.s32 %v864, %v866
        %v868 = vrot.slane %v840, %v867
        %v869 = vcombine.low %v847, %v861
        %v870 = vcombine.high %v847, %v861
        %v871 = vcombine.low %v854, %v868
        %v872 = vcombine.high %v854, %v868
        %v873 = vcombine.low %v323, %v348
        %v874 = vcombine.high %v323, %v348
        %v875 = vcombine.low %v373, %v398
        %v876 = vcombine.high %v373, %v398
        %v878 = vunpack.c.l.s4 1983009808
        %v879 = vunpack.c.0.s8 %v878
        %v880 = vlaneseq
        %v881 = vshrl.u32 %v880, 7
        %v882 = vsub.s32 %v879, %v881
        %v883 = vrot.slane %v873, %v882
        %v885 = vunpack.c.l.s4 1983009808
        %v886 = vunpack.c.0.s8 %v885
        %v887 = vlaneseq
        %v888 = vshrl.u32 %v887, 7
        %v889 = vsub.s32 %v886, %v888
        %v890 = vrot.slane %v874, %v889
        %v892 = vunpack.c.l.s4 1983009808
        %v893 = vunpack.c.0.s8 %v892
        %v894 = vlaneseq
        %v895 = vshrl.u32 %v894, 7
        %v896 = vsub.s32 %v893, %v895
        %v897 = vrot.slane %v875, %v896
        %v899 = vunpack.c.l.s4 1983009808
        %v900 = vunpack.c.0.s8 %v899
        %v901 = vlaneseq
        %v902 = vshrl.u32 %v901, 7
        %v903 = vsub.s32 %v900, %v902
        %v904 = vrot.slane %v876, %v903
        %v905 = vcombine.low %v883, %v897
        %v906 = vcombine.high %v883, %v897
        %v907 = vcombine.low %v890, %v904
        %v908 = vcombine.high %v890, %v904
        %v909 = vcombine.low %v324, %v349
        %v910 = vcombine.high %v324, %v349
        %v911 = vcombine.low %v374, %v399
        %v912 = vcombine.high %v374, %v399
        %v914 = vunpack.c.l.s4 1983009808
        %v915 = vunpack.c.0.s8 %v914
        %v916 = vlaneseq
        %v917 = vshrl.u32 %v916, 7
        %v918 = vsub.s32 %v915, %v917
        %v919 = vrot.slane %v909, %v918
        %v921 = vunpack.c.l.s4 1983009808
        %v922 = vunpack.c.0.s8 %v921
        %v923 = vlaneseq
        %v924 = vshrl.u32 %v923, 7
        %v925 = vsub.s32 %v922, %v924
        %v926 = vrot.slane %v910, %v925
        %v928 = vunpack.c.l.s4 1983009808
        %v929 = vunpack.c.0.s8 %v928
        %v930 = vlaneseq
        %v931 = vshrl.u32 %v930, 7
        %v932 = vsub.s32 %v929, %v931
        %v933 = vrot.slane %v911, %v932
        %v935 = vunpack.c.l.s4 1983009808
        %v936 = vunpack.c.0.s8 %v935
        %v937 = vlaneseq
        %v938 = vshrl.u32 %v937, 7
        %v939 = vsub.s32 %v936, %v938
        %v940 = vrot.slane %v912, %v939
        %v941 = vcombine.low %v919, %v933
        %v942 = vcombine.high %v919, %v933
        %v943 = vcombine.low %v926, %v940
        %v944 = vcombine.high %v926, %v940
        %v945 = vcombine.low %v325, %v350
        %v946 = vcombine.high %v325, %v350
        %v947 = vcombine.low %v375, %v400
        %v948 = vcombine.high %v375, %v400
        %v950 = vunpack.c.l.s4 1983009808
        %v951 = vunpack.c.0.s8 %v950
        %v952 = vlaneseq
        %v953 = vshrl.u32 %v952, 7
        %v954 = vsub.s32 %v951, %v953
        %v955 = vrot.slane %v945, %v954
        %v957 = vunpack.c.l.s4 1983009808
        %v958 = vunpack.c.0.s8 %v957
        %v959 = vlaneseq
        %v960 = vshrl.u32 %v959, 7
        %v961 = vsub.s32 %v958, %v960
        %v962 = vrot.slane %v946, %v961
        %v964 = vunpack.c.l.s4 1983009808
        %v965 = vunpack.c.0.s8 %v964
        %v966 = vlaneseq
        %v967 = vshrl.u32 %v966, 7
        %v968 = vsub.s32 %v965, %v967
        %v969 = vrot.slane %v947, %v968
        %v971 = vunpack.c.l.s4 1983009808
        %v972 = vunpack.c.0.s8 %v971
        %v973 = vlaneseq
        %v974 = vshrl.u32 %v973, 7
        %v975 = vsub.s32 %v972, %v974
        %v976 = vrot.slane %v948, %v975
        %v977 = vcombine.low %v955, %v969
        %v978 = vcombine.high %v955, %v969
        %v979 = vcombine.low %v962, %v976
        %v980 = vcombine.high %v962, %v976
        %v981 = vcombine.low %v326, %v351
        %v982 = vcombine.high %v326, %v351
        %v983 = vcombine.low %v376, %v401
        %v984 = vcombine.high %v376, %v401
        %v986 = vunpack.c.l.s4 1983009808
        %v987 = vunpack.c.0.s8 %v986
        %v988 = vlaneseq
        %v989 = vshrl.u32 %v988, 7
        %v990 = vsub.s32 %v987, %v989
        %v991 = vrot.slane %v981, %v990
        %v993 = vunpack.c.l.s4 1983009808
        %v994 = vunpack.c.0.s8 %v993
        %v995 = vlaneseq
        %v996 = vshrl.u32 %v995, 7
        %v997 = vsub.s32 %v994, %v996
        %v998 = vrot.slane %v982, %v997
        %v1000 = vunpack.c.l.s4 1983009808
        %v1001 = vunpack.c.0.s8 %v1000
        %v1002 = vlaneseq
        %v1003 = vshrl.u32 %v1002, 7
        %v1004 = vsub.s32 %v1001, %v1003
        %v1005 = vrot.slane %v983, %v1004
        %v1007 = vunpack.c.l.s4 1983009808
        %v1008 = vunpack.c.0.s8 %v1007
        %v1009 = vlaneseq
        %v1010 = vshrl.u32 %v1009, 7
        %v1011 = vsub.s32 %v1008, %v1010
        %v1012 = vrot.slane %v984, %v1011
        %v1013 = vcombine.low %v991, %v1005
        %v1014 = vcombine.high %v991, %v1005
        %v1015 = vcombine.low %v998, %v1012
        %v1016 = vcombine.high %v998, %v1012
        %v1017 = vcombine.low %v327, %v352
        %v1018 = vcombine.high %v327, %v352
        %v1019 = vcombine.low %v377, %v402
        %v1020 = vcombine.high %v377, %v402
        %v1022 = vunpack.c.l.s4 1983009808
        %v1023 = vunpack.c.0.s8 %v1022
        %v1024 = vlaneseq
        %v1025 = vshrl.u32 %v1024, 7
        %v1026 = vsub.s32 %v1023, %v1025
        %v1027 = vrot.slane %v1017, %v1026
        %v1029 = vunpack.c.l.s4 1983009808
        %v1030 = vunpack.c.0.s8 %v1029
        %v1031 = vlaneseq
        %v1032 = vshrl.u32 %v1031, 7
        %v1033 = vsub.s32 %v1030, %v1032
        %v1034 = vrot.slane %v1018, %v1033
        %v1036 = vunpack.c.l.s4 1983009808
        %v1037 = vunpack.c.0.s8 %v1036
        %v1038 = vlaneseq
        %v1039 = vshrl.u32 %v1038, 7
        %v1040 = vsub.s32 %v1037, %v1039
        %v1041 = vrot.slane %v1019, %v1040
        %v1043 = vunpack.c.l.s4 1983009808
        %v1044 = vunpack.c.0.s8 %v1043
        %v1045 = vlaneseq
        %v1046 = vshrl.u32 %v1045, 7
        %v1047 = vsub.s32 %v1044, %v1046
        %v1048 = vrot.slane %v1020, %v1047
        %v1049 = vcombine.low %v1027, %v1041
        %v1050 = vcombine.high %v1027, %v1041
        %v1051 = vcombine.low %v1034, %v1048
        %v1052 = vcombine.high %v1034, %v1048
        %v1053 = vcombine.low %v328, %v353
        %v1054 = vcombine.high %v328, %v353
        %v1055 = vcombine.low %v378, %v403
        %v1056 = vcombine.high %v378, %v403
        %v1058 = vunpack.c.l.s4 1983009808
        %v1059 = vunpack.c.0.s8 %v1058
        %v1060 = vlaneseq
        %v1061 = vshrl.u32 %v1060, 7
        %v1062 = vsub.s32 %v1059, %v1061
        %v1063 = vrot.slane %v1053, %v1062
        %v1065 = vunpack.c.l.s4 1983009808
        %v1066 = vunpack.c.0.s8 %v1065
        %v1067 = vlaneseq
        %v1068 = vshrl.u32 %v1067, 7
        %v1069 = vsub.s32 %v1066, %v1068
        %v1070 = vrot.slane %v1054, %v1069
        %v1072 = vunpack.c.l.s4 1983009808
        %v1073 = vunpack.c.0.s8 %v1072
        %v1074 = vlaneseq
        %v1075 = vshrl.u32 %v1074, 7
        %v1076 = vsub.s32 %v1073, %v1075
        %v1077 = vrot.slane %v1055, %v1076
        %v1079 = vunpack.c.l.s4 1983009808
        %v1080 = vunpack.c.0.s8 %v1079
        %v1081 = vlaneseq
        %v1082 = vshrl.u32 %v1081, 7
        %v1083 = vsub.s32 %v1080, %v1082
        %v1084 = vrot.slane %v1056, %v1083
        %v1085 = vcombine.low %v1063, %v1077
        %v1086 = vcombine.high %v1063, %v1077
        %v1087 = vcombine.low %v1070, %v1084
        %v1088 = vcombine.high %v1070, %v1084
        %v1089 = vcombine.low %v329, %v354
        %v1090 = vcombine.high %v329, %v354
        %v1091 = vcombine.low %v379, %v404
        %v1092 = vcombine.high %v379, %v404
        %v1094 = vunpack.c.l.s4 1983009808
        %v1095 = vunpack.c.0.s8 %v1094
        %v1096 = vlaneseq
        %v1097 = vshrl.u32 %v1096, 7
        %v1098 = vsub.s32 %v1095, %v1097
        %v1099 = vrot.slane %v1089, %v1098
        %v1101 = vunpack.c.l.s4 1983009808
        %v1102 = vunpack.c.0.s8 %v1101
        %v1103 = vlaneseq
        %v1104 = vshrl.u32 %v1103, 7
        %v1105 = vsub.s32 %v1102, %v1104
        %v1106 = vrot.slane %v1090, %v1105
        %v1108 = vunpack.c.l.s4 1983009808
        %v1109 = vunpack.c.0.s8 %v1108
        %v1110 = vlaneseq
        %v1111 = vshrl.u32 %v1110, 7
        %v1112 = vsub.s32 %v1109, %v1111
        %v1113 = vrot.slane %v1091, %v1112
        %v1115 = vunpack.c.l.s4 1983009808
        %v1116 = vunpack.c.0.s8 %v1115
        %v1117 = vlaneseq
        %v1118 = vshrl.u32 %v1117, 7
        %v1119 = vsub.s32 %v1116, %v1118
        %v1120 = vrot.slane %v1092, %v1119
        %v1121 = vcombine.low %v1099, %v1113
        %v1122 = vcombine.high %v1099, %v1113
        %v1123 = vcombine.low %v1106, %v1120
        %v1124 = vcombine.high %v1106, %v1120
        %v1125 = vcombine.low %v330, %v355
        %v1126 = vcombine.high %v330, %v355
        %v1127 = vcombine.low %v380, %v405
        %v1128 = vcombine.high %v380, %v405
        %v1130 = vunpack.c.l.s4 1983009808
        %v1131 = vunpack.c.0.s8 %v1130
        %v1132 = vlaneseq
        %v1133 = vshrl.u32 %v1132, 7
        %v1134 = vsub.s32 %v1131, %v1133
        %v1135 = vrot.slane %v1125, %v1134
        %v1137 = vunpack.c.l.s4 1983009808
        %v1138 = vunpack.c.0.s8 %v1137
        %v1139 = vlaneseq
        %v1140 = vshrl.u32 %v1139, 7
        %v1141 = vsub.s32 %v1138, %v1140
        %v1142 = vrot.slane %v1126, %v1141
        %v1144 = vunpack.c.l.s4 1983009808
        %v1145 = vunpack.c.0.s8 %v1144
        %v1146 = vlaneseq
        %v1147 = vshrl.u32 %v1146, 7
        %v1148 = vsub.s32 %v1145, %v1147
        %v1149 = vrot.slane %v1127, %v1148
        %v1151 = vunpack.c.l.s4 1983009808
        %v1152 = vunpack.c.0.s8 %v1151
        %v1153 = vlaneseq
        %v1154 = vshrl.u32 %v1153, 7
        %v1155 = vsub.s32 %v1152, %v1154
        %v1156 = vrot.slane %v1128, %v1155
        %v1157 = vcombine.low %v1135, %v1149
        %v1158 = vcombine.high %v1135, %v1149
        %v1159 = vcombine.low %v1142, %v1156
        %v1160 = vcombine.high %v1142, %v1156
        %v1161 = vcombine.low %v331, %v356
        %v1162 = vcombine.high %v331, %v356
        %v1163 = vcombine.low %v381, %v406
        %v1164 = vcombine.high %v381, %v406
        %v1166 = vunpack.c.l.s4 1983009808
        %v1167 = vunpack.c.0.s8 %v1166
        %v1168 = vlaneseq
        %v1169 = vshrl.u32 %v1168, 7
        %v1170 = vsub.s32 %v1167, %v1169
        %v1171 = vrot.slane %v1161, %v1170
        %v1173 = vunpack.c.l.s4 1983009808
        %v1174 = vunpack.c.0.s8 %v1173
        %v1175 = vlaneseq
        %v1176 = vshrl.u32 %v1175, 7
        %v1177 = vsub.s32 %v1174, %v1176
        %v1178 = vrot.slane %v1162, %v1177
        %v1180 = vunpack.c.l.s4 1983009808
        %v1181 = vunpack.c.0.s8 %v1180
        %v1182 = vlaneseq
        %v1183 = vshrl.u32 %v1182, 7
        %v1184 = vsub.s32 %v1181, %v1183
        %v1185 = vrot.slane %v1163, %v1184
        %v1187 = vunpack.c.l.s4 1983009808
        %v1188 = vunpack.c.0.s8 %v1187
        %v1189 = vlaneseq
        %v1190 = vshrl.u32 %v1189, 7
        %v1191 = vsub.s32 %v1188, %v1190
        %v1192 = vrot.slane %v1164, %v1191
        %v1193 = vcombine.low %v1171, %v1185
        %v1194 = vcombine.high %v1171, %v1185
        %v1195 = vcombine.low %v1178, %v1192
        %v1196 = vcombine.high %v1178, %v1192
        %v1197 = vcombine.low %v332, %v357
        %v1198 = vcombine.high %v332, %v357
        %v1199 = vcombine.low %v382, %v407
        %v1200 = vcombine.high %v382, %v407
        %v1202 = vunpack.c.l.s4 1983009808
        %v1203 = vunpack.c.0.s8 %v1202
        %v1204 = vlaneseq
        %v1205 = vshrl.u32 %v1204, 7
        %v1206 = vsub.s32 %v1203, %v1205
        %v1207 = vrot.slane %v1197, %v1206
        %v1209 = vunpack.c.l.s4 1983009808
        %v1210 = vunpack.c.0.s8 %v1209
        %v1211 = vlaneseq
        %v1212 = vshrl.u32 %v1211, 7
        %v1213 = vsub.s32 %v1210, %v1212
        %v1214 = vrot.slane %v1198, %v1213
        %v1216 = vunpack.c.l.s4 1983009808
        %v1217 = vunpack.c.0.s8 %v1216
        %v1218 = vlaneseq
        %v1219 = vshrl.u32 %v1218, 7
        %v1220 = vsub.s32 %v1217, %v1219
        %v1221 = vrot.slane %v1199, %v1220
        %v1223 = vunpack.c.l.s4 1983009808
        %v1224 = vunpack.c.0.s8 %v1223
        %v1225 = vlaneseq
        %v1226 = vshrl.u32 %v1225, 7
        %v1227 = vsub.s32 %v1224, %v1226
        %v1228 = vrot.slane %v1200, %v1227
        %v1229 = vcombine.low %v1207, %v1221
        %v1230 = vcombine.high %v1207, %v1221
        %v1231 = vcombine.low %v1214, %v1228
        %v1232 = vcombine.high %v1214, %v1228
        %v1233 = vcombine.low %v333, %v358
        %v1234 = vcombine.high %v333, %v358
        %v1235 = vcombine.low %v383, %v408
        %v1236 = vcombine.high %v383, %v408
        %v1238 = vunpack.c.l.s4 1983009808
        %v1239 = vunpack.c.0.s8 %v1238
        %v1240 = vlaneseq
        %v1241 = vshrl.u32 %v1240, 7
        %v1242 = vsub.s32 %v1239, %v1241
        %v1243 = vrot.slane %v1233, %v1242
        %v1245 = vunpack.c.l.s4 1983009808
        %v1246 = vunpack.c.0.s8 %v1245
        %v1247 = vlaneseq
        %v1248 = vshrl.u32 %v1247, 7
        %v1249 = vsub.s32 %v1246, %v1248
        %v1250 = vrot.slane %v1234, %v1249
        %v1252 = vunpack.c.l.s4 1983009808
        %v1253 = vunpack.c.0.s8 %v1252
        %v1254 = vlaneseq
        %v1255 = vshrl.u32 %v1254, 7
        %v1256 = vsub.s32 %v1253, %v1255
        %v1257 = vrot.slane %v1235, %v1256
        %v1259 = vunpack.c.l.s4 1983009808
        %v1260 = vunpack.c.0.s8 %v1259
        %v1261 = vlaneseq
        %v1262 = vshrl.u32 %v1261, 7
        %v1263 = vsub.s32 %v1260, %v1262
        %v1264 = vrot.slane %v1236, %v1263
        %v1265 = vcombine.low %v1243, %v1257
        %v1266 = vcombine.high %v1243, %v1257
        %v1267 = vcombine.low %v1250, %v1264
        %v1268 = vcombine.high %v1250, %v1264
        %v1269 = vcombine.low %v334, %v359
        %v1270 = vcombine.high %v334, %v359
        %v1271 = vcombine.low %v384, %v409
        %v1272 = vcombine.high %v384, %v409
        %v1274 = vunpack.c.l.s4 1983009808
        %v1275 = vunpack.c.0.s8 %v1274
        %v1276 = vlaneseq
        %v1277 = vshrl.u32 %v1276, 7
        %v1278 = vsub.s32 %v1275, %v1277
        %v1279 = vrot.slane %v1269, %v1278
        %v1281 = vunpack.c.l.s4 1983009808
        %v1282 = vunpack.c.0.s8 %v1281
        %v1283 = vlaneseq
        %v1284 = vshrl.u32 %v1283, 7
        %v1285 = vsub.s32 %v1282, %v1284
        %v1286 = vrot.slane %v1270, %v1285
        %v1288 = vunpack.c.l.s4 1983009808
        %v1289 = vunpack.c.0.s8 %v1288
        %v1290 = vlaneseq
        %v1291 = vshrl.u32 %v1290, 7
        %v1292 = vsub.s32 %v1289, %v1291
        %v1293 = vrot.slane %v1271, %v1292
        %v1295 = vunpack.c.l.s4 1983009808
        %v1296 = vunpack.c.0.s8 %v1295
        %v1297 = vlaneseq
        %v1298 = vshrl.u32 %v1297, 7
        %v1299 = vsub.s32 %v1296, %v1298
        %v1300 = vrot.slane %v1272, %v1299
        %v1301 = vcombine.low %v1279, %v1293
        %v1302 = vcombine.high %v1279, %v1293
        %v1303 = vcombine.low %v1286, %v1300
        %v1304 = vcombine.high %v1286, %v1300
        %v1305 = vcombine.low %v335, %v360
        %v1306 = vcombine.high %v335, %v360
        %v1307 = vcombine.low %v385, %v410
        %v1308 = vcombine.high %v385, %v410
        %v1310 = vunpack.c.l.s4 1983009808
        %v1311 = vunpack.c.0.s8 %v1310
        %v1312 = vlaneseq
        %v1313 = vshrl.u32 %v1312, 7
        %v1314 = vsub.s32 %v1311, %v1313
        %v1315 = vrot.slane %v1305, %v1314
        %v1317 = vunpack.c.l.s4 1983009808
        %v1318 = vunpack.c.0.s8 %v1317
        %v1319 = vlaneseq
        %v1320 = vshrl.u32 %v1319, 7
        %v1321 = vsub.s32 %v1318, %v1320
        %v1322 = vrot.slane %v1306, %v1321
        %v1324 = vunpack.c.l.s4 1983009808
        %v1325 = vunpack.c.0.s8 %v1324
        %v1326 = vlaneseq
        %v1327 = vshrl.u32 %v1326, 7
        %v1328 = vsub.s32 %v1325, %v1327
        %v1329 = vrot.slane %v1307, %v1328
        %v1331 = vunpack.c.l.s4 1983009808
        %v1332 = vunpack.c.0.s8 %v1331
        %v1333 = vlaneseq
        %v1334 = vshrl.u32 %v1333, 7
        %v1335 = vsub.s32 %v1332, %v1334
        %v1336 = vrot.slane %v1308, %v1335
        %v1337 = vcombine.low %v1315, %v1329
        %v1338 = vcombine.high %v1315, %v1329
        %v1339 = vcombine.low %v1322, %v1336
        %v1340 = vcombine.high %v1322, %v1336
        %v1341 = vcombine.low %v336, %v361
        %v1342 = vcombine.high %v336, %v361
        %v1343 = vcombine.low %v386, %v411
        %v1344 = vcombine.high %v386, %v411
        %v1346 = vunpack.c.l.s4 1983009808
        %v1347 = vunpack.c.0.s8 %v1346
        %v1348 = vlaneseq
        %v1349 = vshrl.u32 %v1348, 7
        %v1350 = vsub.s32 %v1347, %v1349
        %v1351 = vrot.slane %v1341, %v1350
        %v1353 = vunpack.c.l.s4 1983009808
        %v1354 = vunpack.c.0.s8 %v1353
        %v1355 = vlaneseq
        %v1356 = vshrl.u32 %v1355, 7
        %v1357 = vsub.s32 %v1354, %v1356
        %v1358 = vrot.slane %v1342, %v1357
        %v1360 = vunpack.c.l.s4 1983009808
        %v1361 = vunpack.c.0.s8 %v1360
        %v1362 = vlaneseq
        %v1363 = vshrl.u32 %v1362, 7
        %v1364 = vsub.s32 %v1361, %v1363
        %v1365 = vrot.slane %v1343, %v1364
        %v1367 = vunpack.c.l.s4 1983009808
        %v1368 = vunpack.c.0.s8 %v1367
        %v1369 = vlaneseq
        %v1370 = vshrl.u32 %v1369, 7
        %v1371 = vsub.s32 %v1368, %v1370
        %v1372 = vrot.slane %v1344, %v1371
        %v1373 = vcombine.low %v1351, %v1365
        %v1374 = vcombine.high %v1351, %v1365
        %v1375 = vcombine.low %v1358, %v1372
        %v1376 = vcombine.high %v1358, %v1372
        %v1377 = vcombine.low %v337, %v362
        %v1378 = vcombine.low %v387, %v412
        %v1380 = vunpack.c.l.s4 1983009808
        %v1381 = vunpack.c.0.s8 %v1380
        %v1382 = vlaneseq
        %v1383 = vshrl.u32 %v1382, 7
        %v1384 = vsub.s32 %v1381, %v1383
        %v1385 = vrot.slane %v1377, %v1384
        %v1387 = vunpack.c.l.s4 1983009808
        %v1388 = vunpack.c.0.s8 %v1387
        %v1389 = vlaneseq
        %v1390 = vshrl.u32 %v1389, 7
        %v1391 = vsub.s32 %v1388, %v1390
        %v1392 = vrot.slane %v1378, %v1391
        %v1393 = vcombine.low %v1385, %v1392
        %v1394 = vcombine.high %v1385, %v1392
        %v1493 = vpack.c.bf16 %v545, %v545
        %v1494 = vpack.c.bf16 %v546, %v546
        %v1495 = vpack.c.bf16 %v547, %v547
        %v1496 = vpack.c.bf16 %v548, %v548
        %v1497 = vpack.c.bf16 %v581, %v581
        %v1498 = vpack.c.bf16 %v582, %v582
        %v1499 = vpack.c.bf16 %v583, %v583
        %v1500 = vpack.c.bf16 %v584, %v584
        %v1501 = vpack.c.bf16 %v617, %v617
        %v1502 = vpack.c.bf16 %v618, %v618
        %v1503 = vpack.c.bf16 %v619, %v619
        %v1504 = vpack.c.bf16 %v620, %v620
        %v1505 = vpack.c.bf16 %v653, %v653
        %v1506 = vpack.c.bf16 %v654, %v654
        %v1507 = vpack.c.bf16 %v655, %v655
        %v1508 = vpack.c.bf16 %v656, %v656
        %v1509 = vpack.c.bf16 %v689, %v689
        %v1510 = vpack.c.bf16 %v690, %v690
        %v1511 = vpack.c.bf16 %v691, %v691
        %v1512 = vpack.c.bf16 %v692, %v692
        %v1513 = vpack.c.bf16 %v725, %v725
        %v1514 = vpack.c.bf16 %v726, %v726
        %v1515 = vpack.c.bf16 %v727, %v727
        %v1516 = vpack.c.bf16 %v728, %v728
        %v1517 = vpack.c.bf16 %v761, %v761
        %v1518 = vpack.c.bf16 %v762, %v762
        %v1519 = vpack.c.bf16 %v763, %v763
        %v1520 = vpack.c.bf16 %v764, %v764
        %v1521 = vpack.c.bf16 %v797, %v797
        %v1522 = vpack.c.bf16 %v798, %v798
        %v1523 = vpack.c.bf16 %v799, %v799
        %v1524 = vpack.c.bf16 %v800, %v800
        %v1525 = vpack.c.bf16 %v833, %v833
        %v1526 = vpack.c.bf16 %v834, %v834
        %v1527 = vpack.c.bf16 %v835, %v835
        %v1528 = vpack.c.bf16 %v836, %v836
        %v1529 = vpack.c.bf16 %v869, %v869
        %v1530 = vpack.c.bf16 %v870, %v870
        %v1531 = vpack.c.bf16 %v871, %v871
        %v1532 = vpack.c.bf16 %v872, %v872
        %v1533 = vpack.c.bf16 %v905, %v905
        %v1534 = vpack.c.bf16 %v906, %v906
        %v1535 = vpack.c.bf16 %v907, %v907
        %v1536 = vpack.c.bf16 %v908, %v908
        %v1537 = vpack.c.bf16 %v941, %v941
        %v1538 = vpack.c.bf16 %v942, %v942
        %v1539 = vpack.c.bf16 %v943, %v943
        %v1540 = vpack.c.bf16 %v944, %v944
        %v1541 = vpack.c.bf16 %v977, %v977
        %v1542 = vpack.c.bf16 %v978, %v978
        %v1543 = vpack.c.bf16 %v979, %v979
        %v1544 = vpack.c.bf16 %v980, %v980
        %v1545 = vpack.c.bf16 %v1013, %v1013
        %v1546 = vpack.c.bf16 %v1014, %v1014
        %v1547 = vpack.c.bf16 %v1015, %v1015
        %v1548 = vpack.c.bf16 %v1016, %v1016
        %v1549 = vpack.c.bf16 %v1049, %v1049
        %v1550 = vpack.c.bf16 %v1050, %v1050
        %v1551 = vpack.c.bf16 %v1051, %v1051
        %v1552 = vpack.c.bf16 %v1052, %v1052
        %v1553 = vpack.c.bf16 %v1085, %v1085
        %v1554 = vpack.c.bf16 %v1086, %v1086
        %v1555 = vpack.c.bf16 %v1087, %v1087
        %v1556 = vpack.c.bf16 %v1088, %v1088
        %v1557 = vpack.c.bf16 %v1121, %v1121
        %v1558 = vpack.c.bf16 %v1122, %v1122
        %v1559 = vpack.c.bf16 %v1123, %v1123
        %v1560 = vpack.c.bf16 %v1124, %v1124
        %v1561 = vpack.c.bf16 %v1157, %v1157
        %v1562 = vpack.c.bf16 %v1158, %v1158
        %v1563 = vpack.c.bf16 %v1159, %v1159
        %v1564 = vpack.c.bf16 %v1160, %v1160
        %v1565 = vpack.c.bf16 %v1193, %v1193
        %v1566 = vpack.c.bf16 %v1194, %v1194
        %v1567 = vpack.c.bf16 %v1195, %v1195
        %v1568 = vpack.c.bf16 %v1196, %v1196
        %v1569 = vpack.c.bf16 %v1229, %v1229
        %v1570 = vpack.c.bf16 %v1230, %v1230
        %v1571 = vpack.c.bf16 %v1231, %v1231
        %v1572 = vpack.c.bf16 %v1232, %v1232
        %v1573 = vpack.c.bf16 %v1265, %v1265
        %v1574 = vpack.c.bf16 %v1266, %v1266
        %v1575 = vpack.c.bf16 %v1267, %v1267
        %v1576 = vpack.c.bf16 %v1268, %v1268
        %v1577 = vpack.c.bf16 %v1301, %v1301
        %v1578 = vpack.c.bf16 %v1302, %v1302
        %v1579 = vpack.c.bf16 %v1303, %v1303
        %v1580 = vpack.c.bf16 %v1304, %v1304
        %v1581 = vpack.c.bf16 %v1337, %v1337
        %v1582 = vpack.c.bf16 %v1338, %v1338
        %v1583 = vpack.c.bf16 %v1339, %v1339
        %v1584 = vpack.c.bf16 %v1340, %v1340
        %v1585 = vpack.c.bf16 %v1373, %v1373
        %v1586 = vpack.c.bf16 %v1374, %v1374
        %v1587 = vpack.c.bf16 %v1375, %v1375
        %v1588 = vpack.c.bf16 %v1376, %v1376
        %v1589 = vpack.c.bf16 %v1393, %v1393
        %v1590 = vpack.c.bf16 %v1394, %v1394
        %s1591 = sshra.s32 %s312, 3
        %s1592 = sand.u32 %s312, 7
        %s1593 = smul.addr %s1591, 4
        %s1594 = scalar_lea.vmem [#allocation6], %s1593
        %v1595 = vld [vmem:[%s1594] sm:$0xf]
        %v1596 = vld [vmem:[%s1594 + $0x4] sm:$0xf]
        %v1597 = vld [vmem:[%s1594 + $0x8] sm:$0xf]
        %v1598 = vld [vmem:[%s1594 + $0xc] sm:$0xf]
        %v1599 = vld [vmem:[%s1594 + $0x10] sm:$0xf]
        %v1600 = vld [vmem:[%s1594 + $0x14] sm:$0xf]
        %v1601 = vld [vmem:[%s1594 + $0x18] sm:$0xf]
        %v1602 = vld [vmem:[%s1594 + $0x1c] sm:$0xf]
        %v1603 = vld [vmem:[%s1594 + $0x20] sm:$0xf]
        %v1604 = vld [vmem:[%s1594 + $0x24] sm:$0xf]
        %v1605 = vld [vmem:[%s1594 + $0x28] sm:$0xf]
        %v1606 = vld [vmem:[%s1594 + $0x2c] sm:$0xf]
        %v1607 = vld [vmem:[%s1594 + $0x30] sm:$0xf]
        %v1608 = vld [vmem:[%s1594 + $0x34] sm:$0xf]
        %v1609 = vld [vmem:[%s1594 + $0x38] sm:$0xf]
        %v1610 = vld [vmem:[%s1594 + $0x3c] sm:$0xf]
        %v1611 = vld [vmem:[%s1594 + $0x40] sm:$0xf]
        %v1612 = vld [vmem:[%s1594 + $0x44] sm:$0xf]
        %v1613 = vld [vmem:[%s1594 + $0x48] sm:$0xf]
        %v1614 = vld [vmem:[%s1594 + $0x4c] sm:$0xf]
        %v1615 = vld [vmem:[%s1594 + $0x50] sm:$0xf]
        %v1616 = vld [vmem:[%s1594 + $0x54] sm:$0xf]
        %v1617 = vld [vmem:[%s1594 + $0x58] sm:$0xf]
        %v1618 = vld [vmem:[%s1594 + $0x5c] sm:$0xf]
        %v1619 = vld [vmem:[%s1594 + $0x60] sm:$0xf]
        %v1620 = vld [vmem:[%s1594 + $0x64] sm:$0xf]
        %v1621 = vld [vmem:[%s1594 + $0x68] sm:$0xf]
        %v1622 = vld [vmem:[%s1594 + $0x6c] sm:$0xf]
        %v1623 = vld [vmem:[%s1594 + $0x70] sm:$0xf]
        %v1624 = vld [vmem:[%s1594 + $0x74] sm:$0xf]
        %v1625 = vld [vmem:[%s1594 + $0x78] sm:$0xf]
        %v1626 = vld [vmem:[%s1594 + $0x7c] sm:$0xf]
        %v1627 = vld [vmem:[%s1594 + $0x80] sm:$0xf]
        %v1628 = vld [vmem:[%s1594 + $0x84] sm:$0xf]
        %v1629 = vld [vmem:[%s1594 + $0x88] sm:$0xf]
        %v1630 = vld [vmem:[%s1594 + $0x8c] sm:$0xf]
        %v1631 = vld [vmem:[%s1594 + $0x90] sm:$0xf]
        %v1632 = vld [vmem:[%s1594 + $0x94] sm:$0xf]
        %v1633 = vld [vmem:[%s1594 + $0x98] sm:$0xf]
        %v1634 = vld [vmem:[%s1594 + $0x9c] sm:$0xf]
        %v1635 = vld [vmem:[%s1594 + $0xa0] sm:$0xf]
        %v1636 = vld [vmem:[%s1594 + $0xa4] sm:$0xf]
        %v1637 = vld [vmem:[%s1594 + $0xa8] sm:$0xf]
        %v1638 = vld [vmem:[%s1594 + $0xac] sm:$0xf]
        %v1639 = vld [vmem:[%s1594 + $0xb0] sm:$0xf]
        %v1640 = vld [vmem:[%s1594 + $0xb4] sm:$0xf]
        %v1641 = vld [vmem:[%s1594 + $0xb8] sm:$0xf]
        %v1642 = vld [vmem:[%s1594 + $0xbc] sm:$0xf]
        %v1643 = vld [vmem:[%s1594 + $0xc0] sm:$0xf]
        %v1644 = vld [vmem:[%s1594 + $0xc4] sm:$0xf]
        %v1645 = vld [vmem:[%s1594 + $0xc8] sm:$0xf]
        %v1646 = vld [vmem:[%s1594 + $0xcc] sm:$0xf]
        %v1647 = vld [vmem:[%s1594 + $0xd0] sm:$0xf]
        %v1648 = vld [vmem:[%s1594 + $0xd4] sm:$0xf]
        %v1649 = vld [vmem:[%s1594 + $0xd8] sm:$0xf]
        %v1650 = vld [vmem:[%s1594 + $0xdc] sm:$0xf]
        %v1651 = vld [vmem:[%s1594 + $0xe0] sm:$0xf]
        %v1652 = vld [vmem:[%s1594 + $0xe4] sm:$0xf]
        %v1653 = vld [vmem:[%s1594 + $0xe8] sm:$0xf]
        %v1654 = vld [vmem:[%s1594 + $0xec] sm:$0xf]
        %v1655 = vld [vmem:[%s1594 + $0xf0] sm:$0xf]
        %v1656 = vld [vmem:[%s1594 + $0xf4] sm:$0xf]
        %v1657 = vld [vmem:[%s1594 + $0xf8] sm:$0xf]
        %v1658 = vld [vmem:[%s1594 + $0xfc] sm:$0xf]
        %v1659 = vld [vmem:[%s1594 + $0x100] sm:$0xf]
        %v1660 = vld [vmem:[%s1594 + $0x104] sm:$0xf]
        %v1661 = vld [vmem:[%s1594 + $0x108] sm:$0xf]
        %v1662 = vld [vmem:[%s1594 + $0x10c] sm:$0xf]
        %v1663 = vld [vmem:[%s1594 + $0x110] sm:$0xf]
        %v1664 = vld [vmem:[%s1594 + $0x114] sm:$0xf]
        %v1665 = vld [vmem:[%s1594 + $0x118] sm:$0xf]
        %v1666 = vld [vmem:[%s1594 + $0x11c] sm:$0xf]
        %v1667 = vld [vmem:[%s1594 + $0x120] sm:$0xf]
        %v1668 = vld [vmem:[%s1594 + $0x124] sm:$0xf]
        %v1669 = vld [vmem:[%s1594 + $0x128] sm:$0xf]
        %v1670 = vld [vmem:[%s1594 + $0x12c] sm:$0xf]
        %v1671 = vld [vmem:[%s1594 + $0x130] sm:$0xf]
        %v1672 = vld [vmem:[%s1594 + $0x134] sm:$0xf]
        %v1673 = vld [vmem:[%s1594 + $0x138] sm:$0xf]
        %v1674 = vld [vmem:[%s1594 + $0x13c] sm:$0xf]
        %v1675 = vld [vmem:[%s1594 + $0x140] sm:$0xf]
        %v1676 = vld [vmem:[%s1594 + $0x144] sm:$0xf]
        %v1677 = vld [vmem:[%s1594 + $0x148] sm:$0xf]
        %v1678 = vld [vmem:[%s1594 + $0x14c] sm:$0xf]
        %v1679 = vld [vmem:[%s1594 + $0x150] sm:$0xf]
        %v1680 = vld [vmem:[%s1594 + $0x154] sm:$0xf]
        %v1681 = vld [vmem:[%s1594 + $0x158] sm:$0xf]
        %v1682 = vld [vmem:[%s1594 + $0x15c] sm:$0xf]
        %v1683 = vld [vmem:[%s1594 + $0x160] sm:$0xf]
        %v1684 = vld [vmem:[%s1594 + $0x164] sm:$0xf]
        %v1685 = vld [vmem:[%s1594 + $0x168] sm:$0xf]
        %v1686 = vld [vmem:[%s1594 + $0x16c] sm:$0xf]
        %v1687 = vld [vmem:[%s1594 + $0x170] sm:$0xf]
        %v1688 = vld [vmem:[%s1594 + $0x174] sm:$0xf]
        %v1689 = vld [vmem:[%s1594 + $0x178] sm:$0xf]
        %v1690 = vld [vmem:[%s1594 + $0x17c] sm:$0xf]
        %v1691 = vld [vmem:[%s1594 + $0x180] sm:$0xf]
        %v1692 = vld [vmem:[%s1594 + $0x184] sm:$0xf]
        %v1693 = vld [vmem:[%s1594 + $0x188] sm:$0xf]
        %v1694 = vld [vmem:[%s1594 + $0x18c] sm:$0xf]
        %v1695 = vld [vmem:[%s1594 + $0x190] sm:$0xf]
        %v1696 = vld [vmem:[%s1594 + $0x194] sm:$0xf]
        %v1697 = vld [vmem:[%s1594 + $0x198] sm:$0xf]
        %v1698 = vld [vmem:[%s1594 + $0x19c] sm:$0xf]
        %v1699 = vld [vmem:[%s1594 + $0x1a0] sm:$0xf]
        %v1700 = vld [vmem:[%s1594 + $0x1a4] sm:$0xf]
        %v1701 = vld [vmem:[%s1594 + $0x1a8] sm:$0xf]
        %v1702 = vld [vmem:[%s1594 + $0x1ac] sm:$0xf]
        %v1703 = vld [vmem:[%s1594 + $0x1b0] sm:$0xf]
        %v1704 = vld [vmem:[%s1594 + $0x1b4] sm:$0xf]
        %v1705 = vld [vmem:[%s1594 + $0x1b8] sm:$0xf]
        %v1706 = vld [vmem:[%s1594 + $0x1bc] sm:$0xf]
        %v1707 = vld [vmem:[%s1594 + $0x1c0] sm:$0xf]
        %v1708 = vld [vmem:[%s1594 + $0x1c4] sm:$0xf]
        %v1709 = vld [vmem:[%s1594 + $0x1c8] sm:$0xf]
        %v1710 = vld [vmem:[%s1594 + $0x1cc] sm:$0xf]
        %v1711 = vld [vmem:[%s1594 + $0x1d0] sm:$0xf]
        %v1712 = vld [vmem:[%s1594 + $0x1d4] sm:$0xf]
        %v1713 = vld [vmem:[%s1594 + $0x1d8] sm:$0xf]
        %v1714 = vld [vmem:[%s1594 + $0x1dc] sm:$0xf]
        %v1715 = vld [vmem:[%s1594 + $0x1e0] sm:$0xf]
        %v1716 = vld [vmem:[%s1594 + $0x1e4] sm:$0xf]
        %v1717 = vld [vmem:[%s1594 + $0x1e8] sm:$0xf]
        %v1718 = vld [vmem:[%s1594 + $0x1ec] sm:$0xf]
        %v1719 = vld [vmem:[%s1594 + $0x1f0] sm:$0xf]
        %v1720 = vld [vmem:[%s1594 + $0x1f4] sm:$0xf]
        %v1721 = vld [vmem:[%s1594 + $0x1f8] sm:$0xf]
        %v1722 = vld [vmem:[%s1594 + $0x1fc] sm:$0xf]
        %v1723 = vld [vmem:[%s1594 + $0x200] sm:$0xf]
        %v1724 = vld [vmem:[%s1594 + $0x204] sm:$0xf]
        %v1725 = vld [vmem:[%s1594 + $0x208] sm:$0xf]
        %v1726 = vld [vmem:[%s1594 + $0x20c] sm:$0xf]
        %v1727 = vld [vmem:[%s1594 + $0x210] sm:$0xf]
        %v1728 = vld [vmem:[%s1594 + $0x214] sm:$0xf]
        %v1729 = vld [vmem:[%s1594 + $0x218] sm:$0xf]
        %v1730 = vld [vmem:[%s1594 + $0x21c] sm:$0xf]
        %v1731 = vld [vmem:[%s1594 + $0x220] sm:$0xf]
        %v1732 = vld [vmem:[%s1594 + $0x224] sm:$0xf]
        %v1733 = vld [vmem:[%s1594 + $0x228] sm:$0xf]
        %v1734 = vld [vmem:[%s1594 + $0x22c] sm:$0xf]
        %v1735 = vld [vmem:[%s1594 + $0x230] sm:$0xf]
        %v1736 = vld [vmem:[%s1594 + $0x234] sm:$0xf]
        %v1737 = vld [vmem:[%s1594 + $0x238] sm:$0xf]
        %v1738 = vld [vmem:[%s1594 + $0x23c] sm:$0xf]
        %v1739 = vld [vmem:[%s1594 + $0x240] sm:$0xf]
        %v1740 = vld [vmem:[%s1594 + $0x244] sm:$0xf]
        %v1741 = vld [vmem:[%s1594 + $0x248] sm:$0xf]
        %v1742 = vld [vmem:[%s1594 + $0x24c] sm:$0xf]
        %v1743 = vld [vmem:[%s1594 + $0x250] sm:$0xf]
        %v1744 = vld [vmem:[%s1594 + $0x254] sm:$0xf]
        %v1745 = vld [vmem:[%s1594 + $0x258] sm:$0xf]
        %v1746 = vld [vmem:[%s1594 + $0x25c] sm:$0xf]
        %v1747 = vld [vmem:[%s1594 + $0x260] sm:$0xf]
        %v1748 = vld [vmem:[%s1594 + $0x264] sm:$0xf]
        %v1749 = vld [vmem:[%s1594 + $0x268] sm:$0xf]
        %v1750 = vld [vmem:[%s1594 + $0x26c] sm:$0xf]
        %v1751 = vld [vmem:[%s1594 + $0x270] sm:$0xf]
        %v1752 = vld [vmem:[%s1594 + $0x274] sm:$0xf]
        %v1753 = vld [vmem:[%s1594 + $0x278] sm:$0xf]
        %v1754 = vld [vmem:[%s1594 + $0x27c] sm:$0xf]
        %v1755 = vld [vmem:[%s1594 + $0x280] sm:$0xf]
        %v1756 = vld [vmem:[%s1594 + $0x284] sm:$0xf]
        %v1757 = vld [vmem:[%s1594 + $0x288] sm:$0xf]
        %v1758 = vld [vmem:[%s1594 + $0x28c] sm:$0xf]
        %v1759 = vld [vmem:[%s1594 + $0x290] sm:$0xf]
        %v1760 = vld [vmem:[%s1594 + $0x294] sm:$0xf]
        %v1761 = vld [vmem:[%s1594 + $0x298] sm:$0xf]
        %v1762 = vld [vmem:[%s1594 + $0x29c] sm:$0xf]
        %v1763 = vld [vmem:[%s1594 + $0x2a0] sm:$0xf]
        %v1764 = vld [vmem:[%s1594 + $0x2a4] sm:$0xf]
        %v1765 = vld [vmem:[%s1594 + $0x2a8] sm:$0xf]
        %v1766 = vld [vmem:[%s1594 + $0x2ac] sm:$0xf]
        %v1767 = vld [vmem:[%s1594 + $0x2b0] sm:$0xf]
        %v1768 = vld [vmem:[%s1594 + $0x2b4] sm:$0xf]
        %v1769 = vld [vmem:[%s1594 + $0x2b8] sm:$0xf]
        %v1770 = vld [vmem:[%s1594 + $0x2bc] sm:$0xf]
        %v1771 = vld [vmem:[%s1594 + $0x2c0] sm:$0xf]
        %v1772 = vld [vmem:[%s1594 + $0x2c4] sm:$0xf]
        %v1773 = vld [vmem:[%s1594 + $0x2c8] sm:$0xf]
        %v1774 = vld [vmem:[%s1594 + $0x2cc] sm:$0xf]
        %v1775 = vld [vmem:[%s1594 + $0x2d0] sm:$0xf]
        %v1776 = vld [vmem:[%s1594 + $0x2d4] sm:$0xf]
        %v1777 = vld [vmem:[%s1594 + $0x2d8] sm:$0xf]
        %v1778 = vld [vmem:[%s1594 + $0x2dc] sm:$0xf]
        %v1779 = vld [vmem:[%s1594 + $0x2e0] sm:$0xf]
        %v1780 = vld [vmem:[%s1594 + $0x2e4] sm:$0xf]
        %v1781 = vld [vmem:[%s1594 + $0x2e8] sm:$0xf]
        %v1782 = vld [vmem:[%s1594 + $0x2ec] sm:$0xf]
        %v1783 = vld [vmem:[%s1594 + $0x2f0] sm:$0xf]
        %v1784 = vld [vmem:[%s1594 + $0x2f4] sm:$0xf]
        %v1785 = vld [vmem:[%s1594 + $0x2f8] sm:$0xf]
        %v1786 = vld [vmem:[%s1594 + $0x2fc] sm:$0xf]
        %v1787 = vld [vmem:[%s1594 + $0x300] sm:$0xf]
        %v1788 = vld [vmem:[%s1594 + $0x304] sm:$0xf]
        %v1789 = vld [vmem:[%s1594 + $0x308] sm:$0xf]
        %v1790 = vld [vmem:[%s1594 + $0x30c] sm:$0xf]
        %v1791 = vld [vmem:[%s1594 + $0x310] sm:$0xf]
        %v1792 = vld [vmem:[%s1594 + $0x314] sm:$0xf]
        %v1793 = vld [vmem:[%s1594 + $0x318] sm:$0xf]
        %v1794 = vld [vmem:[%s1594 + $0x31c] sm:$0xf]
        %v1795 = vld [vmem:[%s1594 + $0x320] sm:$0xf]
        %v1796 = vld [vmem:[%s1594 + $0x324] sm:$0xf]
        %v1797 = vld [vmem:[%s1594 + $0x328] sm:$0xf]
        %v1798 = vld [vmem:[%s1594 + $0x32c] sm:$0xf]
        %v1799 = vld [vmem:[%s1594 + $0x330] sm:$0xf]
        %v1800 = vld [vmem:[%s1594 + $0x334] sm:$0xf]
        %v1801 = vld [vmem:[%s1594 + $0x338] sm:$0xf]
        %v1802 = vld [vmem:[%s1594 + $0x33c] sm:$0xf]
        %v1803 = vld [vmem:[%s1594 + $0x340] sm:$0xf]
        %v1804 = vld [vmem:[%s1594 + $0x344] sm:$0xf]
        %v1805 = vld [vmem:[%s1594 + $0x348] sm:$0xf]
        %v1806 = vld [vmem:[%s1594 + $0x34c] sm:$0xf]
        %v1807 = vld [vmem:[%s1594 + $0x350] sm:$0xf]
        %v1808 = vld [vmem:[%s1594 + $0x354] sm:$0xf]
        %v1809 = vld [vmem:[%s1594 + $0x358] sm:$0xf]
        %v1810 = vld [vmem:[%s1594 + $0x35c] sm:$0xf]
        %v1811 = vld [vmem:[%s1594 + $0x360] sm:$0xf]
        %v1812 = vld [vmem:[%s1594 + $0x364] sm:$0xf]
        %v1813 = vld [vmem:[%s1594 + $0x368] sm:$0xf]
        %v1814 = vld [vmem:[%s1594 + $0x36c] sm:$0xf]
        %v1815 = vld [vmem:[%s1594 + $0x370] sm:$0xf]
        %v1816 = vld [vmem:[%s1594 + $0x374] sm:$0xf]
        %v1817 = vld [vmem:[%s1594 + $0x378] sm:$0xf]
        %v1818 = vld [vmem:[%s1594 + $0x37c] sm:$0xf]
        %v1819 = vld [vmem:[%s1594 + $0x380] sm:$0xf]
        %v1820 = vld [vmem:[%s1594 + $0x384] sm:$0xf]
        %v1821 = vld [vmem:[%s1594 + $0x388] sm:$0xf]
        %v1822 = vld [vmem:[%s1594 + $0x38c] sm:$0xf]
        %v1823 = vld [vmem:[%s1594 + $0x390] sm:$0xf]
        %v1824 = vld [vmem:[%s1594 + $0x394] sm:$0xf]
        %v1825 = vld [vmem:[%s1594 + $0x398] sm:$0xf]
        %v1826 = vld [vmem:[%s1594 + $0x39c] sm:$0xf]
        %v1827 = vld [vmem:[%s1594 + $0x3a0] sm:$0xf]
        %v1828 = vld [vmem:[%s1594 + $0x3a4] sm:$0xf]
        %v1829 = vld [vmem:[%s1594 + $0x3a8] sm:$0xf]
        %v1830 = vld [vmem:[%s1594 + $0x3ac] sm:$0xf]
        %v1831 = vld [vmem:[%s1594 + $0x3b0] sm:$0xf]
        %v1832 = vld [vmem:[%s1594 + $0x3b4] sm:$0xf]
        %v1833 = vld [vmem:[%s1594 + $0x3b8] sm:$0xf]
        %v1834 = vld [vmem:[%s1594 + $0x3bc] sm:$0xf]
        %v1835 = vld [vmem:[%s1594 + $0x3c0] sm:$0xf]
        %v1836 = vld [vmem:[%s1594 + $0x3c4] sm:$0xf]
        %v1837 = vld [vmem:[%s1594 + $0x3c8] sm:$0xf]
        %v1838 = vld [vmem:[%s1594 + $0x3cc] sm:$0xf]
        %v1839 = vld [vmem:[%s1594 + $0x3d0] sm:$0xf]
        %v1840 = vld [vmem:[%s1594 + $0x3d4] sm:$0xf]
        %v1841 = vld [vmem:[%s1594 + $0x3d8] sm:$0xf]
        %v1842 = vld [vmem:[%s1594 + $0x3dc] sm:$0xf]
        %v1843 = vld [vmem:[%s1594 + $0x3e0] sm:$0xf]
        %v1844 = vld [vmem:[%s1594 + $0x3e4] sm:$0xf]
        %v1845 = vld [vmem:[%s1594 + $0x3e8] sm:$0xf]
        %v1846 = vld [vmem:[%s1594 + $0x3ec] sm:$0xf]
        %v1847 = vld [vmem:[%s1594 + $0x3f0] sm:$0xf]
        %v1848 = vld [vmem:[%s1594 + $0x3f4] sm:$0xf]
        %v1849 = vld [vmem:[%s1594 + $0x3f8] sm:$0xf]
        %v1850 = vld [vmem:[%s1594 + $0x3fc] sm:$0xf]
        %v1851 = vld [vmem:[%s1594 + $0x400] sm:$0xf]
        %v1852 = vld [vmem:[%s1594 + $0x404] sm:$0xf]
        %v1853 = vld [vmem:[%s1594 + $0x408] sm:$0xf]
        %v1854 = vld [vmem:[%s1594 + $0x40c] sm:$0xf]
        %v1855 = vld [vmem:[%s1594 + $0x410] sm:$0xf]
        %v1856 = vld [vmem:[%s1594 + $0x414] sm:$0xf]
        %v1857 = vld [vmem:[%s1594 + $0x418] sm:$0xf]
        %v1858 = vld [vmem:[%s1594 + $0x41c] sm:$0xf]
        %v1859 = vld [vmem:[%s1594 + $0x420] sm:$0xf]
        %v1860 = vld [vmem:[%s1594 + $0x424] sm:$0xf]
        %v1861 = vld [vmem:[%s1594 + $0x428] sm:$0xf]
        %v1862 = vld [vmem:[%s1594 + $0x42c] sm:$0xf]
        %v1863 = vld [vmem:[%s1594 + $0x430] sm:$0xf]
        %v1864 = vld [vmem:[%s1594 + $0x434] sm:$0xf]
        %v1865 = vld [vmem:[%s1594 + $0x438] sm:$0xf]
        %v1866 = vld [vmem:[%s1594 + $0x43c] sm:$0xf]
        %v1867 = vld [vmem:[%s1594 + $0x440] sm:$0xf]
        %v1868 = vld [vmem:[%s1594 + $0x444] sm:$0xf]
        %v1869 = vld [vmem:[%s1594 + $0x448] sm:$0xf]
        %v1870 = vld [vmem:[%s1594 + $0x44c] sm:$0xf]
        %v1871 = vld [vmem:[%s1594 + $0x450] sm:$0xf]
        %v1872 = vld [vmem:[%s1594 + $0x454] sm:$0xf]
        %v1873 = vld [vmem:[%s1594 + $0x458] sm:$0xf]
        %v1874 = vld [vmem:[%s1594 + $0x45c] sm:$0xf]
        %v1875 = vld [vmem:[%s1594 + $0x460] sm:$0xf]
        %v1876 = vld [vmem:[%s1594 + $0x464] sm:$0xf]
        %v1877 = vld [vmem:[%s1594 + $0x468] sm:$0xf]
        %v1878 = vld [vmem:[%s1594 + $0x46c] sm:$0xf]
        %v1879 = vld [vmem:[%s1594 + $0x470] sm:$0xf]
        %v1880 = vld [vmem:[%s1594 + $0x474] sm:$0xf]
        %v1881 = vld [vmem:[%s1594 + $0x478] sm:$0xf]
        %v1882 = vld [vmem:[%s1594 + $0x47c] sm:$0xf]
        %v1883 = vld [vmem:[%s1594 + $0x480] sm:$0xf]
        %v1884 = vld [vmem:[%s1594 + $0x484] sm:$0xf]
        %v1885 = vld [vmem:[%s1594 + $0x488] sm:$0xf]
        %v1886 = vld [vmem:[%s1594 + $0x48c] sm:$0xf]
        %v1887 = vld [vmem:[%s1594 + $0x490] sm:$0xf]
        %v1888 = vld [vmem:[%s1594 + $0x494] sm:$0xf]
        %v1889 = vld [vmem:[%s1594 + $0x498] sm:$0xf]
        %v1890 = vld [vmem:[%s1594 + $0x49c] sm:$0xf]
        %v1891 = vld [vmem:[%s1594 + $0x4a0] sm:$0xf]
        %v1892 = vld [vmem:[%s1594 + $0x4a4] sm:$0xf]
        %v1893 = vld [vmem:[%s1594 + $0x4a8] sm:$0xf]
        %v1894 = vld [vmem:[%s1594 + $0x4ac] sm:$0xf]
        %v1895 = vld [vmem:[%s1594 + $0x4b0] sm:$0xf]
        %v1896 = vld [vmem:[%s1594 + $0x4b4] sm:$0xf]
        %v1897 = vld [vmem:[%s1594 + $0x4b8] sm:$0xf]
        %v1898 = vld [vmem:[%s1594 + $0x4bc] sm:$0xf]
        %v1899 = vld [vmem:[%s1594 + $0x4c0] sm:$0xf]
        %v1900 = vld [vmem:[%s1594 + $0x4c4] sm:$0xf]
        %v1901 = vld [vmem:[%s1594 + $0x4c8] sm:$0xf]
        %v1902 = vld [vmem:[%s1594 + $0x4cc] sm:$0xf]
        %v1903 = vld [vmem:[%s1594 + $0x4d0] sm:$0xf]
        %v1904 = vld [vmem:[%s1594 + $0x4d4] sm:$0xf]
        %v1905 = vld [vmem:[%s1594 + $0x4d8] sm:$0xf]
        %v1906 = vld [vmem:[%s1594 + $0x4dc] sm:$0xf]
        %v1907 = vld [vmem:[%s1594 + $0x4e0] sm:$0xf]
        %v1908 = vld [vmem:[%s1594 + $0x4e4] sm:$0xf]
        %v1909 = vld [vmem:[%s1594 + $0x4e8] sm:$0xf]
        %v1910 = vld [vmem:[%s1594 + $0x4ec] sm:$0xf]
        %v1911 = vld [vmem:[%s1594 + $0x4f0] sm:$0xf]
        %v1912 = vld [vmem:[%s1594 + $0x4f4] sm:$0xf]
        %v1913 = vld [vmem:[%s1594 + $0x4f8] sm:$0xf]
        %v1914 = vld [vmem:[%s1594 + $0x4fc] sm:$0xf]
        %v1915 = vld [vmem:[%s1594 + $0x500] sm:$0xf]
        %v1916 = vld [vmem:[%s1594 + $0x504] sm:$0xf]
        %v1917 = vld [vmem:[%s1594 + $0x508] sm:$0xf]
        %v1918 = vld [vmem:[%s1594 + $0x50c] sm:$0xf]
        %v1919 = vld [vmem:[%s1594 + $0x510] sm:$0xf]
        %v1920 = vld [vmem:[%s1594 + $0x514] sm:$0xf]
        %v1921 = vld [vmem:[%s1594 + $0x518] sm:$0xf]
        %v1922 = vld [vmem:[%s1594 + $0x51c] sm:$0xf]
        %v1923 = vld [vmem:[%s1594 + $0x520] sm:$0xf]
        %v1924 = vld [vmem:[%s1594 + $0x524] sm:$0xf]
        %v1925 = vld [vmem:[%s1594 + $0x528] sm:$0xf]
        %v1926 = vld [vmem:[%s1594 + $0x52c] sm:$0xf]
        %v1927 = vld [vmem:[%s1594 + $0x530] sm:$0xf]
        %v1928 = vld [vmem:[%s1594 + $0x534] sm:$0xf]
        %v1929 = vld [vmem:[%s1594 + $0x538] sm:$0xf]
        %v1930 = vld [vmem:[%s1594 + $0x53c] sm:$0xf]
        %v1931 = vld [vmem:[%s1594 + $0x540] sm:$0xf]
        %v1932 = vld [vmem:[%s1594 + $0x544] sm:$0xf]
        %v1933 = vld [vmem:[%s1594 + $0x548] sm:$0xf]
        %v1934 = vld [vmem:[%s1594 + $0x54c] sm:$0xf]
        %v1935 = vld [vmem:[%s1594 + $0x550] sm:$0xf]
        %v1936 = vld [vmem:[%s1594 + $0x554] sm:$0xf]
        %v1937 = vld [vmem:[%s1594 + $0x558] sm:$0xf]
        %v1938 = vld [vmem:[%s1594 + $0x55c] sm:$0xf]
        %v1939 = vld [vmem:[%s1594 + $0x560] sm:$0xf]
        %v1940 = vld [vmem:[%s1594 + $0x564] sm:$0xf]
        %v1941 = vld [vmem:[%s1594 + $0x568] sm:$0xf]
        %v1942 = vld [vmem:[%s1594 + $0x56c] sm:$0xf]
        %v1943 = vld [vmem:[%s1594 + $0x570] sm:$0xf]
        %v1944 = vld [vmem:[%s1594 + $0x574] sm:$0xf]
        %v1945 = vld [vmem:[%s1594 + $0x578] sm:$0xf]
        %v1946 = vld [vmem:[%s1594 + $0x57c] sm:$0xf]
        %v1947 = vld [vmem:[%s1594 + $0x580] sm:$0xf]
        %v1948 = vld [vmem:[%s1594 + $0x584] sm:$0xf]
        %v1949 = vld [vmem:[%s1594 + $0x588] sm:$0xf]
        %v1950 = vld [vmem:[%s1594 + $0x58c] sm:$0xf]
        %v1951 = vld [vmem:[%s1594 + $0x590] sm:$0xf]
        %v1952 = vld [vmem:[%s1594 + $0x594] sm:$0xf]
        %v1953 = vld [vmem:[%s1594 + $0x598] sm:$0xf]
        %v1954 = vld [vmem:[%s1594 + $0x59c] sm:$0xf]
        %v1955 = vld [vmem:[%s1594 + $0x5a0] sm:$0xf]
        %v1956 = vld [vmem:[%s1594 + $0x5a4] sm:$0xf]
        %v1957 = vld [vmem:[%s1594 + $0x5a8] sm:$0xf]
        %v1958 = vld [vmem:[%s1594 + $0x5ac] sm:$0xf]
        %v1959 = vld [vmem:[%s1594 + $0x5b0] sm:$0xf]
        %v1960 = vld [vmem:[%s1594 + $0x5b4] sm:$0xf]
        %v1961 = vld [vmem:[%s1594 + $0x5b8] sm:$0xf]
        %v1962 = vld [vmem:[%s1594 + $0x5bc] sm:$0xf]
        %v1963 = vld [vmem:[%s1594 + $0x5c0] sm:$0xf]
        %v1964 = vld [vmem:[%s1594 + $0x5c4] sm:$0xf]
        %v1965 = vld [vmem:[%s1594 + $0x5c8] sm:$0xf]
        %v1966 = vld [vmem:[%s1594 + $0x5cc] sm:$0xf]
        %v1967 = vld [vmem:[%s1594 + $0x5d0] sm:$0xf]
        %v1968 = vld [vmem:[%s1594 + $0x5d4] sm:$0xf]
        %v1969 = vld [vmem:[%s1594 + $0x5d8] sm:$0xf]
        %v1970 = vld [vmem:[%s1594 + $0x5dc] sm:$0xf]
        %v1971 = vld [vmem:[%s1594 + $0x5e0] sm:$0xf]
        %v1972 = vld [vmem:[%s1594 + $0x5e4] sm:$0xf]
        %v1973 = vld [vmem:[%s1594 + $0x5e8] sm:$0xf]
        %v1974 = vld [vmem:[%s1594 + $0x5ec] sm:$0xf]
        %v1975 = vld [vmem:[%s1594 + $0x5f0] sm:$0xf]
        %v1976 = vld [vmem:[%s1594 + $0x5f4] sm:$0xf]
        %v1977 = vld [vmem:[%s1594 + $0x5f8] sm:$0xf]
        %v1978 = vld [vmem:[%s1594 + $0x5fc] sm:$0xf]
        %v1979 = vld [vmem:[%s1594 + $0x600] sm:$0xf]
        %v1980 = vld [vmem:[%s1594 + $0x604] sm:$0xf]
        %v1981 = vld [vmem:[%s1594 + $0x608] sm:$0xf]
        %v1982 = vld [vmem:[%s1594 + $0x60c] sm:$0xf]
        %v1983 = vld [vmem:[%s1594 + $0x610] sm:$0xf]
        %v1984 = vld [vmem:[%s1594 + $0x614] sm:$0xf]
        %v1985 = vld [vmem:[%s1594 + $0x618] sm:$0xf]
        %v1986 = vld [vmem:[%s1594 + $0x61c] sm:$0xf]
        %v1987 = vld [vmem:[%s1594 + $0x620] sm:$0xf]
        %v1988 = vld [vmem:[%s1594 + $0x624] sm:$0xf]
        %v1989 = vld [vmem:[%s1594 + $0x628] sm:$0xf]
        %v1990 = vld [vmem:[%s1594 + $0x62c] sm:$0xf]
        %v1991 = vld [vmem:[%s1594 + $0x630] sm:$0xf]
        %v1992 = vld [vmem:[%s1594 + $0x634] sm:$0xf]
        %v1993 = vld [vmem:[%s1594 + $0x638] sm:$0xf]
        %v1994 = vld [vmem:[%s1594 + $0x63c] sm:$0xf]
        %v1995 = vld [vmem:[%s1594 + $0x640] sm:$0xf]
        %v1996 = vld [vmem:[%s1594 + $0x644] sm:$0xf]
        %v1997 = vld [vmem:[%s1594 + $0x648] sm:$0xf]
        %v1998 = vld [vmem:[%s1594 + $0x64c] sm:$0xf]
        %v1999 = vld [vmem:[%s1594 + $0x650] sm:$0xf]
        %v2000 = vld [vmem:[%s1594 + $0x654] sm:$0xf]
        %v2001 = vld [vmem:[%s1594 + $0x658] sm:$0xf]
        %v2002 = vld [vmem:[%s1594 + $0x65c] sm:$0xf]
        %v2003 = vld [vmem:[%s1594 + $0x660] sm:$0xf]
        %v2004 = vld [vmem:[%s1594 + $0x664] sm:$0xf]
        %v2005 = vld [vmem:[%s1594 + $0x668] sm:$0xf]
        %v2006 = vld [vmem:[%s1594 + $0x66c] sm:$0xf]
        %v2007 = vld [vmem:[%s1594 + $0x670] sm:$0xf]
        %v2008 = vld [vmem:[%s1594 + $0x674] sm:$0xf]
        %v2009 = vld [vmem:[%s1594 + $0x678] sm:$0xf]
        %v2010 = vld [vmem:[%s1594 + $0x67c] sm:$0xf]
        %v2011 = vld [vmem:[%s1594 + $0x680] sm:$0xf]
        %v2012 = vld [vmem:[%s1594 + $0x684] sm:$0xf]
        %v2013 = vld [vmem:[%s1594 + $0x688] sm:$0xf]
        %v2014 = vld [vmem:[%s1594 + $0x68c] sm:$0xf]
        %v2015 = vld [vmem:[%s1594 + $0x690] sm:$0xf]
        %v2016 = vld [vmem:[%s1594 + $0x694] sm:$0xf]
        %v2017 = vld [vmem:[%s1594 + $0x698] sm:$0xf]
        %v2018 = vld [vmem:[%s1594 + $0x69c] sm:$0xf]
        %v2019 = vld [vmem:[%s1594 + $0x6a0] sm:$0xf]
        %v2020 = vld [vmem:[%s1594 + $0x6a4] sm:$0xf]
        %v2021 = vld [vmem:[%s1594 + $0x6a8] sm:$0xf]
        %v2022 = vld [vmem:[%s1594 + $0x6ac] sm:$0xf]
        %v2023 = vld [vmem:[%s1594 + $0x6b0] sm:$0xf]
        %v2024 = vld [vmem:[%s1594 + $0x6b4] sm:$0xf]
        %v2025 = vld [vmem:[%s1594 + $0x6b8] sm:$0xf]
        %v2026 = vld [vmem:[%s1594 + $0x6bc] sm:$0xf]
        %v2027 = vld [vmem:[%s1594 + $0x6c0] sm:$0xf]
        %v2028 = vld [vmem:[%s1594 + $0x6c4] sm:$0xf]
        %v2029 = vld [vmem:[%s1594 + $0x6c8] sm:$0xf]
        %v2030 = vld [vmem:[%s1594 + $0x6cc] sm:$0xf]
        %v2031 = vld [vmem:[%s1594 + $0x6d0] sm:$0xf]
        %v2032 = vld [vmem:[%s1594 + $0x6d4] sm:$0xf]
        %v2033 = vld [vmem:[%s1594 + $0x6d8] sm:$0xf]
        %v2034 = vld [vmem:[%s1594 + $0x6dc] sm:$0xf]
        %v2035 = vld [vmem:[%s1594 + $0x6e0] sm:$0xf]
        %v2036 = vld [vmem:[%s1594 + $0x6e4] sm:$0xf]
        %v2037 = vld [vmem:[%s1594 + $0x6e8] sm:$0xf]
        %v2038 = vld [vmem:[%s1594 + $0x6ec] sm:$0xf]
        %v2039 = vld [vmem:[%s1594 + $0x6f0] sm:$0xf]
        %v2040 = vld [vmem:[%s1594 + $0x6f4] sm:$0xf]
        %v2041 = vld [vmem:[%s1594 + $0x6f8] sm:$0xf]
        %v2042 = vld [vmem:[%s1594 + $0x6fc] sm:$0xf]
        %v2043 = vld [vmem:[%s1594 + $0x700] sm:$0xf]
        %v2044 = vld [vmem:[%s1594 + $0x704] sm:$0xf]
        %v2045 = vld [vmem:[%s1594 + $0x708] sm:$0xf]
        %v2046 = vld [vmem:[%s1594 + $0x70c] sm:$0xf]
        %v2047 = vld [vmem:[%s1594 + $0x710] sm:$0xf]
        %v2048 = vld [vmem:[%s1594 + $0x714] sm:$0xf]
        %v2049 = vld [vmem:[%s1594 + $0x718] sm:$0xf]
        %v2050 = vld [vmem:[%s1594 + $0x71c] sm:$0xf]
        %v2051 = vld [vmem:[%s1594 + $0x720] sm:$0xf]
        %v2052 = vld [vmem:[%s1594 + $0x724] sm:$0xf]
        %v2053 = vld [vmem:[%s1594 + $0x728] sm:$0xf]
        %v2054 = vld [vmem:[%s1594 + $0x72c] sm:$0xf]
        %v2055 = vld [vmem:[%s1594 + $0x730] sm:$0xf]
        %v2056 = vld [vmem:[%s1594 + $0x734] sm:$0xf]
        %v2057 = vld [vmem:[%s1594 + $0x738] sm:$0xf]
        %v2058 = vld [vmem:[%s1594 + $0x73c] sm:$0xf]
        %v2059 = vld [vmem:[%s1594 + $0x740] sm:$0xf]
        %v2060 = vld [vmem:[%s1594 + $0x744] sm:$0xf]
        %v2061 = vld [vmem:[%s1594 + $0x748] sm:$0xf]
        %v2062 = vld [vmem:[%s1594 + $0x74c] sm:$0xf]
        %v2063 = vld [vmem:[%s1594 + $0x750] sm:$0xf]
        %v2064 = vld [vmem:[%s1594 + $0x754] sm:$0xf]
        %v2065 = vld [vmem:[%s1594 + $0x758] sm:$0xf]
        %v2066 = vld [vmem:[%s1594 + $0x75c] sm:$0xf]
        %v2067 = vld [vmem:[%s1594 + $0x760] sm:$0xf]
        %v2068 = vld [vmem:[%s1594 + $0x764] sm:$0xf]
        %v2069 = vld [vmem:[%s1594 + $0x768] sm:$0xf]
        %v2070 = vld [vmem:[%s1594 + $0x76c] sm:$0xf]
        %v2071 = vld [vmem:[%s1594 + $0x770] sm:$0xf]
        %v2072 = vld [vmem:[%s1594 + $0x774] sm:$0xf]
        %v2073 = vld [vmem:[%s1594 + $0x778] sm:$0xf]
        %v2074 = vld [vmem:[%s1594 + $0x77c] sm:$0xf]
        %v2075 = vld [vmem:[%s1594 + $0x780] sm:$0xf]
        %v2076 = vld [vmem:[%s1594 + $0x784] sm:$0xf]
        %v2077 = vld [vmem:[%s1594 + $0x788] sm:$0xf]
        %v2078 = vld [vmem:[%s1594 + $0x78c] sm:$0xf]
        %v2079 = vld [vmem:[%s1594 + $0x790] sm:$0xf]
        %v2080 = vld [vmem:[%s1594 + $0x794] sm:$0xf]
        %v2081 = vld [vmem:[%s1594 + $0x798] sm:$0xf]
        %v2082 = vld [vmem:[%s1594 + $0x79c] sm:$0xf]
        %v2083 = vld [vmem:[%s1594 + $0x7a0] sm:$0xf]
        %v2084 = vld [vmem:[%s1594 + $0x7a4] sm:$0xf]
        %v2085 = vld [vmem:[%s1594 + $0x7a8] sm:$0xf]
        %v2086 = vld [vmem:[%s1594 + $0x7ac] sm:$0xf]
        %v2087 = vld [vmem:[%s1594 + $0x7b0] sm:$0xf]
        %v2088 = vld [vmem:[%s1594 + $0x7b4] sm:$0xf]
        %v2089 = vld [vmem:[%s1594 + $0x7b8] sm:$0xf]
        %v2090 = vld [vmem:[%s1594 + $0x7bc] sm:$0xf]
        %v2091 = vld [vmem:[%s1594 + $0x7c0] sm:$0xf]
        %v2092 = vld [vmem:[%s1594 + $0x7c4] sm:$0xf]
        %v2093 = vld [vmem:[%s1594 + $0x7c8] sm:$0xf]
        %v2094 = vld [vmem:[%s1594 + $0x7cc] sm:$0xf]
        %v2095 = vld [vmem:[%s1594 + $0x7d0] sm:$0xf]
        %v2096 = vld [vmem:[%s1594 + $0x7d4] sm:$0xf]
        %v2097 = vld [vmem:[%s1594 + $0x7d8] sm:$0xf]
        %v2098 = vld [vmem:[%s1594 + $0x7dc] sm:$0xf]
        %v2099 = vld [vmem:[%s1594 + $0x7e0] sm:$0xf]
        %v2100 = vld [vmem:[%s1594 + $0x7e4] sm:$0xf]
        %v2101 = vld [vmem:[%s1594 + $0x7e8] sm:$0xf]
        %v2102 = vld [vmem:[%s1594 + $0x7ec] sm:$0xf]
        %v2103 = vld [vmem:[%s1594 + $0x7f0] sm:$0xf]
        %v2104 = vld [vmem:[%s1594 + $0x7f4] sm:$0xf]
        %v2105 = vld [vmem:[%s1594 + $0x7f8] sm:$0xf]
        %v2106 = vld [vmem:[%s1594 + $0x7fc] sm:$0xf]
        %v2107 = vld [vmem:[%s1594 + $0x800] sm:$0xf]
        %v2108 = vld [vmem:[%s1594 + $0x804] sm:$0xf]
        %v2109 = vld [vmem:[%s1594 + $0x808] sm:$0xf]
        %v2110 = vld [vmem:[%s1594 + $0x80c] sm:$0xf]
        %v2111 = vld [vmem:[%s1594 + $0x810] sm:$0xf]
        %v2112 = vld [vmem:[%s1594 + $0x814] sm:$0xf]
        %v2113 = vld [vmem:[%s1594 + $0x818] sm:$0xf]
        %v2114 = vld [vmem:[%s1594 + $0x81c] sm:$0xf]
        %v2115 = vld [vmem:[%s1594 + $0x820] sm:$0xf]
        %v2116 = vld [vmem:[%s1594 + $0x824] sm:$0xf]
        %v2117 = vld [vmem:[%s1594 + $0x828] sm:$0xf]
        %v2118 = vld [vmem:[%s1594 + $0x82c] sm:$0xf]
        %v2119 = vld [vmem:[%s1594 + $0x830] sm:$0xf]
        %v2120 = vld [vmem:[%s1594 + $0x834] sm:$0xf]
        %v2121 = vld [vmem:[%s1594 + $0x838] sm:$0xf]
        %v2122 = vld [vmem:[%s1594 + $0x83c] sm:$0xf]
        %v2123 = vld [vmem:[%s1594 + $0x840] sm:$0xf]
        %v2124 = vld [vmem:[%s1594 + $0x844] sm:$0xf]
        %v2125 = vld [vmem:[%s1594 + $0x848] sm:$0xf]
        %v2126 = vld [vmem:[%s1594 + $0x84c] sm:$0xf]
        %v2127 = vld [vmem:[%s1594 + $0x850] sm:$0xf]
        %v2128 = vld [vmem:[%s1594 + $0x854] sm:$0xf]
        %v2129 = vld [vmem:[%s1594 + $0x858] sm:$0xf]
        %v2130 = vld [vmem:[%s1594 + $0x85c] sm:$0xf]
        %v2131 = vld [vmem:[%s1594 + $0x860] sm:$0xf]
        %v2132 = vld [vmem:[%s1594 + $0x864] sm:$0xf]
        %v2133 = vld [vmem:[%s1594 + $0x868] sm:$0xf]
        %v2134 = vld [vmem:[%s1594 + $0x86c] sm:$0xf]
        %v2135 = vld [vmem:[%s1594 + $0x870] sm:$0xf]
        %v2136 = vld [vmem:[%s1594 + $0x874] sm:$0xf]
        %v2137 = vld [vmem:[%s1594 + $0x878] sm:$0xf]
        %v2138 = vld [vmem:[%s1594 + $0x87c] sm:$0xf]
        %v2139 = vld [vmem:[%s1594 + $0x880] sm:$0xf]
        %v2140 = vld [vmem:[%s1594 + $0x884] sm:$0xf]
        %v2141 = vld [vmem:[%s1594 + $0x888] sm:$0xf]
        %v2142 = vld [vmem:[%s1594 + $0x88c] sm:$0xf]
        %v2143 = vld [vmem:[%s1594 + $0x890] sm:$0xf]
        %v2144 = vld [vmem:[%s1594 + $0x894] sm:$0xf]
        %v2145 = vld [vmem:[%s1594 + $0x898] sm:$0xf]
        %v2146 = vld [vmem:[%s1594 + $0x89c] sm:$0xf]
        %v2147 = vld [vmem:[%s1594 + $0x8a0] sm:$0xf]
        %v2148 = vld [vmem:[%s1594 + $0x8a4] sm:$0xf]
        %v2149 = vld [vmem:[%s1594 + $0x8a8] sm:$0xf]
        %v2150 = vld [vmem:[%s1594 + $0x8ac] sm:$0xf]
        %v2151 = vld [vmem:[%s1594 + $0x8b0] sm:$0xf]
        %v2152 = vld [vmem:[%s1594 + $0x8b4] sm:$0xf]
        %v2153 = vld [vmem:[%s1594 + $0x8b8] sm:$0xf]
        %v2154 = vld [vmem:[%s1594 + $0x8bc] sm:$0xf]
        %v2155 = vld [vmem:[%s1594 + $0x8c0] sm:$0xf]
        %v2156 = vld [vmem:[%s1594 + $0x8c4] sm:$0xf]
        %v2157 = vld [vmem:[%s1594 + $0x8c8] sm:$0xf]
        %v2158 = vld [vmem:[%s1594 + $0x8cc] sm:$0xf]
        %v2159 = vld [vmem:[%s1594 + $0x8d0] sm:$0xf]
        %v2160 = vld [vmem:[%s1594 + $0x8d4] sm:$0xf]
        %v2161 = vld [vmem:[%s1594 + $0x8d8] sm:$0xf]
        %v2162 = vld [vmem:[%s1594 + $0x8dc] sm:$0xf]
        %v2163 = vld [vmem:[%s1594 + $0x8e0] sm:$0xf]
        %v2164 = vld [vmem:[%s1594 + $0x8e4] sm:$0xf]
        %v2165 = vld [vmem:[%s1594 + $0x8e8] sm:$0xf]
        %v2166 = vld [vmem:[%s1594 + $0x8ec] sm:$0xf]
        %v2167 = vld [vmem:[%s1594 + $0x8f0] sm:$0xf]
        %v2168 = vld [vmem:[%s1594 + $0x8f4] sm:$0xf]
        %v2169 = vld [vmem:[%s1594 + $0x8f8] sm:$0xf]
        %v2170 = vld [vmem:[%s1594 + $0x8fc] sm:$0xf]
        %v2171 = vld [vmem:[%s1594 + $0x900] sm:$0xf]
        %v2172 = vld [vmem:[%s1594 + $0x904] sm:$0xf]
        %v2173 = vld [vmem:[%s1594 + $0x908] sm:$0xf]
        %v2174 = vld [vmem:[%s1594 + $0x90c] sm:$0xf]
        %v2175 = vld [vmem:[%s1594 + $0x910] sm:$0xf]
        %v2176 = vld [vmem:[%s1594 + $0x914] sm:$0xf]
        %v2177 = vld [vmem:[%s1594 + $0x918] sm:$0xf]
        %v2178 = vld [vmem:[%s1594 + $0x91c] sm:$0xf]
        %v2179 = vld [vmem:[%s1594 + $0x920] sm:$0xf]
        %v2180 = vld [vmem:[%s1594 + $0x924] sm:$0xf]
        %v2181 = vld [vmem:[%s1594 + $0x928] sm:$0xf]
        %v2182 = vld [vmem:[%s1594 + $0x92c] sm:$0xf]
        %v2183 = vld [vmem:[%s1594 + $0x930] sm:$0xf]
        %v2184 = vld [vmem:[%s1594 + $0x934] sm:$0xf]
        %v2185 = vld [vmem:[%s1594 + $0x938] sm:$0xf]
        %v2186 = vld [vmem:[%s1594 + $0x93c] sm:$0xf]
        %v2187 = vld [vmem:[%s1594 + $0x940] sm:$0xf]
        %v2188 = vld [vmem:[%s1594 + $0x944] sm:$0xf]
        %v2189 = vld [vmem:[%s1594 + $0x948] sm:$0xf]
        %v2190 = vld [vmem:[%s1594 + $0x94c] sm:$0xf]
        %v2191 = vld [vmem:[%s1594 + $0x950] sm:$0xf]
        %v2192 = vld [vmem:[%s1594 + $0x954] sm:$0xf]
        %v2193 = vld [vmem:[%s1594 + $0x958] sm:$0xf]
        %v2194 = vld [vmem:[%s1594 + $0x95c] sm:$0xf]
        %v2195 = vld [vmem:[%s1594 + $0x960] sm:$0xf]
        %v2196 = vld [vmem:[%s1594 + $0x964] sm:$0xf]
        %v2197 = vld [vmem:[%s1594 + $0x968] sm:$0xf]
        %v2198 = vld [vmem:[%s1594 + $0x96c] sm:$0xf]
        %v2199 = vld [vmem:[%s1594 + $0x970] sm:$0xf]
        %v2200 = vld [vmem:[%s1594 + $0x974] sm:$0xf]
        %v2201 = vld [vmem:[%s1594 + $0x978] sm:$0xf]
        %v2202 = vld [vmem:[%s1594 + $0x97c] sm:$0xf]
        %v2203 = vld [vmem:[%s1594 + $0x980] sm:$0xf]
        %v2204 = vld [vmem:[%s1594 + $0x984] sm:$0xf]
        %v2205 = vld [vmem:[%s1594 + $0x988] sm:$0xf]
        %v2206 = vld [vmem:[%s1594 + $0x98c] sm:$0xf]
        %v2207 = vld [vmem:[%s1594 + $0x990] sm:$0xf]
        %v2208 = vld [vmem:[%s1594 + $0x994] sm:$0xf]
        %v2209 = vld [vmem:[%s1594 + $0x998] sm:$0xf]
        %v2210 = vld [vmem:[%s1594 + $0x99c] sm:$0xf]
        %v2211 = vld [vmem:[%s1594 + $0x9a0] sm:$0xf]
        %v2212 = vld [vmem:[%s1594 + $0x9a4] sm:$0xf]
        %v2213 = vld [vmem:[%s1594 + $0x9a8] sm:$0xf]
        %v2214 = vld [vmem:[%s1594 + $0x9ac] sm:$0xf]
        %v2215 = vld [vmem:[%s1594 + $0x9b0] sm:$0xf]
        %v2216 = vld [vmem:[%s1594 + $0x9b4] sm:$0xf]
        %v2217 = vld [vmem:[%s1594 + $0x9b8] sm:$0xf]
        %v2218 = vld [vmem:[%s1594 + $0x9bc] sm:$0xf]
        %v2219 = vld [vmem:[%s1594 + $0x9c0] sm:$0xf]
        %v2220 = vld [vmem:[%s1594 + $0x9c4] sm:$0xf]
        %v2221 = vld [vmem:[%s1594 + $0x9c8] sm:$0xf]
        %v2222 = vld [vmem:[%s1594 + $0x9cc] sm:$0xf]
        %v2223 = vld [vmem:[%s1594 + $0x9d0] sm:$0xf]
        %v2224 = vld [vmem:[%s1594 + $0x9d4] sm:$0xf]
        %v2225 = vld [vmem:[%s1594 + $0x9d8] sm:$0xf]
        %v2226 = vld [vmem:[%s1594 + $0x9dc] sm:$0xf]
        %v2227 = vld [vmem:[%s1594 + $0x9e0] sm:$0xf]
        %v2228 = vld [vmem:[%s1594 + $0x9e4] sm:$0xf]
        %v2229 = vld [vmem:[%s1594 + $0x9e8] sm:$0xf]
        %v2230 = vld [vmem:[%s1594 + $0x9ec] sm:$0xf]
        %v2231 = vld [vmem:[%s1594 + $0x9f0] sm:$0xf]
        %v2232 = vld [vmem:[%s1594 + $0x9f4] sm:$0xf]
        %v2233 = vld [vmem:[%s1594 + $0x9f8] sm:$0xf]
        %v2234 = vld [vmem:[%s1594 + $0x9fc] sm:$0xf]
        %v2235 = vld [vmem:[%s1594 + $0xa00] sm:$0xf]
        %v2236 = vld [vmem:[%s1594 + $0xa04] sm:$0xf]
        %v2237 = vld [vmem:[%s1594 + $0xa08] sm:$0xf]
        %v2238 = vld [vmem:[%s1594 + $0xa0c] sm:$0xf]
        %v2239 = vld [vmem:[%s1594 + $0xa10] sm:$0xf]
        %v2240 = vld [vmem:[%s1594 + $0xa14] sm:$0xf]
        %v2241 = vld [vmem:[%s1594 + $0xa18] sm:$0xf]
        %v2242 = vld [vmem:[%s1594 + $0xa1c] sm:$0xf]
        %v2243 = vld [vmem:[%s1594 + $0xa20] sm:$0xf]
        %v2244 = vld [vmem:[%s1594 + $0xa24] sm:$0xf]
        %v2245 = vld [vmem:[%s1594 + $0xa28] sm:$0xf]
        %v2246 = vld [vmem:[%s1594 + $0xa2c] sm:$0xf]
        %v2247 = vld [vmem:[%s1594 + $0xa30] sm:$0xf]
        %v2248 = vld [vmem:[%s1594 + $0xa34] sm:$0xf]
        %v2249 = vld [vmem:[%s1594 + $0xa38] sm:$0xf]
        %v2250 = vld [vmem:[%s1594 + $0xa3c] sm:$0xf]
        %v2251 = vld [vmem:[%s1594 + $0xa40] sm:$0xf]
        %v2252 = vld [vmem:[%s1594 + $0xa44] sm:$0xf]
        %v2253 = vld [vmem:[%s1594 + $0xa48] sm:$0xf]
        %v2254 = vld [vmem:[%s1594 + $0xa4c] sm:$0xf]
        %v2255 = vld [vmem:[%s1594 + $0xa50] sm:$0xf]
        %v2256 = vld [vmem:[%s1594 + $0xa54] sm:$0xf]
        %v2257 = vld [vmem:[%s1594 + $0xa58] sm:$0xf]
        %v2258 = vld [vmem:[%s1594 + $0xa5c] sm:$0xf]
        %v2259 = vld [vmem:[%s1594 + $0xa60] sm:$0xf]
        %v2260 = vld [vmem:[%s1594 + $0xa64] sm:$0xf]
        %v2261 = vld [vmem:[%s1594 + $0xa68] sm:$0xf]
        %v2262 = vld [vmem:[%s1594 + $0xa6c] sm:$0xf]
        %v2263 = vld [vmem:[%s1594 + $0xa70] sm:$0xf]
        %v2264 = vld [vmem:[%s1594 + $0xa74] sm:$0xf]
        %v2265 = vld [vmem:[%s1594 + $0xa78] sm:$0xf]
        %v2266 = vld [vmem:[%s1594 + $0xa7c] sm:$0xf]
        %v2267 = vld [vmem:[%s1594 + $0xa80] sm:$0xf]
        %v2268 = vld [vmem:[%s1594 + $0xa84] sm:$0xf]
        %v2269 = vld [vmem:[%s1594 + $0xa88] sm:$0xf]
        %v2270 = vld [vmem:[%s1594 + $0xa8c] sm:$0xf]
        %v2271 = vld [vmem:[%s1594 + $0xa90] sm:$0xf]
        %v2272 = vld [vmem:[%s1594 + $0xa94] sm:$0xf]
        %v2273 = vld [vmem:[%s1594 + $0xa98] sm:$0xf]
        %v2274 = vld [vmem:[%s1594 + $0xa9c] sm:$0xf]
        %v2275 = vld [vmem:[%s1594 + $0xaa0] sm:$0xf]
        %v2276 = vld [vmem:[%s1594 + $0xaa4] sm:$0xf]
        %v2277 = vld [vmem:[%s1594 + $0xaa8] sm:$0xf]
        %v2278 = vld [vmem:[%s1594 + $0xaac] sm:$0xf]
        %v2279 = vld [vmem:[%s1594 + $0xab0] sm:$0xf]
        %v2280 = vld [vmem:[%s1594 + $0xab4] sm:$0xf]
        %v2281 = vld [vmem:[%s1594 + $0xab8] sm:$0xf]
        %v2282 = vld [vmem:[%s1594 + $0xabc] sm:$0xf]
        %v2283 = vld [vmem:[%s1594 + $0xac0] sm:$0xf]
        %v2284 = vld [vmem:[%s1594 + $0xac4] sm:$0xf]
        %v2285 = vld [vmem:[%s1594 + $0xac8] sm:$0xf]
        %v2286 = vld [vmem:[%s1594 + $0xacc] sm:$0xf]
        %v2287 = vld [vmem:[%s1594 + $0xad0] sm:$0xf]
        %v2288 = vld [vmem:[%s1594 + $0xad4] sm:$0xf]
        %v2289 = vld [vmem:[%s1594 + $0xad8] sm:$0xf]
        %v2290 = vld [vmem:[%s1594 + $0xadc] sm:$0xf]
        %v2291 = vld [vmem:[%s1594 + $0xae0] sm:$0xf]
        %v2292 = vld [vmem:[%s1594 + $0xae4] sm:$0xf]
        %v2293 = vld [vmem:[%s1594 + $0xae8] sm:$0xf]
        %v2294 = vld [vmem:[%s1594 + $0xaec] sm:$0xf]
        %v2295 = vld [vmem:[%s1594 + $0xaf0] sm:$0xf]
        %v2296 = vld [vmem:[%s1594 + $0xaf4] sm:$0xf]
        %v2297 = vld [vmem:[%s1594 + $0xaf8] sm:$0xf]
        %v2298 = vld [vmem:[%s1594 + $0xafc] sm:$0xf]
        %v2299 = vld [vmem:[%s1594 + $0xb00] sm:$0xf]
        %v2300 = vld [vmem:[%s1594 + $0xb04] sm:$0xf]
        %v2301 = vld [vmem:[%s1594 + $0xb08] sm:$0xf]
        %v2302 = vld [vmem:[%s1594 + $0xb0c] sm:$0xf]
        %v2303 = vld [vmem:[%s1594 + $0xb10] sm:$0xf]
        %v2304 = vld [vmem:[%s1594 + $0xb14] sm:$0xf]
        %v2305 = vld [vmem:[%s1594 + $0xb18] sm:$0xf]
        %v2306 = vld [vmem:[%s1594 + $0xb1c] sm:$0xf]
        %v2307 = vld [vmem:[%s1594 + $0xb20] sm:$0xf]
        %v2308 = vld [vmem:[%s1594 + $0xb24] sm:$0xf]
        %v2309 = vld [vmem:[%s1594 + $0xb28] sm:$0xf]
        %v2310 = vld [vmem:[%s1594 + $0xb2c] sm:$0xf]
        %v2311 = vld [vmem:[%s1594 + $0xb30] sm:$0xf]
        %v2312 = vld [vmem:[%s1594 + $0xb34] sm:$0xf]
        %v2313 = vld [vmem:[%s1594 + $0xb38] sm:$0xf]
        %v2314 = vld [vmem:[%s1594 + $0xb3c] sm:$0xf]
        %v2315 = vld [vmem:[%s1594 + $0xb40] sm:$0xf]
        %v2316 = vld [vmem:[%s1594 + $0xb44] sm:$0xf]
        %v2317 = vld [vmem:[%s1594 + $0xb48] sm:$0xf]
        %v2318 = vld [vmem:[%s1594 + $0xb4c] sm:$0xf]
        %v2319 = vld [vmem:[%s1594 + $0xb50] sm:$0xf]
        %v2320 = vld [vmem:[%s1594 + $0xb54] sm:$0xf]
        %v2321 = vld [vmem:[%s1594 + $0xb58] sm:$0xf]
        %v2322 = vld [vmem:[%s1594 + $0xb5c] sm:$0xf]
        %v2323 = vld [vmem:[%s1594 + $0xb60] sm:$0xf]
        %v2324 = vld [vmem:[%s1594 + $0xb64] sm:$0xf]
        %v2325 = vld [vmem:[%s1594 + $0xb68] sm:$0xf]
        %v2326 = vld [vmem:[%s1594 + $0xb6c] sm:$0xf]
        %v2327 = vld [vmem:[%s1594 + $0xb70] sm:$0xf]
        %v2328 = vld [vmem:[%s1594 + $0xb74] sm:$0xf]
        %v2329 = vld [vmem:[%s1594 + $0xb78] sm:$0xf]
        %v2330 = vld [vmem:[%s1594 + $0xb7c] sm:$0xf]
        %v2331 = vld [vmem:[%s1594 + $0xb80] sm:$0xf]
        %v2332 = vld [vmem:[%s1594 + $0xb84] sm:$0xf]
        %v2333 = vld [vmem:[%s1594 + $0xb88] sm:$0xf]
        %v2334 = vld [vmem:[%s1594 + $0xb8c] sm:$0xf]
        %v2335 = vld [vmem:[%s1594 + $0xb90] sm:$0xf]
        %v2336 = vld [vmem:[%s1594 + $0xb94] sm:$0xf]
        %v2337 = vld [vmem:[%s1594 + $0xb98] sm:$0xf]
        %v2338 = vld [vmem:[%s1594 + $0xb9c] sm:$0xf]
        %v2339 = vld [vmem:[%s1594 + $0xba0] sm:$0xf]
        %v2340 = vld [vmem:[%s1594 + $0xba4] sm:$0xf]
        %v2341 = vld [vmem:[%s1594 + $0xba8] sm:$0xf]
        %v2342 = vld [vmem:[%s1594 + $0xbac] sm:$0xf]
        %v2343 = vld [vmem:[%s1594 + $0xbb0] sm:$0xf]
        %v2344 = vld [vmem:[%s1594 + $0xbb4] sm:$0xf]
        %v2345 = vld [vmem:[%s1594 + $0xbb8] sm:$0xf]
        %v2346 = vld [vmem:[%s1594 + $0xbbc] sm:$0xf]
        %v2347 = vld [vmem:[%s1594 + $0xbc0] sm:$0xf]
        %v2348 = vld [vmem:[%s1594 + $0xbc4] sm:$0xf]
        %v2349 = vld [vmem:[%s1594 + $0xbc8] sm:$0xf]
        %v2350 = vld [vmem:[%s1594 + $0xbcc] sm:$0xf]
        %v2351 = vld [vmem:[%s1594 + $0xbd0] sm:$0xf]
        %v2352 = vld [vmem:[%s1594 + $0xbd4] sm:$0xf]
        %v2353 = vld [vmem:[%s1594 + $0xbd8] sm:$0xf]
        %v2354 = vld [vmem:[%s1594 + $0xbdc] sm:$0xf]
        %v2355 = vld [vmem:[%s1594 + $0xbe0] sm:$0xf]
        %v2356 = vld [vmem:[%s1594 + $0xbe4] sm:$0xf]
        %v2357 = vld [vmem:[%s1594 + $0xbe8] sm:$0xf]
        %v2358 = vld [vmem:[%s1594 + $0xbec] sm:$0xf]
        %v2359 = vld [vmem:[%s1594 + $0xbf0] sm:$0xf]
        %v2360 = vld [vmem:[%s1594 + $0xbf4] sm:$0xf]
        %v2361 = vld [vmem:[%s1594 + $0xbf8] sm:$0xf]
        %v2362 = vld [vmem:[%s1594 + $0xbfc] sm:$0xf]
        %v2363 = vld [vmem:[%s1594 + $0xc00] sm:$0xf]
        %v2364 = vld [vmem:[%s1594 + $0xc04] sm:$0xf]
        %v2365 = vld [vmem:[%s1594 + $0xc08] sm:$0xf]
        %v2366 = vld [vmem:[%s1594 + $0xc0c] sm:$0xf]
        %v2367 = vld [vmem:[%s1594 + $0xc10] sm:$0xf]
        %v2368 = vld [vmem:[%s1594 + $0xc14] sm:$0xf]
        %v2369 = vld [vmem:[%s1594 + $0xc18] sm:$0xf]
        %v2370 = vld [vmem:[%s1594 + $0xc1c] sm:$0xf]
        %v2371 = vld [vmem:[%s1594 + $0xc20] sm:$0xf]
        %v2372 = vld [vmem:[%s1594 + $0xc24] sm:$0xf]
        %v2373 = vld [vmem:[%s1594 + $0xc28] sm:$0xf]
        %v2374 = vld [vmem:[%s1594 + $0xc2c] sm:$0xf]
        %v2375 = vld [vmem:[%s1594 + $0xc30] sm:$0xf]
        %v2376 = vld [vmem:[%s1594 + $0xc34] sm:$0xf]
        %v2377 = vld [vmem:[%s1594 + $0xc38] sm:$0xf]
        %v2378 = vld [vmem:[%s1594 + $0xc3c] sm:$0xf]
        %v2379 = vld [vmem:[%s1594 + $0xc40] sm:$0xf]
        %v2380 = vld [vmem:[%s1594 + $0xc44] sm:$0xf]
        %v2381 = vld [vmem:[%s1594 + $0xc48] sm:$0xf]
        %v2382 = vld [vmem:[%s1594 + $0xc4c] sm:$0xf]
        %v2383 = vld [vmem:[%s1594 + $0xc50] sm:$0xf]
        %v2384 = vld [vmem:[%s1594 + $0xc54] sm:$0xf]
        %v2385 = vld [vmem:[%s1594 + $0xc58] sm:$0xf]
        %v2386 = vld [vmem:[%s1594 + $0xc5c] sm:$0xf]
        %v2387 = vld [vmem:[%s1594 + $0xc60] sm:$0xf]
        %v2388 = vld [vmem:[%s1594 + $0xc64] sm:$0xf]
        %v2389 = vld [vmem:[%s1594 + $0xc68] sm:$0xf]
        %v2390 = vld [vmem:[%s1594 + $0xc6c] sm:$0xf]
        %v2391 = vld [vmem:[%s1594 + $0xc70] sm:$0xf]
        %v2392 = vld [vmem:[%s1594 + $0xc74] sm:$0xf]
        %v2393 = vld [vmem:[%s1594 + $0xc78] sm:$0xf]
        %v2394 = vld [vmem:[%s1594 + $0xc7c] sm:$0xf]
        %v2395 = vld [vmem:[%s1594 + $0xc80] sm:$0xf]
        %v2396 = vld [vmem:[%s1594 + $0xc84] sm:$0xf]
        %v2397 = vld [vmem:[%s1594 + $0xc88] sm:$0xf]
        %v2398 = vld [vmem:[%s1594 + $0xc8c] sm:$0xf]
        %v2399 = vld [vmem:[%s1594 + $0xc90] sm:$0xf]
        %v2400 = vld [vmem:[%s1594 + $0xc94] sm:$0xf]
        %v2401 = vld [vmem:[%s1594 + $0xc98] sm:$0xf]
        %v2402 = vld [vmem:[%s1594 + $0xc9c] sm:$0xf]
        %v2403 = vld [vmem:[%s1594 + $0xca0] sm:$0xf]
        %v2404 = vld [vmem:[%s1594 + $0xca4] sm:$0xf]
        %v2405 = vld [vmem:[%s1594 + $0xca8] sm:$0xf]
        %v2406 = vld [vmem:[%s1594 + $0xcac] sm:$0xf]
        %v2407 = vld [vmem:[%s1594 + $0xcb0] sm:$0xf]
        %v2408 = vld [vmem:[%s1594 + $0xcb4] sm:$0xf]
        %v2409 = vld [vmem:[%s1594 + $0xcb8] sm:$0xf]
        %v2410 = vld [vmem:[%s1594 + $0xcbc] sm:$0xf]
        %v2411 = vld [vmem:[%s1594 + $0xcc0] sm:$0xf]
        %v2412 = vld [vmem:[%s1594 + $0xcc4] sm:$0xf]
        %v2413 = vld [vmem:[%s1594 + $0xcc8] sm:$0xf]
        %v2414 = vld [vmem:[%s1594 + $0xccc] sm:$0xf]
        %v2415 = vld [vmem:[%s1594 + $0xcd0] sm:$0xf]
        %v2416 = vld [vmem:[%s1594 + $0xcd4] sm:$0xf]
        %v2417 = vld [vmem:[%s1594 + $0xcd8] sm:$0xf]
        %v2418 = vld [vmem:[%s1594 + $0xcdc] sm:$0xf]
        %v2419 = vld [vmem:[%s1594 + $0xce0] sm:$0xf]
        %v2420 = vld [vmem:[%s1594 + $0xce4] sm:$0xf]
        %v2421 = vld [vmem:[%s1594 + $0xce8] sm:$0xf]
        %v2422 = vld [vmem:[%s1594 + $0xcec] sm:$0xf]
        %v2423 = vld [vmem:[%s1594 + $0xcf0] sm:$0xf]
        %v2424 = vld [vmem:[%s1594 + $0xcf4] sm:$0xf]
        %v2425 = vld [vmem:[%s1594 + $0xcf8] sm:$0xf]
        %v2426 = vld [vmem:[%s1594 + $0xcfc] sm:$0xf]
        %v2427 = vld [vmem:[%s1594 + $0xd00] sm:$0xf]
        %v2428 = vld [vmem:[%s1594 + $0xd04] sm:$0xf]
        %v2429 = vld [vmem:[%s1594 + $0xd08] sm:$0xf]
        %v2430 = vld [vmem:[%s1594 + $0xd0c] sm:$0xf]
        %v2431 = vld [vmem:[%s1594 + $0xd10] sm:$0xf]
        %v2432 = vld [vmem:[%s1594 + $0xd14] sm:$0xf]
        %v2433 = vld [vmem:[%s1594 + $0xd18] sm:$0xf]
        %v2434 = vld [vmem:[%s1594 + $0xd1c] sm:$0xf]
        %v2435 = vld [vmem:[%s1594 + $0xd20] sm:$0xf]
        %v2436 = vld [vmem:[%s1594 + $0xd24] sm:$0xf]
        %v2437 = vld [vmem:[%s1594 + $0xd28] sm:$0xf]
        %v2438 = vld [vmem:[%s1594 + $0xd2c] sm:$0xf]
        %v2439 = vld [vmem:[%s1594 + $0xd30] sm:$0xf]
        %v2440 = vld [vmem:[%s1594 + $0xd34] sm:$0xf]
        %v2441 = vld [vmem:[%s1594 + $0xd38] sm:$0xf]
        %v2442 = vld [vmem:[%s1594 + $0xd3c] sm:$0xf]
        %v2443 = vld [vmem:[%s1594 + $0xd40] sm:$0xf]
        %v2444 = vld [vmem:[%s1594 + $0xd44] sm:$0xf]
        %v2445 = vld [vmem:[%s1594 + $0xd48] sm:$0xf]
        %v2446 = vld [vmem:[%s1594 + $0xd4c] sm:$0xf]
        %v2447 = vld [vmem:[%s1594 + $0xd50] sm:$0xf]
        %v2448 = vld [vmem:[%s1594 + $0xd54] sm:$0xf]
        %v2449 = vld [vmem:[%s1594 + $0xd58] sm:$0xf]
        %v2450 = vld [vmem:[%s1594 + $0xd5c] sm:$0xf]
        %v2451 = vld [vmem:[%s1594 + $0xd60] sm:$0xf]
        %v2452 = vld [vmem:[%s1594 + $0xd64] sm:$0xf]
        %v2453 = vld [vmem:[%s1594 + $0xd68] sm:$0xf]
        %v2454 = vld [vmem:[%s1594 + $0xd6c] sm:$0xf]
        %v2455 = vld [vmem:[%s1594 + $0xd70] sm:$0xf]
        %v2456 = vld [vmem:[%s1594 + $0xd74] sm:$0xf]
        %v2457 = vld [vmem:[%s1594 + $0xd78] sm:$0xf]
        %v2458 = vld [vmem:[%s1594 + $0xd7c] sm:$0xf]
        %v2459 = vld [vmem:[%s1594 + $0xd80] sm:$0xf]
        %v2460 = vld [vmem:[%s1594 + $0xd84] sm:$0xf]
        %v2461 = vld [vmem:[%s1594 + $0xd88] sm:$0xf]
        %v2462 = vld [vmem:[%s1594 + $0xd8c] sm:$0xf]
        %v2463 = vld [vmem:[%s1594 + $0xd90] sm:$0xf]
        %v2464 = vld [vmem:[%s1594 + $0xd94] sm:$0xf]
        %v2465 = vld [vmem:[%s1594 + $0xd98] sm:$0xf]
        %v2466 = vld [vmem:[%s1594 + $0xd9c] sm:$0xf]
        %v2467 = vld [vmem:[%s1594 + $0xda0] sm:$0xf]
        %v2468 = vld [vmem:[%s1594 + $0xda4] sm:$0xf]
        %v2469 = vld [vmem:[%s1594 + $0xda8] sm:$0xf]
        %v2470 = vld [vmem:[%s1594 + $0xdac] sm:$0xf]
        %v2471 = vld [vmem:[%s1594 + $0xdb0] sm:$0xf]
        %v2472 = vld [vmem:[%s1594 + $0xdb4] sm:$0xf]
        %v2473 = vld [vmem:[%s1594 + $0xdb8] sm:$0xf]
        %v2474 = vld [vmem:[%s1594 + $0xdbc] sm:$0xf]
        %v2475 = vld [vmem:[%s1594 + $0xdc0] sm:$0xf]
        %v2476 = vld [vmem:[%s1594 + $0xdc4] sm:$0xf]
        %v2477 = vld [vmem:[%s1594 + $0xdc8] sm:$0xf]
        %v2478 = vld [vmem:[%s1594 + $0xdcc] sm:$0xf]
        %v2479 = vld [vmem:[%s1594 + $0xdd0] sm:$0xf]
        %v2480 = vld [vmem:[%s1594 + $0xdd4] sm:$0xf]
        %v2481 = vld [vmem:[%s1594 + $0xdd8] sm:$0xf]
        %v2482 = vld [vmem:[%s1594 + $0xddc] sm:$0xf]
        %v2483 = vld [vmem:[%s1594 + $0xde0] sm:$0xf]
        %v2484 = vld [vmem:[%s1594 + $0xde4] sm:$0xf]
        %v2485 = vld [vmem:[%s1594 + $0xde8] sm:$0xf]
        %v2486 = vld [vmem:[%s1594 + $0xdec] sm:$0xf]
        %v2487 = vld [vmem:[%s1594 + $0xdf0] sm:$0xf]
        %v2488 = vld [vmem:[%s1594 + $0xdf4] sm:$0xf]
        %v2489 = vld [vmem:[%s1594 + $0xdf8] sm:$0xf]
        %v2490 = vld [vmem:[%s1594 + $0xdfc] sm:$0xf]
        %v2491 = vld [vmem:[%s1594 + $0xe00] sm:$0xf]
        %v2492 = vld [vmem:[%s1594 + $0xe04] sm:$0xf]
        %v2493 = vld [vmem:[%s1594 + $0xe08] sm:$0xf]
        %v2494 = vld [vmem:[%s1594 + $0xe0c] sm:$0xf]
        %v2495 = vld [vmem:[%s1594 + $0xe10] sm:$0xf]
        %v2496 = vld [vmem:[%s1594 + $0xe14] sm:$0xf]
        %v2497 = vld [vmem:[%s1594 + $0xe18] sm:$0xf]
        %v2498 = vld [vmem:[%s1594 + $0xe1c] sm:$0xf]
        %v2499 = vld [vmem:[%s1594 + $0xe20] sm:$0xf]
        %v2500 = vld [vmem:[%s1594 + $0xe24] sm:$0xf]
        %v2501 = vld [vmem:[%s1594 + $0xe28] sm:$0xf]
        %v2502 = vld [vmem:[%s1594 + $0xe2c] sm:$0xf]
        %v2503 = vld [vmem:[%s1594 + $0xe30] sm:$0xf]
        %v2504 = vld [vmem:[%s1594 + $0xe34] sm:$0xf]
        %v2505 = vld [vmem:[%s1594 + $0xe38] sm:$0xf]
        %v2506 = vld [vmem:[%s1594 + $0xe3c] sm:$0xf]
        %v2507 = vld [vmem:[%s1594 + $0xe40] sm:$0xf]
        %v2508 = vld [vmem:[%s1594 + $0xe44] sm:$0xf]
        %v2509 = vld [vmem:[%s1594 + $0xe48] sm:$0xf]
        %v2510 = vld [vmem:[%s1594 + $0xe4c] sm:$0xf]
        %v2511 = vld [vmem:[%s1594 + $0xe50] sm:$0xf]
        %v2512 = vld [vmem:[%s1594 + $0xe54] sm:$0xf]
        %v2513 = vld [vmem:[%s1594 + $0xe58] sm:$0xf]
        %v2514 = vld [vmem:[%s1594 + $0xe5c] sm:$0xf]
        %v2515 = vld [vmem:[%s1594 + $0xe60] sm:$0xf]
        %v2516 = vld [vmem:[%s1594 + $0xe64] sm:$0xf]
        %v2517 = vld [vmem:[%s1594 + $0xe68] sm:$0xf]
        %v2518 = vld [vmem:[%s1594 + $0xe6c] sm:$0xf]
        %v2519 = vld [vmem:[%s1594 + $0xe70] sm:$0xf]
        %v2520 = vld [vmem:[%s1594 + $0xe74] sm:$0xf]
        %v2521 = vld [vmem:[%s1594 + $0xe78] sm:$0xf]
        %v2522 = vld [vmem:[%s1594 + $0xe7c] sm:$0xf]
        %v2523 = vld [vmem:[%s1594 + $0xe80] sm:$0xf]
        %v2524 = vld [vmem:[%s1594 + $0xe84] sm:$0xf]
        %v2525 = vld [vmem:[%s1594 + $0xe88] sm:$0xf]
        %v2526 = vld [vmem:[%s1594 + $0xe8c] sm:$0xf]
        %v2527 = vld [vmem:[%s1594 + $0xe90] sm:$0xf]
        %v2528 = vld [vmem:[%s1594 + $0xe94] sm:$0xf]
        %v2529 = vld [vmem:[%s1594 + $0xe98] sm:$0xf]
        %v2530 = vld [vmem:[%s1594 + $0xe9c] sm:$0xf]
        %v2531 = vld [vmem:[%s1594 + $0xea0] sm:$0xf]
        %v2532 = vld [vmem:[%s1594 + $0xea4] sm:$0xf]
        %v2533 = vld [vmem:[%s1594 + $0xea8] sm:$0xf]
        %v2534 = vld [vmem:[%s1594 + $0xeac] sm:$0xf]
        %v2535 = vld [vmem:[%s1594 + $0xeb0] sm:$0xf]
        %v2536 = vld [vmem:[%s1594 + $0xeb4] sm:$0xf]
        %v2537 = vld [vmem:[%s1594 + $0xeb8] sm:$0xf]
        %v2538 = vld [vmem:[%s1594 + $0xebc] sm:$0xf]
        %v2539 = vld [vmem:[%s1594 + $0xec0] sm:$0xf]
        %v2540 = vld [vmem:[%s1594 + $0xec4] sm:$0xf]
        %v2541 = vld [vmem:[%s1594 + $0xec8] sm:$0xf]
        %v2542 = vld [vmem:[%s1594 + $0xecc] sm:$0xf]
        %v2543 = vld [vmem:[%s1594 + $0xed0] sm:$0xf]
        %v2544 = vld [vmem:[%s1594 + $0xed4] sm:$0xf]
        %v2545 = vld [vmem:[%s1594 + $0xed8] sm:$0xf]
        %v2546 = vld [vmem:[%s1594 + $0xedc] sm:$0xf]
        %v2547 = vld [vmem:[%s1594 + $0xee0] sm:$0xf]
        %v2548 = vld [vmem:[%s1594 + $0xee4] sm:$0xf]
        %v2549 = vld [vmem:[%s1594 + $0xee8] sm:$0xf]
        %v2550 = vld [vmem:[%s1594 + $0xeec] sm:$0xf]
        %v2551 = vld [vmem:[%s1594 + $0xef0] sm:$0xf]
        %v2552 = vld [vmem:[%s1594 + $0xef4] sm:$0xf]
        %v2553 = vld [vmem:[%s1594 + $0xef8] sm:$0xf]
        %v2554 = vld [vmem:[%s1594 + $0xefc] sm:$0xf]
        %v2555 = vld [vmem:[%s1594 + $0xf00] sm:$0xf]
        %v2556 = vld [vmem:[%s1594 + $0xf04] sm:$0xf]
        %v2557 = vld [vmem:[%s1594 + $0xf08] sm:$0xf]
        %v2558 = vld [vmem:[%s1594 + $0xf0c] sm:$0xf]
        %v2559 = vld [vmem:[%s1594 + $0xf10] sm:$0xf]
        %v2560 = vld [vmem:[%s1594 + $0xf14] sm:$0xf]
        %v2561 = vld [vmem:[%s1594 + $0xf18] sm:$0xf]
        %v2562 = vld [vmem:[%s1594 + $0xf1c] sm:$0xf]
        %v2563 = vld [vmem:[%s1594 + $0xf20] sm:$0xf]
        %v2564 = vld [vmem:[%s1594 + $0xf24] sm:$0xf]
        %v2565 = vld [vmem:[%s1594 + $0xf28] sm:$0xf]
        %v2566 = vld [vmem:[%s1594 + $0xf2c] sm:$0xf]
        %v2567 = vld [vmem:[%s1594 + $0xf30] sm:$0xf]
        %v2568 = vld [vmem:[%s1594 + $0xf34] sm:$0xf]
        %v2569 = vld [vmem:[%s1594 + $0xf38] sm:$0xf]
        %v2570 = vld [vmem:[%s1594 + $0xf3c] sm:$0xf]
        %v2571 = vld [vmem:[%s1594 + $0xf40] sm:$0xf]
        %v2572 = vld [vmem:[%s1594 + $0xf44] sm:$0xf]
        %v2573 = vld [vmem:[%s1594 + $0xf48] sm:$0xf]
        %v2574 = vld [vmem:[%s1594 + $0xf4c] sm:$0xf]
        %v2575 = vld [vmem:[%s1594 + $0xf50] sm:$0xf]
        %v2576 = vld [vmem:[%s1594 + $0xf54] sm:$0xf]
        %v2577 = vld [vmem:[%s1594 + $0xf58] sm:$0xf]
        %v2578 = vld [vmem:[%s1594 + $0xf5c] sm:$0xf]
        %v2579 = vld [vmem:[%s1594 + $0xf60] sm:$0xf]
        %v2580 = vld [vmem:[%s1594 + $0xf64] sm:$0xf]
        %v2581 = vld [vmem:[%s1594 + $0xf68] sm:$0xf]
        %v2582 = vld [vmem:[%s1594 + $0xf6c] sm:$0xf]
        %v2583 = vld [vmem:[%s1594 + $0xf70] sm:$0xf]
        %v2584 = vld [vmem:[%s1594 + $0xf74] sm:$0xf]
        %v2585 = vld [vmem:[%s1594 + $0xf78] sm:$0xf]
        %v2586 = vld [vmem:[%s1594 + $0xf7c] sm:$0xf]
        %v2587 = vld [vmem:[%s1594 + $0xf80] sm:$0xf]
        %v2588 = vld [vmem:[%s1594 + $0xf84] sm:$0xf]
        %v2589 = vld [vmem:[%s1594 + $0xf88] sm:$0xf]
        %v2590 = vld [vmem:[%s1594 + $0xf8c] sm:$0xf]
        %v2591 = vld [vmem:[%s1594 + $0xf90] sm:$0xf]
        %v2592 = vld [vmem:[%s1594 + $0xf94] sm:$0xf]
        %v2593 = vld [vmem:[%s1594 + $0xf98] sm:$0xf]
        %v2594 = vld [vmem:[%s1594 + $0xf9c] sm:$0xf]
        %v2595 = vld [vmem:[%s1594 + $0xfa0] sm:$0xf]
        %v2596 = vld [vmem:[%s1594 + $0xfa4] sm:$0xf]
        %v2597 = vld [vmem:[%s1594 + $0xfa8] sm:$0xf]
        %v2598 = vld [vmem:[%s1594 + $0xfac] sm:$0xf]
        %v2599 = vld [vmem:[%s1594 + $0xfb0] sm:$0xf]
        %v2600 = vld [vmem:[%s1594 + $0xfb4] sm:$0xf]
        %v2601 = vld [vmem:[%s1594 + $0xfb8] sm:$0xf]
        %v2602 = vld [vmem:[%s1594 + $0xfbc] sm:$0xf]
        %v2603 = vld [vmem:[%s1594 + $0xfc0] sm:$0xf]
        %v2604 = vld [vmem:[%s1594 + $0xfc4] sm:$0xf]
        %v2605 = vld [vmem:[%s1594 + $0xfc8] sm:$0xf]
        %v2606 = vld [vmem:[%s1594 + $0xfcc] sm:$0xf]
        %v2607 = vld [vmem:[%s1594 + $0xfd0] sm:$0xf]
        %v2608 = vld [vmem:[%s1594 + $0xfd4] sm:$0xf]
        %v2609 = vld [vmem:[%s1594 + $0xfd8] sm:$0xf]
        %v2610 = vld [vmem:[%s1594 + $0xfdc] sm:$0xf]
        %v2611 = vld [vmem:[%s1594 + $0xfe0] sm:$0xf]
        %v2612 = vld [vmem:[%s1594 + $0xfe4] sm:$0xf]
        %v2613 = vld [vmem:[%s1594 + $0xfe8] sm:$0xf]
        %v2614 = vld [vmem:[%s1594 + $0xfec] sm:$0xf]
        %v2615 = vld [vmem:[%s1594 + $0xff0] sm:$0xf]
        %v2616 = vld [vmem:[%s1594 + $0xff4] sm:$0xf]
        %v2617 = vld [vmem:[%s1594 + $0xff8] sm:$0xf]
        %v2618 = vld [vmem:[%s1594 + $0xffc] sm:$0xf]
        %v2619 = vld [vmem:[%s1594 + $0x1000] sm:$0xf]
        %v2620 = vld [vmem:[%s1594 + $0x1004] sm:$0xf]
        %v2621 = vld [vmem:[%s1594 + $0x1008] sm:$0xf]
        %v2622 = vld [vmem:[%s1594 + $0x100c] sm:$0xf]
        %v2623 = vld [vmem:[%s1594 + $0x1010] sm:$0xf]
        %v2624 = vld [vmem:[%s1594 + $0x1014] sm:$0xf]
        %v2625 = vld [vmem:[%s1594 + $0x1018] sm:$0xf]
        %v2626 = vld [vmem:[%s1594 + $0x101c] sm:$0xf]
        %v2627 = vld [vmem:[%s1594 + $0x1020] sm:$0xf]
        %v2628 = vld [vmem:[%s1594 + $0x1024] sm:$0xf]
        %v2629 = vld [vmem:[%s1594 + $0x1028] sm:$0xf]
        %v2630 = vld [vmem:[%s1594 + $0x102c] sm:$0xf]
        %v2631 = vld [vmem:[%s1594 + $0x1030] sm:$0xf]
        %v2632 = vld [vmem:[%s1594 + $0x1034] sm:$0xf]
        %v2633 = vld [vmem:[%s1594 + $0x1038] sm:$0xf]
        %v2634 = vld [vmem:[%s1594 + $0x103c] sm:$0xf]
        %v2635 = vld [vmem:[%s1594 + $0x1040] sm:$0xf]
        %v2636 = vld [vmem:[%s1594 + $0x1044] sm:$0xf]
        %v2637 = vld [vmem:[%s1594 + $0x1048] sm:$0xf]
        %v2638 = vld [vmem:[%s1594 + $0x104c] sm:$0xf]
        %v2639 = vld [vmem:[%s1594 + $0x1050] sm:$0xf]
        %v2640 = vld [vmem:[%s1594 + $0x1054] sm:$0xf]
        %v2641 = vld [vmem:[%s1594 + $0x1058] sm:$0xf]
        %v2642 = vld [vmem:[%s1594 + $0x105c] sm:$0xf]
        %v2643 = vld [vmem:[%s1594 + $0x1060] sm:$0xf]
        %v2644 = vld [vmem:[%s1594 + $0x1064] sm:$0xf]
        %v2645 = vld [vmem:[%s1594 + $0x1068] sm:$0xf]
        %v2646 = vld [vmem:[%s1594 + $0x106c] sm:$0xf]
        %v2647 = vld [vmem:[%s1594 + $0x1070] sm:$0xf]
        %v2648 = vld [vmem:[%s1594 + $0x1074] sm:$0xf]
        %v2649 = vld [vmem:[%s1594 + $0x1078] sm:$0xf]
        %v2650 = vld [vmem:[%s1594 + $0x107c] sm:$0xf]
        %v2651 = vld [vmem:[%s1594 + $0x1080] sm:$0xf]
        %v2652 = vld [vmem:[%s1594 + $0x1084] sm:$0xf]
        %v2653 = vld [vmem:[%s1594 + $0x1088] sm:$0xf]
        %v2654 = vld [vmem:[%s1594 + $0x108c] sm:$0xf]
        %v2655 = vld [vmem:[%s1594 + $0x1090] sm:$0xf]
        %v2656 = vld [vmem:[%s1594 + $0x1094] sm:$0xf]
        %v2657 = vld [vmem:[%s1594 + $0x1098] sm:$0xf]
        %v2658 = vld [vmem:[%s1594 + $0x109c] sm:$0xf]
        %v2659 = vld [vmem:[%s1594 + $0x10a0] sm:$0xf]
        %v2660 = vld [vmem:[%s1594 + $0x10a4] sm:$0xf]
        %v2661 = vld [vmem:[%s1594 + $0x10a8] sm:$0xf]
        %v2662 = vld [vmem:[%s1594 + $0x10ac] sm:$0xf]
        %v2663 = vld [vmem:[%s1594 + $0x10b0] sm:$0xf]
        %v2664 = vld [vmem:[%s1594 + $0x10b4] sm:$0xf]
        %v2665 = vld [vmem:[%s1594 + $0x10b8] sm:$0xf]
        %v2666 = vld [vmem:[%s1594 + $0x10bc] sm:$0xf]
        %v2667 = vld [vmem:[%s1594 + $0x10c0] sm:$0xf]
        %v2668 = vld [vmem:[%s1594 + $0x10c4] sm:$0xf]
        %v2669 = vld [vmem:[%s1594 + $0x10c8] sm:$0xf]
        %v2670 = vld [vmem:[%s1594 + $0x10cc] sm:$0xf]
        %v2671 = vld [vmem:[%s1594 + $0x10d0] sm:$0xf]
        %v2672 = vld [vmem:[%s1594 + $0x10d4] sm:$0xf]
        %v2673 = vld [vmem:[%s1594 + $0x10d8] sm:$0xf]
        %v2674 = vld [vmem:[%s1594 + $0x10dc] sm:$0xf]
        %v2675 = vld [vmem:[%s1594 + $0x10e0] sm:$0xf]
        %v2676 = vld [vmem:[%s1594 + $0x10e4] sm:$0xf]
        %v2677 = vld [vmem:[%s1594 + $0x10e8] sm:$0xf]
        %v2678 = vld [vmem:[%s1594 + $0x10ec] sm:$0xf]
        %v2679 = vld [vmem:[%s1594 + $0x10f0] sm:$0xf]
        %v2680 = vld [vmem:[%s1594 + $0x10f4] sm:$0xf]
        %v2681 = vld [vmem:[%s1594 + $0x10f8] sm:$0xf]
        %v2682 = vld [vmem:[%s1594 + $0x10fc] sm:$0xf]
        %v2683 = vld [vmem:[%s1594 + $0x1100] sm:$0xf]
        %v2684 = vld [vmem:[%s1594 + $0x1104] sm:$0xf]
        %v2685 = vld [vmem:[%s1594 + $0x1108] sm:$0xf]
        %v2686 = vld [vmem:[%s1594 + $0x110c] sm:$0xf]
        %v2687 = vld [vmem:[%s1594 + $0x1110] sm:$0xf]
        %v2688 = vld [vmem:[%s1594 + $0x1114] sm:$0xf]
        %v2689 = vld [vmem:[%s1594 + $0x1118] sm:$0xf]
        %v2690 = vld [vmem:[%s1594 + $0x111c] sm:$0xf]
        %v2691 = vld [vmem:[%s1594 + $0x1120] sm:$0xf]
        %v2692 = vld [vmem:[%s1594 + $0x1124] sm:$0xf]
        %v2693 = vld [vmem:[%s1594 + $0x1128] sm:$0xf]
        %v2694 = vld [vmem:[%s1594 + $0x112c] sm:$0xf]
        %v2695 = vld [vmem:[%s1594 + $0x1130] sm:$0xf]
        %v2696 = vld [vmem:[%s1594 + $0x1134] sm:$0xf]
        %v2697 = vld [vmem:[%s1594 + $0x1138] sm:$0xf]
        %v2698 = vld [vmem:[%s1594 + $0x113c] sm:$0xf]
        %v2699 = vld [vmem:[%s1594 + $0x1140] sm:$0xf]
        %v2700 = vld [vmem:[%s1594 + $0x1144] sm:$0xf]
        %v2701 = vld [vmem:[%s1594 + $0x1148] sm:$0xf]
        %v2702 = vld [vmem:[%s1594 + $0x114c] sm:$0xf]
        %v2703 = vld [vmem:[%s1594 + $0x1150] sm:$0xf]
        %v2704 = vld [vmem:[%s1594 + $0x1154] sm:$0xf]
        %v2705 = vld [vmem:[%s1594 + $0x1158] sm:$0xf]
        %v2706 = vld [vmem:[%s1594 + $0x115c] sm:$0xf]
        %v2707 = vld [vmem:[%s1594 + $0x1160] sm:$0xf]
        %v2708 = vld [vmem:[%s1594 + $0x1164] sm:$0xf]
        %v2709 = vld [vmem:[%s1594 + $0x1168] sm:$0xf]
        %v2710 = vld [vmem:[%s1594 + $0x116c] sm:$0xf]
        %v2711 = vld [vmem:[%s1594 + $0x1170] sm:$0xf]
        %v2712 = vld [vmem:[%s1594 + $0x1174] sm:$0xf]
        %v2713 = vld [vmem:[%s1594 + $0x1178] sm:$0xf]
        %v2714 = vld [vmem:[%s1594 + $0x117c] sm:$0xf]
        %v2715 = vld [vmem:[%s1594 + $0x1180] sm:$0xf]
        %v2716 = vld [vmem:[%s1594 + $0x1184] sm:$0xf]
        %v2717 = vld [vmem:[%s1594 + $0x1188] sm:$0xf]
        %v2718 = vld [vmem:[%s1594 + $0x118c] sm:$0xf]
        %v2719 = vld [vmem:[%s1594 + $0x1190] sm:$0xf]
        %v2720 = vld [vmem:[%s1594 + $0x1194] sm:$0xf]
        %v2721 = vld [vmem:[%s1594 + $0x1198] sm:$0xf]
        %v2722 = vld [vmem:[%s1594 + $0x119c] sm:$0xf]
        %v2723 = vld [vmem:[%s1594 + $0x11a0] sm:$0xf]
        %v2724 = vld [vmem:[%s1594 + $0x11a4] sm:$0xf]
        %v2725 = vld [vmem:[%s1594 + $0x11a8] sm:$0xf]
        %v2726 = vld [vmem:[%s1594 + $0x11ac] sm:$0xf]
        %v2727 = vld [vmem:[%s1594 + $0x11b0] sm:$0xf]
        %v2728 = vld [vmem:[%s1594 + $0x11b4] sm:$0xf]
        %v2729 = vld [vmem:[%s1594 + $0x11b8] sm:$0xf]
        %v2730 = vld [vmem:[%s1594 + $0x11bc] sm:$0xf]
        %v2731 = vld [vmem:[%s1594 + $0x11c0] sm:$0xf]
        %v2732 = vld [vmem:[%s1594 + $0x11c4] sm:$0xf]
        %v2733 = vld [vmem:[%s1594 + $0x11c8] sm:$0xf]
        %v2734 = vld [vmem:[%s1594 + $0x11cc] sm:$0xf]
        %v2735 = vld [vmem:[%s1594 + $0x11d0] sm:$0xf]
        %v2736 = vld [vmem:[%s1594 + $0x11d4] sm:$0xf]
        %v2737 = vld [vmem:[%s1594 + $0x11d8] sm:$0xf]
        %v2738 = vld [vmem:[%s1594 + $0x11dc] sm:$0xf]
        %v2739 = vld [vmem:[%s1594 + $0x11e0] sm:$0xf]
        %v2740 = vld [vmem:[%s1594 + $0x11e4] sm:$0xf]
        %v2741 = vld [vmem:[%s1594 + $0x11e8] sm:$0xf]
        %v2742 = vld [vmem:[%s1594 + $0x11ec] sm:$0xf]
        %v2743 = vld [vmem:[%s1594 + $0x11f0] sm:$0xf]
        %v2744 = vld [vmem:[%s1594 + $0x11f4] sm:$0xf]
        %v2745 = vld [vmem:[%s1594 + $0x11f8] sm:$0xf]
        %v2746 = vld [vmem:[%s1594 + $0x11fc] sm:$0xf]
        %v2747 = vld [vmem:[%s1594 + $0x1200] sm:$0xf]
        %v2748 = vld [vmem:[%s1594 + $0x1204] sm:$0xf]
        %v2749 = vld [vmem:[%s1594 + $0x1208] sm:$0xf]
        %v2750 = vld [vmem:[%s1594 + $0x120c] sm:$0xf]
        %v2751 = vld [vmem:[%s1594 + $0x1210] sm:$0xf]
        %v2752 = vld [vmem:[%s1594 + $0x1214] sm:$0xf]
        %v2753 = vld [vmem:[%s1594 + $0x1218] sm:$0xf]
        %v2754 = vld [vmem:[%s1594 + $0x121c] sm:$0xf]
        %v2755 = vld [vmem:[%s1594 + $0x1220] sm:$0xf]
        %v2756 = vld [vmem:[%s1594 + $0x1224] sm:$0xf]
        %v2757 = vld [vmem:[%s1594 + $0x1228] sm:$0xf]
        %v2758 = vld [vmem:[%s1594 + $0x122c] sm:$0xf]
        %v2759 = vld [vmem:[%s1594 + $0x1230] sm:$0xf]
        %v2760 = vld [vmem:[%s1594 + $0x1234] sm:$0xf]
        %v2761 = vld [vmem:[%s1594 + $0x1238] sm:$0xf]
        %v2762 = vld [vmem:[%s1594 + $0x123c] sm:$0xf]
        %v2763 = vld [vmem:[%s1594 + $0x1240] sm:$0xf]
        %v2764 = vld [vmem:[%s1594 + $0x1244] sm:$0xf]
        %v2765 = vld [vmem:[%s1594 + $0x1248] sm:$0xf]
        %v2766 = vld [vmem:[%s1594 + $0x124c] sm:$0xf]
        %v2767 = vld [vmem:[%s1594 + $0x1250] sm:$0xf]
        %v2768 = vld [vmem:[%s1594 + $0x1254] sm:$0xf]
        %v2769 = vld [vmem:[%s1594 + $0x1258] sm:$0xf]
        %v2770 = vld [vmem:[%s1594 + $0x125c] sm:$0xf]
        %v2771 = vld [vmem:[%s1594 + $0x1260] sm:$0xf]
        %v2772 = vld [vmem:[%s1594 + $0x1264] sm:$0xf]
        %v2773 = vld [vmem:[%s1594 + $0x1268] sm:$0xf]
        %v2774 = vld [vmem:[%s1594 + $0x126c] sm:$0xf]
        %v2775 = vld [vmem:[%s1594 + $0x1270] sm:$0xf]
        %v2776 = vld [vmem:[%s1594 + $0x1274] sm:$0xf]
        %v2777 = vld [vmem:[%s1594 + $0x1278] sm:$0xf]
        %v2778 = vld [vmem:[%s1594 + $0x127c] sm:$0xf]
        %v2779 = vld [vmem:[%s1594 + $0x1280] sm:$0xf]
        %v2780 = vld [vmem:[%s1594 + $0x1284] sm:$0xf]
        %v2781 = vld [vmem:[%s1594 + $0x1288] sm:$0xf]
        %v2782 = vld [vmem:[%s1594 + $0x128c] sm:$0xf]
        %v2783 = vld [vmem:[%s1594 + $0x1290] sm:$0xf]
        %v2784 = vld [vmem:[%s1594 + $0x1294] sm:$0xf]
        %v2785 = vld [vmem:[%s1594 + $0x1298] sm:$0xf]
        %v2786 = vld [vmem:[%s1594 + $0x129c] sm:$0xf]
        %v2787 = vld [vmem:[%s1594 + $0x12a0] sm:$0xf]
        %v2788 = vld [vmem:[%s1594 + $0x12a4] sm:$0xf]
        %v2789 = vld [vmem:[%s1594 + $0x12a8] sm:$0xf]
        %v2790 = vld [vmem:[%s1594 + $0x12ac] sm:$0xf]
        %v2791 = vld [vmem:[%s1594 + $0x12b0] sm:$0xf]
        %v2792 = vld [vmem:[%s1594 + $0x12b4] sm:$0xf]
        %v2793 = vld [vmem:[%s1594 + $0x12b8] sm:$0xf]
        %v2794 = vld [vmem:[%s1594 + $0x12bc] sm:$0xf]
        %v2795 = vld [vmem:[%s1594 + $0x12c0] sm:$0xf]
        %v2796 = vld [vmem:[%s1594 + $0x12c4] sm:$0xf]
        %v2797 = vld [vmem:[%s1594 + $0x12c8] sm:$0xf]
        %v2798 = vld [vmem:[%s1594 + $0x12cc] sm:$0xf]
        %v2799 = vld [vmem:[%s1594 + $0x12d0] sm:$0xf]
        %v2800 = vld [vmem:[%s1594 + $0x12d4] sm:$0xf]
        %v2801 = vld [vmem:[%s1594 + $0x12d8] sm:$0xf]
        %v2802 = vld [vmem:[%s1594 + $0x12dc] sm:$0xf]
        %v2803 = vld [vmem:[%s1594 + $0x12e0] sm:$0xf]
        %v2804 = vld [vmem:[%s1594 + $0x12e4] sm:$0xf]
        %v2805 = vld [vmem:[%s1594 + $0x12e8] sm:$0xf]
        %v2806 = vld [vmem:[%s1594 + $0x12ec] sm:$0xf]
        %v2807 = vld [vmem:[%s1594 + $0x12f0] sm:$0xf]
        %v2808 = vld [vmem:[%s1594 + $0x12f4] sm:$0xf]
        %v2809 = vld [vmem:[%s1594 + $0x12f8] sm:$0xf]
        %v2810 = vld [vmem:[%s1594 + $0x12fc] sm:$0xf]
        %v2811 = vld [vmem:[%s1594 + $0x1300] sm:$0xf]
        %v2812 = vld [vmem:[%s1594 + $0x1304] sm:$0xf]
        %v2813 = vld [vmem:[%s1594 + $0x1308] sm:$0xf]
        %v2814 = vld [vmem:[%s1594 + $0x130c] sm:$0xf]
        %v2815 = vld [vmem:[%s1594 + $0x1310] sm:$0xf]
        %v2816 = vld [vmem:[%s1594 + $0x1314] sm:$0xf]
        %v2817 = vld [vmem:[%s1594 + $0x1318] sm:$0xf]
        %v2818 = vld [vmem:[%s1594 + $0x131c] sm:$0xf]
        %v2819 = vld [vmem:[%s1594 + $0x1320] sm:$0xf]
        %v2820 = vld [vmem:[%s1594 + $0x1324] sm:$0xf]
        %v2821 = vld [vmem:[%s1594 + $0x1328] sm:$0xf]
        %v2822 = vld [vmem:[%s1594 + $0x132c] sm:$0xf]
        %v2823 = vld [vmem:[%s1594 + $0x1330] sm:$0xf]
        %v2824 = vld [vmem:[%s1594 + $0x1334] sm:$0xf]
        %v2825 = vld [vmem:[%s1594 + $0x1338] sm:$0xf]
        %v2826 = vld [vmem:[%s1594 + $0x133c] sm:$0xf]
        %v2827 = vld [vmem:[%s1594 + $0x1340] sm:$0xf]
        %v2828 = vld [vmem:[%s1594 + $0x1344] sm:$0xf]
        %v2829 = vld [vmem:[%s1594 + $0x1348] sm:$0xf]
        %v2830 = vld [vmem:[%s1594 + $0x134c] sm:$0xf]
        %v2831 = vld [vmem:[%s1594 + $0x1350] sm:$0xf]
        %v2832 = vld [vmem:[%s1594 + $0x1354] sm:$0xf]
        %v2833 = vld [vmem:[%s1594 + $0x1358] sm:$0xf]
        %v2834 = vld [vmem:[%s1594 + $0x135c] sm:$0xf]
        %v2835 = vld [vmem:[%s1594 + $0x1360] sm:$0xf]
        %v2836 = vld [vmem:[%s1594 + $0x1364] sm:$0xf]
        %v2837 = vld [vmem:[%s1594 + $0x1368] sm:$0xf]
        %v2838 = vld [vmem:[%s1594 + $0x136c] sm:$0xf]
        %v2839 = vld [vmem:[%s1594 + $0x1370] sm:$0xf]
        %v2840 = vld [vmem:[%s1594 + $0x1374] sm:$0xf]
        %v2841 = vld [vmem:[%s1594 + $0x1378] sm:$0xf]
        %v2842 = vld [vmem:[%s1594 + $0x137c] sm:$0xf]
        %v2843 = vld [vmem:[%s1594 + $0x1380] sm:$0xf]
        %v2844 = vld [vmem:[%s1594 + $0x1384] sm:$0xf]
        %v2845 = vld [vmem:[%s1594 + $0x1388] sm:$0xf]
        %v2846 = vld [vmem:[%s1594 + $0x138c] sm:$0xf]
        %v2847 = vld [vmem:[%s1594 + $0x1390] sm:$0xf]
        %v2848 = vld [vmem:[%s1594 + $0x1394] sm:$0xf]
        %v2849 = vld [vmem:[%s1594 + $0x1398] sm:$0xf]
        %v2850 = vld [vmem:[%s1594 + $0x139c] sm:$0xf]
        %v2851 = vld [vmem:[%s1594 + $0x13a0] sm:$0xf]
        %v2852 = vld [vmem:[%s1594 + $0x13a4] sm:$0xf]
        %v2853 = vld [vmem:[%s1594 + $0x13a8] sm:$0xf]
        %v2854 = vld [vmem:[%s1594 + $0x13ac] sm:$0xf]
        %v2855 = vld [vmem:[%s1594 + $0x13b0] sm:$0xf]
        %v2856 = vld [vmem:[%s1594 + $0x13b4] sm:$0xf]
        %v2857 = vld [vmem:[%s1594 + $0x13b8] sm:$0xf]
        %v2858 = vld [vmem:[%s1594 + $0x13bc] sm:$0xf]
        %v2859 = vld [vmem:[%s1594 + $0x13c0] sm:$0xf]
        %v2860 = vld [vmem:[%s1594 + $0x13c4] sm:$0xf]
        %v2861 = vld [vmem:[%s1594 + $0x13c8] sm:$0xf]
        %v2862 = vld [vmem:[%s1594 + $0x13cc] sm:$0xf]
        %v2863 = vld [vmem:[%s1594 + $0x13d0] sm:$0xf]
        %v2864 = vld [vmem:[%s1594 + $0x13d4] sm:$0xf]
        %v2865 = vld [vmem:[%s1594 + $0x13d8] sm:$0xf]
        %v2866 = vld [vmem:[%s1594 + $0x13dc] sm:$0xf]
        %v2867 = vld [vmem:[%s1594 + $0x13e0] sm:$0xf]
        %v2868 = vld [vmem:[%s1594 + $0x13e4] sm:$0xf]
        %v2869 = vld [vmem:[%s1594 + $0x13e8] sm:$0xf]
        %v2870 = vld [vmem:[%s1594 + $0x13ec] sm:$0xf]
        %v2871 = vld [vmem:[%s1594 + $0x13f0] sm:$0xf]
        %v2872 = vld [vmem:[%s1594 + $0x13f4] sm:$0xf]
        %v2873 = vld [vmem:[%s1594 + $0x13f8] sm:$0xf]
        %v2874 = vld [vmem:[%s1594 + $0x13fc] sm:$0xf]
        %v2875 = vld [vmem:[%s1594 + $0x1400] sm:$0xf]
        %v2876 = vld [vmem:[%s1594 + $0x1404] sm:$0xf]
        %v2877 = vld [vmem:[%s1594 + $0x1408] sm:$0xf]
        %v2878 = vld [vmem:[%s1594 + $0x140c] sm:$0xf]
        %v2879 = vld [vmem:[%s1594 + $0x1410] sm:$0xf]
        %v2880 = vld [vmem:[%s1594 + $0x1414] sm:$0xf]
        %v2881 = vld [vmem:[%s1594 + $0x1418] sm:$0xf]
        %v2882 = vld [vmem:[%s1594 + $0x141c] sm:$0xf]
        %v2883 = vld [vmem:[%s1594 + $0x1420] sm:$0xf]
        %v2884 = vld [vmem:[%s1594 + $0x1424] sm:$0xf]
        %v2885 = vld [vmem:[%s1594 + $0x1428] sm:$0xf]
        %v2886 = vld [vmem:[%s1594 + $0x142c] sm:$0xf]
        %v2887 = vld [vmem:[%s1594 + $0x1430] sm:$0xf]
        %v2888 = vld [vmem:[%s1594 + $0x1434] sm:$0xf]
        %v2889 = vld [vmem:[%s1594 + $0x1438] sm:$0xf]
        %v2890 = vld [vmem:[%s1594 + $0x143c] sm:$0xf]
        %v2891 = vld [vmem:[%s1594 + $0x1440] sm:$0xf]
        %v2892 = vld [vmem:[%s1594 + $0x1444] sm:$0xf]
        %v2893 = vld [vmem:[%s1594 + $0x1448] sm:$0xf]
        %v2894 = vld [vmem:[%s1594 + $0x144c] sm:$0xf]
        %v2895 = vld [vmem:[%s1594 + $0x1450] sm:$0xf]
        %v2896 = vld [vmem:[%s1594 + $0x1454] sm:$0xf]
        %v2897 = vld [vmem:[%s1594 + $0x1458] sm:$0xf]
        %v2898 = vld [vmem:[%s1594 + $0x145c] sm:$0xf]
        %v2899 = vld [vmem:[%s1594 + $0x1460] sm:$0xf]
        %v2900 = vld [vmem:[%s1594 + $0x1464] sm:$0xf]
        %v2901 = vld [vmem:[%s1594 + $0x1468] sm:$0xf]
        %v2902 = vld [vmem:[%s1594 + $0x146c] sm:$0xf]
        %v2903 = vld [vmem:[%s1594 + $0x1470] sm:$0xf]
        %v2904 = vld [vmem:[%s1594 + $0x1474] sm:$0xf]
        %v2905 = vld [vmem:[%s1594 + $0x1478] sm:$0xf]
        %v2906 = vld [vmem:[%s1594 + $0x147c] sm:$0xf]
        %v2907 = vld [vmem:[%s1594 + $0x1480] sm:$0xf]
        %v2908 = vld [vmem:[%s1594 + $0x1484] sm:$0xf]
        %v2909 = vld [vmem:[%s1594 + $0x1488] sm:$0xf]
        %v2910 = vld [vmem:[%s1594 + $0x148c] sm:$0xf]
        %v2911 = vld [vmem:[%s1594 + $0x1490] sm:$0xf]
        %v2912 = vld [vmem:[%s1594 + $0x1494] sm:$0xf]
        %v2913 = vld [vmem:[%s1594 + $0x1498] sm:$0xf]
        %v2914 = vld [vmem:[%s1594 + $0x149c] sm:$0xf]
        %v2915 = vld [vmem:[%s1594 + $0x14a0] sm:$0xf]
        %v2916 = vld [vmem:[%s1594 + $0x14a4] sm:$0xf]
        %v2917 = vld [vmem:[%s1594 + $0x14a8] sm:$0xf]
        %v2918 = vld [vmem:[%s1594 + $0x14ac] sm:$0xf]
        %v2919 = vld [vmem:[%s1594 + $0x14b0] sm:$0xf]
        %v2920 = vld [vmem:[%s1594 + $0x14b4] sm:$0xf]
        %v2921 = vld [vmem:[%s1594 + $0x14b8] sm:$0xf]
        %v2922 = vld [vmem:[%s1594 + $0x14bc] sm:$0xf]
        %v2923 = vld [vmem:[%s1594 + $0x14c0] sm:$0xf]
        %v2924 = vld [vmem:[%s1594 + $0x14c4] sm:$0xf]
        %v2925 = vld [vmem:[%s1594 + $0x14c8] sm:$0xf]
        %v2926 = vld [vmem:[%s1594 + $0x14cc] sm:$0xf]
        %v2927 = vld [vmem:[%s1594 + $0x14d0] sm:$0xf]
        %v2928 = vld [vmem:[%s1594 + $0x14d4] sm:$0xf]
        %v2929 = vld [vmem:[%s1594 + $0x14d8] sm:$0xf]
        %v2930 = vld [vmem:[%s1594 + $0x14dc] sm:$0xf]
        %v2931 = vld [vmem:[%s1594 + $0x14e0] sm:$0xf]
        %v2932 = vld [vmem:[%s1594 + $0x14e4] sm:$0xf]
        %v2933 = vld [vmem:[%s1594 + $0x14e8] sm:$0xf]
        %v2934 = vld [vmem:[%s1594 + $0x14ec] sm:$0xf]
        %v2935 = vld [vmem:[%s1594 + $0x14f0] sm:$0xf]
        %v2936 = vld [vmem:[%s1594 + $0x14f4] sm:$0xf]
        %v2937 = vld [vmem:[%s1594 + $0x14f8] sm:$0xf]
        %v2938 = vld [vmem:[%s1594 + $0x14fc] sm:$0xf]
        %v2939 = vld [vmem:[%s1594 + $0x1500] sm:$0xf]
        %v2940 = vld [vmem:[%s1594 + $0x1504] sm:$0xf]
        %v2941 = vld [vmem:[%s1594 + $0x1508] sm:$0xf]
        %v2942 = vld [vmem:[%s1594 + $0x150c] sm:$0xf]
        %v2943 = vld [vmem:[%s1594 + $0x1510] sm:$0xf]
        %v2944 = vld [vmem:[%s1594 + $0x1514] sm:$0xf]
        %v2945 = vld [vmem:[%s1594 + $0x1518] sm:$0xf]
        %v2946 = vld [vmem:[%s1594 + $0x151c] sm:$0xf]
        %v2947 = vld [vmem:[%s1594 + $0x1520] sm:$0xf]
        %v2948 = vld [vmem:[%s1594 + $0x1524] sm:$0xf]
        %v2949 = vld [vmem:[%s1594 + $0x1528] sm:$0xf]
        %v2950 = vld [vmem:[%s1594 + $0x152c] sm:$0xf]
        %v2951 = vld [vmem:[%s1594 + $0x1530] sm:$0xf]
        %v2952 = vld [vmem:[%s1594 + $0x1534] sm:$0xf]
        %v2953 = vld [vmem:[%s1594 + $0x1538] sm:$0xf]
        %v2954 = vld [vmem:[%s1594 + $0x153c] sm:$0xf]
        %v2955 = vld [vmem:[%s1594 + $0x1540] sm:$0xf]
        %v2956 = vld [vmem:[%s1594 + $0x1544] sm:$0xf]
        %v2957 = vld [vmem:[%s1594 + $0x1548] sm:$0xf]
        %v2958 = vld [vmem:[%s1594 + $0x154c] sm:$0xf]
        %v2959 = vld [vmem:[%s1594 + $0x1550] sm:$0xf]
        %v2960 = vld [vmem:[%s1594 + $0x1554] sm:$0xf]
        %v2961 = vld [vmem:[%s1594 + $0x1558] sm:$0xf]
        %v2962 = vld [vmem:[%s1594 + $0x155c] sm:$0xf]
        %v2963 = vld [vmem:[%s1594 + $0x1560] sm:$0xf]
        %v2964 = vld [vmem:[%s1594 + $0x1564] sm:$0xf]
        %v2965 = vld [vmem:[%s1594 + $0x1568] sm:$0xf]
        %v2966 = vld [vmem:[%s1594 + $0x156c] sm:$0xf]
        %v2967 = vld [vmem:[%s1594 + $0x1570] sm:$0xf]
        %v2968 = vld [vmem:[%s1594 + $0x1574] sm:$0xf]
        %v2969 = vld [vmem:[%s1594 + $0x1578] sm:$0xf]
        %v2970 = vld [vmem:[%s1594 + $0x157c] sm:$0xf]
        %v2971 = vld [vmem:[%s1594 + $0x1580] sm:$0xf]
        %v2972 = vld [vmem:[%s1594 + $0x1584] sm:$0xf]
        %v2973 = vld [vmem:[%s1594 + $0x1588] sm:$0xf]
        %v2974 = vld [vmem:[%s1594 + $0x158c] sm:$0xf]
        %v2975 = vld [vmem:[%s1594 + $0x1590] sm:$0xf]
        %v2976 = vld [vmem:[%s1594 + $0x1594] sm:$0xf]
        %v2977 = vld [vmem:[%s1594 + $0x1598] sm:$0xf]
        %v2978 = vld [vmem:[%s1594 + $0x159c] sm:$0xf]
        %v2979 = vld [vmem:[%s1594 + $0x15a0] sm:$0xf]
        %v2980 = vld [vmem:[%s1594 + $0x15a4] sm:$0xf]
        %v2981 = vld [vmem:[%s1594 + $0x15a8] sm:$0xf]
        %v2982 = vld [vmem:[%s1594 + $0x15ac] sm:$0xf]
        %v2983 = vld [vmem:[%s1594 + $0x15b0] sm:$0xf]
        %v2984 = vld [vmem:[%s1594 + $0x15b4] sm:$0xf]
        %v2985 = vld [vmem:[%s1594 + $0x15b8] sm:$0xf]
        %v2986 = vld [vmem:[%s1594 + $0x15bc] sm:$0xf]
        %v2987 = vld [vmem:[%s1594 + $0x15c0] sm:$0xf]
        %v2988 = vld [vmem:[%s1594 + $0x15c4] sm:$0xf]
        %v2989 = vld [vmem:[%s1594 + $0x15c8] sm:$0xf]
        %v2990 = vld [vmem:[%s1594 + $0x15cc] sm:$0xf]
        %v2991 = vld [vmem:[%s1594 + $0x15d0] sm:$0xf]
        %v2992 = vld [vmem:[%s1594 + $0x15d4] sm:$0xf]
        %v2993 = vld [vmem:[%s1594 + $0x15d8] sm:$0xf]
        %v2994 = vld [vmem:[%s1594 + $0x15dc] sm:$0xf]
        %v2995 = vld [vmem:[%s1594 + $0x15e0] sm:$0xf]
        %v2996 = vld [vmem:[%s1594 + $0x15e4] sm:$0xf]
        %v2997 = vld [vmem:[%s1594 + $0x15e8] sm:$0xf]
        %v2998 = vld [vmem:[%s1594 + $0x15ec] sm:$0xf]
        %v2999 = vld [vmem:[%s1594 + $0x15f0] sm:$0xf]
        %v3000 = vld [vmem:[%s1594 + $0x15f4] sm:$0xf]
        %v3001 = vld [vmem:[%s1594 + $0x15f8] sm:$0xf]
        %v3002 = vld [vmem:[%s1594 + $0x15fc] sm:$0xf]
        %v3003 = vld [vmem:[%s1594 + $0x1600] sm:$0xf]
        %v3004 = vld [vmem:[%s1594 + $0x1604] sm:$0xf]
        %v3005 = vld [vmem:[%s1594 + $0x1608] sm:$0xf]
        %v3006 = vld [vmem:[%s1594 + $0x160c] sm:$0xf]
        %v3007 = vld [vmem:[%s1594 + $0x1610] sm:$0xf]
        %v3008 = vld [vmem:[%s1594 + $0x1614] sm:$0xf]
        %v3009 = vld [vmem:[%s1594 + $0x1618] sm:$0xf]
        %v3010 = vld [vmem:[%s1594 + $0x161c] sm:$0xf]
        %v3011 = vld [vmem:[%s1594 + $0x1620] sm:$0xf]
        %v3012 = vld [vmem:[%s1594 + $0x1624] sm:$0xf]
        %v3013 = vld [vmem:[%s1594 + $0x1628] sm:$0xf]
        %v3014 = vld [vmem:[%s1594 + $0x162c] sm:$0xf]
        %v3015 = vld [vmem:[%s1594 + $0x1630] sm:$0xf]
        %v3016 = vld [vmem:[%s1594 + $0x1634] sm:$0xf]
        %v3017 = vld [vmem:[%s1594 + $0x1638] sm:$0xf]
        %v3018 = vld [vmem:[%s1594 + $0x163c] sm:$0xf]
        %v3019 = vld [vmem:[%s1594 + $0x1640] sm:$0xf]
        %v3020 = vld [vmem:[%s1594 + $0x1644] sm:$0xf]
        %v3021 = vld [vmem:[%s1594 + $0x1648] sm:$0xf]
        %v3022 = vld [vmem:[%s1594 + $0x164c] sm:$0xf]
        %v3023 = vld [vmem:[%s1594 + $0x1650] sm:$0xf]
        %v3024 = vld [vmem:[%s1594 + $0x1654] sm:$0xf]
        %v3025 = vld [vmem:[%s1594 + $0x1658] sm:$0xf]
        %v3026 = vld [vmem:[%s1594 + $0x165c] sm:$0xf]
        %v3027 = vld [vmem:[%s1594 + $0x1660] sm:$0xf]
        %v3028 = vld [vmem:[%s1594 + $0x1664] sm:$0xf]
        %v3029 = vld [vmem:[%s1594 + $0x1668] sm:$0xf]
        %v3030 = vld [vmem:[%s1594 + $0x166c] sm:$0xf]
        %v3031 = vld [vmem:[%s1594 + $0x1670] sm:$0xf]
        %v3032 = vld [vmem:[%s1594 + $0x1674] sm:$0xf]
        %v3033 = vld [vmem:[%s1594 + $0x1678] sm:$0xf]
        %v3034 = vld [vmem:[%s1594 + $0x167c] sm:$0xf]
        %v3035 = vld [vmem:[%s1594 + $0x1680] sm:$0xf]
        %v3036 = vld [vmem:[%s1594 + $0x1684] sm:$0xf]
        %v3037 = vld [vmem:[%s1594 + $0x1688] sm:$0xf]
        %v3038 = vld [vmem:[%s1594 + $0x168c] sm:$0xf]
        %v3039 = vld [vmem:[%s1594 + $0x1690] sm:$0xf]
        %v3040 = vld [vmem:[%s1594 + $0x1694] sm:$0xf]
        %v3041 = vld [vmem:[%s1594 + $0x1698] sm:$0xf]
        %v3042 = vld [vmem:[%s1594 + $0x169c] sm:$0xf]
        %v3043 = vld [vmem:[%s1594 + $0x16a0] sm:$0xf]
        %v3044 = vld [vmem:[%s1594 + $0x16a4] sm:$0xf]
        %v3045 = vld [vmem:[%s1594 + $0x16a8] sm:$0xf]
        %v3046 = vld [vmem:[%s1594 + $0x16ac] sm:$0xf]
        %v3047 = vld [vmem:[%s1594 + $0x16b0] sm:$0xf]
        %v3048 = vld [vmem:[%s1594 + $0x16b4] sm:$0xf]
        %v3049 = vld [vmem:[%s1594 + $0x16b8] sm:$0xf]
        %v3050 = vld [vmem:[%s1594 + $0x16bc] sm:$0xf]
        %v3051 = vld [vmem:[%s1594 + $0x16c0] sm:$0xf]
        %v3052 = vld [vmem:[%s1594 + $0x16c4] sm:$0xf]
        %v3053 = vld [vmem:[%s1594 + $0x16c8] sm:$0xf]
        %v3054 = vld [vmem:[%s1594 + $0x16cc] sm:$0xf]
        %v3055 = vld [vmem:[%s1594 + $0x16d0] sm:$0xf]
        %v3056 = vld [vmem:[%s1594 + $0x16d4] sm:$0xf]
        %v3057 = vld [vmem:[%s1594 + $0x16d8] sm:$0xf]
        %v3058 = vld [vmem:[%s1594 + $0x16dc] sm:$0xf]
        %v3059 = vld [vmem:[%s1594 + $0x16e0] sm:$0xf]
        %v3060 = vld [vmem:[%s1594 + $0x16e4] sm:$0xf]
        %v3061 = vld [vmem:[%s1594 + $0x16e8] sm:$0xf]
        %v3062 = vld [vmem:[%s1594 + $0x16ec] sm:$0xf]
        %v3063 = vld [vmem:[%s1594 + $0x16f0] sm:$0xf]
        %v3064 = vld [vmem:[%s1594 + $0x16f4] sm:$0xf]
        %v3065 = vld [vmem:[%s1594 + $0x16f8] sm:$0xf]
        %v3066 = vld [vmem:[%s1594 + $0x16fc] sm:$0xf]
        %v3067 = vld [vmem:[%s1594 + $0x1700] sm:$0xf]
        %v3068 = vld [vmem:[%s1594 + $0x1704] sm:$0xf]
        %v3069 = vld [vmem:[%s1594 + $0x1708] sm:$0xf]
        %v3070 = vld [vmem:[%s1594 + $0x170c] sm:$0xf]
        %v3071 = vld [vmem:[%s1594 + $0x1710] sm:$0xf]
        %v3072 = vld [vmem:[%s1594 + $0x1714] sm:$0xf]
        %v3073 = vld [vmem:[%s1594 + $0x1718] sm:$0xf]
        %v3074 = vld [vmem:[%s1594 + $0x171c] sm:$0xf]
        %v3075 = vld [vmem:[%s1594 + $0x1720] sm:$0xf]
        %v3076 = vld [vmem:[%s1594 + $0x1724] sm:$0xf]
        %v3077 = vld [vmem:[%s1594 + $0x1728] sm:$0xf]
        %v3078 = vld [vmem:[%s1594 + $0x172c] sm:$0xf]
        %v3079 = vld [vmem:[%s1594 + $0x1730] sm:$0xf]
        %v3080 = vld [vmem:[%s1594 + $0x1734] sm:$0xf]
        %v3081 = vld [vmem:[%s1594 + $0x1738] sm:$0xf]
        %v3082 = vld [vmem:[%s1594 + $0x173c] sm:$0xf]
        %v3083 = vld [vmem:[%s1594 + $0x1740] sm:$0xf]
        %v3084 = vld [vmem:[%s1594 + $0x1744] sm:$0xf]
        %v3085 = vld [vmem:[%s1594 + $0x1748] sm:$0xf]
        %v3086 = vld [vmem:[%s1594 + $0x174c] sm:$0xf]
        %v3087 = vld [vmem:[%s1594 + $0x1750] sm:$0xf]
        %v3088 = vld [vmem:[%s1594 + $0x1754] sm:$0xf]
        %v3089 = vld [vmem:[%s1594 + $0x1758] sm:$0xf]
        %v3090 = vld [vmem:[%s1594 + $0x175c] sm:$0xf]
        %v3091 = vld [vmem:[%s1594 + $0x1760] sm:$0xf]
        %v3092 = vld [vmem:[%s1594 + $0x1764] sm:$0xf]
        %v3093 = vld [vmem:[%s1594 + $0x1768] sm:$0xf]
        %v3094 = vld [vmem:[%s1594 + $0x176c] sm:$0xf]
        %v3095 = vld [vmem:[%s1594 + $0x1770] sm:$0xf]
        %v3096 = vld [vmem:[%s1594 + $0x1774] sm:$0xf]
        %v3097 = vld [vmem:[%s1594 + $0x1778] sm:$0xf]
        %v3098 = vld [vmem:[%s1594 + $0x177c] sm:$0xf]
        %v3099 = vld [vmem:[%s1594 + $0x1780] sm:$0xf]
        %v3100 = vld [vmem:[%s1594 + $0x1784] sm:$0xf]
        %v3101 = vld [vmem:[%s1594 + $0x1788] sm:$0xf]
        %v3102 = vld [vmem:[%s1594 + $0x178c] sm:$0xf]
        %v3103 = vld [vmem:[%s1594 + $0x1790] sm:$0xf]
        %v3104 = vld [vmem:[%s1594 + $0x1794] sm:$0xf]
        %v3105 = vld [vmem:[%s1594 + $0x1798] sm:$0xf]
        %v3106 = vld [vmem:[%s1594 + $0x179c] sm:$0xf]
        %v3107 = vld [vmem:[%s1594 + $0x17a0] sm:$0xf]
        %v3108 = vld [vmem:[%s1594 + $0x17a4] sm:$0xf]
        %v3109 = vld [vmem:[%s1594 + $0x17a8] sm:$0xf]
        %v3110 = vld [vmem:[%s1594 + $0x17ac] sm:$0xf]
        %v3111 = vld [vmem:[%s1594 + $0x17b0] sm:$0xf]
        %v3112 = vld [vmem:[%s1594 + $0x17b4] sm:$0xf]
        %v3113 = vld [vmem:[%s1594 + $0x17b8] sm:$0xf]
        %v3114 = vld [vmem:[%s1594 + $0x17bc] sm:$0xf]
        %v3115 = vld [vmem:[%s1594 + $0x17c0] sm:$0xf]
        %v3116 = vld [vmem:[%s1594 + $0x17c4] sm:$0xf]
        %v3117 = vld [vmem:[%s1594 + $0x17c8] sm:$0xf]
        %v3118 = vld [vmem:[%s1594 + $0x17cc] sm:$0xf]
        %v3119 = vld [vmem:[%s1594 + $0x17d0] sm:$0xf]
        %v3120 = vld [vmem:[%s1594 + $0x17d4] sm:$0xf]
        %v3121 = vld [vmem:[%s1594 + $0x17d8] sm:$0xf]
        %v3122 = vld [vmem:[%s1594 + $0x17dc] sm:$0xf]
        %v3123 = vld [vmem:[%s1594 + $0x17e0] sm:$0xf]
        %v3124 = vld [vmem:[%s1594 + $0x17e4] sm:$0xf]
        %v3125 = vld [vmem:[%s1594 + $0x17e8] sm:$0xf]
        %v3126 = vld [vmem:[%s1594 + $0x17ec] sm:$0xf]
        %v3127 = vld [vmem:[%s1594 + $0x17f0] sm:$0xf]
        %v3128 = vld [vmem:[%s1594 + $0x17f4] sm:$0xf]
        %v3129 = vld [vmem:[%s1594 + $0x17f8] sm:$0xf]
        %v3130 = vld [vmem:[%s1594 + $0x17fc] sm:$0xf]
        %v3131 = vld [vmem:[%s1594 + $0x1800] sm:$0xf]
        %v3132 = vld [vmem:[%s1594 + $0x1804] sm:$0xf]
        %v3133 = vld [vmem:[%s1594 + $0x1808] sm:$0xf]
        %v3134 = vld [vmem:[%s1594 + $0x180c] sm:$0xf]
        %v3135 = vld [vmem:[%s1594 + $0x1810] sm:$0xf]
        %v3136 = vld [vmem:[%s1594 + $0x1814] sm:$0xf]
        %v3137 = vld [vmem:[%s1594 + $0x1818] sm:$0xf]
        %v3138 = vld [vmem:[%s1594 + $0x181c] sm:$0xf]
        %v3139 = vld [vmem:[%s1594 + $0x1820] sm:$0xf]
        %v3140 = vld [vmem:[%s1594 + $0x1824] sm:$0xf]
        %v3141 = vld [vmem:[%s1594 + $0x1828] sm:$0xf]
        %v3142 = vld [vmem:[%s1594 + $0x182c] sm:$0xf]
        %v3143 = vld [vmem:[%s1594 + $0x1830] sm:$0xf]
        %v3144 = vld [vmem:[%s1594 + $0x1834] sm:$0xf]
        %v3145 = vld [vmem:[%s1594 + $0x1838] sm:$0xf]
        %v3146 = vld [vmem:[%s1594 + $0x183c] sm:$0xf]
        %v3147 = vld [vmem:[%s1594 + $0x1840] sm:$0xf]
        %v3148 = vld [vmem:[%s1594 + $0x1844] sm:$0xf]
        %v3149 = vld [vmem:[%s1594 + $0x1848] sm:$0xf]
        %v3150 = vld [vmem:[%s1594 + $0x184c] sm:$0xf]
        %v3151 = vld [vmem:[%s1594 + $0x1850] sm:$0xf]
        %v3152 = vld [vmem:[%s1594 + $0x1854] sm:$0xf]
        %v3153 = vld [vmem:[%s1594 + $0x1858] sm:$0xf]
        %v3154 = vld [vmem:[%s1594 + $0x185c] sm:$0xf]
        %v3155 = vld [vmem:[%s1594 + $0x1860] sm:$0xf]
        %v3156 = vld [vmem:[%s1594 + $0x1864] sm:$0xf]
        %v3157 = vld [vmem:[%s1594 + $0x1868] sm:$0xf]
        %v3158 = vld [vmem:[%s1594 + $0x186c] sm:$0xf]
        %v3159 = vld [vmem:[%s1594 + $0x1870] sm:$0xf]
        %v3160 = vld [vmem:[%s1594 + $0x1874] sm:$0xf]
        %v3161 = vld [vmem:[%s1594 + $0x1878] sm:$0xf]
        %v3162 = vld [vmem:[%s1594 + $0x187c] sm:$0xf]
        %v3163 = vld [vmem:[#allocation2] sm:$0xff]
        %v4732 = vunpack.c.l.b16 %v1595
        %v4733 = vunpack.c.l.b16 %v1596
        %v4734 = vunpack.c.l.b16 %v1597
        %v4735 = vunpack.c.l.b16 %v1598
        %v4736 = vunpack.c.l.b16 %v1599
        %v4737 = vunpack.c.l.b16 %v1600
        %v4738 = vunpack.c.l.b16 %v1601
        %v4739 = vunpack.c.l.b16 %v1602
        %v4740 = vunpack.c.l.b16 %v1603
        %v4741 = vunpack.c.l.b16 %v1604
        %v4742 = vunpack.c.l.b16 %v1605
        %v4743 = vunpack.c.l.b16 %v1606
        %v4744 = vunpack.c.l.b16 %v1607
        %v4745 = vunpack.c.l.b16 %v1608
        %v4746 = vunpack.c.l.b16 %v1609
        %v4747 = vunpack.c.l.b16 %v1610
        %v4748 = vunpack.c.l.b16 %v1611
        %v4749 = vunpack.c.l.b16 %v1612
        %v4750 = vunpack.c.l.b16 %v1613
        %v4751 = vunpack.c.l.b16 %v1614
        %v4752 = vunpack.c.l.b16 %v1615
        %v4753 = vunpack.c.l.b16 %v1616
        %v4754 = vunpack.c.l.b16 %v1617
        %v4755 = vunpack.c.l.b16 %v1618
        %v4756 = vunpack.c.l.b16 %v1619
        %v4757 = vunpack.c.l.b16 %v1620
        %v4758 = vunpack.c.l.b16 %v1621
        %v4759 = vunpack.c.l.b16 %v1622
        %v4760 = vunpack.c.l.b16 %v1623
        %v4761 = vunpack.c.l.b16 %v1624
        %v4762 = vunpack.c.l.b16 %v1625
        %v4763 = vunpack.c.l.b16 %v1626
        %v4764 = vunpack.c.l.b16 %v1627
        %v4765 = vunpack.c.l.b16 %v1628
        %v4766 = vunpack.c.l.b16 %v1629
        %v4767 = vunpack.c.l.b16 %v1630
        %v4768 = vunpack.c.l.b16 %v1631
        %v4769 = vunpack.c.l.b16 %v1632
        %v4770 = vunpack.c.l.b16 %v1633
        %v4771 = vunpack.c.l.b16 %v1634
        %v4772 = vunpack.c.l.b16 %v1635
        %v4773 = vunpack.c.l.b16 %v1636
        %v4774 = vunpack.c.l.b16 %v1637
        %v4775 = vunpack.c.l.b16 %v1638
        %v4776 = vunpack.c.l.b16 %v1639
        %v4777 = vunpack.c.l.b16 %v1640
        %v4778 = vunpack.c.l.b16 %v1641
        %v4779 = vunpack.c.l.b16 %v1642
        %v4780 = vunpack.c.l.b16 %v1643
        %v4781 = vunpack.c.l.b16 %v1644
        %v4782 = vunpack.c.l.b16 %v1645
        %v4783 = vunpack.c.l.b16 %v1646
        %v4784 = vunpack.c.l.b16 %v1647
        %v4785 = vunpack.c.l.b16 %v1648
        %v4786 = vunpack.c.l.b16 %v1649
        %v4787 = vunpack.c.l.b16 %v1650
        %v4788 = vunpack.c.l.b16 %v1651
        %v4789 = vunpack.c.l.b16 %v1652
        %v4790 = vunpack.c.l.b16 %v1653
        %v4791 = vunpack.c.l.b16 %v1654
        %v4792 = vunpack.c.l.b16 %v1655
        %v4793 = vunpack.c.l.b16 %v1656
        %v4794 = vunpack.c.l.b16 %v1657
        %v4795 = vunpack.c.l.b16 %v1658
        %v4796 = vunpack.c.l.b16 %v1659
        %v4797 = vunpack.c.l.b16 %v1660
        %v4798 = vunpack.c.l.b16 %v1661
        %v4799 = vunpack.c.l.b16 %v1662
        %v4800 = vunpack.c.l.b16 %v1663
        %v4801 = vunpack.c.l.b16 %v1664
        %v4802 = vunpack.c.l.b16 %v1665
        %v4803 = vunpack.c.l.b16 %v1666
        %v4804 = vunpack.c.l.b16 %v1667
        %v4805 = vunpack.c.l.b16 %v1668
        %v4806 = vunpack.c.l.b16 %v1669
        %v4807 = vunpack.c.l.b16 %v1670
        %v4808 = vunpack.c.l.b16 %v1671
        %v4809 = vunpack.c.l.b16 %v1672
        %v4810 = vunpack.c.l.b16 %v1673
        %v4811 = vunpack.c.l.b16 %v1674
        %v4812 = vunpack.c.l.b16 %v1675
        %v4813 = vunpack.c.l.b16 %v1676
        %v4814 = vunpack.c.l.b16 %v1677
        %v4815 = vunpack.c.l.b16 %v1678
        %v4816 = vunpack.c.l.b16 %v1679
        %v4817 = vunpack.c.l.b16 %v1680
        %v4818 = vunpack.c.l.b16 %v1681
        %v4819 = vunpack.c.l.b16 %v1682
        %v4820 = vunpack.c.l.b16 %v1683
        %v4821 = vunpack.c.l.b16 %v1684
        %v4822 = vunpack.c.l.b16 %v1685
        %v4823 = vunpack.c.l.b16 %v1686
        %v4824 = vunpack.c.l.b16 %v1687
        %v4825 = vunpack.c.l.b16 %v1688
        %v4826 = vunpack.c.l.b16 %v1689
        %v4827 = vunpack.c.l.b16 %v1690
        %v4828 = vunpack.c.l.b16 %v1691
        %v4829 = vunpack.c.l.b16 %v1692
        %v4830 = vunpack.c.l.b16 %v1693
        %v4831 = vunpack.c.l.b16 %v1694
        %v4832 = vunpack.c.l.b16 %v1695
        %v4833 = vunpack.c.l.b16 %v1696
        %v4834 = vunpack.c.l.b16 %v1697
        %v4835 = vunpack.c.l.b16 %v1698
        %v4836 = vunpack.c.l.b16 %v1699
        %v4837 = vunpack.c.l.b16 %v1700
        %v4838 = vunpack.c.l.b16 %v1701
        %v4839 = vunpack.c.l.b16 %v1702
        %v4840 = vunpack.c.l.b16 %v1703
        %v4841 = vunpack.c.l.b16 %v1704
        %v4842 = vunpack.c.l.b16 %v1705
        %v4843 = vunpack.c.l.b16 %v1706
        %v4844 = vunpack.c.l.b16 %v1707
        %v4845 = vunpack.c.l.b16 %v1708
        %v4846 = vunpack.c.l.b16 %v1709
        %v4847 = vunpack.c.l.b16 %v1710
        %v4848 = vunpack.c.l.b16 %v1711
        %v4849 = vunpack.c.l.b16 %v1712
        %v4850 = vunpack.c.l.b16 %v1713
        %v4851 = vunpack.c.l.b16 %v1714
        %v4852 = vunpack.c.l.b16 %v1715
        %v4853 = vunpack.c.l.b16 %v1716
        %v4854 = vunpack.c.l.b16 %v1717
        %v4855 = vunpack.c.l.b16 %v1718
        %v4856 = vunpack.c.l.b16 %v1719
        %v4857 = vunpack.c.l.b16 %v1720
        %v4858 = vunpack.c.l.b16 %v1721
        %v4859 = vunpack.c.l.b16 %v1722
        %v4860 = vunpack.c.l.b16 %v1723
        %v4861 = vunpack.c.l.b16 %v1724
        %v4862 = vunpack.c.l.b16 %v1725
        %v4863 = vunpack.c.l.b16 %v1726
        %v4864 = vunpack.c.l.b16 %v1727
        %v4865 = vunpack.c.l.b16 %v1728
        %v4866 = vunpack.c.l.b16 %v1729
        %v4867 = vunpack.c.l.b16 %v1730
        %v4868 = vunpack.c.l.b16 %v1731
        %v4869 = vunpack.c.l.b16 %v1732
        %v4870 = vunpack.c.l.b16 %v1733
        %v4871 = vunpack.c.l.b16 %v1734
        %v4872 = vunpack.c.l.b16 %v1735
        %v4873 = vunpack.c.l.b16 %v1736
        %v4874 = vunpack.c.l.b16 %v1737
        %v4875 = vunpack.c.l.b16 %v1738
        %v4876 = vunpack.c.l.b16 %v1739
        %v4877 = vunpack.c.l.b16 %v1740
        %v4878 = vunpack.c.l.b16 %v1741
        %v4879 = vunpack.c.l.b16 %v1742
        %v4880 = vunpack.c.l.b16 %v1743
        %v4881 = vunpack.c.l.b16 %v1744
        %v4882 = vunpack.c.l.b16 %v1745
        %v4883 = vunpack.c.l.b16 %v1746
        %v4884 = vunpack.c.l.b16 %v1747
        %v4885 = vunpack.c.l.b16 %v1748
        %v4886 = vunpack.c.l.b16 %v1749
        %v4887 = vunpack.c.l.b16 %v1750
        %v4888 = vunpack.c.l.b16 %v1751
        %v4889 = vunpack.c.l.b16 %v1752
        %v4890 = vunpack.c.l.b16 %v1753
        %v4891 = vunpack.c.l.b16 %v1754
        %v4892 = vunpack.c.l.b16 %v1755
        %v4893 = vunpack.c.l.b16 %v1756
        %v4894 = vunpack.c.l.b16 %v1757
        %v4895 = vunpack.c.l.b16 %v1758
        %v4896 = vunpack.c.l.b16 %v1759
        %v4897 = vunpack.c.l.b16 %v1760
        %v4898 = vunpack.c.l.b16 %v1761
        %v4899 = vunpack.c.l.b16 %v1762
        %v4900 = vunpack.c.l.b16 %v1763
        %v4901 = vunpack.c.l.b16 %v1764
        %v4902 = vunpack.c.l.b16 %v1765
        %v4903 = vunpack.c.l.b16 %v1766
        %v4904 = vunpack.c.l.b16 %v1767
        %v4905 = vunpack.c.l.b16 %v1768
        %v4906 = vunpack.c.l.b16 %v1769
        %v4907 = vunpack.c.l.b16 %v1770
        %v4908 = vunpack.c.l.b16 %v1771
        %v4909 = vunpack.c.l.b16 %v1772
        %v4910 = vunpack.c.l.b16 %v1773
        %v4911 = vunpack.c.l.b16 %v1774
        %v4912 = vunpack.c.l.b16 %v1775
        %v4913 = vunpack.c.l.b16 %v1776
        %v4914 = vunpack.c.l.b16 %v1777
        %v4915 = vunpack.c.l.b16 %v1778
        %v4916 = vunpack.c.l.b16 %v1779
        %v4917 = vunpack.c.l.b16 %v1780
        %v4918 = vunpack.c.l.b16 %v1781
        %v4919 = vunpack.c.l.b16 %v1782
        %v4920 = vunpack.c.l.b16 %v1783
        %v4921 = vunpack.c.l.b16 %v1784
        %v4922 = vunpack.c.l.b16 %v1785
        %v4923 = vunpack.c.l.b16 %v1786
        %v4924 = vunpack.c.l.b16 %v1787
        %v4925 = vunpack.c.l.b16 %v1788
        %v4926 = vunpack.c.l.b16 %v1789
        %v4927 = vunpack.c.l.b16 %v1790
        %v4928 = vunpack.c.l.b16 %v1791
        %v4929 = vunpack.c.l.b16 %v1792
        %v4930 = vunpack.c.l.b16 %v1793
        %v4931 = vunpack.c.l.b16 %v1794
        %v4932 = vunpack.c.l.b16 %v1795
        %v4933 = vunpack.c.l.b16 %v1796
        %v4934 = vunpack.c.l.b16 %v1797
        %v4935 = vunpack.c.l.b16 %v1798
        %v4936 = vunpack.c.l.b16 %v1799
        %v4937 = vunpack.c.l.b16 %v1800
        %v4938 = vunpack.c.l.b16 %v1801
        %v4939 = vunpack.c.l.b16 %v1802
        %v4940 = vunpack.c.l.b16 %v1803
        %v4941 = vunpack.c.l.b16 %v1804
        %v4942 = vunpack.c.l.b16 %v1805
        %v4943 = vunpack.c.l.b16 %v1806
        %v4944 = vunpack.c.l.b16 %v1807
        %v4945 = vunpack.c.l.b16 %v1808
        %v4946 = vunpack.c.l.b16 %v1809
        %v4947 = vunpack.c.l.b16 %v1810
        %v4948 = vunpack.c.l.b16 %v1811
        %v4949 = vunpack.c.l.b16 %v1812
        %v4950 = vunpack.c.l.b16 %v1813
        %v4951 = vunpack.c.l.b16 %v1814
        %v4952 = vunpack.c.l.b16 %v1815
        %v4953 = vunpack.c.l.b16 %v1816
        %v4954 = vunpack.c.l.b16 %v1817
        %v4955 = vunpack.c.l.b16 %v1818
        %v4956 = vunpack.c.l.b16 %v1819
        %v4957 = vunpack.c.l.b16 %v1820
        %v4958 = vunpack.c.l.b16 %v1821
        %v4959 = vunpack.c.l.b16 %v1822
        %v4960 = vunpack.c.l.b16 %v1823
        %v4961 = vunpack.c.l.b16 %v1824
        %v4962 = vunpack.c.l.b16 %v1825
        %v4963 = vunpack.c.l.b16 %v1826
        %v4964 = vunpack.c.l.b16 %v1827
        %v4965 = vunpack.c.l.b16 %v1828
        %v4966 = vunpack.c.l.b16 %v1829
        %v4967 = vunpack.c.l.b16 %v1830
        %v4968 = vunpack.c.l.b16 %v1831
        %v4969 = vunpack.c.l.b16 %v1832
        %v4970 = vunpack.c.l.b16 %v1833
        %v4971 = vunpack.c.l.b16 %v1834
        %v4972 = vunpack.c.l.b16 %v1835
        %v4973 = vunpack.c.l.b16 %v1836
        %v4974 = vunpack.c.l.b16 %v1837
        %v4975 = vunpack.c.l.b16 %v1838
        %v4976 = vunpack.c.l.b16 %v1839
        %v4977 = vunpack.c.l.b16 %v1840
        %v4978 = vunpack.c.l.b16 %v1841
        %v4979 = vunpack.c.l.b16 %v1842
        %v4980 = vunpack.c.l.b16 %v1843
        %v4981 = vunpack.c.l.b16 %v1844
        %v4982 = vunpack.c.l.b16 %v1845
        %v4983 = vunpack.c.l.b16 %v1846
        %v4984 = vunpack.c.l.b16 %v1847
        %v4985 = vunpack.c.l.b16 %v1848
        %v4986 = vunpack.c.l.b16 %v1849
        %v4987 = vunpack.c.l.b16 %v1850
        %v4988 = vunpack.c.l.b16 %v1851
        %v4989 = vunpack.c.l.b16 %v1852
        %v4990 = vunpack.c.l.b16 %v1853
        %v4991 = vunpack.c.l.b16 %v1854
        %v4992 = vunpack.c.l.b16 %v1855
        %v4993 = vunpack.c.l.b16 %v1856
        %v4994 = vunpack.c.l.b16 %v1857
        %v4995 = vunpack.c.l.b16 %v1858
        %v4996 = vunpack.c.l.b16 %v1859
        %v4997 = vunpack.c.l.b16 %v1860
        %v4998 = vunpack.c.l.b16 %v1861
        %v4999 = vunpack.c.l.b16 %v1862
        %v5000 = vunpack.c.l.b16 %v1863
        %v5001 = vunpack.c.l.b16 %v1864
        %v5002 = vunpack.c.l.b16 %v1865
        %v5003 = vunpack.c.l.b16 %v1866
        %v5004 = vunpack.c.l.b16 %v1867
        %v5005 = vunpack.c.l.b16 %v1868
        %v5006 = vunpack.c.l.b16 %v1869
        %v5007 = vunpack.c.l.b16 %v1870
        %v5008 = vunpack.c.l.b16 %v1871
        %v5009 = vunpack.c.l.b16 %v1872
        %v5010 = vunpack.c.l.b16 %v1873
        %v5011 = vunpack.c.l.b16 %v1874
        %v5012 = vunpack.c.l.b16 %v1875
        %v5013 = vunpack.c.l.b16 %v1876
        %v5014 = vunpack.c.l.b16 %v1877
        %v5015 = vunpack.c.l.b16 %v1878
        %v5016 = vunpack.c.l.b16 %v1879
        %v5017 = vunpack.c.l.b16 %v1880
        %v5018 = vunpack.c.l.b16 %v1881
        %v5019 = vunpack.c.l.b16 %v1882
        %v5020 = vunpack.c.l.b16 %v1883
        %v5021 = vunpack.c.l.b16 %v1884
        %v5022 = vunpack.c.l.b16 %v1885
        %v5023 = vunpack.c.l.b16 %v1886
        %v5024 = vunpack.c.l.b16 %v1887
        %v5025 = vunpack.c.l.b16 %v1888
        %v5026 = vunpack.c.l.b16 %v1889
        %v5027 = vunpack.c.l.b16 %v1890
        %v5028 = vunpack.c.l.b16 %v1891
        %v5029 = vunpack.c.l.b16 %v1892
        %v5030 = vunpack.c.l.b16 %v1893
        %v5031 = vunpack.c.l.b16 %v1894
        %v5032 = vunpack.c.l.b16 %v1895
        %v5033 = vunpack.c.l.b16 %v1896
        %v5034 = vunpack.c.l.b16 %v1897
        %v5035 = vunpack.c.l.b16 %v1898
        %v5036 = vunpack.c.l.b16 %v1899
        %v5037 = vunpack.c.l.b16 %v1900
        %v5038 = vunpack.c.l.b16 %v1901
        %v5039 = vunpack.c.l.b16 %v1902
        %v5040 = vunpack.c.l.b16 %v1903
        %v5041 = vunpack.c.l.b16 %v1904
        %v5042 = vunpack.c.l.b16 %v1905
        %v5043 = vunpack.c.l.b16 %v1906
        %v5044 = vunpack.c.l.b16 %v1907
        %v5045 = vunpack.c.l.b16 %v1908
        %v5046 = vunpack.c.l.b16 %v1909
        %v5047 = vunpack.c.l.b16 %v1910
        %v5048 = vunpack.c.l.b16 %v1911
        %v5049 = vunpack.c.l.b16 %v1912
        %v5050 = vunpack.c.l.b16 %v1913
        %v5051 = vunpack.c.l.b16 %v1914
        %v5052 = vunpack.c.l.b16 %v1915
        %v5053 = vunpack.c.l.b16 %v1916
        %v5054 = vunpack.c.l.b16 %v1917
        %v5055 = vunpack.c.l.b16 %v1918
        %v5056 = vunpack.c.l.b16 %v1919
        %v5057 = vunpack.c.l.b16 %v1920
        %v5058 = vunpack.c.l.b16 %v1921
        %v5059 = vunpack.c.l.b16 %v1922
        %v5060 = vunpack.c.l.b16 %v1923
        %v5061 = vunpack.c.l.b16 %v1924
        %v5062 = vunpack.c.l.b16 %v1925
        %v5063 = vunpack.c.l.b16 %v1926
        %v5064 = vunpack.c.l.b16 %v1927
        %v5065 = vunpack.c.l.b16 %v1928
        %v5066 = vunpack.c.l.b16 %v1929
        %v5067 = vunpack.c.l.b16 %v1930
        %v5068 = vunpack.c.l.b16 %v1931
        %v5069 = vunpack.c.l.b16 %v1932
        %v5070 = vunpack.c.l.b16 %v1933
        %v5071 = vunpack.c.l.b16 %v1934
        %v5072 = vunpack.c.l.b16 %v1935
        %v5073 = vunpack.c.l.b16 %v1936
        %v5074 = vunpack.c.l.b16 %v1937
        %v5075 = vunpack.c.l.b16 %v1938
        %v5076 = vunpack.c.l.b16 %v1939
        %v5077 = vunpack.c.l.b16 %v1940
        %v5078 = vunpack.c.l.b16 %v1941
        %v5079 = vunpack.c.l.b16 %v1942
        %v5080 = vunpack.c.l.b16 %v1943
        %v5081 = vunpack.c.l.b16 %v1944
        %v5082 = vunpack.c.l.b16 %v1945
        %v5083 = vunpack.c.l.b16 %v1946
        %v5084 = vunpack.c.l.b16 %v1947
        %v5085 = vunpack.c.l.b16 %v1948
        %v5086 = vunpack.c.l.b16 %v1949
        %v5087 = vunpack.c.l.b16 %v1950
        %v5088 = vunpack.c.l.b16 %v1951
        %v5089 = vunpack.c.l.b16 %v1952
        %v5090 = vunpack.c.l.b16 %v1953
        %v5091 = vunpack.c.l.b16 %v1954
        %v5092 = vunpack.c.l.b16 %v1955
        %v5093 = vunpack.c.l.b16 %v1956
        %v5094 = vunpack.c.l.b16 %v1957
        %v5095 = vunpack.c.l.b16 %v1958
        %v5096 = vunpack.c.l.b16 %v1959
        %v5097 = vunpack.c.l.b16 %v1960
        %v5098 = vunpack.c.l.b16 %v1961
        %v5099 = vunpack.c.l.b16 %v1962
        %v5100 = vunpack.c.l.b16 %v1963
        %v5101 = vunpack.c.l.b16 %v1964
        %v5102 = vunpack.c.l.b16 %v1965
        %v5103 = vunpack.c.l.b16 %v1966
        %v5104 = vunpack.c.l.b16 %v1967
        %v5105 = vunpack.c.l.b16 %v1968
        %v5106 = vunpack.c.l.b16 %v1969
        %v5107 = vunpack.c.l.b16 %v1970
        %v5108 = vunpack.c.l.b16 %v1971
        %v5109 = vunpack.c.l.b16 %v1972
        %v5110 = vunpack.c.l.b16 %v1973
        %v5111 = vunpack.c.l.b16 %v1974
        %v5112 = vunpack.c.l.b16 %v1975
        %v5113 = vunpack.c.l.b16 %v1976
        %v5114 = vunpack.c.l.b16 %v1977
        %v5115 = vunpack.c.l.b16 %v1978
        %v5116 = vunpack.c.l.b16 %v1979
        %v5117 = vunpack.c.l.b16 %v1980
        %v5118 = vunpack.c.l.b16 %v1981
        %v5119 = vunpack.c.l.b16 %v1982
        %v5120 = vunpack.c.l.b16 %v1983
        %v5121 = vunpack.c.l.b16 %v1984
        %v5122 = vunpack.c.l.b16 %v1985
        %v5123 = vunpack.c.l.b16 %v1986
        %v5124 = vunpack.c.l.b16 %v1987
        %v5125 = vunpack.c.l.b16 %v1988
        %v5126 = vunpack.c.l.b16 %v1989
        %v5127 = vunpack.c.l.b16 %v1990
        %v5128 = vunpack.c.l.b16 %v1991
        %v5129 = vunpack.c.l.b16 %v1992
        %v5130 = vunpack.c.l.b16 %v1993
        %v5131 = vunpack.c.l.b16 %v1994
        %v5132 = vunpack.c.l.b16 %v1995
        %v5133 = vunpack.c.l.b16 %v1996
        %v5134 = vunpack.c.l.b16 %v1997
        %v5135 = vunpack.c.l.b16 %v1998
        %v5136 = vunpack.c.l.b16 %v1999
        %v5137 = vunpack.c.l.b16 %v2000
        %v5138 = vunpack.c.l.b16 %v2001
        %v5139 = vunpack.c.l.b16 %v2002
        %v5140 = vunpack.c.l.b16 %v2003
        %v5141 = vunpack.c.l.b16 %v2004
        %v5142 = vunpack.c.l.b16 %v2005
        %v5143 = vunpack.c.l.b16 %v2006
        %v5144 = vunpack.c.l.b16 %v2007
        %v5145 = vunpack.c.l.b16 %v2008
        %v5146 = vunpack.c.l.b16 %v2009
        %v5147 = vunpack.c.l.b16 %v2010
        %v5148 = vunpack.c.l.b16 %v2011
        %v5149 = vunpack.c.l.b16 %v2012
        %v5150 = vunpack.c.l.b16 %v2013
        %v5151 = vunpack.c.l.b16 %v2014
        %v5152 = vunpack.c.l.b16 %v2015
        %v5153 = vunpack.c.l.b16 %v2016
        %v5154 = vunpack.c.l.b16 %v2017
        %v5155 = vunpack.c.l.b16 %v2018
        %v5156 = vunpack.c.l.b16 %v2019
        %v5157 = vunpack.c.l.b16 %v2020
        %v5158 = vunpack.c.l.b16 %v2021
        %v5159 = vunpack.c.l.b16 %v2022
        %v5160 = vunpack.c.l.b16 %v2023
        %v5161 = vunpack.c.l.b16 %v2024
        %v5162 = vunpack.c.l.b16 %v2025
        %v5163 = vunpack.c.l.b16 %v2026
        %v5164 = vunpack.c.l.b16 %v2027
        %v5165 = vunpack.c.l.b16 %v2028
        %v5166 = vunpack.c.l.b16 %v2029
        %v5167 = vunpack.c.l.b16 %v2030
        %v5168 = vunpack.c.l.b16 %v2031
        %v5169 = vunpack.c.l.b16 %v2032
        %v5170 = vunpack.c.l.b16 %v2033
        %v5171 = vunpack.c.l.b16 %v2034
        %v5172 = vunpack.c.l.b16 %v2035
        %v5173 = vunpack.c.l.b16 %v2036
        %v5174 = vunpack.c.l.b16 %v2037
        %v5175 = vunpack.c.l.b16 %v2038
        %v5176 = vunpack.c.l.b16 %v2039
        %v5177 = vunpack.c.l.b16 %v2040
        %v5178 = vunpack.c.l.b16 %v2041
        %v5179 = vunpack.c.l.b16 %v2042
        %v5180 = vunpack.c.l.b16 %v2043
        %v5181 = vunpack.c.l.b16 %v2044
        %v5182 = vunpack.c.l.b16 %v2045
        %v5183 = vunpack.c.l.b16 %v2046
        %v5184 = vunpack.c.l.b16 %v2047
        %v5185 = vunpack.c.l.b16 %v2048
        %v5186 = vunpack.c.l.b16 %v2049
        %v5187 = vunpack.c.l.b16 %v2050
        %v5188 = vunpack.c.l.b16 %v2051
        %v5189 = vunpack.c.l.b16 %v2052
        %v5190 = vunpack.c.l.b16 %v2053
        %v5191 = vunpack.c.l.b16 %v2054
        %v5192 = vunpack.c.l.b16 %v2055
        %v5193 = vunpack.c.l.b16 %v2056
        %v5194 = vunpack.c.l.b16 %v2057
        %v5195 = vunpack.c.l.b16 %v2058
        %v5196 = vunpack.c.l.b16 %v2059
        %v5197 = vunpack.c.l.b16 %v2060
        %v5198 = vunpack.c.l.b16 %v2061
        %v5199 = vunpack.c.l.b16 %v2062
        %v5200 = vunpack.c.l.b16 %v2063
        %v5201 = vunpack.c.l.b16 %v2064
        %v5202 = vunpack.c.l.b16 %v2065
        %v5203 = vunpack.c.l.b16 %v2066
        %v5204 = vunpack.c.l.b16 %v2067
        %v5205 = vunpack.c.l.b16 %v2068
        %v5206 = vunpack.c.l.b16 %v2069
        %v5207 = vunpack.c.l.b16 %v2070
        %v5208 = vunpack.c.l.b16 %v2071
        %v5209 = vunpack.c.l.b16 %v2072
        %v5210 = vunpack.c.l.b16 %v2073
        %v5211 = vunpack.c.l.b16 %v2074
        %v5212 = vunpack.c.l.b16 %v2075
        %v5213 = vunpack.c.l.b16 %v2076
        %v5214 = vunpack.c.l.b16 %v2077
        %v5215 = vunpack.c.l.b16 %v2078
        %v5216 = vunpack.c.l.b16 %v2079
        %v5217 = vunpack.c.l.b16 %v2080
        %v5218 = vunpack.c.l.b16 %v2081
        %v5219 = vunpack.c.l.b16 %v2082
        %v5220 = vunpack.c.l.b16 %v2083
        %v5221 = vunpack.c.l.b16 %v2084
        %v5222 = vunpack.c.l.b16 %v2085
        %v5223 = vunpack.c.l.b16 %v2086
        %v5224 = vunpack.c.l.b16 %v2087
        %v5225 = vunpack.c.l.b16 %v2088
        %v5226 = vunpack.c.l.b16 %v2089
        %v5227 = vunpack.c.l.b16 %v2090
        %v5228 = vunpack.c.l.b16 %v2091
        %v5229 = vunpack.c.l.b16 %v2092
        %v5230 = vunpack.c.l.b16 %v2093
        %v5231 = vunpack.c.l.b16 %v2094
        %v5232 = vunpack.c.l.b16 %v2095
        %v5233 = vunpack.c.l.b16 %v2096
        %v5234 = vunpack.c.l.b16 %v2097
        %v5235 = vunpack.c.l.b16 %v2098
        %v5236 = vunpack.c.l.b16 %v2099
        %v5237 = vunpack.c.l.b16 %v2100
        %v5238 = vunpack.c.l.b16 %v2101
        %v5239 = vunpack.c.l.b16 %v2102
        %v5240 = vunpack.c.l.b16 %v2103
        %v5241 = vunpack.c.l.b16 %v2104
        %v5242 = vunpack.c.l.b16 %v2105
        %v5243 = vunpack.c.l.b16 %v2106
        %v5244 = vunpack.c.l.b16 %v2107
        %v5245 = vunpack.c.l.b16 %v2108
        %v5246 = vunpack.c.l.b16 %v2109
        %v5247 = vunpack.c.l.b16 %v2110
        %v5248 = vunpack.c.l.b16 %v2111
        %v5249 = vunpack.c.l.b16 %v2112
        %v5250 = vunpack.c.l.b16 %v2113
        %v5251 = vunpack.c.l.b16 %v2114
        %v5252 = vunpack.c.l.b16 %v2115
        %v5253 = vunpack.c.l.b16 %v2116
        %v5254 = vunpack.c.l.b16 %v2117
        %v5255 = vunpack.c.l.b16 %v2118
        %v5256 = vunpack.c.l.b16 %v2119
        %v5257 = vunpack.c.l.b16 %v2120
        %v5258 = vunpack.c.l.b16 %v2121
        %v5259 = vunpack.c.l.b16 %v2122
        %v5260 = vunpack.c.l.b16 %v2123
        %v5261 = vunpack.c.l.b16 %v2124
        %v5262 = vunpack.c.l.b16 %v2125
        %v5263 = vunpack.c.l.b16 %v2126
        %v5264 = vunpack.c.l.b16 %v2127
        %v5265 = vunpack.c.l.b16 %v2128
        %v5266 = vunpack.c.l.b16 %v2129
        %v5267 = vunpack.c.l.b16 %v2130
        %v5268 = vunpack.c.l.b16 %v2131
        %v5269 = vunpack.c.l.b16 %v2132
        %v5270 = vunpack.c.l.b16 %v2133
        %v5271 = vunpack.c.l.b16 %v2134
        %v5272 = vunpack.c.l.b16 %v2135
        %v5273 = vunpack.c.l.b16 %v2136
        %v5274 = vunpack.c.l.b16 %v2137
        %v5275 = vunpack.c.l.b16 %v2138
        %v5276 = vunpack.c.l.b16 %v2139
        %v5277 = vunpack.c.l.b16 %v2140
        %v5278 = vunpack.c.l.b16 %v2141
        %v5279 = vunpack.c.l.b16 %v2142
        %v5280 = vunpack.c.l.b16 %v2143
        %v5281 = vunpack.c.l.b16 %v2144
        %v5282 = vunpack.c.l.b16 %v2145
        %v5283 = vunpack.c.l.b16 %v2146
        %v5284 = vunpack.c.l.b16 %v2147
        %v5285 = vunpack.c.l.b16 %v2148
        %v5286 = vunpack.c.l.b16 %v2149
        %v5287 = vunpack.c.l.b16 %v2150
        %v5288 = vunpack.c.l.b16 %v2151
        %v5289 = vunpack.c.l.b16 %v2152
        %v5290 = vunpack.c.l.b16 %v2153
        %v5291 = vunpack.c.l.b16 %v2154
        %v5292 = vunpack.c.l.b16 %v2155
        %v5293 = vunpack.c.l.b16 %v2156
        %v5294 = vunpack.c.l.b16 %v2157
        %v5295 = vunpack.c.l.b16 %v2158
        %v5296 = vunpack.c.l.b16 %v2159
        %v5297 = vunpack.c.l.b16 %v2160
        %v5298 = vunpack.c.l.b16 %v2161
        %v5299 = vunpack.c.l.b16 %v2162
        %v5300 = vunpack.c.l.b16 %v2163
        %v5301 = vunpack.c.l.b16 %v2164
        %v5302 = vunpack.c.l.b16 %v2165
        %v5303 = vunpack.c.l.b16 %v2166
        %v5304 = vunpack.c.l.b16 %v2167
        %v5305 = vunpack.c.l.b16 %v2168
        %v5306 = vunpack.c.l.b16 %v2169
        %v5307 = vunpack.c.l.b16 %v2170
        %v5308 = vunpack.c.l.b16 %v2171
        %v5309 = vunpack.c.l.b16 %v2172
        %v5310 = vunpack.c.l.b16 %v2173
        %v5311 = vunpack.c.l.b16 %v2174
        %v5312 = vunpack.c.l.b16 %v2175
        %v5313 = vunpack.c.l.b16 %v2176
        %v5314 = vunpack.c.l.b16 %v2177
        %v5315 = vunpack.c.l.b16 %v2178
        %v5316 = vunpack.c.l.b16 %v2179
        %v5317 = vunpack.c.l.b16 %v2180
        %v5318 = vunpack.c.l.b16 %v2181
        %v5319 = vunpack.c.l.b16 %v2182
        %v5320 = vunpack.c.l.b16 %v2183
        %v5321 = vunpack.c.l.b16 %v2184
        %v5322 = vunpack.c.l.b16 %v2185
        %v5323 = vunpack.c.l.b16 %v2186
        %v5324 = vunpack.c.l.b16 %v2187
        %v5325 = vunpack.c.l.b16 %v2188
        %v5326 = vunpack.c.l.b16 %v2189
        %v5327 = vunpack.c.l.b16 %v2190
        %v5328 = vunpack.c.l.b16 %v2191
        %v5329 = vunpack.c.l.b16 %v2192
        %v5330 = vunpack.c.l.b16 %v2193
        %v5331 = vunpack.c.l.b16 %v2194
        %v5332 = vunpack.c.l.b16 %v2195
        %v5333 = vunpack.c.l.b16 %v2196
        %v5334 = vunpack.c.l.b16 %v2197
        %v5335 = vunpack.c.l.b16 %v2198
        %v5336 = vunpack.c.l.b16 %v2199
        %v5337 = vunpack.c.l.b16 %v2200
        %v5338 = vunpack.c.l.b16 %v2201
        %v5339 = vunpack.c.l.b16 %v2202
        %v5340 = vunpack.c.l.b16 %v2203
        %v5341 = vunpack.c.l.b16 %v2204
        %v5342 = vunpack.c.l.b16 %v2205
        %v5343 = vunpack.c.l.b16 %v2206
        %v5344 = vunpack.c.l.b16 %v2207
        %v5345 = vunpack.c.l.b16 %v2208
        %v5346 = vunpack.c.l.b16 %v2209
        %v5347 = vunpack.c.l.b16 %v2210
        %v5348 = vunpack.c.l.b16 %v2211
        %v5349 = vunpack.c.l.b16 %v2212
        %v5350 = vunpack.c.l.b16 %v2213
        %v5351 = vunpack.c.l.b16 %v2214
        %v5352 = vunpack.c.l.b16 %v2215
        %v5353 = vunpack.c.l.b16 %v2216
        %v5354 = vunpack.c.l.b16 %v2217
        %v5355 = vunpack.c.l.b16 %v2218
        %v5356 = vunpack.c.l.b16 %v2219
        %v5357 = vunpack.c.l.b16 %v2220
        %v5358 = vunpack.c.l.b16 %v2221
        %v5359 = vunpack.c.l.b16 %v2222
        %v5360 = vunpack.c.l.b16 %v2223
        %v5361 = vunpack.c.l.b16 %v2224
        %v5362 = vunpack.c.l.b16 %v2225
        %v5363 = vunpack.c.l.b16 %v2226
        %v5364 = vunpack.c.l.b16 %v2227
        %v5365 = vunpack.c.l.b16 %v2228
        %v5366 = vunpack.c.l.b16 %v2229
        %v5367 = vunpack.c.l.b16 %v2230
        %v5368 = vunpack.c.l.b16 %v2231
        %v5369 = vunpack.c.l.b16 %v2232
        %v5370 = vunpack.c.l.b16 %v2233
        %v5371 = vunpack.c.l.b16 %v2234
        %v5372 = vunpack.c.l.b16 %v2235
        %v5373 = vunpack.c.l.b16 %v2236
        %v5374 = vunpack.c.l.b16 %v2237
        %v5375 = vunpack.c.l.b16 %v2238
        %v5376 = vunpack.c.l.b16 %v2239
        %v5377 = vunpack.c.l.b16 %v2240
        %v5378 = vunpack.c.l.b16 %v2241
        %v5379 = vunpack.c.l.b16 %v2242
        %v5380 = vunpack.c.l.b16 %v2243
        %v5381 = vunpack.c.l.b16 %v2244
        %v5382 = vunpack.c.l.b16 %v2245
        %v5383 = vunpack.c.l.b16 %v2246
        %v5384 = vunpack.c.l.b16 %v2247
        %v5385 = vunpack.c.l.b16 %v2248
        %v5386 = vunpack.c.l.b16 %v2249
        %v5387 = vunpack.c.l.b16 %v2250
        %v5388 = vunpack.c.l.b16 %v2251
        %v5389 = vunpack.c.l.b16 %v2252
        %v5390 = vunpack.c.l.b16 %v2253
        %v5391 = vunpack.c.l.b16 %v2254
        %v5392 = vunpack.c.l.b16 %v2255
        %v5393 = vunpack.c.l.b16 %v2256
        %v5394 = vunpack.c.l.b16 %v2257
        %v5395 = vunpack.c.l.b16 %v2258
        %v5396 = vunpack.c.l.b16 %v2259
        %v5397 = vunpack.c.l.b16 %v2260
        %v5398 = vunpack.c.l.b16 %v2261
        %v5399 = vunpack.c.l.b16 %v2262
        %v5400 = vunpack.c.l.b16 %v2263
        %v5401 = vunpack.c.l.b16 %v2264
        %v5402 = vunpack.c.l.b16 %v2265
        %v5403 = vunpack.c.l.b16 %v2266
        %v5404 = vunpack.c.l.b16 %v2267
        %v5405 = vunpack.c.l.b16 %v2268
        %v5406 = vunpack.c.l.b16 %v2269
        %v5407 = vunpack.c.l.b16 %v2270
        %v5408 = vunpack.c.l.b16 %v2271
        %v5409 = vunpack.c.l.b16 %v2272
        %v5410 = vunpack.c.l.b16 %v2273
        %v5411 = vunpack.c.l.b16 %v2274
        %v5412 = vunpack.c.l.b16 %v2275
        %v5413 = vunpack.c.l.b16 %v2276
        %v5414 = vunpack.c.l.b16 %v2277
        %v5415 = vunpack.c.l.b16 %v2278
        %v5416 = vunpack.c.l.b16 %v2279
        %v5417 = vunpack.c.l.b16 %v2280
        %v5418 = vunpack.c.l.b16 %v2281
        %v5419 = vunpack.c.l.b16 %v2282
        %v5420 = vunpack.c.l.b16 %v2283
        %v5421 = vunpack.c.l.b16 %v2284
        %v5422 = vunpack.c.l.b16 %v2285
        %v5423 = vunpack.c.l.b16 %v2286
        %v5424 = vunpack.c.l.b16 %v2287
        %v5425 = vunpack.c.l.b16 %v2288
        %v5426 = vunpack.c.l.b16 %v2289
        %v5427 = vunpack.c.l.b16 %v2290
        %v5428 = vunpack.c.l.b16 %v2291
        %v5429 = vunpack.c.l.b16 %v2292
        %v5430 = vunpack.c.l.b16 %v2293
        %v5431 = vunpack.c.l.b16 %v2294
        %v5432 = vunpack.c.l.b16 %v2295
        %v5433 = vunpack.c.l.b16 %v2296
        %v5434 = vunpack.c.l.b16 %v2297
        %v5435 = vunpack.c.l.b16 %v2298
        %v5436 = vunpack.c.l.b16 %v2299
        %v5437 = vunpack.c.l.b16 %v2300
        %v5438 = vunpack.c.l.b16 %v2301
        %v5439 = vunpack.c.l.b16 %v2302
        %v5440 = vunpack.c.l.b16 %v2303
        %v5441 = vunpack.c.l.b16 %v2304
        %v5442 = vunpack.c.l.b16 %v2305
        %v5443 = vunpack.c.l.b16 %v2306
        %v5444 = vunpack.c.l.b16 %v2307
        %v5445 = vunpack.c.l.b16 %v2308
        %v5446 = vunpack.c.l.b16 %v2309
        %v5447 = vunpack.c.l.b16 %v2310
        %v5448 = vunpack.c.l.b16 %v2311
        %v5449 = vunpack.c.l.b16 %v2312
        %v5450 = vunpack.c.l.b16 %v2313
        %v5451 = vunpack.c.l.b16 %v2314
        %v5452 = vunpack.c.l.b16 %v2315
        %v5453 = vunpack.c.l.b16 %v2316
        %v5454 = vunpack.c.l.b16 %v2317
        %v5455 = vunpack.c.l.b16 %v2318
        %v5456 = vunpack.c.l.b16 %v2319
        %v5457 = vunpack.c.l.b16 %v2320
        %v5458 = vunpack.c.l.b16 %v2321
        %v5459 = vunpack.c.l.b16 %v2322
        %v5460 = vunpack.c.l.b16 %v2323
        %v5461 = vunpack.c.l.b16 %v2324
        %v5462 = vunpack.c.l.b16 %v2325
        %v5463 = vunpack.c.l.b16 %v2326
        %v5464 = vunpack.c.l.b16 %v2327
        %v5465 = vunpack.c.l.b16 %v2328
        %v5466 = vunpack.c.l.b16 %v2329
        %v5467 = vunpack.c.l.b16 %v2330
        %v5468 = vunpack.c.l.b16 %v2331
        %v5469 = vunpack.c.l.b16 %v2332
        %v5470 = vunpack.c.l.b16 %v2333
        %v5471 = vunpack.c.l.b16 %v2334
        %v5472 = vunpack.c.l.b16 %v2335
        %v5473 = vunpack.c.l.b16 %v2336
        %v5474 = vunpack.c.l.b16 %v2337
        %v5475 = vunpack.c.l.b16 %v2338
        %v5476 = vunpack.c.l.b16 %v2339
        %v5477 = vunpack.c.l.b16 %v2340
        %v5478 = vunpack.c.l.b16 %v2341
        %v5479 = vunpack.c.l.b16 %v2342
        %v5480 = vunpack.c.l.b16 %v2343
        %v5481 = vunpack.c.l.b16 %v2344
        %v5482 = vunpack.c.l.b16 %v2345
        %v5483 = vunpack.c.l.b16 %v2346
        %v5484 = vunpack.c.l.b16 %v2347
        %v5485 = vunpack.c.l.b16 %v2348
        %v5486 = vunpack.c.l.b16 %v2349
        %v5487 = vunpack.c.l.b16 %v2350
        %v5488 = vunpack.c.l.b16 %v2351
        %v5489 = vunpack.c.l.b16 %v2352
        %v5490 = vunpack.c.l.b16 %v2353
        %v5491 = vunpack.c.l.b16 %v2354
        %v5492 = vunpack.c.l.b16 %v2355
        %v5493 = vunpack.c.l.b16 %v2356
        %v5494 = vunpack.c.l.b16 %v2357
        %v5495 = vunpack.c.l.b16 %v2358
        %v5496 = vunpack.c.l.b16 %v2359
        %v5497 = vunpack.c.l.b16 %v2360
        %v5498 = vunpack.c.l.b16 %v2361
        %v5499 = vunpack.c.l.b16 %v2362
        %v5500 = vunpack.c.l.b16 %v2363
        %v5501 = vunpack.c.l.b16 %v2364
        %v5502 = vunpack.c.l.b16 %v2365
        %v5503 = vunpack.c.l.b16 %v2366
        %v5504 = vunpack.c.l.b16 %v2367
        %v5505 = vunpack.c.l.b16 %v2368
        %v5506 = vunpack.c.l.b16 %v2369
        %v5507 = vunpack.c.l.b16 %v2370
        %v5508 = vunpack.c.l.b16 %v2371
        %v5509 = vunpack.c.l.b16 %v2372
        %v5510 = vunpack.c.l.b16 %v2373
        %v5511 = vunpack.c.l.b16 %v2374
        %v5512 = vunpack.c.l.b16 %v2375
        %v5513 = vunpack.c.l.b16 %v2376
        %v5514 = vunpack.c.l.b16 %v2377
        %v5515 = vunpack.c.l.b16 %v2378
        %v5516 = vunpack.c.l.b16 %v2379
        %v5517 = vunpack.c.l.b16 %v2380
        %v5518 = vunpack.c.l.b16 %v2381
        %v5519 = vunpack.c.l.b16 %v2382
        %v5520 = vunpack.c.l.b16 %v2383
        %v5521 = vunpack.c.l.b16 %v2384
        %v5522 = vunpack.c.l.b16 %v2385
        %v5523 = vunpack.c.l.b16 %v2386
        %v5524 = vunpack.c.l.b16 %v2387
        %v5525 = vunpack.c.l.b16 %v2388
        %v5526 = vunpack.c.l.b16 %v2389
        %v5527 = vunpack.c.l.b16 %v2390
        %v5528 = vunpack.c.l.b16 %v2391
        %v5529 = vunpack.c.l.b16 %v2392
        %v5530 = vunpack.c.l.b16 %v2393
        %v5531 = vunpack.c.l.b16 %v2394
        %v5532 = vunpack.c.l.b16 %v2395
        %v5533 = vunpack.c.l.b16 %v2396
        %v5534 = vunpack.c.l.b16 %v2397
        %v5535 = vunpack.c.l.b16 %v2398
        %v5536 = vunpack.c.l.b16 %v2399
        %v5537 = vunpack.c.l.b16 %v2400
        %v5538 = vunpack.c.l.b16 %v2401
        %v5539 = vunpack.c.l.b16 %v2402
        %v5540 = vunpack.c.l.b16 %v2403
        %v5541 = vunpack.c.l.b16 %v2404
        %v5542 = vunpack.c.l.b16 %v2405
        %v5543 = vunpack.c.l.b16 %v2406
        %v5544 = vunpack.c.l.b16 %v2407
        %v5545 = vunpack.c.l.b16 %v2408
        %v5546 = vunpack.c.l.b16 %v2409
        %v5547 = vunpack.c.l.b16 %v2410
        %v5548 = vunpack.c.l.b16 %v2411
        %v5549 = vunpack.c.l.b16 %v2412
        %v5550 = vunpack.c.l.b16 %v2413
        %v5551 = vunpack.c.l.b16 %v2414
        %v5552 = vunpack.c.l.b16 %v2415
        %v5553 = vunpack.c.l.b16 %v2416
        %v5554 = vunpack.c.l.b16 %v2417
        %v5555 = vunpack.c.l.b16 %v2418
        %v5556 = vunpack.c.l.b16 %v2419
        %v5557 = vunpack.c.l.b16 %v2420
        %v5558 = vunpack.c.l.b16 %v2421
        %v5559 = vunpack.c.l.b16 %v2422
        %v5560 = vunpack.c.l.b16 %v2423
        %v5561 = vunpack.c.l.b16 %v2424
        %v5562 = vunpack.c.l.b16 %v2425
        %v5563 = vunpack.c.l.b16 %v2426
        %v5564 = vunpack.c.l.b16 %v2427
        %v5565 = vunpack.c.l.b16 %v2428
        %v5566 = vunpack.c.l.b16 %v2429
        %v5567 = vunpack.c.l.b16 %v2430
        %v5568 = vunpack.c.l.b16 %v2431
        %v5569 = vunpack.c.l.b16 %v2432
        %v5570 = vunpack.c.l.b16 %v2433
        %v5571 = vunpack.c.l.b16 %v2434
        %v5572 = vunpack.c.l.b16 %v2435
        %v5573 = vunpack.c.l.b16 %v2436
        %v5574 = vunpack.c.l.b16 %v2437
        %v5575 = vunpack.c.l.b16 %v2438
        %v5576 = vunpack.c.l.b16 %v2439
        %v5577 = vunpack.c.l.b16 %v2440
        %v5578 = vunpack.c.l.b16 %v2441
        %v5579 = vunpack.c.l.b16 %v2442
        %v5580 = vunpack.c.l.b16 %v2443
        %v5581 = vunpack.c.l.b16 %v2444
        %v5582 = vunpack.c.l.b16 %v2445
        %v5583 = vunpack.c.l.b16 %v2446
        %v5584 = vunpack.c.l.b16 %v2447
        %v5585 = vunpack.c.l.b16 %v2448
        %v5586 = vunpack.c.l.b16 %v2449
        %v5587 = vunpack.c.l.b16 %v2450
        %v5588 = vunpack.c.l.b16 %v2451
        %v5589 = vunpack.c.l.b16 %v2452
        %v5590 = vunpack.c.l.b16 %v2453
        %v5591 = vunpack.c.l.b16 %v2454
        %v5592 = vunpack.c.l.b16 %v2455
        %v5593 = vunpack.c.l.b16 %v2456
        %v5594 = vunpack.c.l.b16 %v2457
        %v5595 = vunpack.c.l.b16 %v2458
        %v5596 = vunpack.c.l.b16 %v2459
        %v5597 = vunpack.c.l.b16 %v2460
        %v5598 = vunpack.c.l.b16 %v2461
        %v5599 = vunpack.c.l.b16 %v2462
        %v5600 = vunpack.c.l.b16 %v2463
        %v5601 = vunpack.c.l.b16 %v2464
        %v5602 = vunpack.c.l.b16 %v2465
        %v5603 = vunpack.c.l.b16 %v2466
        %v5604 = vunpack.c.l.b16 %v2467
        %v5605 = vunpack.c.l.b16 %v2468
        %v5606 = vunpack.c.l.b16 %v2469
        %v5607 = vunpack.c.l.b16 %v2470
        %v5608 = vunpack.c.l.b16 %v2471
        %v5609 = vunpack.c.l.b16 %v2472
        %v5610 = vunpack.c.l.b16 %v2473
        %v5611 = vunpack.c.l.b16 %v2474
        %v5612 = vunpack.c.l.b16 %v2475
        %v5613 = vunpack.c.l.b16 %v2476
        %v5614 = vunpack.c.l.b16 %v2477
        %v5615 = vunpack.c.l.b16 %v2478
        %v5616 = vunpack.c.l.b16 %v2479
        %v5617 = vunpack.c.l.b16 %v2480
        %v5618 = vunpack.c.l.b16 %v2481
        %v5619 = vunpack.c.l.b16 %v2482
        %v5620 = vunpack.c.l.b16 %v2483
        %v5621 = vunpack.c.l.b16 %v2484
        %v5622 = vunpack.c.l.b16 %v2485
        %v5623 = vunpack.c.l.b16 %v2486
        %v5624 = vunpack.c.l.b16 %v2487
        %v5625 = vunpack.c.l.b16 %v2488
        %v5626 = vunpack.c.l.b16 %v2489
        %v5627 = vunpack.c.l.b16 %v2490
        %v5628 = vunpack.c.l.b16 %v2491
        %v5629 = vunpack.c.l.b16 %v2492
        %v5630 = vunpack.c.l.b16 %v2493
        %v5631 = vunpack.c.l.b16 %v2494
        %v5632 = vunpack.c.l.b16 %v2495
        %v5633 = vunpack.c.l.b16 %v2496
        %v5634 = vunpack.c.l.b16 %v2497
        %v5635 = vunpack.c.l.b16 %v2498
        %v5636 = vunpack.c.l.b16 %v2499
        %v5637 = vunpack.c.l.b16 %v2500
        %v5638 = vunpack.c.l.b16 %v2501
        %v5639 = vunpack.c.l.b16 %v2502
        %v5640 = vunpack.c.l.b16 %v2503
        %v5641 = vunpack.c.l.b16 %v2504
        %v5642 = vunpack.c.l.b16 %v2505
        %v5643 = vunpack.c.l.b16 %v2506
        %v5644 = vunpack.c.l.b16 %v2507
        %v5645 = vunpack.c.l.b16 %v2508
        %v5646 = vunpack.c.l.b16 %v2509
        %v5647 = vunpack.c.l.b16 %v2510
        %v5648 = vunpack.c.l.b16 %v2511
        %v5649 = vunpack.c.l.b16 %v2512
        %v5650 = vunpack.c.l.b16 %v2513
        %v5651 = vunpack.c.l.b16 %v2514
        %v5652 = vunpack.c.l.b16 %v2515
        %v5653 = vunpack.c.l.b16 %v2516
        %v5654 = vunpack.c.l.b16 %v2517
        %v5655 = vunpack.c.l.b16 %v2518
        %v5656 = vunpack.c.l.b16 %v2519
        %v5657 = vunpack.c.l.b16 %v2520
        %v5658 = vunpack.c.l.b16 %v2521
        %v5659 = vunpack.c.l.b16 %v2522
        %v5660 = vunpack.c.l.b16 %v2523
        %v5661 = vunpack.c.l.b16 %v2524
        %v5662 = vunpack.c.l.b16 %v2525
        %v5663 = vunpack.c.l.b16 %v2526
        %v5664 = vunpack.c.l.b16 %v2527
        %v5665 = vunpack.c.l.b16 %v2528
        %v5666 = vunpack.c.l.b16 %v2529
        %v5667 = vunpack.c.l.b16 %v2530
        %v5668 = vunpack.c.l.b16 %v2531
        %v5669 = vunpack.c.l.b16 %v2532
        %v5670 = vunpack.c.l.b16 %v2533
        %v5671 = vunpack.c.l.b16 %v2534
        %v5672 = vunpack.c.l.b16 %v2535
        %v5673 = vunpack.c.l.b16 %v2536
        %v5674 = vunpack.c.l.b16 %v2537
        %v5675 = vunpack.c.l.b16 %v2538
        %v5676 = vunpack.c.l.b16 %v2539
        %v5677 = vunpack.c.l.b16 %v2540
        %v5678 = vunpack.c.l.b16 %v2541
        %v5679 = vunpack.c.l.b16 %v2542
        %v5680 = vunpack.c.l.b16 %v2543
        %v5681 = vunpack.c.l.b16 %v2544
        %v5682 = vunpack.c.l.b16 %v2545
        %v5683 = vunpack.c.l.b16 %v2546
        %v5684 = vunpack.c.l.b16 %v2547
        %v5685 = vunpack.c.l.b16 %v2548
        %v5686 = vunpack.c.l.b16 %v2549
        %v5687 = vunpack.c.l.b16 %v2550
        %v5688 = vunpack.c.l.b16 %v2551
        %v5689 = vunpack.c.l.b16 %v2552
        %v5690 = vunpack.c.l.b16 %v2553
        %v5691 = vunpack.c.l.b16 %v2554
        %v5692 = vunpack.c.l.b16 %v2555
        %v5693 = vunpack.c.l.b16 %v2556
        %v5694 = vunpack.c.l.b16 %v2557
        %v5695 = vunpack.c.l.b16 %v2558
        %v5696 = vunpack.c.l.b16 %v2559
        %v5697 = vunpack.c.l.b16 %v2560
        %v5698 = vunpack.c.l.b16 %v2561
        %v5699 = vunpack.c.l.b16 %v2562
        %v5700 = vunpack.c.l.b16 %v2563
        %v5701 = vunpack.c.l.b16 %v2564
        %v5702 = vunpack.c.l.b16 %v2565
        %v5703 = vunpack.c.l.b16 %v2566
        %v5704 = vunpack.c.l.b16 %v2567
        %v5705 = vunpack.c.l.b16 %v2568
        %v5706 = vunpack.c.l.b16 %v2569
        %v5707 = vunpack.c.l.b16 %v2570
        %v5708 = vunpack.c.l.b16 %v2571
        %v5709 = vunpack.c.l.b16 %v2572
        %v5710 = vunpack.c.l.b16 %v2573
        %v5711 = vunpack.c.l.b16 %v2574
        %v5712 = vunpack.c.l.b16 %v2575
        %v5713 = vunpack.c.l.b16 %v2576
        %v5714 = vunpack.c.l.b16 %v2577
        %v5715 = vunpack.c.l.b16 %v2578
        %v5716 = vunpack.c.l.b16 %v2579
        %v5717 = vunpack.c.l.b16 %v2580
        %v5718 = vunpack.c.l.b16 %v2581
        %v5719 = vunpack.c.l.b16 %v2582
        %v5720 = vunpack.c.l.b16 %v2583
        %v5721 = vunpack.c.l.b16 %v2584
        %v5722 = vunpack.c.l.b16 %v2585
        %v5723 = vunpack.c.l.b16 %v2586
        %v5724 = vunpack.c.l.b16 %v2587
        %v5725 = vunpack.c.l.b16 %v2588
        %v5726 = vunpack.c.l.b16 %v2589
        %v5727 = vunpack.c.l.b16 %v2590
        %v5728 = vunpack.c.l.b16 %v2591
        %v5729 = vunpack.c.l.b16 %v2592
        %v5730 = vunpack.c.l.b16 %v2593
        %v5731 = vunpack.c.l.b16 %v2594
        %v5732 = vunpack.c.l.b16 %v2595
        %v5733 = vunpack.c.l.b16 %v2596
        %v5734 = vunpack.c.l.b16 %v2597
        %v5735 = vunpack.c.l.b16 %v2598
        %v5736 = vunpack.c.l.b16 %v2599
        %v5737 = vunpack.c.l.b16 %v2600
        %v5738 = vunpack.c.l.b16 %v2601
        %v5739 = vunpack.c.l.b16 %v2602
        %v5740 = vunpack.c.l.b16 %v2603
        %v5741 = vunpack.c.l.b16 %v2604
        %v5742 = vunpack.c.l.b16 %v2605
        %v5743 = vunpack.c.l.b16 %v2606
        %v5744 = vunpack.c.l.b16 %v2607
        %v5745 = vunpack.c.l.b16 %v2608
        %v5746 = vunpack.c.l.b16 %v2609
        %v5747 = vunpack.c.l.b16 %v2610
        %v5748 = vunpack.c.l.b16 %v2611
        %v5749 = vunpack.c.l.b16 %v2612
        %v5750 = vunpack.c.l.b16 %v2613
        %v5751 = vunpack.c.l.b16 %v2614
        %v5752 = vunpack.c.l.b16 %v2615
        %v5753 = vunpack.c.l.b16 %v2616
        %v5754 = vunpack.c.l.b16 %v2617
        %v5755 = vunpack.c.l.b16 %v2618
        %v5756 = vunpack.c.l.b16 %v2619
        %v5757 = vunpack.c.l.b16 %v2620
        %v5758 = vunpack.c.l.b16 %v2621
        %v5759 = vunpack.c.l.b16 %v2622
        %v5760 = vunpack.c.l.b16 %v2623
        %v5761 = vunpack.c.l.b16 %v2624
        %v5762 = vunpack.c.l.b16 %v2625
        %v5763 = vunpack.c.l.b16 %v2626
        %v5764 = vunpack.c.l.b16 %v2627
        %v5765 = vunpack.c.l.b16 %v2628
        %v5766 = vunpack.c.l.b16 %v2629
        %v5767 = vunpack.c.l.b16 %v2630
        %v5768 = vunpack.c.l.b16 %v2631
        %v5769 = vunpack.c.l.b16 %v2632
        %v5770 = vunpack.c.l.b16 %v2633
        %v5771 = vunpack.c.l.b16 %v2634
        %v5772 = vunpack.c.l.b16 %v2635
        %v5773 = vunpack.c.l.b16 %v2636
        %v5774 = vunpack.c.l.b16 %v2637
        %v5775 = vunpack.c.l.b16 %v2638
        %v5776 = vunpack.c.l.b16 %v2639
        %v5777 = vunpack.c.l.b16 %v2640
        %v5778 = vunpack.c.l.b16 %v2641
        %v5779 = vunpack.c.l.b16 %v2642
        %v5780 = vunpack.c.l.b16 %v2643
        %v5781 = vunpack.c.l.b16 %v2644
        %v5782 = vunpack.c.l.b16 %v2645
        %v5783 = vunpack.c.l.b16 %v2646
        %v5784 = vunpack.c.l.b16 %v2647
        %v5785 = vunpack.c.l.b16 %v2648
        %v5786 = vunpack.c.l.b16 %v2649
        %v5787 = vunpack.c.l.b16 %v2650
        %v5788 = vunpack.c.l.b16 %v2651
        %v5789 = vunpack.c.l.b16 %v2652
        %v5790 = vunpack.c.l.b16 %v2653
        %v5791 = vunpack.c.l.b16 %v2654
        %v5792 = vunpack.c.l.b16 %v2655
        %v5793 = vunpack.c.l.b16 %v2656
        %v5794 = vunpack.c.l.b16 %v2657
        %v5795 = vunpack.c.l.b16 %v2658
        %v5796 = vunpack.c.l.b16 %v2659
        %v5797 = vunpack.c.l.b16 %v2660
        %v5798 = vunpack.c.l.b16 %v2661
        %v5799 = vunpack.c.l.b16 %v2662
        %v5800 = vunpack.c.l.b16 %v2663
        %v5801 = vunpack.c.l.b16 %v2664
        %v5802 = vunpack.c.l.b16 %v2665
        %v5803 = vunpack.c.l.b16 %v2666
        %v5804 = vunpack.c.l.b16 %v2667
        %v5805 = vunpack.c.l.b16 %v2668
        %v5806 = vunpack.c.l.b16 %v2669
        %v5807 = vunpack.c.l.b16 %v2670
        %v5808 = vunpack.c.l.b16 %v2671
        %v5809 = vunpack.c.l.b16 %v2672
        %v5810 = vunpack.c.l.b16 %v2673
        %v5811 = vunpack.c.l.b16 %v2674
        %v5812 = vunpack.c.l.b16 %v2675
        %v5813 = vunpack.c.l.b16 %v2676
        %v5814 = vunpack.c.l.b16 %v2677
        %v5815 = vunpack.c.l.b16 %v2678
        %v5816 = vunpack.c.l.b16 %v2679
        %v5817 = vunpack.c.l.b16 %v2680
        %v5818 = vunpack.c.l.b16 %v2681
        %v5819 = vunpack.c.l.b16 %v2682
        %v5820 = vunpack.c.l.b16 %v2683
        %v5821 = vunpack.c.l.b16 %v2684
        %v5822 = vunpack.c.l.b16 %v2685
        %v5823 = vunpack.c.l.b16 %v2686
        %v5824 = vunpack.c.l.b16 %v2687
        %v5825 = vunpack.c.l.b16 %v2688
        %v5826 = vunpack.c.l.b16 %v2689
        %v5827 = vunpack.c.l.b16 %v2690
        %v5828 = vunpack.c.l.b16 %v2691
        %v5829 = vunpack.c.l.b16 %v2692
        %v5830 = vunpack.c.l.b16 %v2693
        %v5831 = vunpack.c.l.b16 %v2694
        %v5832 = vunpack.c.l.b16 %v2695
        %v5833 = vunpack.c.l.b16 %v2696
        %v5834 = vunpack.c.l.b16 %v2697
        %v5835 = vunpack.c.l.b16 %v2698
        %v5836 = vunpack.c.l.b16 %v2699
        %v5837 = vunpack.c.l.b16 %v2700
        %v5838 = vunpack.c.l.b16 %v2701
        %v5839 = vunpack.c.l.b16 %v2702
        %v5840 = vunpack.c.l.b16 %v2703
        %v5841 = vunpack.c.l.b16 %v2704
        %v5842 = vunpack.c.l.b16 %v2705
        %v5843 = vunpack.c.l.b16 %v2706
        %v5844 = vunpack.c.l.b16 %v2707
        %v5845 = vunpack.c.l.b16 %v2708
        %v5846 = vunpack.c.l.b16 %v2709
        %v5847 = vunpack.c.l.b16 %v2710
        %v5848 = vunpack.c.l.b16 %v2711
        %v5849 = vunpack.c.l.b16 %v2712
        %v5850 = vunpack.c.l.b16 %v2713
        %v5851 = vunpack.c.l.b16 %v2714
        %v5852 = vunpack.c.l.b16 %v2715
        %v5853 = vunpack.c.l.b16 %v2716
        %v5854 = vunpack.c.l.b16 %v2717
        %v5855 = vunpack.c.l.b16 %v2718
        %v5856 = vunpack.c.l.b16 %v2719
        %v5857 = vunpack.c.l.b16 %v2720
        %v5858 = vunpack.c.l.b16 %v2721
        %v5859 = vunpack.c.l.b16 %v2722
        %v5860 = vunpack.c.l.b16 %v2723
        %v5861 = vunpack.c.l.b16 %v2724
        %v5862 = vunpack.c.l.b16 %v2725
        %v5863 = vunpack.c.l.b16 %v2726
        %v5864 = vunpack.c.l.b16 %v2727
        %v5865 = vunpack.c.l.b16 %v2728
        %v5866 = vunpack.c.l.b16 %v2729
        %v5867 = vunpack.c.l.b16 %v2730
        %v5868 = vunpack.c.l.b16 %v2731
        %v5869 = vunpack.c.l.b16 %v2732
        %v5870 = vunpack.c.l.b16 %v2733
        %v5871 = vunpack.c.l.b16 %v2734
        %v5872 = vunpack.c.l.b16 %v2735
        %v5873 = vunpack.c.l.b16 %v2736
        %v5874 = vunpack.c.l.b16 %v2737
        %v5875 = vunpack.c.l.b16 %v2738
        %v5876 = vunpack.c.l.b16 %v2739
        %v5877 = vunpack.c.l.b16 %v2740
        %v5878 = vunpack.c.l.b16 %v2741
        %v5879 = vunpack.c.l.b16 %v2742
        %v5880 = vunpack.c.l.b16 %v2743
        %v5881 = vunpack.c.l.b16 %v2744
        %v5882 = vunpack.c.l.b16 %v2745
        %v5883 = vunpack.c.l.b16 %v2746
        %v5884 = vunpack.c.l.b16 %v2747
        %v5885 = vunpack.c.l.b16 %v2748
        %v5886 = vunpack.c.l.b16 %v2749
        %v5887 = vunpack.c.l.b16 %v2750
        %v5888 = vunpack.c.l.b16 %v2751
        %v5889 = vunpack.c.l.b16 %v2752
        %v5890 = vunpack.c.l.b16 %v2753
        %v5891 = vunpack.c.l.b16 %v2754
        %v5892 = vunpack.c.l.b16 %v2755
        %v5893 = vunpack.c.l.b16 %v2756
        %v5894 = vunpack.c.l.b16 %v2757
        %v5895 = vunpack.c.l.b16 %v2758
        %v5896 = vunpack.c.l.b16 %v2759
        %v5897 = vunpack.c.l.b16 %v2760
        %v5898 = vunpack.c.l.b16 %v2761
        %v5899 = vunpack.c.l.b16 %v2762
        %v5900 = vunpack.c.l.b16 %v2763
        %v5901 = vunpack.c.l.b16 %v2764
        %v5902 = vunpack.c.l.b16 %v2765
        %v5903 = vunpack.c.l.b16 %v2766
        %v5904 = vunpack.c.l.b16 %v2767
        %v5905 = vunpack.c.l.b16 %v2768
        %v5906 = vunpack.c.l.b16 %v2769
        %v5907 = vunpack.c.l.b16 %v2770
        %v5908 = vunpack.c.l.b16 %v2771
        %v5909 = vunpack.c.l.b16 %v2772
        %v5910 = vunpack.c.l.b16 %v2773
        %v5911 = vunpack.c.l.b16 %v2774
        %v5912 = vunpack.c.l.b16 %v2775
        %v5913 = vunpack.c.l.b16 %v2776
        %v5914 = vunpack.c.l.b16 %v2777
        %v5915 = vunpack.c.l.b16 %v2778
        %v5916 = vunpack.c.l.b16 %v2779
        %v5917 = vunpack.c.l.b16 %v2780
        %v5918 = vunpack.c.l.b16 %v2781
        %v5919 = vunpack.c.l.b16 %v2782
        %v5920 = vunpack.c.l.b16 %v2783
        %v5921 = vunpack.c.l.b16 %v2784
        %v5922 = vunpack.c.l.b16 %v2785
        %v5923 = vunpack.c.l.b16 %v2786
        %v5924 = vunpack.c.l.b16 %v2787
        %v5925 = vunpack.c.l.b16 %v2788
        %v5926 = vunpack.c.l.b16 %v2789
        %v5927 = vunpack.c.l.b16 %v2790
        %v5928 = vunpack.c.l.b16 %v2791
        %v5929 = vunpack.c.l.b16 %v2792
        %v5930 = vunpack.c.l.b16 %v2793
        %v5931 = vunpack.c.l.b16 %v2794
        %v5932 = vunpack.c.l.b16 %v2795
        %v5933 = vunpack.c.l.b16 %v2796
        %v5934 = vunpack.c.l.b16 %v2797
        %v5935 = vunpack.c.l.b16 %v2798
        %v5936 = vunpack.c.l.b16 %v2799
        %v5937 = vunpack.c.l.b16 %v2800
        %v5938 = vunpack.c.l.b16 %v2801
        %v5939 = vunpack.c.l.b16 %v2802
        %v5940 = vunpack.c.l.b16 %v2803
        %v5941 = vunpack.c.l.b16 %v2804
        %v5942 = vunpack.c.l.b16 %v2805
        %v5943 = vunpack.c.l.b16 %v2806
        %v5944 = vunpack.c.l.b16 %v2807
        %v5945 = vunpack.c.l.b16 %v2808
        %v5946 = vunpack.c.l.b16 %v2809
        %v5947 = vunpack.c.l.b16 %v2810
        %v5948 = vunpack.c.l.b16 %v2811
        %v5949 = vunpack.c.l.b16 %v2812
        %v5950 = vunpack.c.l.b16 %v2813
        %v5951 = vunpack.c.l.b16 %v2814
        %v5952 = vunpack.c.l.b16 %v2815
        %v5953 = vunpack.c.l.b16 %v2816
        %v5954 = vunpack.c.l.b16 %v2817
        %v5955 = vunpack.c.l.b16 %v2818
        %v5956 = vunpack.c.l.b16 %v2819
        %v5957 = vunpack.c.l.b16 %v2820
        %v5958 = vunpack.c.l.b16 %v2821
        %v5959 = vunpack.c.l.b16 %v2822
        %v5960 = vunpack.c.l.b16 %v2823
        %v5961 = vunpack.c.l.b16 %v2824
        %v5962 = vunpack.c.l.b16 %v2825
        %v5963 = vunpack.c.l.b16 %v2826
        %v5964 = vunpack.c.l.b16 %v2827
        %v5965 = vunpack.c.l.b16 %v2828
        %v5966 = vunpack.c.l.b16 %v2829
        %v5967 = vunpack.c.l.b16 %v2830
        %v5968 = vunpack.c.l.b16 %v2831
        %v5969 = vunpack.c.l.b16 %v2832
        %v5970 = vunpack.c.l.b16 %v2833
        %v5971 = vunpack.c.l.b16 %v2834
        %v5972 = vunpack.c.l.b16 %v2835
        %v5973 = vunpack.c.l.b16 %v2836
        %v5974 = vunpack.c.l.b16 %v2837
        %v5975 = vunpack.c.l.b16 %v2838
        %v5976 = vunpack.c.l.b16 %v2839
        %v5977 = vunpack.c.l.b16 %v2840
        %v5978 = vunpack.c.l.b16 %v2841
        %v5979 = vunpack.c.l.b16 %v2842
        %v5980 = vunpack.c.l.b16 %v2843
        %v5981 = vunpack.c.l.b16 %v2844
        %v5982 = vunpack.c.l.b16 %v2845
        %v5983 = vunpack.c.l.b16 %v2846
        %v5984 = vunpack.c.l.b16 %v2847
        %v5985 = vunpack.c.l.b16 %v2848
        %v5986 = vunpack.c.l.b16 %v2849
        %v5987 = vunpack.c.l.b16 %v2850
        %v5988 = vunpack.c.l.b16 %v2851
        %v5989 = vunpack.c.l.b16 %v2852
        %v5990 = vunpack.c.l.b16 %v2853
        %v5991 = vunpack.c.l.b16 %v2854
        %v5992 = vunpack.c.l.b16 %v2855
        %v5993 = vunpack.c.l.b16 %v2856
        %v5994 = vunpack.c.l.b16 %v2857
        %v5995 = vunpack.c.l.b16 %v2858
        %v5996 = vunpack.c.l.b16 %v2859
        %v5997 = vunpack.c.l.b16 %v2860
        %v5998 = vunpack.c.l.b16 %v2861
        %v5999 = vunpack.c.l.b16 %v2862
        %v6000 = vunpack.c.l.b16 %v2863
        %v6001 = vunpack.c.l.b16 %v2864
        %v6002 = vunpack.c.l.b16 %v2865
        %v6003 = vunpack.c.l.b16 %v2866
        %v6004 = vunpack.c.l.b16 %v2867
        %v6005 = vunpack.c.l.b16 %v2868
        %v6006 = vunpack.c.l.b16 %v2869
        %v6007 = vunpack.c.l.b16 %v2870
        %v6008 = vunpack.c.l.b16 %v2871
        %v6009 = vunpack.c.l.b16 %v2872
        %v6010 = vunpack.c.l.b16 %v2873
        %v6011 = vunpack.c.l.b16 %v2874
        %v6012 = vunpack.c.l.b16 %v2875
        %v6013 = vunpack.c.l.b16 %v2876
        %v6014 = vunpack.c.l.b16 %v2877
        %v6015 = vunpack.c.l.b16 %v2878
        %v6016 = vunpack.c.l.b16 %v2879
        %v6017 = vunpack.c.l.b16 %v2880
        %v6018 = vunpack.c.l.b16 %v2881
        %v6019 = vunpack.c.l.b16 %v2882
        %v6020 = vunpack.c.l.b16 %v2883
        %v6021 = vunpack.c.l.b16 %v2884
        %v6022 = vunpack.c.l.b16 %v2885
        %v6023 = vunpack.c.l.b16 %v2886
        %v6024 = vunpack.c.l.b16 %v2887
        %v6025 = vunpack.c.l.b16 %v2888
        %v6026 = vunpack.c.l.b16 %v2889
        %v6027 = vunpack.c.l.b16 %v2890
        %v6028 = vunpack.c.l.b16 %v2891
        %v6029 = vunpack.c.l.b16 %v2892
        %v6030 = vunpack.c.l.b16 %v2893
        %v6031 = vunpack.c.l.b16 %v2894
        %v6032 = vunpack.c.l.b16 %v2895
        %v6033 = vunpack.c.l.b16 %v2896
        %v6034 = vunpack.c.l.b16 %v2897
        %v6035 = vunpack.c.l.b16 %v2898
        %v6036 = vunpack.c.l.b16 %v2899
        %v6037 = vunpack.c.l.b16 %v2900
        %v6038 = vunpack.c.l.b16 %v2901
        %v6039 = vunpack.c.l.b16 %v2902
        %v6040 = vunpack.c.l.b16 %v2903
        %v6041 = vunpack.c.l.b16 %v2904
        %v6042 = vunpack.c.l.b16 %v2905
        %v6043 = vunpack.c.l.b16 %v2906
        %v6044 = vunpack.c.l.b16 %v2907
        %v6045 = vunpack.c.l.b16 %v2908
        %v6046 = vunpack.c.l.b16 %v2909
        %v6047 = vunpack.c.l.b16 %v2910
        %v6048 = vunpack.c.l.b16 %v2911
        %v6049 = vunpack.c.l.b16 %v2912
        %v6050 = vunpack.c.l.b16 %v2913
        %v6051 = vunpack.c.l.b16 %v2914
        %v6052 = vunpack.c.l.b16 %v2915
        %v6053 = vunpack.c.l.b16 %v2916
        %v6054 = vunpack.c.l.b16 %v2917
        %v6055 = vunpack.c.l.b16 %v2918
        %v6056 = vunpack.c.l.b16 %v2919
        %v6057 = vunpack.c.l.b16 %v2920
        %v6058 = vunpack.c.l.b16 %v2921
        %v6059 = vunpack.c.l.b16 %v2922
        %v6060 = vunpack.c.l.b16 %v2923
        %v6061 = vunpack.c.l.b16 %v2924
        %v6062 = vunpack.c.l.b16 %v2925
        %v6063 = vunpack.c.l.b16 %v2926
        %v6064 = vunpack.c.l.b16 %v2927
        %v6065 = vunpack.c.l.b16 %v2928
        %v6066 = vunpack.c.l.b16 %v2929
        %v6067 = vunpack.c.l.b16 %v2930
        %v6068 = vunpack.c.l.b16 %v2931
        %v6069 = vunpack.c.l.b16 %v2932
        %v6070 = vunpack.c.l.b16 %v2933
        %v6071 = vunpack.c.l.b16 %v2934
        %v6072 = vunpack.c.l.b16 %v2935
        %v6073 = vunpack.c.l.b16 %v2936
        %v6074 = vunpack.c.l.b16 %v2937
        %v6075 = vunpack.c.l.b16 %v2938
        %v6076 = vunpack.c.l.b16 %v2939
        %v6077 = vunpack.c.l.b16 %v2940
        %v6078 = vunpack.c.l.b16 %v2941
        %v6079 = vunpack.c.l.b16 %v2942
        %v6080 = vunpack.c.l.b16 %v2943
        %v6081 = vunpack.c.l.b16 %v2944
        %v6082 = vunpack.c.l.b16 %v2945
        %v6083 = vunpack.c.l.b16 %v2946
        %v6084 = vunpack.c.l.b16 %v2947
        %v6085 = vunpack.c.l.b16 %v2948
        %v6086 = vunpack.c.l.b16 %v2949
        %v6087 = vunpack.c.l.b16 %v2950
        %v6088 = vunpack.c.l.b16 %v2951
        %v6089 = vunpack.c.l.b16 %v2952
        %v6090 = vunpack.c.l.b16 %v2953
        %v6091 = vunpack.c.l.b16 %v2954
        %v6092 = vunpack.c.l.b16 %v2955
        %v6093 = vunpack.c.l.b16 %v2956
        %v6094 = vunpack.c.l.b16 %v2957
        %v6095 = vunpack.c.l.b16 %v2958
        %v6096 = vunpack.c.l.b16 %v2959
        %v6097 = vunpack.c.l.b16 %v2960
        %v6098 = vunpack.c.l.b16 %v2961
        %v6099 = vunpack.c.l.b16 %v2962
        %v6100 = vunpack.c.l.b16 %v2963
        %v6101 = vunpack.c.l.b16 %v2964
        %v6102 = vunpack.c.l.b16 %v2965
        %v6103 = vunpack.c.l.b16 %v2966
        %v6104 = vunpack.c.l.b16 %v2967
        %v6105 = vunpack.c.l.b16 %v2968
        %v6106 = vunpack.c.l.b16 %v2969
        %v6107 = vunpack.c.l.b16 %v2970
        %v6108 = vunpack.c.l.b16 %v2971
        %v6109 = vunpack.c.l.b16 %v2972
        %v6110 = vunpack.c.l.b16 %v2973
        %v6111 = vunpack.c.l.b16 %v2974
        %v6112 = vunpack.c.l.b16 %v2975
        %v6113 = vunpack.c.l.b16 %v2976
        %v6114 = vunpack.c.l.b16 %v2977
        %v6115 = vunpack.c.l.b16 %v2978
        %v6116 = vunpack.c.l.b16 %v2979
        %v6117 = vunpack.c.l.b16 %v2980
        %v6118 = vunpack.c.l.b16 %v2981
        %v6119 = vunpack.c.l.b16 %v2982
        %v6120 = vunpack.c.l.b16 %v2983
        %v6121 = vunpack.c.l.b16 %v2984
        %v6122 = vunpack.c.l.b16 %v2985
        %v6123 = vunpack.c.l.b16 %v2986
        %v6124 = vunpack.c.l.b16 %v2987
        %v6125 = vunpack.c.l.b16 %v2988
        %v6126 = vunpack.c.l.b16 %v2989
        %v6127 = vunpack.c.l.b16 %v2990
        %v6128 = vunpack.c.l.b16 %v2991
        %v6129 = vunpack.c.l.b16 %v2992
        %v6130 = vunpack.c.l.b16 %v2993
        %v6131 = vunpack.c.l.b16 %v2994
        %v6132 = vunpack.c.l.b16 %v2995
        %v6133 = vunpack.c.l.b16 %v2996
        %v6134 = vunpack.c.l.b16 %v2997
        %v6135 = vunpack.c.l.b16 %v2998
        %v6136 = vunpack.c.l.b16 %v2999
        %v6137 = vunpack.c.l.b16 %v3000
        %v6138 = vunpack.c.l.b16 %v3001
        %v6139 = vunpack.c.l.b16 %v3002
        %v6140 = vunpack.c.l.b16 %v3003
        %v6141 = vunpack.c.l.b16 %v3004
        %v6142 = vunpack.c.l.b16 %v3005
        %v6143 = vunpack.c.l.b16 %v3006
        %v6144 = vunpack.c.l.b16 %v3007
        %v6145 = vunpack.c.l.b16 %v3008
        %v6146 = vunpack.c.l.b16 %v3009
        %v6147 = vunpack.c.l.b16 %v3010
        %v6148 = vunpack.c.l.b16 %v3011
        %v6149 = vunpack.c.l.b16 %v3012
        %v6150 = vunpack.c.l.b16 %v3013
        %v6151 = vunpack.c.l.b16 %v3014
        %v6152 = vunpack.c.l.b16 %v3015
        %v6153 = vunpack.c.l.b16 %v3016
        %v6154 = vunpack.c.l.b16 %v3017
        %v6155 = vunpack.c.l.b16 %v3018
        %v6156 = vunpack.c.l.b16 %v3019
        %v6157 = vunpack.c.l.b16 %v3020
        %v6158 = vunpack.c.l.b16 %v3021
        %v6159 = vunpack.c.l.b16 %v3022
        %v6160 = vunpack.c.l.b16 %v3023
        %v6161 = vunpack.c.l.b16 %v3024
        %v6162 = vunpack.c.l.b16 %v3025
        %v6163 = vunpack.c.l.b16 %v3026
        %v6164 = vunpack.c.l.b16 %v3027
        %v6165 = vunpack.c.l.b16 %v3028
        %v6166 = vunpack.c.l.b16 %v3029
        %v6167 = vunpack.c.l.b16 %v3030
        %v6168 = vunpack.c.l.b16 %v3031
        %v6169 = vunpack.c.l.b16 %v3032
        %v6170 = vunpack.c.l.b16 %v3033
        %v6171 = vunpack.c.l.b16 %v3034
        %v6172 = vunpack.c.l.b16 %v3035
        %v6173 = vunpack.c.l.b16 %v3036
        %v6174 = vunpack.c.l.b16 %v3037
        %v6175 = vunpack.c.l.b16 %v3038
        %v6176 = vunpack.c.l.b16 %v3039
        %v6177 = vunpack.c.l.b16 %v3040
        %v6178 = vunpack.c.l.b16 %v3041
        %v6179 = vunpack.c.l.b16 %v3042
        %v6180 = vunpack.c.l.b16 %v3043
        %v6181 = vunpack.c.l.b16 %v3044
        %v6182 = vunpack.c.l.b16 %v3045
        %v6183 = vunpack.c.l.b16 %v3046
        %v6184 = vunpack.c.l.b16 %v3047
        %v6185 = vunpack.c.l.b16 %v3048
        %v6186 = vunpack.c.l.b16 %v3049
        %v6187 = vunpack.c.l.b16 %v3050
        %v6188 = vunpack.c.l.b16 %v3051
        %v6189 = vunpack.c.l.b16 %v3052
        %v6190 = vunpack.c.l.b16 %v3053
        %v6191 = vunpack.c.l.b16 %v3054
        %v6192 = vunpack.c.l.b16 %v3055
        %v6193 = vunpack.c.l.b16 %v3056
        %v6194 = vunpack.c.l.b16 %v3057
        %v6195 = vunpack.c.l.b16 %v3058
        %v6196 = vunpack.c.l.b16 %v3059
        %v6197 = vunpack.c.l.b16 %v3060
        %v6198 = vunpack.c.l.b16 %v3061
        %v6199 = vunpack.c.l.b16 %v3062
        %v6200 = vunpack.c.l.b16 %v3063
        %v6201 = vunpack.c.l.b16 %v3064
        %v6202 = vunpack.c.l.b16 %v3065
        %v6203 = vunpack.c.l.b16 %v3066
        %v6204 = vunpack.c.l.b16 %v3067
        %v6205 = vunpack.c.l.b16 %v3068
        %v6206 = vunpack.c.l.b16 %v3069
        %v6207 = vunpack.c.l.b16 %v3070
        %v6208 = vunpack.c.l.b16 %v3071
        %v6209 = vunpack.c.l.b16 %v3072
        %v6210 = vunpack.c.l.b16 %v3073
        %v6211 = vunpack.c.l.b16 %v3074
        %v6212 = vunpack.c.l.b16 %v3075
        %v6213 = vunpack.c.l.b16 %v3076
        %v6214 = vunpack.c.l.b16 %v3077
        %v6215 = vunpack.c.l.b16 %v3078
        %v6216 = vunpack.c.l.b16 %v3079
        %v6217 = vunpack.c.l.b16 %v3080
        %v6218 = vunpack.c.l.b16 %v3081
        %v6219 = vunpack.c.l.b16 %v3082
        %v6220 = vunpack.c.l.b16 %v3083
        %v6221 = vunpack.c.l.b16 %v3084
        %v6222 = vunpack.c.l.b16 %v3085
        %v6223 = vunpack.c.l.b16 %v3086
        %v6224 = vunpack.c.l.b16 %v3087
        %v6225 = vunpack.c.l.b16 %v3088
        %v6226 = vunpack.c.l.b16 %v3089
        %v6227 = vunpack.c.l.b16 %v3090
        %v6228 = vunpack.c.l.b16 %v3091
        %v6229 = vunpack.c.l.b16 %v3092
        %v6230 = vunpack.c.l.b16 %v3093
        %v6231 = vunpack.c.l.b16 %v3094
        %v6232 = vunpack.c.l.b16 %v3095
        %v6233 = vunpack.c.l.b16 %v3096
        %v6234 = vunpack.c.l.b16 %v3097
        %v6235 = vunpack.c.l.b16 %v3098
        %v6236 = vunpack.c.l.b16 %v3099
        %v6237 = vunpack.c.l.b16 %v3100
        %v6238 = vunpack.c.l.b16 %v3101
        %v6239 = vunpack.c.l.b16 %v3102
        %v6240 = vunpack.c.l.b16 %v3103
        %v6241 = vunpack.c.l.b16 %v3104
        %v6242 = vunpack.c.l.b16 %v3105
        %v6243 = vunpack.c.l.b16 %v3106
        %v6244 = vunpack.c.l.b16 %v3107
        %v6245 = vunpack.c.l.b16 %v3108
        %v6246 = vunpack.c.l.b16 %v3109
        %v6247 = vunpack.c.l.b16 %v3110
        %v6248 = vunpack.c.l.b16 %v3111
        %v6249 = vunpack.c.l.b16 %v3112
        %v6250 = vunpack.c.l.b16 %v3113
        %v6251 = vunpack.c.l.b16 %v3114
        %v6252 = vunpack.c.l.b16 %v3115
        %v6253 = vunpack.c.l.b16 %v3116
        %v6254 = vunpack.c.l.b16 %v3117
        %v6255 = vunpack.c.l.b16 %v3118
        %v6256 = vunpack.c.l.b16 %v3119
        %v6257 = vunpack.c.l.b16 %v3120
        %v6258 = vunpack.c.l.b16 %v3121
        %v6259 = vunpack.c.l.b16 %v3122
        %v6260 = vunpack.c.l.b16 %v3123
        %v6261 = vunpack.c.l.b16 %v3124
        %v6262 = vunpack.c.l.b16 %v3125
        %v6263 = vunpack.c.l.b16 %v3126
        %v6264 = vunpack.c.l.b16 %v3127
        %v6265 = vunpack.c.l.b16 %v3128
        %v6266 = vunpack.c.l.b16 %v3129
        %v6267 = vunpack.c.l.b16 %v3130
        %v6268 = vunpack.c.l.b16 %v3131
        %v6269 = vunpack.c.l.b16 %v3132
        %v6270 = vunpack.c.l.b16 %v3133
        %v6271 = vunpack.c.l.b16 %v3134
        %v6272 = vunpack.c.l.b16 %v3135
        %v6273 = vunpack.c.l.b16 %v3136
        %v6274 = vunpack.c.l.b16 %v3137
        %v6275 = vunpack.c.l.b16 %v3138
        %v6276 = vunpack.c.l.b16 %v3139
        %v6277 = vunpack.c.l.b16 %v3140
        %v6278 = vunpack.c.l.b16 %v3141
        %v6279 = vunpack.c.l.b16 %v3142
        %v6280 = vunpack.c.l.b16 %v3143
        %v6281 = vunpack.c.l.b16 %v3144
        %v6282 = vunpack.c.l.b16 %v3145
        %v6283 = vunpack.c.l.b16 %v3146
        %v6284 = vunpack.c.l.b16 %v3147
        %v6285 = vunpack.c.l.b16 %v3148
        %v6286 = vunpack.c.l.b16 %v3149
        %v6287 = vunpack.c.l.b16 %v3150
        %v6288 = vunpack.c.l.b16 %v3151
        %v6289 = vunpack.c.l.b16 %v3152
        %v6290 = vunpack.c.l.b16 %v3153
        %v6291 = vunpack.c.l.b16 %v3154
        %v6292 = vunpack.c.l.b16 %v3155
        %v6293 = vunpack.c.l.b16 %v3156
        %v6294 = vunpack.c.l.b16 %v3157
        %v6295 = vunpack.c.l.b16 %v3158
        %v6296 = vunpack.c.l.b16 %v3159
        %v6297 = vunpack.c.l.b16 %v3160
        %v6298 = vunpack.c.l.b16 %v3161
        %v6299 = vunpack.c.l.b16 %v3162
        %v6300 = vpack.c.b16 %v4733, %v4732
        %v6301 = vpack.c.b16 %v4735, %v4734
        %v6302 = vpack.c.b16 %v4737, %v4736
        %v6303 = vpack.c.b16 %v4739, %v4738
        %v6304 = vpack.c.b16 %v4741, %v4740
        %v6305 = vpack.c.b16 %v4743, %v4742
        %v6306 = vpack.c.b16 %v4745, %v4744
        %v6307 = vpack.c.b16 %v4747, %v4746
        %v6308 = vpack.c.b16 %v4749, %v4748
        %v6309 = vpack.c.b16 %v4751, %v4750
        %v6310 = vpack.c.b16 %v4753, %v4752
        %v6311 = vpack.c.b16 %v4755, %v4754
        %v6312 = vpack.c.b16 %v4757, %v4756
        %v6313 = vpack.c.b16 %v4759, %v4758
        %v6314 = vpack.c.b16 %v4761, %v4760
        %v6315 = vpack.c.b16 %v4763, %v4762
        %v6316 = vpack.c.b16 %v4765, %v4764
        %v6317 = vpack.c.b16 %v4767, %v4766
        %v6318 = vpack.c.b16 %v4769, %v4768
        %v6319 = vpack.c.b16 %v4771, %v4770
        %v6320 = vpack.c.b16 %v4773, %v4772
        %v6321 = vpack.c.b16 %v4775, %v4774
        %v6322 = vpack.c.b16 %v4777, %v4776
        %v6323 = vpack.c.b16 %v4779, %v4778
        %v6324 = vpack.c.b16 %v4781, %v4780
        %v6325 = vpack.c.b16 %v4783, %v4782
        %v6326 = vpack.c.b16 %v4785, %v4784
        %v6327 = vpack.c.b16 %v4787, %v4786
        %v6328 = vpack.c.b16 %v4789, %v4788
        %v6329 = vpack.c.b16 %v4791, %v4790
        %v6330 = vpack.c.b16 %v4793, %v4792
        %v6331 = vpack.c.b16 %v4795, %v4794
        %v6332 = vpack.c.b16 %v4797, %v4796
        %v6333 = vpack.c.b16 %v4799, %v4798
        %v6334 = vpack.c.b16 %v4801, %v4800
        %v6335 = vpack.c.b16 %v4803, %v4802
        %v6336 = vpack.c.b16 %v4805, %v4804
        %v6337 = vpack.c.b16 %v4807, %v4806
        %v6338 = vpack.c.b16 %v4809, %v4808
        %v6339 = vpack.c.b16 %v4811, %v4810
        %v6340 = vpack.c.b16 %v4813, %v4812
        %v6341 = vpack.c.b16 %v4815, %v4814
        %v6342 = vpack.c.b16 %v4817, %v4816
        %v6343 = vpack.c.b16 %v4819, %v4818
        %v6344 = vpack.c.b16 %v4821, %v4820
        %v6345 = vpack.c.b16 %v4823, %v4822
        %v6346 = vpack.c.b16 %v4825, %v4824
        %v6347 = vpack.c.b16 %v4827, %v4826
        %v6348 = vpack.c.b16 %v4829, %v4828
        %v6349 = vpack.c.b16 %v4831, %v4830
        %v6350 = vpack.c.b16 %v4833, %v4832
        %v6351 = vpack.c.b16 %v4835, %v4834
        %v6352 = vpack.c.b16 %v4837, %v4836
        %v6353 = vpack.c.b16 %v4839, %v4838
        %v6354 = vpack.c.b16 %v4841, %v4840
        %v6355 = vpack.c.b16 %v4843, %v4842
        %v6356 = vpack.c.b16 %v4845, %v4844
        %v6357 = vpack.c.b16 %v4847, %v4846
        %v6358 = vpack.c.b16 %v4849, %v4848
        %v6359 = vpack.c.b16 %v4851, %v4850
        %v6360 = vpack.c.b16 %v4853, %v4852
        %v6361 = vpack.c.b16 %v4855, %v4854
        %v6362 = vpack.c.b16 %v4857, %v4856
        %v6363 = vpack.c.b16 %v4859, %v4858
        %v6364 = vpack.c.b16 %v4861, %v4860
        %v6365 = vpack.c.b16 %v4863, %v4862
        %v6366 = vpack.c.b16 %v4865, %v4864
        %v6367 = vpack.c.b16 %v4867, %v4866
        %v6368 = vpack.c.b16 %v4869, %v4868
        %v6369 = vpack.c.b16 %v4871, %v4870
        %v6370 = vpack.c.b16 %v4873, %v4872
        %v6371 = vpack.c.b16 %v4875, %v4874
        %v6372 = vpack.c.b16 %v4877, %v4876
        %v6373 = vpack.c.b16 %v4879, %v4878
        %v6374 = vpack.c.b16 %v4881, %v4880
        %v6375 = vpack.c.b16 %v4883, %v4882
        %v6376 = vpack.c.b16 %v4885, %v4884
        %v6377 = vpack.c.b16 %v4887, %v4886
        %v6378 = vpack.c.b16 %v4889, %v4888
        %v6379 = vpack.c.b16 %v4891, %v4890
        %v6380 = vpack.c.b16 %v4893, %v4892
        %v6381 = vpack.c.b16 %v4895, %v4894
        %v6382 = vpack.c.b16 %v4897, %v4896
        %v6383 = vpack.c.b16 %v4899, %v4898
        %v6384 = vpack.c.b16 %v4901, %v4900
        %v6385 = vpack.c.b16 %v4903, %v4902
        %v6386 = vpack.c.b16 %v4905, %v4904
        %v6387 = vpack.c.b16 %v4907, %v4906
        %v6388 = vpack.c.b16 %v4909, %v4908
        %v6389 = vpack.c.b16 %v4911, %v4910
        %v6390 = vpack.c.b16 %v4913, %v4912
        %v6391 = vpack.c.b16 %v4915, %v4914
        %v6392 = vpack.c.b16 %v4917, %v4916
        %v6393 = vpack.c.b16 %v4919, %v4918
        %v6394 = vpack.c.b16 %v4921, %v4920
        %v6395 = vpack.c.b16 %v4923, %v4922
        %v6396 = vpack.c.b16 %v4925, %v4924
        %v6397 = vpack.c.b16 %v4927, %v4926
        %v6398 = vpack.c.b16 %v4929, %v4928
        %v6399 = vpack.c.b16 %v4931, %v4930
        %v6400 = vpack.c.b16 %v4933, %v4932
        %v6401 = vpack.c.b16 %v4935, %v4934
        %v6402 = vpack.c.b16 %v4937, %v4936
        %v6403 = vpack.c.b16 %v4939, %v4938
        %v6404 = vpack.c.b16 %v4941, %v4940
        %v6405 = vpack.c.b16 %v4943, %v4942
        %v6406 = vpack.c.b16 %v4945, %v4944
        %v6407 = vpack.c.b16 %v4947, %v4946
        %v6408 = vpack.c.b16 %v4949, %v4948
        %v6409 = vpack.c.b16 %v4951, %v4950
        %v6410 = vpack.c.b16 %v4953, %v4952
        %v6411 = vpack.c.b16 %v4955, %v4954
        %v6412 = vpack.c.b16 %v4957, %v4956
        %v6413 = vpack.c.b16 %v4959, %v4958
        %v6414 = vpack.c.b16 %v4961, %v4960
        %v6415 = vpack.c.b16 %v4963, %v4962
        %v6416 = vpack.c.b16 %v4965, %v4964
        %v6417 = vpack.c.b16 %v4967, %v4966
        %v6418 = vpack.c.b16 %v4969, %v4968
        %v6419 = vpack.c.b16 %v4971, %v4970
        %v6420 = vpack.c.b16 %v4973, %v4972
        %v6421 = vpack.c.b16 %v4975, %v4974
        %v6422 = vpack.c.b16 %v4977, %v4976
        %v6423 = vpack.c.b16 %v4979, %v4978
        %v6424 = vpack.c.b16 %v4981, %v4980
        %v6425 = vpack.c.b16 %v4983, %v4982
        %v6426 = vpack.c.b16 %v4985, %v4984
        %v6427 = vpack.c.b16 %v4987, %v4986
        %v6428 = vpack.c.b16 %v4989, %v4988
        %v6429 = vpack.c.b16 %v4991, %v4990
        %v6430 = vpack.c.b16 %v4993, %v4992
        %v6431 = vpack.c.b16 %v4995, %v4994
        %v6432 = vpack.c.b16 %v4997, %v4996
        %v6433 = vpack.c.b16 %v4999, %v4998
        %v6434 = vpack.c.b16 %v5001, %v5000
        %v6435 = vpack.c.b16 %v5003, %v5002
        %v6436 = vpack.c.b16 %v5005, %v5004
        %v6437 = vpack.c.b16 %v5007, %v5006
        %v6438 = vpack.c.b16 %v5009, %v5008
        %v6439 = vpack.c.b16 %v5011, %v5010
        %v6440 = vpack.c.b16 %v5013, %v5012
        %v6441 = vpack.c.b16 %v5015, %v5014
        %v6442 = vpack.c.b16 %v5017, %v5016
        %v6443 = vpack.c.b16 %v5019, %v5018
        %v6444 = vpack.c.b16 %v5021, %v5020
        %v6445 = vpack.c.b16 %v5023, %v5022
        %v6446 = vpack.c.b16 %v5025, %v5024
        %v6447 = vpack.c.b16 %v5027, %v5026
        %v6448 = vpack.c.b16 %v5029, %v5028
        %v6449 = vpack.c.b16 %v5031, %v5030
        %v6450 = vpack.c.b16 %v5033, %v5032
        %v6451 = vpack.c.b16 %v5035, %v5034
        %v6452 = vpack.c.b16 %v5037, %v5036
        %v6453 = vpack.c.b16 %v5039, %v5038
        %v6454 = vpack.c.b16 %v5041, %v5040
        %v6455 = vpack.c.b16 %v5043, %v5042
        %v6456 = vpack.c.b16 %v5045, %v5044
        %v6457 = vpack.c.b16 %v5047, %v5046
        %v6458 = vpack.c.b16 %v5049, %v5048
        %v6459 = vpack.c.b16 %v5051, %v5050
        %v6460 = vpack.c.b16 %v5053, %v5052
        %v6461 = vpack.c.b16 %v5055, %v5054
        %v6462 = vpack.c.b16 %v5057, %v5056
        %v6463 = vpack.c.b16 %v5059, %v5058
        %v6464 = vpack.c.b16 %v5061, %v5060
        %v6465 = vpack.c.b16 %v5063, %v5062
        %v6466 = vpack.c.b16 %v5065, %v5064
        %v6467 = vpack.c.b16 %v5067, %v5066
        %v6468 = vpack.c.b16 %v5069, %v5068
        %v6469 = vpack.c.b16 %v5071, %v5070
        %v6470 = vpack.c.b16 %v5073, %v5072
        %v6471 = vpack.c.b16 %v5075, %v5074
        %v6472 = vpack.c.b16 %v5077, %v5076
        %v6473 = vpack.c.b16 %v5079, %v5078
        %v6474 = vpack.c.b16 %v5081, %v5080
        %v6475 = vpack.c.b16 %v5083, %v5082
        %v6476 = vpack.c.b16 %v5085, %v5084
        %v6477 = vpack.c.b16 %v5087, %v5086
        %v6478 = vpack.c.b16 %v5089, %v5088
        %v6479 = vpack.c.b16 %v5091, %v5090
        %v6480 = vpack.c.b16 %v5093, %v5092
        %v6481 = vpack.c.b16 %v5095, %v5094
        %v6482 = vpack.c.b16 %v5097, %v5096
        %v6483 = vpack.c.b16 %v5099, %v5098
        %v6484 = vpack.c.b16 %v5101, %v5100
        %v6485 = vpack.c.b16 %v5103, %v5102
        %v6486 = vpack.c.b16 %v5105, %v5104
        %v6487 = vpack.c.b16 %v5107, %v5106
        %v6488 = vpack.c.b16 %v5109, %v5108
        %v6489 = vpack.c.b16 %v5111, %v5110
        %v6490 = vpack.c.b16 %v5113, %v5112
        %v6491 = vpack.c.b16 %v5115, %v5114
        %v6492 = vpack.c.b16 %v5117, %v5116
        %v6493 = vpack.c.b16 %v5119, %v5118
        %v6494 = vpack.c.b16 %v5121, %v5120
        %v6495 = vpack.c.b16 %v5123, %v5122
        %v6496 = vpack.c.b16 %v5125, %v5124
        %v6497 = vpack.c.b16 %v5127, %v5126
        %v6498 = vpack.c.b16 %v5129, %v5128
        %v6499 = vpack.c.b16 %v5131, %v5130
        %v6500 = vpack.c.b16 %v5133, %v5132
        %v6501 = vpack.c.b16 %v5135, %v5134
        %v6502 = vpack.c.b16 %v5137, %v5136
        %v6503 = vpack.c.b16 %v5139, %v5138
        %v6504 = vpack.c.b16 %v5141, %v5140
        %v6505 = vpack.c.b16 %v5143, %v5142
        %v6506 = vpack.c.b16 %v5145, %v5144
        %v6507 = vpack.c.b16 %v5147, %v5146
        %v6508 = vpack.c.b16 %v5149, %v5148
        %v6509 = vpack.c.b16 %v5151, %v5150
        %v6510 = vpack.c.b16 %v5153, %v5152
        %v6511 = vpack.c.b16 %v5155, %v5154
        %v6512 = vpack.c.b16 %v5157, %v5156
        %v6513 = vpack.c.b16 %v5159, %v5158
        %v6514 = vpack.c.b16 %v5161, %v5160
        %v6515 = vpack.c.b16 %v5163, %v5162
        %v6516 = vpack.c.b16 %v5165, %v5164
        %v6517 = vpack.c.b16 %v5167, %v5166
        %v6518 = vpack.c.b16 %v5169, %v5168
        %v6519 = vpack.c.b16 %v5171, %v5170
        %v6520 = vpack.c.b16 %v5173, %v5172
        %v6521 = vpack.c.b16 %v5175, %v5174
        %v6522 = vpack.c.b16 %v5177, %v5176
        %v6523 = vpack.c.b16 %v5179, %v5178
        %v6524 = vpack.c.b16 %v5181, %v5180
        %v6525 = vpack.c.b16 %v5183, %v5182
        %v6526 = vpack.c.b16 %v5185, %v5184
        %v6527 = vpack.c.b16 %v5187, %v5186
        %v6528 = vpack.c.b16 %v5189, %v5188
        %v6529 = vpack.c.b16 %v5191, %v5190
        %v6530 = vpack.c.b16 %v5193, %v5192
        %v6531 = vpack.c.b16 %v5195, %v5194
        %v6532 = vpack.c.b16 %v5197, %v5196
        %v6533 = vpack.c.b16 %v5199, %v5198
        %v6534 = vpack.c.b16 %v5201, %v5200
        %v6535 = vpack.c.b16 %v5203, %v5202
        %v6536 = vpack.c.b16 %v5205, %v5204
        %v6537 = vpack.c.b16 %v5207, %v5206
        %v6538 = vpack.c.b16 %v5209, %v5208
        %v6539 = vpack.c.b16 %v5211, %v5210
        %v6540 = vpack.c.b16 %v5213, %v5212
        %v6541 = vpack.c.b16 %v5215, %v5214
        %v6542 = vpack.c.b16 %v5217, %v5216
        %v6543 = vpack.c.b16 %v5219, %v5218
        %v6544 = vpack.c.b16 %v5221, %v5220
        %v6545 = vpack.c.b16 %v5223, %v5222
        %v6546 = vpack.c.b16 %v5225, %v5224
        %v6547 = vpack.c.b16 %v5227, %v5226
        %v6548 = vpack.c.b16 %v5229, %v5228
        %v6549 = vpack.c.b16 %v5231, %v5230
        %v6550 = vpack.c.b16 %v5233, %v5232
        %v6551 = vpack.c.b16 %v5235, %v5234
        %v6552 = vpack.c.b16 %v5237, %v5236
        %v6553 = vpack.c.b16 %v5239, %v5238
        %v6554 = vpack.c.b16 %v5241, %v5240
        %v6555 = vpack.c.b16 %v5243, %v5242
        %v6556 = vpack.c.b16 %v5245, %v5244
        %v6557 = vpack.c.b16 %v5247, %v5246
        %v6558 = vpack.c.b16 %v5249, %v5248
        %v6559 = vpack.c.b16 %v5251, %v5250
        %v6560 = vpack.c.b16 %v5253, %v5252
        %v6561 = vpack.c.b16 %v5255, %v5254
        %v6562 = vpack.c.b16 %v5257, %v5256
        %v6563 = vpack.c.b16 %v5259, %v5258
        %v6564 = vpack.c.b16 %v5261, %v5260
        %v6565 = vpack.c.b16 %v5263, %v5262
        %v6566 = vpack.c.b16 %v5265, %v5264
        %v6567 = vpack.c.b16 %v5267, %v5266
        %v6568 = vpack.c.b16 %v5269, %v5268
        %v6569 = vpack.c.b16 %v5271, %v5270
        %v6570 = vpack.c.b16 %v5273, %v5272
        %v6571 = vpack.c.b16 %v5275, %v5274
        %v6572 = vpack.c.b16 %v5277, %v5276
        %v6573 = vpack.c.b16 %v5279, %v5278
        %v6574 = vpack.c.b16 %v5281, %v5280
        %v6575 = vpack.c.b16 %v5283, %v5282
        %v6576 = vpack.c.b16 %v5285, %v5284
        %v6577 = vpack.c.b16 %v5287, %v5286
        %v6578 = vpack.c.b16 %v5289, %v5288
        %v6579 = vpack.c.b16 %v5291, %v5290
        %v6580 = vpack.c.b16 %v5293, %v5292
        %v6581 = vpack.c.b16 %v5295, %v5294
        %v6582 = vpack.c.b16 %v5297, %v5296
        %v6583 = vpack.c.b16 %v5299, %v5298
        %v6584 = vpack.c.b16 %v5301, %v5300
        %v6585 = vpack.c.b16 %v5303, %v5302
        %v6586 = vpack.c.b16 %v5305, %v5304
        %v6587 = vpack.c.b16 %v5307, %v5306
        %v6588 = vpack.c.b16 %v5309, %v5308
        %v6589 = vpack.c.b16 %v5311, %v5310
        %v6590 = vpack.c.b16 %v5313, %v5312
        %v6591 = vpack.c.b16 %v5315, %v5314
        %v6592 = vpack.c.b16 %v5317, %v5316
        %v6593 = vpack.c.b16 %v5319, %v5318
        %v6594 = vpack.c.b16 %v5321, %v5320
        %v6595 = vpack.c.b16 %v5323, %v5322
        %v6596 = vpack.c.b16 %v5325, %v5324
        %v6597 = vpack.c.b16 %v5327, %v5326
        %v6598 = vpack.c.b16 %v5329, %v5328
        %v6599 = vpack.c.b16 %v5331, %v5330
        %v6600 = vpack.c.b16 %v5333, %v5332
        %v6601 = vpack.c.b16 %v5335, %v5334
        %v6602 = vpack.c.b16 %v5337, %v5336
        %v6603 = vpack.c.b16 %v5339, %v5338
        %v6604 = vpack.c.b16 %v5341, %v5340
        %v6605 = vpack.c.b16 %v5343, %v5342
        %v6606 = vpack.c.b16 %v5345, %v5344
        %v6607 = vpack.c.b16 %v5347, %v5346
        %v6608 = vpack.c.b16 %v5349, %v5348
        %v6609 = vpack.c.b16 %v5351, %v5350
        %v6610 = vpack.c.b16 %v5353, %v5352
        %v6611 = vpack.c.b16 %v5355, %v5354
        %v6612 = vpack.c.b16 %v5357, %v5356
        %v6613 = vpack.c.b16 %v5359, %v5358
        %v6614 = vpack.c.b16 %v5361, %v5360
        %v6615 = vpack.c.b16 %v5363, %v5362
        %v6616 = vpack.c.b16 %v5365, %v5364
        %v6617 = vpack.c.b16 %v5367, %v5366
        %v6618 = vpack.c.b16 %v5369, %v5368
        %v6619 = vpack.c.b16 %v5371, %v5370
        %v6620 = vpack.c.b16 %v5373, %v5372
        %v6621 = vpack.c.b16 %v5375, %v5374
        %v6622 = vpack.c.b16 %v5377, %v5376
        %v6623 = vpack.c.b16 %v5379, %v5378
        %v6624 = vpack.c.b16 %v5381, %v5380
        %v6625 = vpack.c.b16 %v5383, %v5382
        %v6626 = vpack.c.b16 %v5385, %v5384
        %v6627 = vpack.c.b16 %v5387, %v5386
        %v6628 = vpack.c.b16 %v5389, %v5388
        %v6629 = vpack.c.b16 %v5391, %v5390
        %v6630 = vpack.c.b16 %v5393, %v5392
        %v6631 = vpack.c.b16 %v5395, %v5394
        %v6632 = vpack.c.b16 %v5397, %v5396
        %v6633 = vpack.c.b16 %v5399, %v5398
        %v6634 = vpack.c.b16 %v5401, %v5400
        %v6635 = vpack.c.b16 %v5403, %v5402
        %v6636 = vpack.c.b16 %v5405, %v5404
        %v6637 = vpack.c.b16 %v5407, %v5406
        %v6638 = vpack.c.b16 %v5409, %v5408
        %v6639 = vpack.c.b16 %v5411, %v5410
        %v6640 = vpack.c.b16 %v5413, %v5412
        %v6641 = vpack.c.b16 %v5415, %v5414
        %v6642 = vpack.c.b16 %v5417, %v5416
        %v6643 = vpack.c.b16 %v5419, %v5418
        %v6644 = vpack.c.b16 %v5421, %v5420
        %v6645 = vpack.c.b16 %v5423, %v5422
        %v6646 = vpack.c.b16 %v5425, %v5424
        %v6647 = vpack.c.b16 %v5427, %v5426
        %v6648 = vpack.c.b16 %v5429, %v5428
        %v6649 = vpack.c.b16 %v5431, %v5430
        %v6650 = vpack.c.b16 %v5433, %v5432
        %v6651 = vpack.c.b16 %v5435, %v5434
        %v6652 = vpack.c.b16 %v5437, %v5436
        %v6653 = vpack.c.b16 %v5439, %v5438
        %v6654 = vpack.c.b16 %v5441, %v5440
        %v6655 = vpack.c.b16 %v5443, %v5442
        %v6656 = vpack.c.b16 %v5445, %v5444
        %v6657 = vpack.c.b16 %v5447, %v5446
        %v6658 = vpack.c.b16 %v5449, %v5448
        %v6659 = vpack.c.b16 %v5451, %v5450
        %v6660 = vpack.c.b16 %v5453, %v5452
        %v6661 = vpack.c.b16 %v5455, %v5454
        %v6662 = vpack.c.b16 %v5457, %v5456
        %v6663 = vpack.c.b16 %v5459, %v5458
        %v6664 = vpack.c.b16 %v5461, %v5460
        %v6665 = vpack.c.b16 %v5463, %v5462
        %v6666 = vpack.c.b16 %v5465, %v5464
        %v6667 = vpack.c.b16 %v5467, %v5466
        %v6668 = vpack.c.b16 %v5469, %v5468
        %v6669 = vpack.c.b16 %v5471, %v5470
        %v6670 = vpack.c.b16 %v5473, %v5472
        %v6671 = vpack.c.b16 %v5475, %v5474
        %v6672 = vpack.c.b16 %v5477, %v5476
        %v6673 = vpack.c.b16 %v5479, %v5478
        %v6674 = vpack.c.b16 %v5481, %v5480
        %v6675 = vpack.c.b16 %v5483, %v5482
        %v6676 = vpack.c.b16 %v5485, %v5484
        %v6677 = vpack.c.b16 %v5487, %v5486
        %v6678 = vpack.c.b16 %v5489, %v5488
        %v6679 = vpack.c.b16 %v5491, %v5490
        %v6680 = vpack.c.b16 %v5493, %v5492
        %v6681 = vpack.c.b16 %v5495, %v5494
        %v6682 = vpack.c.b16 %v5497, %v5496
        %v6683 = vpack.c.b16 %v5499, %v5498
        %v6684 = vpack.c.b16 %v5501, %v5500
        %v6685 = vpack.c.b16 %v5503, %v5502
        %v6686 = vpack.c.b16 %v5505, %v5504
        %v6687 = vpack.c.b16 %v5507, %v5506
        %v6688 = vpack.c.b16 %v5509, %v5508
        %v6689 = vpack.c.b16 %v5511, %v5510
        %v6690 = vpack.c.b16 %v5513, %v5512
        %v6691 = vpack.c.b16 %v5515, %v5514
        %v6692 = vpack.c.b16 %v5517, %v5516
        %v6693 = vpack.c.b16 %v5519, %v5518
        %v6694 = vpack.c.b16 %v5521, %v5520
        %v6695 = vpack.c.b16 %v5523, %v5522
        %v6696 = vpack.c.b16 %v5525, %v5524
        %v6697 = vpack.c.b16 %v5527, %v5526
        %v6698 = vpack.c.b16 %v5529, %v5528
        %v6699 = vpack.c.b16 %v5531, %v5530
        %v6700 = vpack.c.b16 %v5533, %v5532
        %v6701 = vpack.c.b16 %v5535, %v5534
        %v6702 = vpack.c.b16 %v5537, %v5536
        %v6703 = vpack.c.b16 %v5539, %v5538
        %v6704 = vpack.c.b16 %v5541, %v5540
        %v6705 = vpack.c.b16 %v5543, %v5542
        %v6706 = vpack.c.b16 %v5545, %v5544
        %v6707 = vpack.c.b16 %v5547, %v5546
        %v6708 = vpack.c.b16 %v5549, %v5548
        %v6709 = vpack.c.b16 %v5551, %v5550
        %v6710 = vpack.c.b16 %v5553, %v5552
        %v6711 = vpack.c.b16 %v5555, %v5554
        %v6712 = vpack.c.b16 %v5557, %v5556
        %v6713 = vpack.c.b16 %v5559, %v5558
        %v6714 = vpack.c.b16 %v5561, %v5560
        %v6715 = vpack.c.b16 %v5563, %v5562
        %v6716 = vpack.c.b16 %v5565, %v5564
        %v6717 = vpack.c.b16 %v5567, %v5566
        %v6718 = vpack.c.b16 %v5569, %v5568
        %v6719 = vpack.c.b16 %v5571, %v5570
        %v6720 = vpack.c.b16 %v5573, %v5572
        %v6721 = vpack.c.b16 %v5575, %v5574
        %v6722 = vpack.c.b16 %v5577, %v5576
        %v6723 = vpack.c.b16 %v5579, %v5578
        %v6724 = vpack.c.b16 %v5581, %v5580
        %v6725 = vpack.c.b16 %v5583, %v5582
        %v6726 = vpack.c.b16 %v5585, %v5584
        %v6727 = vpack.c.b16 %v5587, %v5586
        %v6728 = vpack.c.b16 %v5589, %v5588
        %v6729 = vpack.c.b16 %v5591, %v5590
        %v6730 = vpack.c.b16 %v5593, %v5592
        %v6731 = vpack.c.b16 %v5595, %v5594
        %v6732 = vpack.c.b16 %v5597, %v5596
        %v6733 = vpack.c.b16 %v5599, %v5598
        %v6734 = vpack.c.b16 %v5601, %v5600
        %v6735 = vpack.c.b16 %v5603, %v5602
        %v6736 = vpack.c.b16 %v5605, %v5604
        %v6737 = vpack.c.b16 %v5607, %v5606
        %v6738 = vpack.c.b16 %v5609, %v5608
        %v6739 = vpack.c.b16 %v5611, %v5610
        %v6740 = vpack.c.b16 %v5613, %v5612
        %v6741 = vpack.c.b16 %v5615, %v5614
        %v6742 = vpack.c.b16 %v5617, %v5616
        %v6743 = vpack.c.b16 %v5619, %v5618
        %v6744 = vpack.c.b16 %v5621, %v5620
        %v6745 = vpack.c.b16 %v5623, %v5622
        %v6746 = vpack.c.b16 %v5625, %v5624
        %v6747 = vpack.c.b16 %v5627, %v5626
        %v6748 = vpack.c.b16 %v5629, %v5628
        %v6749 = vpack.c.b16 %v5631, %v5630
        %v6750 = vpack.c.b16 %v5633, %v5632
        %v6751 = vpack.c.b16 %v5635, %v5634
        %v6752 = vpack.c.b16 %v5637, %v5636
        %v6753 = vpack.c.b16 %v5639, %v5638
        %v6754 = vpack.c.b16 %v5641, %v5640
        %v6755 = vpack.c.b16 %v5643, %v5642
        %v6756 = vpack.c.b16 %v5645, %v5644
        %v6757 = vpack.c.b16 %v5647, %v5646
        %v6758 = vpack.c.b16 %v5649, %v5648
        %v6759 = vpack.c.b16 %v5651, %v5650
        %v6760 = vpack.c.b16 %v5653, %v5652
        %v6761 = vpack.c.b16 %v5655, %v5654
        %v6762 = vpack.c.b16 %v5657, %v5656
        %v6763 = vpack.c.b16 %v5659, %v5658
        %v6764 = vpack.c.b16 %v5661, %v5660
        %v6765 = vpack.c.b16 %v5663, %v5662
        %v6766 = vpack.c.b16 %v5665, %v5664
        %v6767 = vpack.c.b16 %v5667, %v5666
        %v6768 = vpack.c.b16 %v5669, %v5668
        %v6769 = vpack.c.b16 %v5671, %v5670
        %v6770 = vpack.c.b16 %v5673, %v5672
        %v6771 = vpack.c.b16 %v5675, %v5674
        %v6772 = vpack.c.b16 %v5677, %v5676
        %v6773 = vpack.c.b16 %v5679, %v5678
        %v6774 = vpack.c.b16 %v5681, %v5680
        %v6775 = vpack.c.b16 %v5683, %v5682
        %v6776 = vpack.c.b16 %v5685, %v5684
        %v6777 = vpack.c.b16 %v5687, %v5686
        %v6778 = vpack.c.b16 %v5689, %v5688
        %v6779 = vpack.c.b16 %v5691, %v5690
        %v6780 = vpack.c.b16 %v5693, %v5692
        %v6781 = vpack.c.b16 %v5695, %v5694
        %v6782 = vpack.c.b16 %v5697, %v5696
        %v6783 = vpack.c.b16 %v5699, %v5698
        %v6784 = vpack.c.b16 %v5701, %v5700
        %v6785 = vpack.c.b16 %v5703, %v5702
        %v6786 = vpack.c.b16 %v5705, %v5704
        %v6787 = vpack.c.b16 %v5707, %v5706
        %v6788 = vpack.c.b16 %v5709, %v5708
        %v6789 = vpack.c.b16 %v5711, %v5710
        %v6790 = vpack.c.b16 %v5713, %v5712
        %v6791 = vpack.c.b16 %v5715, %v5714
        %v6792 = vpack.c.b16 %v5717, %v5716
        %v6793 = vpack.c.b16 %v5719, %v5718
        %v6794 = vpack.c.b16 %v5721, %v5720
        %v6795 = vpack.c.b16 %v5723, %v5722
        %v6796 = vpack.c.b16 %v5725, %v5724
        %v6797 = vpack.c.b16 %v5727, %v5726
        %v6798 = vpack.c.b16 %v5729, %v5728
        %v6799 = vpack.c.b16 %v5731, %v5730
        %v6800 = vpack.c.b16 %v5733, %v5732
        %v6801 = vpack.c.b16 %v5735, %v5734
        %v6802 = vpack.c.b16 %v5737, %v5736
        %v6803 = vpack.c.b16 %v5739, %v5738
        %v6804 = vpack.c.b16 %v5741, %v5740
        %v6805 = vpack.c.b16 %v5743, %v5742
        %v6806 = vpack.c.b16 %v5745, %v5744
        %v6807 = vpack.c.b16 %v5747, %v5746
        %v6808 = vpack.c.b16 %v5749, %v5748
        %v6809 = vpack.c.b16 %v5751, %v5750
        %v6810 = vpack.c.b16 %v5753, %v5752
        %v6811 = vpack.c.b16 %v5755, %v5754
        %v6812 = vpack.c.b16 %v5757, %v5756
        %v6813 = vpack.c.b16 %v5759, %v5758
        %v6814 = vpack.c.b16 %v5761, %v5760
        %v6815 = vpack.c.b16 %v5763, %v5762
        %v6816 = vpack.c.b16 %v5765, %v5764
        %v6817 = vpack.c.b16 %v5767, %v5766
        %v6818 = vpack.c.b16 %v5769, %v5768
        %v6819 = vpack.c.b16 %v5771, %v5770
        %v6820 = vpack.c.b16 %v5773, %v5772
        %v6821 = vpack.c.b16 %v5775, %v5774
        %v6822 = vpack.c.b16 %v5777, %v5776
        %v6823 = vpack.c.b16 %v5779, %v5778
        %v6824 = vpack.c.b16 %v5781, %v5780
        %v6825 = vpack.c.b16 %v5783, %v5782
        %v6826 = vpack.c.b16 %v5785, %v5784
        %v6827 = vpack.c.b16 %v5787, %v5786
        %v6828 = vpack.c.b16 %v5789, %v5788
        %v6829 = vpack.c.b16 %v5791, %v5790
        %v6830 = vpack.c.b16 %v5793, %v5792
        %v6831 = vpack.c.b16 %v5795, %v5794
        %v6832 = vpack.c.b16 %v5797, %v5796
        %v6833 = vpack.c.b16 %v5799, %v5798
        %v6834 = vpack.c.b16 %v5801, %v5800
        %v6835 = vpack.c.b16 %v5803, %v5802
        %v6836 = vpack.c.b16 %v5805, %v5804
        %v6837 = vpack.c.b16 %v5807, %v5806
        %v6838 = vpack.c.b16 %v5809, %v5808
        %v6839 = vpack.c.b16 %v5811, %v5810
        %v6840 = vpack.c.b16 %v5813, %v5812
        %v6841 = vpack.c.b16 %v5815, %v5814
        %v6842 = vpack.c.b16 %v5817, %v5816
        %v6843 = vpack.c.b16 %v5819, %v5818
        %v6844 = vpack.c.b16 %v5821, %v5820
        %v6845 = vpack.c.b16 %v5823, %v5822
        %v6846 = vpack.c.b16 %v5825, %v5824
        %v6847 = vpack.c.b16 %v5827, %v5826
        %v6848 = vpack.c.b16 %v5829, %v5828
        %v6849 = vpack.c.b16 %v5831, %v5830
        %v6850 = vpack.c.b16 %v5833, %v5832
        %v6851 = vpack.c.b16 %v5835, %v5834
        %v6852 = vpack.c.b16 %v5837, %v5836
        %v6853 = vpack.c.b16 %v5839, %v5838
        %v6854 = vpack.c.b16 %v5841, %v5840
        %v6855 = vpack.c.b16 %v5843, %v5842
        %v6856 = vpack.c.b16 %v5845, %v5844
        %v6857 = vpack.c.b16 %v5847, %v5846
        %v6858 = vpack.c.b16 %v5849, %v5848
        %v6859 = vpack.c.b16 %v5851, %v5850
        %v6860 = vpack.c.b16 %v5853, %v5852
        %v6861 = vpack.c.b16 %v5855, %v5854
        %v6862 = vpack.c.b16 %v5857, %v5856
        %v6863 = vpack.c.b16 %v5859, %v5858
        %v6864 = vpack.c.b16 %v5861, %v5860
        %v6865 = vpack.c.b16 %v5863, %v5862
        %v6866 = vpack.c.b16 %v5865, %v5864
        %v6867 = vpack.c.b16 %v5867, %v5866
        %v6868 = vpack.c.b16 %v5869, %v5868
        %v6869 = vpack.c.b16 %v5871, %v5870
        %v6870 = vpack.c.b16 %v5873, %v5872
        %v6871 = vpack.c.b16 %v5875, %v5874
        %v6872 = vpack.c.b16 %v5877, %v5876
        %v6873 = vpack.c.b16 %v5879, %v5878
        %v6874 = vpack.c.b16 %v5881, %v5880
        %v6875 = vpack.c.b16 %v5883, %v5882
        %v6876 = vpack.c.b16 %v5885, %v5884
        %v6877 = vpack.c.b16 %v5887, %v5886
        %v6878 = vpack.c.b16 %v5889, %v5888
        %v6879 = vpack.c.b16 %v5891, %v5890
        %v6880 = vpack.c.b16 %v5893, %v5892
        %v6881 = vpack.c.b16 %v5895, %v5894
        %v6882 = vpack.c.b16 %v5897, %v5896
        %v6883 = vpack.c.b16 %v5899, %v5898
        %v6884 = vpack.c.b16 %v5901, %v5900
        %v6885 = vpack.c.b16 %v5903, %v5902
        %v6886 = vpack.c.b16 %v5905, %v5904
        %v6887 = vpack.c.b16 %v5907, %v5906
        %v6888 = vpack.c.b16 %v5909, %v5908
        %v6889 = vpack.c.b16 %v5911, %v5910
        %v6890 = vpack.c.b16 %v5913, %v5912
        %v6891 = vpack.c.b16 %v5915, %v5914
        %v6892 = vpack.c.b16 %v5917, %v5916
        %v6893 = vpack.c.b16 %v5919, %v5918
        %v6894 = vpack.c.b16 %v5921, %v5920
        %v6895 = vpack.c.b16 %v5923, %v5922
        %v6896 = vpack.c.b16 %v5925, %v5924
        %v6897 = vpack.c.b16 %v5927, %v5926
        %v6898 = vpack.c.b16 %v5929, %v5928
        %v6899 = vpack.c.b16 %v5931, %v5930
        %v6900 = vpack.c.b16 %v5933, %v5932
        %v6901 = vpack.c.b16 %v5935, %v5934
        %v6902 = vpack.c.b16 %v5937, %v5936
        %v6903 = vpack.c.b16 %v5939, %v5938
        %v6904 = vpack.c.b16 %v5941, %v5940
        %v6905 = vpack.c.b16 %v5943, %v5942
        %v6906 = vpack.c.b16 %v5945, %v5944
        %v6907 = vpack.c.b16 %v5947, %v5946
        %v6908 = vpack.c.b16 %v5949, %v5948
        %v6909 = vpack.c.b16 %v5951, %v5950
        %v6910 = vpack.c.b16 %v5953, %v5952
        %v6911 = vpack.c.b16 %v5955, %v5954
        %v6912 = vpack.c.b16 %v5957, %v5956
        %v6913 = vpack.c.b16 %v5959, %v5958
        %v6914 = vpack.c.b16 %v5961, %v5960
        %v6915 = vpack.c.b16 %v5963, %v5962
        %v6916 = vpack.c.b16 %v5965, %v5964
        %v6917 = vpack.c.b16 %v5967, %v5966
        %v6918 = vpack.c.b16 %v5969, %v5968
        %v6919 = vpack.c.b16 %v5971, %v5970
        %v6920 = vpack.c.b16 %v5973, %v5972
        %v6921 = vpack.c.b16 %v5975, %v5974
        %v6922 = vpack.c.b16 %v5977, %v5976
        %v6923 = vpack.c.b16 %v5979, %v5978
        %v6924 = vpack.c.b16 %v5981, %v5980
        %v6925 = vpack.c.b16 %v5983, %v5982
        %v6926 = vpack.c.b16 %v5985, %v5984
        %v6927 = vpack.c.b16 %v5987, %v5986
        %v6928 = vpack.c.b16 %v5989, %v5988
        %v6929 = vpack.c.b16 %v5991, %v5990
        %v6930 = vpack.c.b16 %v5993, %v5992
        %v6931 = vpack.c.b16 %v5995, %v5994
        %v6932 = vpack.c.b16 %v5997, %v5996
        %v6933 = vpack.c.b16 %v5999, %v5998
        %v6934 = vpack.c.b16 %v6001, %v6000
        %v6935 = vpack.c.b16 %v6003, %v6002
        %v6936 = vpack.c.b16 %v6005, %v6004
        %v6937 = vpack.c.b16 %v6007, %v6006
        %v6938 = vpack.c.b16 %v6009, %v6008
        %v6939 = vpack.c.b16 %v6011, %v6010
        %v6940 = vpack.c.b16 %v6013, %v6012
        %v6941 = vpack.c.b16 %v6015, %v6014
        %v6942 = vpack.c.b16 %v6017, %v6016
        %v6943 = vpack.c.b16 %v6019, %v6018
        %v6944 = vpack.c.b16 %v6021, %v6020
        %v6945 = vpack.c.b16 %v6023, %v6022
        %v6946 = vpack.c.b16 %v6025, %v6024
        %v6947 = vpack.c.b16 %v6027, %v6026
        %v6948 = vpack.c.b16 %v6029, %v6028
        %v6949 = vpack.c.b16 %v6031, %v6030
        %v6950 = vpack.c.b16 %v6033, %v6032
        %v6951 = vpack.c.b16 %v6035, %v6034
        %v6952 = vpack.c.b16 %v6037, %v6036
        %v6953 = vpack.c.b16 %v6039, %v6038
        %v6954 = vpack.c.b16 %v6041, %v6040
        %v6955 = vpack.c.b16 %v6043, %v6042
        %v6956 = vpack.c.b16 %v6045, %v6044
        %v6957 = vpack.c.b16 %v6047, %v6046
        %v6958 = vpack.c.b16 %v6049, %v6048
        %v6959 = vpack.c.b16 %v6051, %v6050
        %v6960 = vpack.c.b16 %v6053, %v6052
        %v6961 = vpack.c.b16 %v6055, %v6054
        %v6962 = vpack.c.b16 %v6057, %v6056
        %v6963 = vpack.c.b16 %v6059, %v6058
        %v6964 = vpack.c.b16 %v6061, %v6060
        %v6965 = vpack.c.b16 %v6063, %v6062
        %v6966 = vpack.c.b16 %v6065, %v6064
        %v6967 = vpack.c.b16 %v6067, %v6066
        %v6968 = vpack.c.b16 %v6069, %v6068
        %v6969 = vpack.c.b16 %v6071, %v6070
        %v6970 = vpack.c.b16 %v6073, %v6072
        %v6971 = vpack.c.b16 %v6075, %v6074
        %v6972 = vpack.c.b16 %v6077, %v6076
        %v6973 = vpack.c.b16 %v6079, %v6078
        %v6974 = vpack.c.b16 %v6081, %v6080
        %v6975 = vpack.c.b16 %v6083, %v6082
        %v6976 = vpack.c.b16 %v6085, %v6084
        %v6977 = vpack.c.b16 %v6087, %v6086
        %v6978 = vpack.c.b16 %v6089, %v6088
        %v6979 = vpack.c.b16 %v6091, %v6090
        %v6980 = vpack.c.b16 %v6093, %v6092
        %v6981 = vpack.c.b16 %v6095, %v6094
        %v6982 = vpack.c.b16 %v6097, %v6096
        %v6983 = vpack.c.b16 %v6099, %v6098
        %v6984 = vpack.c.b16 %v6101, %v6100
        %v6985 = vpack.c.b16 %v6103, %v6102
        %v6986 = vpack.c.b16 %v6105, %v6104
        %v6987 = vpack.c.b16 %v6107, %v6106
        %v6988 = vpack.c.b16 %v6109, %v6108
        %v6989 = vpack.c.b16 %v6111, %v6110
        %v6990 = vpack.c.b16 %v6113, %v6112
        %v6991 = vpack.c.b16 %v6115, %v6114
        %v6992 = vpack.c.b16 %v6117, %v6116
        %v6993 = vpack.c.b16 %v6119, %v6118
        %v6994 = vpack.c.b16 %v6121, %v6120
        %v6995 = vpack.c.b16 %v6123, %v6122
        %v6996 = vpack.c.b16 %v6125, %v6124
        %v6997 = vpack.c.b16 %v6127, %v6126
        %v6998 = vpack.c.b16 %v6129, %v6128
        %v6999 = vpack.c.b16 %v6131, %v6130
        %v7000 = vpack.c.b16 %v6133, %v6132
        %v7001 = vpack.c.b16 %v6135, %v6134
        %v7002 = vpack.c.b16 %v6137, %v6136
        %v7003 = vpack.c.b16 %v6139, %v6138
        %v7004 = vpack.c.b16 %v6141, %v6140
        %v7005 = vpack.c.b16 %v6143, %v6142
        %v7006 = vpack.c.b16 %v6145, %v6144
        %v7007 = vpack.c.b16 %v6147, %v6146
        %v7008 = vpack.c.b16 %v6149, %v6148
        %v7009 = vpack.c.b16 %v6151, %v6150
        %v7010 = vpack.c.b16 %v6153, %v6152
        %v7011 = vpack.c.b16 %v6155, %v6154
        %v7012 = vpack.c.b16 %v6157, %v6156
        %v7013 = vpack.c.b16 %v6159, %v6158
        %v7014 = vpack.c.b16 %v6161, %v6160
        %v7015 = vpack.c.b16 %v6163, %v6162
        %v7016 = vpack.c.b16 %v6165, %v6164
        %v7017 = vpack.c.b16 %v6167, %v6166
        %v7018 = vpack.c.b16 %v6169, %v6168
        %v7019 = vpack.c.b16 %v6171, %v6170
        %v7020 = vpack.c.b16 %v6173, %v6172
        %v7021 = vpack.c.b16 %v6175, %v6174
        %v7022 = vpack.c.b16 %v6177, %v6176
        %v7023 = vpack.c.b16 %v6179, %v6178
        %v7024 = vpack.c.b16 %v6181, %v6180
        %v7025 = vpack.c.b16 %v6183, %v6182
        %v7026 = vpack.c.b16 %v6185, %v6184
        %v7027 = vpack.c.b16 %v6187, %v6186
        %v7028 = vpack.c.b16 %v6189, %v6188
        %v7029 = vpack.c.b16 %v6191, %v6190
        %v7030 = vpack.c.b16 %v6193, %v6192
        %v7031 = vpack.c.b16 %v6195, %v6194
        %v7032 = vpack.c.b16 %v6197, %v6196
        %v7033 = vpack.c.b16 %v6199, %v6198
        %v7034 = vpack.c.b16 %v6201, %v6200
        %v7035 = vpack.c.b16 %v6203, %v6202
        %v7036 = vpack.c.b16 %v6205, %v6204
        %v7037 = vpack.c.b16 %v6207, %v6206
        %v7038 = vpack.c.b16 %v6209, %v6208
        %v7039 = vpack.c.b16 %v6211, %v6210
        %v7040 = vpack.c.b16 %v6213, %v6212
        %v7041 = vpack.c.b16 %v6215, %v6214
        %v7042 = vpack.c.b16 %v6217, %v6216
        %v7043 = vpack.c.b16 %v6219, %v6218
        %v7044 = vpack.c.b16 %v6221, %v6220
        %v7045 = vpack.c.b16 %v6223, %v6222
        %v7046 = vpack.c.b16 %v6225, %v6224
        %v7047 = vpack.c.b16 %v6227, %v6226
        %v7048 = vpack.c.b16 %v6229, %v6228
        %v7049 = vpack.c.b16 %v6231, %v6230
        %v7050 = vpack.c.b16 %v6233, %v6232
        %v7051 = vpack.c.b16 %v6235, %v6234
        %v7052 = vpack.c.b16 %v6237, %v6236
        %v7053 = vpack.c.b16 %v6239, %v6238
        %v7054 = vpack.c.b16 %v6241, %v6240
        %v7055 = vpack.c.b16 %v6243, %v6242
        %v7056 = vpack.c.b16 %v6245, %v6244
        %v7057 = vpack.c.b16 %v6247, %v6246
        %v7058 = vpack.c.b16 %v6249, %v6248
        %v7059 = vpack.c.b16 %v6251, %v6250
        %v7060 = vpack.c.b16 %v6253, %v6252
        %v7061 = vpack.c.b16 %v6255, %v6254
        %v7062 = vpack.c.b16 %v6257, %v6256
        %v7063 = vpack.c.b16 %v6259, %v6258
        %v7064 = vpack.c.b16 %v6261, %v6260
        %v7065 = vpack.c.b16 %v6263, %v6262
        %v7066 = vpack.c.b16 %v6265, %v6264
        %v7067 = vpack.c.b16 %v6267, %v6266
        %v7068 = vpack.c.b16 %v6269, %v6268
        %v7069 = vpack.c.b16 %v6271, %v6270
        %v7070 = vpack.c.b16 %v6273, %v6272
        %v7071 = vpack.c.b16 %v6275, %v6274
        %v7072 = vpack.c.b16 %v6277, %v6276
        %v7073 = vpack.c.b16 %v6279, %v6278
        %v7074 = vpack.c.b16 %v6281, %v6280
        %v7075 = vpack.c.b16 %v6283, %v6282
        %v7076 = vpack.c.b16 %v6285, %v6284
        %v7077 = vpack.c.b16 %v6287, %v6286
        %v7078 = vpack.c.b16 %v6289, %v6288
        %v7079 = vpack.c.b16 %v6291, %v6290
        %v7080 = vpack.c.b16 %v6293, %v6292
        %v7081 = vpack.c.b16 %v6295, %v6294
        %v7082 = vpack.c.b16 %v6297, %v6296
        %v7083 = vpack.c.b16 %v6299, %v6298
        %7868 = vmatprep.subr.bf16.mxu0 0
        %7869 = vmatpush1.bf16.msra.mxu0 %v6300
        %7870 = vmatprep.subr.bf16.mxu0 0
        %7871 = vmatpush1.bf16.msra.mxu0 %v6301
        %7872 = vmatprep.subr.bf16.mxu0 0
        %7873 = vmatpush1.bf16.msra.mxu0 %v6302
        %7874 = vmatprep.subr.bf16.mxu0 0
        %7875 = vmatpush1.bf16.msra.mxu0 %v6303
        %7876 = vmatprep.subr.bf16.mxu0 0
        %7877 = vmatpush1.bf16.msra.mxu0 %v6304
        %7878 = vmatprep.subr.bf16.mxu0 0
        %7879 = vmatpush1.bf16.msra.mxu0 %v6305
        %7880 = vmatprep.subr.bf16.mxu0 0
        %7881 = vmatpush1.bf16.msra.mxu0 %v6306
        %7882 = vmatprep.subr.bf16.mxu0 0
        %7883 = vmatpush1.bf16.msra.mxu0 %v6307
        %7884 = vmatprep.subr.bf16.mxu0 0
        %7885 = vmatpush1.bf16.msra.mxu0 %v6308
        %7886 = vmatprep.subr.bf16.mxu0 0
        %7887 = vmatpush1.bf16.msra.mxu0 %v6309
        %7888 = vmatprep.subr.bf16.mxu0 0
        %7889 = vmatpush1.bf16.msra.mxu0 %v6310
        %7890 = vmatprep.subr.bf16.mxu0 0
        %7891 = vmatpush1.bf16.msra.mxu0 %v6311
        %7892 = vmatprep.subr.bf16.mxu0 0
        %7893 = vmatpush1.bf16.msra.mxu0 %v6312
        %7894 = vmatprep.subr.bf16.mxu0 0
        %7895 = vmatpush1.bf16.msra.mxu0 %v6313
        %7896 = vmatprep.subr.bf16.mxu0 0
        %7897 = vmatpush1.bf16.msra.mxu0 %v6314
        %7898 = vmatprep.subr.bf16.mxu0 0
        %7899 = vmatpush1.bf16.msra.mxu0 %v6315
        %7900 = vmatprep.mubr.bf16.mxu0 %v1494
        %7901 = vmatmul.mubr.bf16.gmra.mrb[0].mxu0 %v1493
        %v7902 = vpop.f32.mrb[0].mxu0
        %v7903 = vadd.f32 0.0, %v7902
        %v7904 = vpop.f32.mrb[0].mxu0
        %v7905 = vpop.f32.mrb[0].mxu0
        %v7906 = vpop.f32.mrb[0].mxu0
        %7907 = vdwg.mxu0
        %7908 = vmatprep.subr.bf16.mxu0 0
        %7909 = vmatpush1.bf16.msra.mxu0 %v6316
        %7910 = vmatprep.subr.bf16.mxu0 0
        %7911 = vmatpush1.bf16.msra.mxu0 %v6317
        %7912 = vmatprep.subr.bf16.mxu0 0
        %7913 = vmatpush1.bf16.msra.mxu0 %v6318
        %7914 = vmatprep.subr.bf16.mxu0 0
        %7915 = vmatpush1.bf16.msra.mxu0 %v6319
        %7916 = vmatprep.subr.bf16.mxu0 0
        %7917 = vmatpush1.bf16.msra.mxu0 %v6320
        %7918 = vmatprep.subr.bf16.mxu0 0
        %7919 = vmatpush1.bf16.msra.mxu0 %v6321
        %7920 = vmatprep.subr.bf16.mxu0 0
        %7921 = vmatpush1.bf16.msra.mxu0 %v6322
        %7922 = vmatprep.subr.bf16.mxu0 0
        %7923 = vmatpush1.bf16.msra.mxu0 %v6323
        %7924 = vmatprep.subr.bf16.mxu0 0
        %7925 = vmatpush1.bf16.msra.mxu0 %v6324
        %7926 = vmatprep.subr.bf16.mxu0 0
        %7927 = vmatpush1.bf16.msra.mxu0 %v6325
        %7928 = vmatprep.subr.bf16.mxu0 0
        %7929 = vmatpush1.bf16.msra.mxu0 %v6326
        %7930 = vmatprep.subr.bf16.mxu0 0
        %7931 = vmatpush1.bf16.msra.mxu0 %v6327
        %7932 = vmatprep.subr.bf16.mxu0 0
        %7933 = vmatpush1.bf16.msra.mxu0 %v6328
        %7934 = vmatprep.subr.bf16.mxu0 0
        %7935 = vmatpush1.bf16.msra.mxu0 %v6329
        %7936 = vmatprep.subr.bf16.mxu0 0
        %7937 = vmatpush1.bf16.msra.mxu0 %v6330
        %7938 = vmatprep.subr.bf16.mxu0 0
        %7939 = vmatpush1.bf16.msra.mxu0 %v6331
        %7940 = vmatprep.mubr.bf16.mxu0 %v1496
        %7941 = vmatmul.mubr.bf16.gmra.mrb[0].mxu0 %v1495
        %v7942 = vpop.f32.mrb[0].mxu0
        %v7943 = vadd.f32 %v7903, %v7942
        %v7944 = vpop.f32.mrb[0].mxu0
        %v7945 = vpop.f32.mrb[0].mxu0
        %v7946 = vpop.f32.mrb[0].mxu0
        %7947 = vdwg.mxu0
        %7948 = vmatprep.subr.bf16.mxu0 0
        %7949 = vmatpush1.bf16.msra.mxu0 %v6332
        %7950 = vmatprep.subr.bf16.mxu0 0
        %7951 = vmatpush1.bf16.msra.mxu0 %v6333
        %7952 = vmatprep.subr.bf16.mxu0 0
        %7953 = vmatpush1.bf16.msra.mxu0 %v6334
        %7954 = vmatprep.subr.bf16.mxu0 0
        %7955 = vmatpush1.bf16.msra.mxu0 %v6335
        %7956 = vmatprep.subr.bf16.mxu0 0
        %7957 = vmatpush1.bf16.msra.mxu0 %v6336
        %7958 = vmatprep.subr.bf16.mxu0 0
        %7959 = vmatpush1.bf16.msra.mxu0 %v6337
        %7960 = vmatprep.subr.bf16.mxu0 0
        %7961 = vmatpush1.bf16.msra.mxu0 %v6338
        %7962 = vmatprep.subr.bf16.mxu0 0
        %7963 = vmatpush1.bf16.msra.mxu0 %v6339
        %7964 = vmatprep.subr.bf16.mxu0 0
        %7965 = vmatpush1.bf16.msra.mxu0 %v6340
        %7966 = vmatprep.subr.bf16.mxu0 0
        %7967 = vmatpush1.bf16.msra.mxu0 %v6341
        %7968 = vmatprep.subr.bf16.mxu0 0
        %7969 = vmatpush1.bf16.msra.mxu0 %v6342
        %7970 = vmatprep.subr.bf16.mxu0 0
        %7971 = vmatpush1.bf16.msra.mxu0 %v6343
        %7972 = vmatprep.subr.bf16.mxu0 0
        %7973 = vmatpush1.bf16.msra.mxu0 %v6344
        %7974 = vmatprep.subr.bf16.mxu0 0
        %7975 = vmatpush1.bf16.msra.mxu0 %v6345
        %7976 = vmatprep.subr.bf16.mxu0 0
        %7977 = vmatpush1.bf16.msra.mxu0 %v6346
        %7978 = vmatprep.subr.bf16.mxu0 0
        %7979 = vmatpush1.bf16.msra.mxu0 %v6347
        %7980 = vmatprep.mubr.bf16.mxu0 %v1498
        %7981 = vmatmul.mubr.bf16.gmra.mrb[0].mxu0 %v1497
        %v7982 = vpop.f32.mrb[0].mxu0
        %v7983 = vadd.f32 %v7943, %v7982
        %v7984 = vpop.f32.mrb[0].mxu0
        %v7985 = vpop.f32.mrb[0].mxu0
        %v7986 = vpop.f32.mrb[0].mxu0
        %7987 = vdwg.mxu0
        %7988 = vmatprep.subr.bf16.mxu0 0
        %7989 = vmatpush1.bf16.msra.mxu0 %v6348
        %7990 = vmatprep.subr.bf16.mxu0 0
        %7991 = vmatpush1.bf16.msra.mxu0 %v6349
        %7992 = vmatprep.subr.bf16.mxu0 0
        %7993 = vmatpush1.bf16.msra.mxu0 %v6350
        %7994 = vmatprep.subr.bf16.mxu0 0
        %7995 = vmatpush1.bf16.msra.mxu0 %v6351
        %7996 = vmatprep.subr.bf16.mxu0 0
        %7997 = vmatpush1.bf16.msra.mxu0 %v6352
        %7998 = vmatprep.subr.bf16.mxu0 0
        %7999 = vmatpush1.bf16.msra.mxu0 %v6353
        %8000 = vmatprep.subr.bf16.mxu0 0
        %8001 = vmatpush1.bf16.msra.mxu0 %v6354
        %8002 = vmatprep.subr.bf16.mxu0 0
        %8003 = vmatpush1.bf16.msra.mxu0 %v6355
        %8004 = vmatprep.subr.bf16.mxu0 0
        %8005 = vmatpush1.bf16.msra.mxu0 %v6356
        %8006 = vmatprep.subr.bf16.mxu0 0
        %8007 = vmatpush1.bf16.msra.mxu0 %v6357
        %8008 = vmatprep.subr.bf16.mxu0 0
        %8009 = vmatpush1.bf16.msra.mxu0 %v6358
        %8010 = vmatprep.subr.bf16.mxu0 0
        %8011 = vmatpush1.bf16.msra.mxu0 %v6359
        %8012 = vmatprep.subr.bf16.mxu0 0
        %8013 = vmatpush1.bf16.msra.mxu0 %v6360
        %8014 = vmatprep.subr.bf16.mxu0 0
        %8015 = vmatpush1.bf16.msra.mxu0 %v6361
        %8016 = vmatprep.subr.bf16.mxu0 0
        %8017 = vmatpush1.bf16.msra.mxu0 %v6362
        %8018 = vmatprep.subr.bf16.mxu0 0
        %8019 = vmatpush1.bf16.msra.mxu0 %v6363
        %8020 = vmatprep.mubr.bf16.mxu0 %v1500
        %8021 = vmatmul.mubr.bf16.gmra.mrb[0].mxu0 %v1499
        %v8022 = vpop.f32.mrb[0].mxu0
        %v8023 = vadd.f32 %v7983, %v8022
        %v8024 = vpop.f32.mrb[0].mxu0
        %v8025 = vpop.f32.mrb[0].mxu0
        %v8026 = vpop.f32.mrb[0].mxu0
        %8027 = vdwg.mxu0
        %8028 = vmatprep.subr.bf16.mxu0 0
        %8029 = vmatpush1.bf16.msra.mxu0 %v6364
        %8030 = vmatprep.subr.bf16.mxu0 0
        %8031 = vmatpush1.bf16.msra.mxu0 %v6365
        %8032 = vmatprep.subr.bf16.mxu0 0
        %8033 = vmatpush1.bf16.msra.mxu0 %v6366
        %8034 = vmatprep.subr.bf16.mxu0 0
        %8035 = vmatpush1.bf16.msra.mxu0 %v6367
        %8036 = vmatprep.subr.bf16.mxu0 0
        %8037 = vmatpush1.bf16.msra.mxu0 %v6368
        %8038 = vmatprep.subr.bf16.mxu0 0
        %8039 = vmatpush1.bf16.msra.mxu0 %v6369
        %8040 = vmatprep.subr.bf16.mxu0 0
        %8041 = vmatpush1.bf16.msra.mxu0 %v6370
        %8042 = vmatprep.subr.bf16.mxu0 0
        %8043 = vmatpush1.bf16.msra.mxu0 %v6371
        %8044 = vmatprep.subr.bf16.mxu0 0
        %8045 = vmatpush1.bf16.msra.mxu0 %v6372
        %8046 = vmatprep.subr.bf16.mxu0 0
        %8047 = vmatpush1.bf16.msra.mxu0 %v6373
        %8048 = vmatprep.subr.bf16.mxu0 0
        %8049 = vmatpush1.bf16.msra.mxu0 %v6374
        %8050 = vmatprep.subr.bf16.mxu0 0
        %8051 = vmatpush1.bf16.msra.mxu0 %v6375
        %8052 = vmatprep.subr.bf16.mxu0 0
        %8053 = vmatpush1.bf16.msra.mxu0 %v6376
        %8054 = vmatprep.subr.bf16.mxu0 0
        %8055 = vmatpush1.bf16.msra.mxu0 %v6377
        %8056 = vmatprep.subr.bf16.mxu0 0
        %8057 = vmatpush1.bf16.msra.mxu0 %v6378
        %8058 = vmatprep.subr.bf16.mxu0 0
        %8059 = vmatpush1.bf16.msra.mxu0 %v6379
        %8060 = vmatprep.mubr.bf16.mxu0 %v1502
        %8061 = vmatmul.mubr.bf16.gmra.mrb[0].mxu0 %v1501
        %v8062 = vpop.f32.mrb[0].mxu0
        %v8063 = vadd.f32 %v8023, %v8062
        %v8064 = vpop.f32.mrb[0].mxu0
        %v8065 = vpop.f32.mrb[0].mxu0
        %v8066 = vpop.f32.mrb[0].mxu0
        %8067 = vdwg.mxu0
        %8068 = vmatprep.subr.bf16.mxu0 0
        %8069 = vmatpush1.bf16.msra.mxu0 %v6380
        %8070 = vmatprep.subr.bf16.mxu0 0
        %8071 = vmatpush1.bf16.msra.mxu0 %v6381
        %8072 = vmatprep.subr.bf16.mxu0 0
        %8073 = vmatpush1.bf16.msra.mxu0 %v6382
        %8074 = vmatprep.subr.bf16.mxu0 0
        %8075 = vmatpush1.bf16.msra.mxu0 %v6383
        %8076 = vmatprep.subr.bf16.mxu0 0
        %8077 = vmatpush1.bf16.msra.mxu0 %v6384
        %8078 = vmatprep.subr.bf16.mxu0 0
        %8079 = vmatpush1.bf16.msra.mxu0 %v6385
        %8080 = vmatprep.subr.bf16.mxu0 0
        %8081 = vmatpush1.bf16.msra.mxu0 %v6386
        %8082 = vmatprep.subr.bf16.mxu0 0
        %8083 = vmatpush1.bf16.msra.mxu0 %v6387
        %8084 = vmatprep.subr.bf16.mxu0 0
        %8085 = vmatpush1.bf16.msra.mxu0 %v6388
        %8086 = vmatprep.subr.bf16.mxu0 0
        %8087 = vmatpush1.bf16.msra.mxu0 %v6389
        %8088 = vmatprep.subr.bf16.mxu0 0
        %8089 = vmatpush1.bf16.msra.mxu0 %v6390
        %8090 = vmatprep.subr.bf16.mxu0 0
        %8091 = vmatpush1.bf16.msra.mxu0 %v6391
        %8092 = vmatprep.subr.bf16.mxu0 0
        %8093 = vmatpush1.bf16.msra.mxu0 %v6392
        %8094 = vmatprep.subr.bf16.mxu0 0
        %8095 = vmatpush1.bf16.msra.mxu0 %v6393
        %8096 = vmatprep.subr.bf16.mxu0 0
        %8097 = vmatpush1.bf16.msra.mxu0 %v6394
        %8098 = vmatprep.subr.bf16.mxu0 0
        %8099 = vmatpush1.bf16.msra.mxu0 %v6395
        %8100 = vmatprep.mubr.bf16.mxu0 %v1504
        %8101 = vmatmul.mubr.bf16.gmra.mrb[0].mxu0 %v1503
        %v8102 = vpop.f32.mrb[0].mxu0
        %v8103 = vadd.f32 %v8063, %v8102
        %v8104 = vpop.f32.mrb[0].mxu0
        %v8105 = vpop.f32.mrb[0].mxu0
        %v8106 = vpop.f32.mrb[0].mxu0
        %8107 = vdwg.mxu0
        %8108 = vmatprep.subr.bf16.mxu0 0
        %8109 = vmatpush1.bf16.msra.mxu0 %v6396
        %8110 = vmatprep.subr.bf16.mxu0 0
        %8111 = vmatpush1.bf16.msra.mxu0 %v6397
        %8112 = vmatprep.subr.bf16.mxu0 0
        %8113 = vmatpush1.bf16.msra.mxu0 %v6398
        %8114 = vmatprep.subr.bf16.mxu0 0
        %8115 = vmatpush1.bf16.msra.mxu0 %v6399
        %8116 = vmatprep.subr.bf16.mxu0 0
        %8117 = vmatpush1.bf16.msra.mxu0 %v6400
        %8118 = vmatprep.subr.bf16.mxu0 0
        %8119 = vmatpush1.bf16.msra.mxu0 %v6401
        %8120 = vmatprep.subr.bf16.mxu0 0
        %8121 = vmatpush1.bf16.msra.mxu0 %v6402
        %8122 = vmatprep.subr.bf16.mxu0 0
        %8123 = vmatpush1.bf16.msra.mxu0 %v6403
        %8124 = vmatprep.subr.bf16.mxu0 0
        %8125 = vmatpush1.bf16.msra.mxu0 %v6404
        %8126 = vmatprep.subr.bf16.mxu0 0
        %8127 = vmatpush1.bf16.msra.mxu0 %v6405
        %8128 = vmatprep.subr.bf16.mxu0 0
        %8129 = vmatpush1.bf16.msra.mxu0 %v6406
        %8130 = vmatprep.subr.bf16.mxu0 0
        %8131 = vmatpush1.bf16.msra.mxu0 %v6407
        %8132 = vmatprep.subr.bf16.mxu0 0
        %8133 = vmatpush1.bf16.msra.mxu0 %v6408
        %8134 = vmatprep.subr.bf16.mxu0 0
        %8135 = vmatpush1.bf16.msra.mxu0 %v6409
        %8136 = vmatprep.subr.bf16.mxu0 0
        %8137 = vmatpush1.bf16.msra.mxu0 %v6410
        %8138 = vmatprep.subr.bf16.mxu0 0
        %8139 = vmatpush1.bf16.msra.mxu0 %v6411
        %8140 = vmatprep.mubr.bf16.mxu0 %v1506
        %8141 = vmatmul.mubr.bf16.gmra.mrb[0].mxu0 %v1505
        %v8142 = vpop.f32.mrb[0].mxu0
        %v8143 = vadd.f32 %v8103, %v8142
        %v8144 = vpop.f32.mrb[0].mxu0
        %v8145 = vpop.f32.mrb[0].mxu0
        %v8146 = vpop.f32.mrb[0].mxu0
        %8147 = vdwg.mxu0
        %8148 = vmatprep.subr.bf16.mxu0 0
        %8149 = vmatpush1.bf16.msra.mxu0 %v6412
        %8150 = vmatprep.subr.bf16.mxu0 0
        %8151 = vmatpush1.bf16.msra.mxu0 %v6413
        %8152 = vmatprep.subr.bf16.mxu0 0
        %8153 = vmatpush1.bf16.msra.mxu0 %v6414
        %8154 = vmatprep.subr.bf16.mxu0 0
        %8155 = vmatpush1.bf16.msra.mxu0 %v6415
        %8156 = vmatprep.subr.bf16.mxu0 0
        %8157 = vmatpush1.bf16.msra.mxu0 %v6416
        %8158 = vmatprep.subr.bf16.mxu0 0
        %8159 = vmatpush1.bf16.msra.mxu0 %v6417
        %8160 = vmatprep.subr.bf16.mxu0 0
        %8161 = vmatpush1.bf16.msra.mxu0 %v6418
        %8162 = vmatprep.subr.bf16.mxu0 0
        %8163 = vmatpush1.bf16.msra.mxu0 %v6419
        %8164 = vmatprep.subr.bf16.mxu0 0
        %8165 = vmatpush1.bf16.msra.mxu0 %v6420
        %8166 = vmatprep.subr.bf16.mxu0 0
        %8167 = vmatpush1.bf16.msra.mxu0 %v6421
        %8168 = vmatprep.subr.bf16.mxu0 0
        %8169 = vmatpush1.bf16.msra.mxu0 %v6422
        %8170 = vmatprep.subr.bf16.mxu0 0
        %8171 = vmatpush1.bf16.msra.mxu0 %v6423
        %8172 = vmatprep.subr.bf16.mxu0 0
        %8173 = vmatpush1.bf16.msra.mxu0 %v6424
        %8174 = vmatprep.subr.bf16.mxu0 0
        %8175 = vmatpush1.bf16.msra.mxu0 %v6425
        %8176 = vmatprep.subr.bf16.mxu0 0
        %8177 = vmatpush1.bf16.msra.mxu0 %v6426
        %8178 = vmatprep.subr.bf16.mxu0 0
        %8179 = vmatpush1.bf16.msra.mxu0 %v6427
        %8180 = vmatprep.mubr.bf16.mxu0 %v1508
        %8181 = vmatmul.mubr.bf16.gmra.mrb[0].mxu0 %v1507
        %v8182 = vpop.f32.mrb[0].mxu0
        %v8183 = vadd.f32 %v8143, %v8182
        %v8184 = vpop.f32.mrb[0].mxu0
        %v8185 = vpop.f32.mrb[0].mxu0
        %v8186 = vpop.f32.mrb[0].mxu0
        %8187 = vdwg.mxu0
        %8188 = vmatprep.subr.bf16.mxu0 0
        %8189 = vmatpush1.bf16.msra.mxu0 %v6428
        %8190 = vmatprep.subr.bf16.mxu0 0
        %8191 = vmatpush1.bf16.msra.mxu0 %v6429
        %8192 = vmatprep.subr.bf16.mxu0 0
        %8193 = vmatpush1.bf16.msra.mxu0 %v6430
        %8194 = vmatprep.subr.bf16.mxu0 0
        %8195 = vmatpush1.bf16.msra.mxu0 %v6431
        %8196 = vmatprep.subr.bf16.mxu0 0
        %8197 = vmatpush1.bf16.msra.mxu0 %v6432
        %8198 = vmatprep.subr.bf16.mxu0 0
        %8199 = vmatpush1.bf16.msra.mxu0 %v6433
        %8200 = vmatprep.subr.bf16.mxu0 0
        %8201 = vmatpush1.bf16.msra.mxu0 %v6434
        %8202 = vmatprep.subr.bf16.mxu0 0
        %8203 = vmatpush1.bf16.msra.mxu0 %v6435
        %8204 = vmatprep.subr.bf16.mxu0 0
        %8205 = vmatpush1.bf16.msra.mxu0 %v6436
        %8206 = vmatprep.subr.bf16.mxu0 0
        %8207 = vmatpush1.bf16.msra.mxu0 %v6437
        %8208 = vmatprep.subr.bf16.mxu0 0
        %8209 = vmatpush1.bf16.msra.mxu0 %v6438
        %8210 = vmatprep.subr.bf16.mxu0 0
        %8211 = vmatpush1.bf16.msra.mxu0 %v6439
        %8212 = vmatprep.subr.bf16.mxu0 0
        %8213 = vmatpush1.bf16.msra.mxu0 %v6440
        %8214 = vmatprep.subr.bf16.mxu0 0
        %8215 = vmatpush1.bf16.msra.mxu0 %v6441
        %8216 = vmatprep.subr.bf16.mxu0 0
        %8217 = vmatpush1.bf16.msra.mxu0 %v6442
        %8218 = vmatprep.subr.bf16.mxu0 0
        %8219 = vmatpush1.bf16.msra.mxu0 %v6443
        %8220 = vmatprep.mubr.bf16.mxu0 %v1510
        %8221 = vmatmul.mubr.bf16.gmra.mrb[0].mxu0 %v1509
        %v8222 = vpop.f32.mrb[0].mxu0
        %v8223 = vadd.f32 %v8183, %v8222
        %v8224 = vpop.f32.mrb[0].mxu0
        %v8225 = vpop.f32.mrb[0].mxu0
        %v8226 = vpop.f32.mrb[0].mxu0
        %8227 = vdwg.mxu0
        %8228 = vmatprep.subr.bf16.mxu0 0
        %8229 = vmatpush1.bf16.msra.mxu0 %v6444
        %8230 = vmatprep.subr.bf16.mxu0 0
        %8231 = vmatpush1.bf16.msra.mxu0 %v6445
        %8232 = vmatprep.subr.bf16.mxu0 0
        %8233 = vmatpush1.bf16.msra.mxu0 %v6446
        %8234 = vmatprep.subr.bf16.mxu0 0
        %8235 = vmatpush1.bf16.msra.mxu0 %v6447
        %8236 = vmatprep.subr.bf16.mxu0 0
        %8237 = vmatpush1.bf16.msra.mxu0 %v6448
        %8238 = vmatprep.subr.bf16.mxu0 0
        %8239 = vmatpush1.bf16.msra.mxu0 %v6449
        %8240 = vmatprep.subr.bf16.mxu0 0
        %8241 = vmatpush1.bf16.msra.mxu0 %v6450
        %8242 = vmatprep.subr.bf16.mxu0 0
        %8243 = vmatpush1.bf16.msra.mxu0 %v6451
        %8244 = vmatprep.subr.bf16.mxu0 0
        %8245 = vmatpush1.bf16.msra.mxu0 %v6452
        %8246 = vmatprep.subr.bf16.mxu0 0
        %8247 = vmatpush1.bf16.msra.mxu0 %v6453
        %8248 = vmatprep.subr.bf16.mxu0 0
        %8249 = vmatpush1.bf16.msra.mxu0 %v6454
        %8250 = vmatprep.subr.bf16.mxu0 0
        %8251 = vmatpush1.bf16.msra.mxu0 %v6455
        %8252 = vmatprep.subr.bf16.mxu0 0
        %8253 = vmatpush1.bf16.msra.mxu0 %v6456
        %8254 = vmatprep.subr.bf16.mxu0 0
        %8255 = vmatpush1.bf16.msra.mxu0 %v6457
        %8256 = vmatprep.subr.bf16.mxu0 0
        %8257 = vmatpush1.bf16.msra.mxu0 %v6458
        %8258 = vmatprep.subr.bf16.mxu0 0
        %8259 = vmatpush1.bf16.msra.mxu0 %v6459
        %8260 = vmatprep.mubr.bf16.mxu0 %v1512
        %8261 = vmatmul.mubr.bf16.gmra.mrb[0].mxu0 %v1511
        %v8262 = vpop.f32.mrb[0].mxu0
        %v8263 = vadd.f32 %v8223, %v8262
        %v8264 = vpop.f32.mrb[0].mxu0
        %v8265 = vpop.f32.mrb[0].mxu0
        %v8266 = vpop.f32.mrb[0].mxu0
        %8267 = vdwg.mxu0
        %8268 = vmatprep.subr.bf16.mxu0 0
        %8269 = vmatpush1.bf16.msra.mxu0 %v6460
        %8270 = vmatprep.subr.bf16.mxu0 0
        %8271 = vmatpush1.bf16.msra.mxu0 %v6461
        %8272 = vmatprep.subr.bf16.mxu0 0
        %8273 = vmatpush1.bf16.msra.mxu0 %v6462
        %8274 = vmatprep.subr.bf16.mxu0 0
        %8275 = vmatpush1.bf16.msra.mxu0 %v6463
        %8276 = vmatprep.subr.bf16.mxu0 0
        %8277 = vmatpush1.bf16.msra.mxu0 %v6464
        %8278 = vmatprep.subr.bf16.mxu0 0
        %8279 = vmatpush1.bf16.msra.mxu0 %v6465
        %8280 = vmatprep.subr.bf16.mxu0 0
        %8281 = vmatpush1.bf16.msra.mxu0 %v6466
        %8282 = vmatprep.subr.bf16.mxu0 0
        %8283 = vmatpush1.bf16.msra.mxu0 %v6467
        %8284 = vmatprep.subr.bf16.mxu0 0
        %8285 = vmatpush1.bf16.msra.mxu0 %v6468
        %8286 = vmatprep.subr.bf16.mxu0 0
        %8287 = vmatpush1.bf16.msra.mxu0 %v6469
        %8288 = vmatprep.subr.bf16.mxu0 0
        %8289 = vmatpush1.bf16.msra.mxu0 %v6470
        %8290 = vmatprep.subr.bf16.mxu0 0
        %8291 = vmatpush1.bf16.msra.mxu0 %v6471
        %8292 = vmatprep.subr.bf16.mxu0 0
        %8293 = vmatpush1.bf16.msra.mxu0 %v6472
        %8294 = vmatprep.subr.bf16.mxu0 0
        %8295 = vmatpush1.bf16.msra.mxu0 %v6473
        %8296 = vmatprep.subr.bf16.mxu0 0
        %8297 = vmatpush1.bf16.msra.mxu0 %v6474
        %8298 = vmatprep.subr.bf16.mxu0 0
        %8299 = vmatpush1.bf16.msra.mxu0 %v6475
        %8300 = vmatprep.mubr.bf16.mxu0 %v1514
        %8301 = vmatmul.mubr.bf16.gmra.mrb[0].mxu0 %v1513
        %v8302 = vpop.f32.mrb[0].mxu0
        %v8303 = vadd.f32 %v8263, %v8302
        %v8304 = vpop.f32.mrb[0].mxu0
        %v8305 = vpop.f32.mrb[0].mxu0
        %v8306 = vpop.f32.mrb[0].mxu0
        %8307 = vdwg.mxu0
        %8308 = vmatprep.subr.bf16.mxu0 0
        %8309 = vmatpush1.bf16.msra.mxu0 %v6476
        %8310 = vmatprep.subr.bf16.mxu0 0
        %8311 = vmatpush1.bf16.msra.mxu0 %v6477
        %8312 = vmatprep.subr.bf16.mxu0 0
        %8313 = vmatpush1.bf16.msra.mxu0 %v6478
        %8314 = vmatprep.subr.bf16.mxu0 0
        %8315 = vmatpush1.bf16.msra.mxu0 %v6479
        %8316 = vmatprep.subr.bf16.mxu0 0
        %8317 = vmatpush1.bf16.msra.mxu0 %v6480
        %8318 = vmatprep.subr.bf16.mxu0 0
        %8319 = vmatpush1.bf16.msra.mxu0 %v6481
        %8320 = vmatprep.subr.bf16.mxu0 0
        %8321 = vmatpush1.bf16.msra.mxu0 %v6482
        %8322 = vmatprep.subr.bf16.mxu0 0
        %8323 = vmatpush1.bf16.msra.mxu0 %v6483
        %8324 = vmatprep.subr.bf16.mxu0 0
        %8325 = vmatpush1.bf16.msra.mxu0 %v6484
        %8326 = vmatprep.subr.bf16.mxu0 0
        %8327 = vmatpush1.bf16.msra.mxu0 %v6485
        %8328 = vmatprep.subr.bf16.mxu0 0
        %8329 = vmatpush1.bf16.msra.mxu0 %v6486
        %8330 = vmatprep.subr.bf16.mxu0 0
        %8331 = vmatpush1.bf16.msra.mxu0 %v6487
        %8332 = vmatprep.subr.bf16.mxu0 0
        %8333 = vmatpush1.bf16.msra.mxu0 %v6488
        %8334 = vmatprep.subr.bf16.mxu0 0
        %8335 = vmatpush1.bf16.msra.mxu0 %v6489
        %8336 = vmatprep.subr.bf16.mxu0 0
        %8337 = vmatpush1.bf16.msra.mxu0 %v6490
        %8338 = vmatprep.subr.bf16.mxu0 0
        %8339 = vmatpush1.bf16.msra.mxu0 %v6491
        %8340 = vmatprep.mubr.bf16.mxu0 %v1516
        %8341 = vmatmul.mubr.bf16.gmra.mrb[0].mxu0 %v1515
        %v8342 = vpop.f32.mrb[0].mxu0
        %v8343 = vadd.f32 %v8303, %v8342
        %v8344 = vpop.f32.mrb[0].mxu0
        %v8345 = vpop.f32.mrb[0].mxu0
        %v8346 = vpop.f32.mrb[0].mxu0
        %8347 = vdwg.mxu0
        %8348 = vmatprep.subr.bf16.mxu0 0
        %8349 = vmatpush1.bf16.msra.mxu0 %v6492
        %8350 = vmatprep.subr.bf16.mxu0 0
        %8351 = vmatpush1.bf16.msra.mxu0 %v6493
        %8352 = vmatprep.subr.bf16.mxu0 0
        %8353 = vmatpush1.bf16.msra.mxu0 %v6494
        %8354 = vmatprep.subr.bf16.mxu0 0
        %8355 = vmatpush1.bf16.msra.mxu0 %v6495
        %8356 = vmatprep.subr.bf16.mxu0 0
        %8357 = vmatpush1.bf16.msra.mxu0 %v6496
        %8358 = vmatprep.subr.bf16.mxu0 0
        %8359 = vmatpush1.bf16.msra.mxu0 %v6497
        %8360 = vmatprep.subr.bf16.mxu0 0
        %8361 = vmatpush1.bf16.msra.mxu0 %v6498
        %8362 = vmatprep.subr.bf16.mxu0 0
        %8363 = vmatpush1.bf16.msra.mxu0 %v6499
        %8364 = vmatprep.subr.bf16.mxu0 0
        %8365 = vmatpush1.bf16.msra.mxu0 %v6500
        %8366 = vmatprep.subr.bf16.mxu0 0
        %8367 = vmatpush1.bf16.msra.mxu0 %v6501
        %8368 = vmatprep.subr.bf16.mxu0 0
        %8369 = vmatpush1.bf16.msra.mxu0 %v6502
        %8370 = vmatprep.subr.bf16.mxu0 0
        %8371 = vmatpush1.bf16.msra.mxu0 %v6503
        %8372 = vmatprep.subr.bf16.mxu0 0
        %8373 = vmatpush1.bf16.msra.mxu0 %v6504
        %8374 = vmatprep.subr.bf16.mxu0 0
        %8375 = vmatpush1.bf16.msra.mxu0 %v6505
        %8376 = vmatprep.subr.bf16.mxu0 0
        %8377 = vmatpush1.bf16.msra.mxu0 %v6506
        %8378 = vmatprep.subr.bf16.mxu0 0
        %8379 = vmatpush1.bf16.msra.mxu0 %v6507
        %8380 = vmatprep.mubr.bf16.mxu0 %v1518
        %8381 = vmatmul.mubr.bf16.gmra.mrb[0].mxu0 %v1517
        %v8382 = vpop.f32.mrb[0].mxu0
        %v8383 = vadd.f32 %v8343, %v8382
        %v8384 = vpop.f32.mrb[0].mxu0
        %v8385 = vpop.f32.mrb[0].mxu0
        %v8386 = vpop.f32.mrb[0].mxu0
        %8387 = vdwg.mxu0
        %8388 = vmatprep.subr.bf16.mxu0 0
        %8389 = vmatpush1.bf16.msra.mxu0 %v6508
        %8390 = vmatprep.subr.bf16.mxu0 0
        %8391 = vmatpush1.bf16.msra.mxu0 %v6509
        %8392 = vmatprep.subr.bf16.mxu0 0
        %8393 = vmatpush1.bf16.msra.mxu0 %v6510
        %8394 = vmatprep.subr.bf16.mxu0 0
        %8395 = vmatpush1.bf16.msra.mxu0 %v6511
        %8396 = vmatprep.subr.bf16.mxu0 0
        %8397 = vmatpush1.bf16.msra.mxu0 %v6512
        %8398 = vmatprep.subr.bf16.mxu0 0
        %8399 = vmatpush1.bf16.msra.mxu0 %v6513
        %8400 = vmatprep.subr.bf16.mxu0 0
        %8401 = vmatpush1.bf16.msra.mxu0 %v6514
        %8402 = vmatprep.subr.bf16.mxu0 0
        %8403 = vmatpush1.bf16.msra.mxu0 %v6515
        %8404 = vmatprep.subr.bf16.mxu0 0
        %8405 = vmatpush1.bf16.msra.mxu0 %v6516
        %8406 = vmatprep.subr.bf16.mxu0 0
        %8407 = vmatpush1.bf16.msra.mxu0 %v6517
        %8408 = vmatprep.subr.bf16.mxu0 0
        %8409 = vmatpush1.bf16.msra.mxu0 %v6518
        %8410 = vmatprep.subr.bf16.mxu0 0
        %8411 = vmatpush1.bf16.msra.mxu0 %v6519
        %8412 = vmatprep.subr.bf16.mxu0 0
        %8413 = vmatpush1.bf16.msra.mxu0 %v6520
        %8414 = vmatprep.subr.bf16.mxu0 0
        %8415 = vmatpush1.bf16.msra.mxu0 %v6521
        %8416 = vmatprep.subr.bf16.mxu0 0
        %8417 = vmatpush1.bf16.msra.mxu0 %v6522
        %8418 = vmatprep.subr.bf16.mxu0 0
        %8419 = vmatpush1.bf16.msra.mxu0 %v6523
        %8420 = vmatprep.mubr.bf16.mxu0 %v1520
        %8421 = vmatmul.mubr.bf16.gmra.mrb[0].mxu0 %v1519
        %v8422 = vpop.f32.mrb[0].mxu0
        %v8423 = vadd.f32 %v8383, %v8422
        %v8424 = vpop.f32.mrb[0].mxu0
        %v8425 = vpop.f32.mrb[0].mxu0
        %v8426 = vpop.f32.mrb[0].mxu0
        %8427 = vdwg.mxu0
        %8428 = vmatprep.subr.bf16.mxu0 0
        %8429 = vmatpush1.bf16.msra.mxu0 %v6524
        %8430 = vmatprep.subr.bf16.mxu0 0
        %8431 = vmatpush1.bf16.msra.mxu0 %v6525
        %8432 = vmatprep.subr.bf16.mxu0 0
        %8433 = vmatpush1.bf16.msra.mxu0 %v6526
        %8434 = vmatprep.subr.bf16.mxu0 0
        %8435 = vmatpush1.bf16.msra.mxu0 %v6527
        %8436 = vmatprep.subr.bf16.mxu0 0
        %8437 = vmatpush1.bf16.msra.mxu0 %v6528
        %8438 = vmatprep.subr.bf16.mxu0 0
        %8439 = vmatpush1.bf16.msra.mxu0 %v6529
        %8440 = vmatprep.subr.bf16.mxu0 0
        %8441 = vmatpush1.bf16.msra.mxu0 %v6530
        %8442 = vmatprep.subr.bf16.mxu0 0
        %8443 = vmatpush1.bf16.msra.mxu0 %v6531
        %8444 = vmatprep.subr.bf16.mxu0 0
        %8445 = vmatpush1.bf16.msra.mxu0 %v6532
        %8446 = vmatprep.subr.bf16.mxu0 0
        %8447 = vmatpush1.bf16.msra.mxu0 %v6533
        %8448 = vmatprep.subr.bf16.mxu0 0
        %8449 = vmatpush1.bf16.msra.mxu0 %v6534
        %8450 = vmatprep.subr.bf16.mxu0 0
        %8451 = vmatpush1.bf16.msra.mxu0 %v6535
        %8452 = vmatprep.subr.bf16.mxu0 0
        %8453 = vmatpush1.bf16.msra.mxu0 %v6536
        %8454 = vmatprep.subr.bf16.mxu0 0
        %8455 = vmatpush1.bf16.msra.mxu0 %v6537
        %8456 = vmatprep.subr.bf16.mxu0 0
        %8457 = vmatpush1.bf16.msra.mxu0 %v6538
        %8458 = vmatprep.subr.bf16.mxu0 0
        %8459 = vmatpush1.bf16.msra.mxu0 %v6539
        %8460 = vmatprep.mubr.bf16.mxu0 %v1522
        %8461 = vmatmul.mubr.bf16.gmra.mrb[0].mxu0 %v1521
        %v8462 = vpop.f32.mrb[0].mxu0
        %v8463 = vadd.f32 %v8423, %v8462
        %v8464 = vpop.f32.mrb[0].mxu0
        %v8465 = vpop.f32.mrb[0].mxu0
        %v8466 = vpop.f32.mrb[0].mxu0
        %8467 = vdwg.mxu0
        %8468 = vmatprep.subr.bf16.mxu0 0
        %8469 = vmatpush1.bf16.msra.mxu0 %v6540
        %8470 = vmatprep.subr.bf16.mxu0 0
        %8471 = vmatpush1.bf16.msra.mxu0 %v6541
        %8472 = vmatprep.subr.bf16.mxu0 0
        %8473 = vmatpush1.bf16.msra.mxu0 %v6542
        %8474 = vmatprep.subr.bf16.mxu0 0
        %8475 = vmatpush1.bf16.msra.mxu0 %v6543
        %8476 = vmatprep.subr.bf16.mxu0 0
        %8477 = vmatpush1.bf16.msra.mxu0 %v6544
        %8478 = vmatprep.subr.bf16.mxu0 0
        %8479 = vmatpush1.bf16.msra.mxu0 %v6545
        %8480 = vmatprep.subr.bf16.mxu0 0
        %8481 = vmatpush1.bf16.msra.mxu0 %v6546
        %8482 = vmatprep.subr.bf16.mxu0 0
        %8483 = vmatpush1.bf16.msra.mxu0 %v6547
        %8484 = vmatprep.subr.bf16.mxu0 0
        %8485 = vmatpush1.bf16.msra.mxu0 %v6548
        %8486 = vmatprep.subr.bf16.mxu0 0
        %8487 = vmatpush1.bf16.msra.mxu0 %v6549
        %8488 = vmatprep.subr.bf16.mxu0 0
        %8489 = vmatpush1.bf16.msra.mxu0 %v6550
        %8490 = vmatprep.subr.bf16.mxu0 0
        %8491 = vmatpush1.bf16.msra.mxu0 %v6551
        %8492 = vmatprep.subr.bf16.mxu0 0
        %8493 = vmatpush1.bf16.msra.mxu0 %v6552
        %8494 = vmatprep.subr.bf16.mxu0 0
        %8495 = vmatpush1.bf16.msra.mxu0 %v6553
        %8496 = vmatprep.subr.bf16.mxu0 0
        %8497 = vmatpush1.bf16.msra.mxu0 %v6554
        %8498 = vmatprep.subr.bf16.mxu0 0
        %8499 = vmatpush1.bf16.msra.mxu0 %v6555
        %8500 = vmatprep.mubr.bf16.mxu0 %v1524
        %8501 = vmatmul.mubr.bf16.gmra.mrb[0].mxu0 %v1523
        %v8502 = vpop.f32.mrb[0].mxu0
        %v8503 = vadd.f32 %v8463, %v8502
        %v8504 = vpop.f32.mrb[0].mxu0
        %v8505 = vpop.f32.mrb[0].mxu0
        %v8506 = vpop.f32.mrb[0].mxu0
        %8507 = vdwg.mxu0
        %8508 = vmatprep.subr.bf16.mxu0 0
        %8509 = vmatpush1.bf16.msra.mxu0 %v6556
        %8510 = vmatprep.subr.bf16.mxu0 0
        %8511 = vmatpush1.bf16.msra.mxu0 %v6557
        %8512 = vmatprep.subr.bf16.mxu0 0
        %8513 = vmatpush1.bf16.msra.mxu0 %v6558
        %8514 = vmatprep.subr.bf16.mxu0 0
        %8515 = vmatpush1.bf16.msra.mxu0 %v6559
        %8516 = vmatprep.subr.bf16.mxu0 0
        %8517 = vmatpush1.bf16.msra.mxu0 %v6560
        %8518 = vmatprep.subr.bf16.mxu0 0
        %8519 = vmatpush1.bf16.msra.mxu0 %v6561
        %8520 = vmatprep.subr.bf16.mxu0 0
        %8521 = vmatpush1.bf16.msra.mxu0 %v6562
        %8522 = vmatprep.subr.bf16.mxu0 0
        %8523 = vmatpush1.bf16.msra.mxu0 %v6563
        %8524 = vmatprep.subr.bf16.mxu0 0
        %8525 = vmatpush1.bf16.msra.mxu0 %v6564
        %8526 = vmatprep.subr.bf16.mxu0 0
        %8527 = vmatpush1.bf16.msra.mxu0 %v6565
        %8528 = vmatprep.subr.bf16.mxu0 0
        %8529 = vmatpush1.bf16.msra.mxu0 %v6566
        %8530 = vmatprep.subr.bf16.mxu0 0
        %8531 = vmatpush1.bf16.msra.mxu0 %v6567
        %8532 = vmatprep.subr.bf16.mxu0 0
        %8533 = vmatpush1.bf16.msra.mxu0 %v6568
        %8534 = vmatprep.subr.bf16.mxu0 0
        %8535 = vmatpush1.bf16.msra.mxu0 %v6569
        %8536 = vmatprep.subr.bf16.mxu0 0
        %8537 = vmatpush1.bf16.msra.mxu0 %v6570
        %8538 = vmatprep.subr.bf16.mxu0 0
        %8539 = vmatpush1.bf16.msra.mxu0 %v6571
        %8540 = vmatprep.mubr.bf16.mxu0 %v1526
        %8541 = vmatmul.mubr.bf16.gmra.mrb[0].mxu0 %v1525
        %v8542 = vpop.f32.mrb[0].mxu0
        %v8543 = vadd.f32 %v8503, %v8542
        %v8544 = vpop.f32.mrb[0].mxu0
        %v8545 = vpop.f32.mrb[0].mxu0
        %v8546 = vpop.f32.mrb[0].mxu0
        %8547 = vdwg.mxu0
        %8548 = vmatprep.subr.bf16.mxu0 0
        %8549 = vmatpush1.bf16.msra.mxu0 %v6572
        %8550 = vmatprep.subr.bf16.mxu0 0
        %8551 = vmatpush1.bf16.msra.mxu0 %v6573
        %8552 = vmatprep.subr.bf16.mxu0 0
        %8553 = vmatpush1.bf16.msra.mxu0 %v6574
        %8554 = vmatprep.subr.bf16.mxu0 0
        %8555 = vmatpush1.bf16.msra.mxu0 %v6575
        %8556 = vmatprep.subr.bf16.mxu0 0
        %8557 = vmatpush1.bf16.msra.mxu0 %v6576
        %8558 = vmatprep.subr.bf16.mxu0 0
        %8559 = vmatpush1.bf16.msra.mxu0 %v6577
        %8560 = vmatprep.subr.bf16.mxu0 0
        %8561 = vmatpush1.bf16.msra.mxu0 %v6578
        %8562 = vmatprep.subr.bf16.mxu0 0
        %8563 = vmatpush1.bf16.msra.mxu0 %v6579
        %8564 = vmatprep.subr.bf16.mxu0 0
        %8565 = vmatpush1.bf16.msra.mxu0 %v6580
        %8566 = vmatprep.subr.bf16.mxu0 0
        %8567 = vmatpush1.bf16.msra.mxu0 %v6581
        %8568 = vmatprep.subr.bf16.mxu0 0
        %8569 = vmatpush1.bf16.msra.mxu0 %v6582
        %8570 = vmatprep.subr.bf16.mxu0 0
        %8571 = vmatpush1.bf16.msra.mxu0 %v6583
        %8572 = vmatprep.subr.bf16.mxu0 0
        %8573 = vmatpush1.bf16.msra.mxu0 %v6584
        %8574 = vmatprep.subr.bf16.mxu0 0
        %8575 = vmatpush1.bf16.msra.mxu0 %v6585
        %8576 = vmatprep.subr.bf16.mxu0 0
        %8577 = vmatpush1.bf16.msra.mxu0 %v6586
        %8578 = vmatprep.subr.bf16.mxu0 0
        %8579 = vmatpush1.bf16.msra.mxu0 %v6587
        %8580 = vmatprep.mubr.bf16.mxu0 %v1528
        %8581 = vmatmul.mubr.bf16.gmra.mrb[0].mxu0 %v1527
        %v8582 = vpop.f32.mrb[0].mxu0
        %v8583 = vadd.f32 %v8543, %v8582
        %v8584 = vpop.f32.mrb[0].mxu0
        %v8585 = vpop.f32.mrb[0].mxu0
        %v8586 = vpop.f32.mrb[0].mxu0
        %8587 = vdwg.mxu0
        %8588 = vmatprep.subr.bf16.mxu0 0
        %8589 = vmatpush1.bf16.msra.mxu0 %v6588
        %8590 = vmatprep.subr.bf16.mxu0 0
        %8591 = vmatpush1.bf16.msra.mxu0 %v6589
        %8592 = vmatprep.subr.bf16.mxu0 0
        %8593 = vmatpush1.bf16.msra.mxu0 %v6590
        %8594 = vmatprep.subr.bf16.mxu0 0
        %8595 = vmatpush1.bf16.msra.mxu0 %v6591
        %8596 = vmatprep.subr.bf16.mxu0 0
        %8597 = vmatpush1.bf16.msra.mxu0 %v6592
        %8598 = vmatprep.subr.bf16.mxu0 0
        %8599 = vmatpush1.bf16.msra.mxu0 %v6593
        %8600 = vmatprep.subr.bf16.mxu0 0
        %8601 = vmatpush1.bf16.msra.mxu0 %v6594
        %8602 = vmatprep.subr.bf16.mxu0 0
        %8603 = vmatpush1.bf16.msra.mxu0 %v6595
        %8604 = vmatprep.subr.bf16.mxu0 0
        %8605 = vmatpush1.bf16.msra.mxu0 %v6596
        %8606 = vmatprep.subr.bf16.mxu0 0
        %8607 = vmatpush1.bf16.msra.mxu0 %v6597
        %8608 = vmatprep.subr.bf16.mxu0 0
        %8609 = vmatpush1.bf16.msra.mxu0 %v6598
        %8610 = vmatprep.subr.bf16.mxu0 0
        %8611 = vmatpush1.bf16.msra.mxu0 %v6599
        %8612 = vmatprep.subr.bf16.mxu0 0
        %8613 = vmatpush1.bf16.msra.mxu0 %v6600
        %8614 = vmatprep.subr.bf16.mxu0 0
        %8615 = vmatpush1.bf16.msra.mxu0 %v6601
        %8616 = vmatprep.subr.bf16.mxu0 0
        %8617 = vmatpush1.bf16.msra.mxu0 %v6602
        %8618 = vmatprep.subr.bf16.mxu0 0
        %8619 = vmatpush1.bf16.msra.mxu0 %v6603
        %8620 = vmatprep.mubr.bf16.mxu0 %v1530
        %8621 = vmatmul.mubr.bf16.gmra.mrb[0].mxu0 %v1529
        %v8622 = vpop.f32.mrb[0].mxu0
        %v8623 = vadd.f32 %v8583, %v8622
        %v8624 = vpop.f32.mrb[0].mxu0
        %v8625 = vpop.f32.mrb[0].mxu0
        %v8626 = vpop.f32.mrb[0].mxu0
        %8627 = vdwg.mxu0
        %8628 = vmatprep.subr.bf16.mxu0 0
        %8629 = vmatpush1.bf16.msra.mxu0 %v6604
        %8630 = vmatprep.subr.bf16.mxu0 0
        %8631 = vmatpush1.bf16.msra.mxu0 %v6605
        %8632 = vmatprep.subr.bf16.mxu0 0
        %8633 = vmatpush1.bf16.msra.mxu0 %v6606
        %8634 = vmatprep.subr.bf16.mxu0 0
        %8635 = vmatpush1.bf16.msra.mxu0 %v6607
        %8636 = vmatprep.subr.bf16.mxu0 0
        %8637 = vmatpush1.bf16.msra.mxu0 %v6608
        %8638 = vmatprep.subr.bf16.mxu0 0
        %8639 = vmatpush1.bf16.msra.mxu0 %v6609
        %8640 = vmatprep.subr.bf16.mxu0 0
        %8641 = vmatpush1.bf16.msra.mxu0 %v6610
        %8642 = vmatprep.subr.bf16.mxu0 0
        %8643 = vmatpush1.bf16.msra.mxu0 %v6611
        %8644 = vmatprep.subr.bf16.mxu0 0
        %8645 = vmatpush1.bf16.msra.mxu0 %v6612
        %8646 = vmatprep.subr.bf16.mxu0 0
        %8647 = vmatpush1.bf16.msra.mxu0 %v6613
        %8648 = vmatprep.subr.bf16.mxu0 0
        %8649 = vmatpush1.bf16.msra.mxu0 %v6614
        %8650 = vmatprep.subr.bf16.mxu0 0
        %8651 = vmatpush1.bf16.msra.mxu0 %v6615
        %8652 = vmatprep.subr.bf16.mxu0 0
        %8653 = vmatpush1.bf16.msra.mxu0 %v6616
        %8654 = vmatprep.subr.bf16.mxu0 0
        %8655 = vmatpush1.bf16.msra.mxu0 %v6617
        %8656 = vmatprep.subr.bf16.mxu0 0
        %8657 = vmatpush1.bf16.msra.mxu0 %v6618
        %8658 = vmatprep.subr.bf16.mxu0 0
        %8659 = vmatpush1.bf16.msra.mxu0 %v6619
        %8660 = vmatprep.mubr.bf16.mxu0 %v1532
        %8661 = vmatmul.mubr.bf16.gmra.mrb[0].mxu0 %v1531
        %v8662 = vpop.f32.mrb[0].mxu0
        %v8663 = vadd.f32 %v8623, %v8662
        %v8664 = vpop.f32.mrb[0].mxu0
        %v8665 = vpop.f32.mrb[0].mxu0
        %v8666 = vpop.f32.mrb[0].mxu0
        %8667 = vdwg.mxu0
        %8668 = vmatprep.subr.bf16.mxu0 0
        %8669 = vmatpush1.bf16.msra.mxu0 %v6620
        %8670 = vmatprep.subr.bf16.mxu0 0
        %8671 = vmatpush1.bf16.msra.mxu0 %v6621
        %8672 = vmatprep.subr.bf16.mxu0 0
        %8673 = vmatpush1.bf16.msra.mxu0 %v6622
        %8674 = vmatprep.subr.bf16.mxu0 0
        %8675 = vmatpush1.bf16.msra.mxu0 %v6623
        %8676 = vmatprep.subr.bf16.mxu0 0
        %8677 = vmatpush1.bf16.msra.mxu0 %v6624
        %8678 = vmatprep.subr.bf16.mxu0 0
        %8679 = vmatpush1.bf16.msra.mxu0 %v6625
        %8680 = vmatprep.subr.bf16.mxu0 0
        %8681 = vmatpush1.bf16.msra.mxu0 %v6626
        %8682 = vmatprep.subr.bf16.mxu0 0
        %8683 = vmatpush1.bf16.msra.mxu0 %v6627
        %8684 = vmatprep.subr.bf16.mxu0 0
        %8685 = vmatpush1.bf16.msra.mxu0 %v6628
        %8686 = vmatprep.subr.bf16.mxu0 0
        %8687 = vmatpush1.bf16.msra.mxu0 %v6629
        %8688 = vmatprep.subr.bf16.mxu0 0
        %8689 = vmatpush1.bf16.msra.mxu0 %v6630
        %8690 = vmatprep.subr.bf16.mxu0 0
        %8691 = vmatpush1.bf16.msra.mxu0 %v6631
        %8692 = vmatprep.subr.bf16.mxu0 0
        %8693 = vmatpush1.bf16.msra.mxu0 %v6632
        %8694 = vmatprep.subr.bf16.mxu0 0
        %8695 = vmatpush1.bf16.msra.mxu0 %v6633
        %8696 = vmatprep.subr.bf16.mxu0 0
        %8697 = vmatpush1.bf16.msra.mxu0 %v6634
        %8698 = vmatprep.subr.bf16.mxu0 0
        %8699 = vmatpush1.bf16.msra.mxu0 %v6635
        %8700 = vmatprep.mubr.bf16.mxu0 %v1534
        %8701 = vmatmul.mubr.bf16.gmra.mrb[0].mxu0 %v1533
        %v8702 = vpop.f32.mrb[0].mxu0
        %v8703 = vadd.f32 %v8663, %v8702
        %v8704 = vpop.f32.mrb[0].mxu0
        %v8705 = vpop.f32.mrb[0].mxu0
        %v8706 = vpop.f32.mrb[0].mxu0
        %8707 = vdwg.mxu0
        %8708 = vmatprep.subr.bf16.mxu0 0
        %8709 = vmatpush1.bf16.msra.mxu0 %v6636
        %8710 = vmatprep.subr.bf16.mxu0 0
        %8711 = vmatpush1.bf16.msra.mxu0 %v6637
        %8712 = vmatprep.subr.bf16.mxu0 0
        %8713 = vmatpush1.bf16.msra.mxu0 %v6638
        %8714 = vmatprep.subr.bf16.mxu0 0
        %8715 = vmatpush1.bf16.msra.mxu0 %v6639
        %8716 = vmatprep.subr.bf16.mxu0 0
        %8717 = vmatpush1.bf16.msra.mxu0 %v6640
        %8718 = vmatprep.subr.bf16.mxu0 0
        %8719 = vmatpush1.bf16.msra.mxu0 %v6641
        %8720 = vmatprep.subr.bf16.mxu0 0
        %8721 = vmatpush1.bf16.msra.mxu0 %v6642
        %8722 = vmatprep.subr.bf16.mxu0 0
        %8723 = vmatpush1.bf16.msra.mxu0 %v6643
        %8724 = vmatprep.subr.bf16.mxu0 0
        %8725 = vmatpush1.bf16.msra.mxu0 %v6644
        %8726 = vmatprep.subr.bf16.mxu0 0
        %8727 = vmatpush1.bf16.msra.mxu0 %v6645
        %8728 = vmatprep.subr.bf16.mxu0 0
        %8729 = vmatpush1.bf16.msra.mxu0 %v6646
        %8730 = vmatprep.subr.bf16.mxu0 0
        %8731 = vmatpush1.bf16.msra.mxu0 %v6647
        %8732 = vmatprep.subr.bf16.mxu0 0
        %8733 = vmatpush1.bf16.msra.mxu0 %v6648
        %8734 = vmatprep.subr.bf16.mxu0 0
        %8735 = vmatpush1.bf16.msra.mxu0 %v6649
        %8736 = vmatprep.subr.bf16.mxu0 0
        %8737 = vmatpush1.bf16.msra.mxu0 %v6650
        %8738 = vmatprep.subr.bf16.mxu0 0
        %8739 = vmatpush1.bf16.msra.mxu0 %v6651
        %8740 = vmatprep.mubr.bf16.mxu0 %v1536
        %8741 = vmatmul.mubr.bf16.gmra.mrb[0].mxu0 %v1535
        %v8742 = vpop.f32.mrb[0].mxu0
        %v8743 = vadd.f32 %v8703, %v8742
        %v8744 = vpop.f32.mrb[0].mxu0
        %v8745 = vpop.f32.mrb[0].mxu0
        %v8746 = vpop.f32.mrb[0].mxu0
        %8747 = vdwg.mxu0
        %8748 = vmatprep.subr.bf16.mxu0 0
        %8749 = vmatpush1.bf16.msra.mxu0 %v6652
        %8750 = vmatprep.subr.bf16.mxu0 0
        %8751 = vmatpush1.bf16.msra.mxu0 %v6653
        %8752 = vmatprep.subr.bf16.mxu0 0
        %8753 = vmatpush1.bf16.msra.mxu0 %v6654
        %8754 = vmatprep.subr.bf16.mxu0 0
        %8755 = vmatpush1.bf16.msra.mxu0 %v6655
        %8756 = vmatprep.subr.bf16.mxu0 0
        %8757 = vmatpush1.bf16.msra.mxu0 %v6656
        %8758 = vmatprep.subr.bf16.mxu0 0
        %8759 = vmatpush1.bf16.msra.mxu0 %v6657
        %8760 = vmatprep.subr.bf16.mxu0 0
        %8761 = vmatpush1.bf16.msra.mxu0 %v6658
        %8762 = vmatprep.subr.bf16.mxu0 0
        %8763 = vmatpush1.bf16.msra.mxu0 %v6659
        %8764 = vmatprep.subr.bf16.mxu0 0
        %8765 = vmatpush1.bf16.msra.mxu0 %v6660
        %8766 = vmatprep.subr.bf16.mxu0 0
        %8767 = vmatpush1.bf16.msra.mxu0 %v6661
        %8768 = vmatprep.subr.bf16.mxu0 0
        %8769 = vmatpush1.bf16.msra.mxu0 %v6662
        %8770 = vmatprep.subr.bf16.mxu0 0
        %8771 = vmatpush1.bf16.msra.mxu0 %v6663
        %8772 = vmatprep.subr.bf16.mxu0 0
        %8773 = vmatpush1.bf16.msra.mxu0 %v6664
        %8774 = vmatprep.subr.bf16.mxu0 0
        %8775 = vmatpush1.bf16.msra.mxu0 %v6665
        %8776 = vmatprep.subr.bf16.mxu0 0
        %8777 = vmatpush1.bf16.msra.mxu0 %v6666
        %8778 = vmatprep.subr.bf16.mxu0 0
        %8779 = vmatpush1.bf16.msra.mxu0 %v6667
        %8780 = vmatprep.mubr.bf16.mxu0 %v1538
        %8781 = vmatmul.mubr.bf16.gmra.mrb[0].mxu0 %v1537
        %v8782 = vpop.f32.mrb[0].mxu0
        %v8783 = vadd.f32 %v8743, %v8782
        %v8784 = vpop.f32.mrb[0].mxu0
        %v8785 = vpop.f32.mrb[0].mxu0
        %v8786 = vpop.f32.mrb[0].mxu0
        %8787 = vdwg.mxu0
        %8788 = vmatprep.subr.bf16.mxu0 0
        %8789 = vmatpush1.bf16.msra.mxu0 %v6668
        %8790 = vmatprep.subr.bf16.mxu0 0
        %8791 = vmatpush1.bf16.msra.mxu0 %v6669
        %8792 = vmatprep.subr.bf16.mxu0 0
        %8793 = vmatpush1.bf16.msra.mxu0 %v6670
        %8794 = vmatprep.subr.bf16.mxu0 0
        %8795 = vmatpush1.bf16.msra.mxu0 %v6671
        %8796 = vmatprep.subr.bf16.mxu0 0
        %8797 = vmatpush1.bf16.msra.mxu0 %v6672
        %8798 = vmatprep.subr.bf16.mxu0 0
        %8799 = vmatpush1.bf16.msra.mxu0 %v6673
        %8800 = vmatprep.subr.bf16.mxu0 0
        %8801 = vmatpush1.bf16.msra.mxu0 %v6674
        %8802 = vmatprep.subr.bf16.mxu0 0
        %8803 = vmatpush1.bf16.msra.mxu0 %v6675
        %8804 = vmatprep.subr.bf16.mxu0 0
        %8805 = vmatpush1.bf16.msra.mxu0 %v6676
        %8806 = vmatprep.subr.bf16.mxu0 0
        %8807 = vmatpush1.bf16.msra.mxu0 %v6677
        %8808 = vmatprep.subr.bf16.mxu0 0
        %8809 = vmatpush1.bf16.msra.mxu0 %v6678
        %8810 = vmatprep.subr.bf16.mxu0 0
        %8811 = vmatpush1.bf16.msra.mxu0 %v6679
        %8812 = vmatprep.subr.bf16.mxu0 0
        %8813 = vmatpush1.bf16.msra.mxu0 %v6680
        %8814 = vmatprep.subr.bf16.mxu0 0
        %8815 = vmatpush1.bf16.msra.mxu0 %v6681
        %8816 = vmatprep.subr.bf16.mxu0 0
        %8817 = vmatpush1.bf16.msra.mxu0 %v6682
        %8818 = vmatprep.subr.bf16.mxu0 0
        %8819 = vmatpush1.bf16.msra.mxu0 %v6683
        %8820 = vmatprep.mubr.bf16.mxu0 %v1540
        %8821 = vmatmul.mubr.bf16.gmra.mrb[0].mxu0 %v1539
        %v8822 = vpop.f32.mrb[0].mxu0
        %v8823 = vadd.f32 %v8783, %v8822
        %v8824 = vpop.f32.mrb[0].mxu0
        %v8825 = vpop.f32.mrb[0].mxu0
        %v8826 = vpop.f32.mrb[0].mxu0
        %8827 = vdwg.mxu0
        %8828 = vmatprep.subr.bf16.mxu0 0
        %8829 = vmatpush1.bf16.msra.mxu0 %v6684
        %8830 = vmatprep.subr.bf16.mxu0 0
        %8831 = vmatpush1.bf16.msra.mxu0 %v6685
        %8832 = vmatprep.subr.bf16.mxu0 0
        %8833 = vmatpush1.bf16.msra.mxu0 %v6686
        %8834 = vmatprep.subr.bf16.mxu0 0
        %8835 = vmatpush1.bf16.msra.mxu0 %v6687
        %8836 = vmatprep.subr.bf16.mxu0 0
        %8837 = vmatpush1.bf16.msra.mxu0 %v6688
        %8838 = vmatprep.subr.bf16.mxu0 0
        %8839 = vmatpush1.bf16.msra.mxu0 %v6689
        %8840 = vmatprep.subr.bf16.mxu0 0
        %8841 = vmatpush1.bf16.msra.mxu0 %v6690
        %8842 = vmatprep.subr.bf16.mxu0 0
        %8843 = vmatpush1.bf16.msra.mxu0 %v6691
        %8844 = vmatprep.subr.bf16.mxu0 0
        %8845 = vmatpush1.bf16.msra.mxu0 %v6692
        %8846 = vmatprep.subr.bf16.mxu0 0
        %8847 = vmatpush1.bf16.msra.mxu0 %v6693
        %8848 = vmatprep.subr.bf16.mxu0 0
        %8849 = vmatpush1.bf16.msra.mxu0 %v6694
        %8850 = vmatprep.subr.bf16.mxu0 0
        %8851 = vmatpush1.bf16.msra.mxu0 %v6695
        %8852 = vmatprep.subr.bf16.mxu0 0
        %8853 = vmatpush1.bf16.msra.mxu0 %v6696
        %8854 = vmatprep.subr.bf16.mxu0 0
        %8855 = vmatpush1.bf16.msra.mxu0 %v6697
        %8856 = vmatprep.subr.bf16.mxu0 0
        %8857 = vmatpush1.bf16.msra.mxu0 %v6698
        %8858 = vmatprep.subr.bf16.mxu0 0
        %8859 = vmatpush1.bf16.msra.mxu0 %v6699
        %8860 = vmatprep.mubr.bf16.mxu0 %v1542
        %8861 = vmatmul.mubr.bf16.gmra.mrb[0].mxu0 %v1541
        %v8862 = vpop.f32.mrb[0].mxu0
        %v8863 = vadd.f32 %v8823, %v8862
        %v8864 = vpop.f32.mrb[0].mxu0
        %v8865 = vpop.f32.mrb[0].mxu0
        %v8866 = vpop.f32.mrb[0].mxu0
        %8867 = vdwg.mxu0
        %8868 = vmatprep.subr.bf16.mxu0 0
        %8869 = vmatpush1.bf16.msra.mxu0 %v6700
        %8870 = vmatprep.subr.bf16.mxu0 0
        %8871 = vmatpush1.bf16.msra.mxu0 %v6701
        %8872 = vmatprep.subr.bf16.mxu0 0
        %8873 = vmatpush1.bf16.msra.mxu0 %v6702
        %8874 = vmatprep.subr.bf16.mxu0 0
        %8875 = vmatpush1.bf16.msra.mxu0 %v6703
        %8876 = vmatprep.subr.bf16.mxu0 0
        %8877 = vmatpush1.bf16.msra.mxu0 %v6704
        %8878 = vmatprep.subr.bf16.mxu0 0
        %8879 = vmatpush1.bf16.msra.mxu0 %v6705
        %8880 = vmatprep.subr.bf16.mxu0 0
        %8881 = vmatpush1.bf16.msra.mxu0 %v6706
        %8882 = vmatprep.subr.bf16.mxu0 0
        %8883 = vmatpush1.bf16.msra.mxu0 %v6707
        %8884 = vmatprep.subr.bf16.mxu0 0
        %8885 = vmatpush1.bf16.msra.mxu0 %v6708
        %8886 = vmatprep.subr.bf16.mxu0 0
        %8887 = vmatpush1.bf16.msra.mxu0 %v6709
        %8888 = vmatprep.subr.bf16.mxu0 0
        %8889 = vmatpush1.bf16.msra.mxu0 %v6710
        %8890 = vmatprep.subr.bf16.mxu0 0
        %8891 = vmatpush1.bf16.msra.mxu0 %v6711
        %8892 = vmatprep.subr.bf16.mxu0 0
        %8893 = vmatpush1.bf16.msra.mxu0 %v6712
        %8894 = vmatprep.subr.bf16.mxu0 0
        %8895 = vmatpush1.bf16.msra.mxu0 %v6713
        %8896 = vmatprep.subr.bf16.mxu0 0
        %8897 = vmatpush1.bf16.msra.mxu0 %v6714
        %8898 = vmatprep.subr.bf16.mxu0 0
        %8899 = vmatpush1.bf16.msra.mxu0 %v6715
        %8900 = vmatprep.mubr.bf16.mxu0 %v1544
        %8901 = vmatmul.mubr.bf16.gmra.mrb[0].mxu0 %v1543
        %v8902 = vpop.f32.mrb[0].mxu0
        %v8903 = vadd.f32 %v8863, %v8902
        %v8904 = vpop.f32.mrb[0].mxu0
        %v8905 = vpop.f32.mrb[0].mxu0
        %v8906 = vpop.f32.mrb[0].mxu0
        %8907 = vdwg.mxu0
        %8908 = vmatprep.subr.bf16.mxu0 0
        %8909 = vmatpush1.bf16.msra.mxu0 %v6716
        %8910 = vmatprep.subr.bf16.mxu0 0
        %8911 = vmatpush1.bf16.msra.mxu0 %v6717
        %8912 = vmatprep.subr.bf16.mxu0 0
        %8913 = vmatpush1.bf16.msra.mxu0 %v6718
        %8914 = vmatprep.subr.bf16.mxu0 0
        %8915 = vmatpush1.bf16.msra.mxu0 %v6719
        %8916 = vmatprep.subr.bf16.mxu0 0
        %8917 = vmatpush1.bf16.msra.mxu0 %v6720
        %8918 = vmatprep.subr.bf16.mxu0 0
        %8919 = vmatpush1.bf16.msra.mxu0 %v6721
        %8920 = vmatprep.subr.bf16.mxu0 0
        %8921 = vmatpush1.bf16.msra.mxu0 %v6722
        %8922 = vmatprep.subr.bf16.mxu0 0
        %8923 = vmatpush1.bf16.msra.mxu0 %v6723
        %8924 = vmatprep.subr.bf16.mxu0 0
        %8925 = vmatpush1.bf16.msra.mxu0 %v6724
        %8926 = vmatprep.subr.bf16.mxu0 0
        %8927 = vmatpush1.bf16.msra.mxu0 %v6725
        %8928 = vmatprep.subr.bf16.mxu0 0
        %8929 = vmatpush1.bf16.msra.mxu0 %v6726
        %8930 = vmatprep.subr.bf16.mxu0 0
        %8931 = vmatpush1.bf16.msra.mxu0 %v6727
        %8932 = vmatprep.subr.bf16.mxu0 0
        %8933 = vmatpush1.bf16.msra.mxu0 %v6728
        %8934 = vmatprep.subr.bf16.mxu0 0
        %8935 = vmatpush1.bf16.msra.mxu0 %v6729
        %8936 = vmatprep.subr.bf16.mxu0 0
        %8937 = vmatpush1.bf16.msra.mxu0 %v6730
        %8938 = vmatprep.subr.bf16.mxu0 0
        %8939 = vmatpush1.bf16.msra.mxu0 %v6731
        %8940 = vmatprep.mubr.bf16.mxu0 %v1546
        %8941 = vmatmul.mubr.bf16.gmra.mrb[0].mxu0 %v1545
        %v8942 = vpop.f32.mrb[0].mxu0
        %v8943 = vadd.f32 %v8903, %v8942
        %v8944 = vpop.f32.mrb[0].mxu0
        %v8945 = vpop.f32.mrb[0].mxu0
        %v8946 = vpop.f32.mrb[0].mxu0
        %8947 = vdwg.mxu0
        %8948 = vmatprep.subr.bf16.mxu0 0
        %8949 = vmatpush1.bf16.msra.mxu0 %v6732
        %8950 = vmatprep.subr.bf16.mxu0 0
        %8951 = vmatpush1.bf16.msra.mxu0 %v6733
        %8952 = vmatprep.subr.bf16.mxu0 0
        %8953 = vmatpush1.bf16.msra.mxu0 %v6734
        %8954 = vmatprep.subr.bf16.mxu0 0
        %8955 = vmatpush1.bf16.msra.mxu0 %v6735
        %8956 = vmatprep.subr.bf16.mxu0 0
        %8957 = vmatpush1.bf16.msra.mxu0 %v6736
        %8958 = vmatprep.subr.bf16.mxu0 0
        %8959 = vmatpush1.bf16.msra.mxu0 %v6737
        %8960 = vmatprep.subr.bf16.mxu0 0
        %8961 = vmatpush1.bf16.msra.mxu0 %v6738
        %8962 = vmatprep.subr.bf16.mxu0 0
        %8963 = vmatpush1.bf16.msra.mxu0 %v6739
        %8964 = vmatprep.subr.bf16.mxu0 0
        %8965 = vmatpush1.bf16.msra.mxu0 %v6740
        %8966 = vmatprep.subr.bf16.mxu0 0
        %8967 = vmatpush1.bf16.msra.mxu0 %v6741
        %8968 = vmatprep.subr.bf16.mxu0 0
        %8969 = vmatpush1.bf16.msra.mxu0 %v6742
        %8970 = vmatprep.subr.bf16.mxu0 0
        %8971 = vmatpush1.bf16.msra.mxu0 %v6743
        %8972 = vmatprep.subr.bf16.mxu0 0
        %8973 = vmatpush1.bf16.msra.mxu0 %v6744
        %8974 = vmatprep.subr.bf16.mxu0 0
        %8975 = vmatpush1.bf16.msra.mxu0 %v6745
        %8976 = vmatprep.subr.bf16.mxu0 0
        %8977 = vmatpush1.bf16.msra.mxu0 %v6746
        %8978 = vmatprep.subr.bf16.mxu0 0
        %8979 = vmatpush1.bf16.msra.mxu0 %v6747
        %8980 = vmatprep.mubr.bf16.mxu0 %v1548
        %8981 = vmatmul.mubr.bf16.gmra.mrb[0].mxu0 %v1547
        %v8982 = vpop.f32.mrb[0].mxu0
        %v8983 = vadd.f32 %v8943, %v8982
        %v8984 = vpop.f32.mrb[0].mxu0
        %v8985 = vpop.f32.mrb[0].mxu0
        %v8986 = vpop.f32.mrb[0].mxu0
        %8987 = vdwg.mxu0
        %8988 = vmatprep.subr.bf16.mxu0 0
        %8989 = vmatpush1.bf16.msra.mxu0 %v6748
        %8990 = vmatprep.subr.bf16.mxu0 0
        %8991 = vmatpush1.bf16.msra.mxu0 %v6749
        %8992 = vmatprep.subr.bf16.mxu0 0
        %8993 = vmatpush1.bf16.msra.mxu0 %v6750
        %8994 = vmatprep.subr.bf16.mxu0 0
        %8995 = vmatpush1.bf16.msra.mxu0 %v6751
        %8996 = vmatprep.subr.bf16.mxu0 0
        %8997 = vmatpush1.bf16.msra.mxu0 %v6752
        %8998 = vmatprep.subr.bf16.mxu0 0
        %8999 = vmatpush1.bf16.msra.mxu0 %v6753
        %9000 = vmatprep.subr.bf16.mxu0 0
        %9001 = vmatpush1.bf16.msra.mxu0 %v6754
        %9002 = vmatprep.subr.bf16.mxu0 0
        %9003 = vmatpush1.bf16.msra.mxu0 %v6755
        %9004 = vmatprep.subr.bf16.mxu0 0
        %9005 = vmatpush1.bf16.msra.mxu0 %v6756
        %9006 = vmatprep.subr.bf16.mxu0 0
        %9007 = vmatpush1.bf16.msra.mxu0 %v6757
        %9008 = vmatprep.subr.bf16.mxu0 0
        %9009 = vmatpush1.bf16.msra.mxu0 %v6758
        %9010 = vmatprep.subr.bf16.mxu0 0
        %9011 = vmatpush1.bf16.msra.mxu0 %v6759
        %9012 = vmatprep.subr.bf16.mxu0 0
        %9013 = vmatpush1.bf16.msra.mxu0 %v6760
        %9014 = vmatprep.subr.bf16.mxu0 0
        %9015 = vmatpush1.bf16.msra.mxu0 %v6761
        %9016 = vmatprep.subr.bf16.mxu0 0
        %9017 = vmatpush1.bf16.msra.mxu0 %v6762
        %9018 = vmatprep.subr.bf16.mxu0 0
        %9019 = vmatpush1.bf16.msra.mxu0 %v6763
        %9020 = vmatprep.mubr.bf16.mxu0 %v1550
        %9021 = vmatmul.mubr.bf16.gmra.mrb[0].mxu0 %v1549
        %v9022 = vpop.f32.mrb[0].mxu0
        %v9023 = vadd.f32 %v8983, %v9022
        %v9024 = vpop.f32.mrb[0].mxu0
        %v9025 = vpop.f32.mrb[0].mxu0
        %v9026 = vpop.f32.mrb[0].mxu0
        %9027 = vdwg.mxu0
        %9028 = vmatprep.subr.bf16.mxu0 0
        %9029 = vmatpush1.bf16.msra.mxu0 %v6764
        %9030 = vmatprep.subr.bf16.mxu0 0
        %9031 = vmatpush1.bf16.msra.mxu0 %v6765
        %9032 = vmatprep.subr.bf16.mxu0 0
        %9033 = vmatpush1.bf16.msra.mxu0 %v6766
        %9034 = vmatprep.subr.bf16.mxu0 0
        %9035 = vmatpush1.bf16.msra.mxu0 %v6767
        %9036 = vmatprep.subr.bf16.mxu0 0
        %9037 = vmatpush1.bf16.msra.mxu0 %v6768
        %9038 = vmatprep.subr.bf16.mxu0 0
        %9039 = vmatpush1.bf16.msra.mxu0 %v6769
        %9040 = vmatprep.subr.bf16.mxu0 0
        %9041 = vmatpush1.bf16.msra.mxu0 %v6770
        %9042 = vmatprep.subr.bf16.mxu0 0
        %9043 = vmatpush1.bf16.msra.mxu0 %v6771
        %9044 = vmatprep.subr.bf16.mxu0 0
        %9045 = vmatpush1.bf16.msra.mxu0 %v6772
        %9046 = vmatprep.subr.bf16.mxu0 0
        %9047 = vmatpush1.bf16.msra.mxu0 %v6773
        %9048 = vmatprep.subr.bf16.mxu0 0
        %9049 = vmatpush1.bf16.msra.mxu0 %v6774
        %9050 = vmatprep.subr.bf16.mxu0 0
        %9051 = vmatpush1.bf16.msra.mxu0 %v6775
        %9052 = vmatprep.subr.bf16.mxu0 0
        %9053 = vmatpush1.bf16.msra.mxu0 %v6776
        %9054 = vmatprep.subr.bf16.mxu0 0
        %9055 = vmatpush1.bf16.msra.mxu0 %v6777
        %9056 = vmatprep.subr.bf16.mxu0 0
        %9057 = vmatpush1.bf16.msra.mxu0 %v6778
        %9058 = vmatprep.subr.bf16.mxu0 0
        %9059 = vmatpush1.bf16.msra.mxu0 %v6779
        %9060 = vmatprep.mubr.bf16.mxu0 %v1552
        %9061 = vmatmul.mubr.bf16.gmra.mrb[0].mxu0 %v1551
        %v9062 = vpop.f32.mrb[0].mxu0
        %v9063 = vadd.f32 %v9023, %v9062
        %v9064 = vpop.f32.mrb[0].mxu0
        %v9065 = vpop.f32.mrb[0].mxu0
        %v9066 = vpop.f32.mrb[0].mxu0
        %9067 = vdwg.mxu0
        %9068 = vmatprep.subr.bf16.mxu0 0
        %9069 = vmatpush1.bf16.msra.mxu0 %v6780
        %9070 = vmatprep.subr.bf16.mxu0 0
        %9071 = vmatpush1.bf16.msra.mxu0 %v6781
        %9072 = vmatprep.subr.bf16.mxu0 0
        %9073 = vmatpush1.bf16.msra.mxu0 %v6782
        %9074 = vmatprep.subr.bf16.mxu0 0
        %9075 = vmatpush1.bf16.msra.mxu0 %v6783
        %9076 = vmatprep.subr.bf16.mxu0 0
        %9077 = vmatpush1.bf16.msra.mxu0 %v6784
        %9078 = vmatprep.subr.bf16.mxu0 0
        %9079 = vmatpush1.bf16.msra.mxu0 %v6785
        %9080 = vmatprep.subr.bf16.mxu0 0
        %9081 = vmatpush1.bf16.msra.mxu0 %v6786
        %9082 = vmatprep.subr.bf16.mxu0 0
        %9083 = vmatpush1.bf16.msra.mxu0 %v6787
        %9084 = vmatprep.subr.bf16.mxu0 0
        %9085 = vmatpush1.bf16.msra.mxu0 %v6788
        %9086 = vmatprep.subr.bf16.mxu0 0
        %9087 = vmatpush1.bf16.msra.mxu0 %v6789
        %9088 = vmatprep.subr.bf16.mxu0 0
        %9089 = vmatpush1.bf16.msra.mxu0 %v6790
        %9090 = vmatprep.subr.bf16.mxu0 0
        %9091 = vmatpush1.bf16.msra.mxu0 %v6791
        %9092 = vmatprep.subr.bf16.mxu0 0
        %9093 = vmatpush1.bf16.msra.mxu0 %v6792
        %9094 = vmatprep.subr.bf16.mxu0 0
        %9095 = vmatpush1.bf16.msra.mxu0 %v6793
        %9096 = vmatprep.subr.bf16.mxu0 0
        %9097 = vmatpush1.bf16.msra.mxu0 %v6794
        %9098 = vmatprep.subr.bf16.mxu0 0
        %9099 = vmatpush1.bf16.msra.mxu0 %v6795
        %9100 = vmatprep.mubr.bf16.mxu0 %v1554
        %9101 = vmatmul.mubr.bf16.gmra.mrb[0].mxu0 %v1553
        %v9102 = vpop.f32.mrb[0].mxu0
        %v9103 = vadd.f32 %v9063, %v9102
        %v9104 = vpop.f32.mrb[0].mxu0
        %v9105 = vpop.f32.mrb[0].mxu0
        %v9106 = vpop.f32.mrb[0].mxu0
        %9107 = vdwg.mxu0
        %9108 = vmatprep.subr.bf16.mxu0 0
        %9109 = vmatpush1.bf16.msra.mxu0 %v6796
        %9110 = vmatprep.subr.bf16.mxu0 0
        %9111 = vmatpush1.bf16.msra.mxu0 %v6797
        %9112 = vmatprep.subr.bf16.mxu0 0
        %9113 = vmatpush1.bf16.msra.mxu0 %v6798
        %9114 = vmatprep.subr.bf16.mxu0 0
        %9115 = vmatpush1.bf16.msra.mxu0 %v6799
        %9116 = vmatprep.subr.bf16.mxu0 0
        %9117 = vmatpush1.bf16.msra.mxu0 %v6800
        %9118 = vmatprep.subr.bf16.mxu0 0
        %9119 = vmatpush1.bf16.msra.mxu0 %v6801
        %9120 = vmatprep.subr.bf16.mxu0 0
        %9121 = vmatpush1.bf16.msra.mxu0 %v6802
        %9122 = vmatprep.subr.bf16.mxu0 0
        %9123 = vmatpush1.bf16.msra.mxu0 %v6803
        %9124 = vmatprep.subr.bf16.mxu0 0
        %9125 = vmatpush1.bf16.msra.mxu0 %v6804
        %9126 = vmatprep.subr.bf16.mxu0 0
        %9127 = vmatpush1.bf16.msra.mxu0 %v6805
        %9128 = vmatprep.subr.bf16.mxu0 0
        %9129 = vmatpush1.bf16.msra.mxu0 %v6806
        %9130 = vmatprep.subr.bf16.mxu0 0
        %9131 = vmatpush1.bf16.msra.mxu0 %v6807
        %9132 = vmatprep.subr.bf16.mxu0 0
        %9133 = vmatpush1.bf16.msra.mxu0 %v6808
        %9134 = vmatprep.subr.bf16.mxu0 0
        %9135 = vmatpush1.bf16.msra.mxu0 %v6809
        %9136 = vmatprep.subr.bf16.mxu0 0
        %9137 = vmatpush1.bf16.msra.mxu0 %v6810
        %9138 = vmatprep.subr.bf16.mxu0 0
        %9139 = vmatpush1.bf16.msra.mxu0 %v6811
        %9140 = vmatprep.mubr.bf16.mxu0 %v1556
        %9141 = vmatmul.mubr.bf16.gmra.mrb[0].mxu0 %v1555
        %v9142 = vpop.f32.mrb[0].mxu0
        %v9143 = vadd.f32 %v9103, %v9142
        %v9144 = vpop.f32.mrb[0].mxu0
        %v9145 = vpop.f32.mrb[0].mxu0
        %v9146 = vpop.f32.mrb[0].mxu0
        %9147 = vdwg.mxu0
        %9148 = vmatprep.subr.bf16.mxu0 0
        %9149 = vmatpush1.bf16.msra.mxu0 %v6812
        %9150 = vmatprep.subr.bf16.mxu0 0
        %9151 = vmatpush1.bf16.msra.mxu0 %v6813
        %9152 = vmatprep.subr.bf16.mxu0 0
        %9153 = vmatpush1.bf16.msra.mxu0 %v6814
        %9154 = vmatprep.subr.bf16.mxu0 0
        %9155 = vmatpush1.bf16.msra.mxu0 %v6815
        %9156 = vmatprep.subr.bf16.mxu0 0
        %9157 = vmatpush1.bf16.msra.mxu0 %v6816
        %9158 = vmatprep.subr.bf16.mxu0 0
        %9159 = vmatpush1.bf16.msra.mxu0 %v6817
        %9160 = vmatprep.subr.bf16.mxu0 0
        %9161 = vmatpush1.bf16.msra.mxu0 %v6818
        %9162 = vmatprep.subr.bf16.mxu0 0
        %9163 = vmatpush1.bf16.msra.mxu0 %v6819
        %9164 = vmatprep.subr.bf16.mxu0 0
        %9165 = vmatpush1.bf16.msra.mxu0 %v6820
        %9166 = vmatprep.subr.bf16.mxu0 0
        %9167 = vmatpush1.bf16.msra.mxu0 %v6821
        %9168 = vmatprep.subr.bf16.mxu0 0
        %9169 = vmatpush1.bf16.msra.mxu0 %v6822
        %9170 = vmatprep.subr.bf16.mxu0 0
        %9171 = vmatpush1.bf16.msra.mxu0 %v6823
        %9172 = vmatprep.subr.bf16.mxu0 0
        %9173 = vmatpush1.bf16.msra.mxu0 %v6824
        %9174 = vmatprep.subr.bf16.mxu0 0
        %9175 = vmatpush1.bf16.msra.mxu0 %v6825
        %9176 = vmatprep.subr.bf16.mxu0 0
        %9177 = vmatpush1.bf16.msra.mxu0 %v6826
        %9178 = vmatprep.subr.bf16.mxu0 0
        %9179 = vmatpush1.bf16.msra.mxu0 %v6827
        %9180 = vmatprep.mubr.bf16.mxu0 %v1558
        %9181 = vmatmul.mubr.bf16.gmra.mrb[0].mxu0 %v1557
        %v9182 = vpop.f32.mrb[0].mxu0
        %v9183 = vadd.f32 %v9143, %v9182
        %v9184 = vpop.f32.mrb[0].mxu0
        %v9185 = vpop.f32.mrb[0].mxu0
        %v9186 = vpop.f32.mrb[0].mxu0
        %9187 = vdwg.mxu0
        %9188 = vmatprep.subr.bf16.mxu0 0
        %9189 = vmatpush1.bf16.msra.mxu0 %v6828
        %9190 = vmatprep.subr.bf16.mxu0 0
        %9191 = vmatpush1.bf16.msra.mxu0 %v6829
        %9192 = vmatprep.subr.bf16.mxu0 0
        %9193 = vmatpush1.bf16.msra.mxu0 %v6830
        %9194 = vmatprep.subr.bf16.mxu0 0
        %9195 = vmatpush1.bf16.msra.mxu0 %v6831
        %9196 = vmatprep.subr.bf16.mxu0 0
        %9197 = vmatpush1.bf16.msra.mxu0 %v6832
        %9198 = vmatprep.subr.bf16.mxu0 0
        %9199 = vmatpush1.bf16.msra.mxu0 %v6833
        %9200 = vmatprep.subr.bf16.mxu0 0
        %9201 = vmatpush1.bf16.msra.mxu0 %v6834
        %9202 = vmatprep.subr.bf16.mxu0 0
        %9203 = vmatpush1.bf16.msra.mxu0 %v6835
        %9204 = vmatprep.subr.bf16.mxu0 0
        %9205 = vmatpush1.bf16.msra.mxu0 %v6836
        %9206 = vmatprep.subr.bf16.mxu0 0
        %9207 = vmatpush1.bf16.msra.mxu0 %v6837
        %9208 = vmatprep.subr.bf16.mxu0 0
        %9209 = vmatpush1.bf16.msra.mxu0 %v6838
        %9210 = vmatprep.subr.bf16.mxu0 0
        %9211 = vmatpush1.bf16.msra.mxu0 %v6839
        %9212 = vmatprep.subr.bf16.mxu0 0
        %9213 = vmatpush1.bf16.msra.mxu0 %v6840
        %9214 = vmatprep.subr.bf16.mxu0 0
        %9215 = vmatpush1.bf16.msra.mxu0 %v6841
        %9216 = vmatprep.subr.bf16.mxu0 0
        %9217 = vmatpush1.bf16.msra.mxu0 %v6842
        %9218 = vmatprep.subr.bf16.mxu0 0
        %9219 = vmatpush1.bf16.msra.mxu0 %v6843
        %9220 = vmatprep.mubr.bf16.mxu0 %v1560
        %9221 = vmatmul.mubr.bf16.gmra.mrb[0].mxu0 %v1559
        %v9222 = vpop.f32.mrb[0].mxu0
        %v9223 = vadd.f32 %v9183, %v9222
        %v9224 = vpop.f32.mrb[0].mxu0
        %v9225 = vpop.f32.mrb[0].mxu0
        %v9226 = vpop.f32.mrb[0].mxu0
        %9227 = vdwg.mxu0
        %9228 = vmatprep.subr.bf16.mxu0 0
        %9229 = vmatpush1.bf16.msra.mxu0 %v6844
        %9230 = vmatprep.subr.bf16.mxu0 0
        %9231 = vmatpush1.bf16.msra.mxu0 %v6845
        %9232 = vmatprep.subr.bf16.mxu0 0
        %9233 = vmatpush1.bf16.msra.mxu0 %v6846
        %9234 = vmatprep.subr.bf16.mxu0 0
        %9235 = vmatpush1.bf16.msra.mxu0 %v6847
        %9236 = vmatprep.subr.bf16.mxu0 0
        %9237 = vmatpush1.bf16.msra.mxu0 %v6848
        %9238 = vmatprep.subr.bf16.mxu0 0
        %9239 = vmatpush1.bf16.msra.mxu0 %v6849
        %9240 = vmatprep.subr.bf16.mxu0 0
        %9241 = vmatpush1.bf16.msra.mxu0 %v6850
        %9242 = vmatprep.subr.bf16.mxu0 0
        %9243 = vmatpush1.bf16.msra.mxu0 %v6851
        %9244 = vmatprep.subr.bf16.mxu0 0
        %9245 = vmatpush1.bf16.msra.mxu0 %v6852
        %9246 = vmatprep.subr.bf16.mxu0 0
        %9247 = vmatpush1.bf16.msra.mxu0 %v6853
        %9248 = vmatprep.subr.bf16.mxu0 0
        %9249 = vmatpush1.bf16.msra.mxu0 %v6854
        %9250 = vmatprep.subr.bf16.mxu0 0
        %9251 = vmatpush1.bf16.msra.mxu0 %v6855
        %9252 = vmatprep.subr.bf16.mxu0 0
        %9253 = vmatpush1.bf16.msra.mxu0 %v6856
        %9254 = vmatprep.subr.bf16.mxu0 0
        %9255 = vmatpush1.bf16.msra.mxu0 %v6857
        %9256 = vmatprep.subr.bf16.mxu0 0
        %9257 = vmatpush1.bf16.msra.mxu0 %v6858
        %9258 = vmatprep.subr.bf16.mxu0 0
        %9259 = vmatpush1.bf16.msra.mxu0 %v6859
        %9260 = vmatprep.mubr.bf16.mxu0 %v1562
        %9261 = vmatmul.mubr.bf16.gmra.mrb[0].mxu0 %v1561
        %v9262 = vpop.f32.mrb[0].mxu0
        %v9263 = vadd.f32 %v9223, %v9262
        %v9264 = vpop.f32.mrb[0].mxu0
        %v9265 = vpop.f32.mrb[0].mxu0
        %v9266 = vpop.f32.mrb[0].mxu0
        %9267 = vdwg.mxu0
        %9268 = vmatprep.subr.bf16.mxu0 0
        %9269 = vmatpush1.bf16.msra.mxu0 %v6860
        %9270 = vmatprep.subr.bf16.mxu0 0
        %9271 = vmatpush1.bf16.msra.mxu0 %v6861
        %9272 = vmatprep.subr.bf16.mxu0 0
        %9273 = vmatpush1.bf16.msra.mxu0 %v6862
        %9274 = vmatprep.subr.bf16.mxu0 0
        %9275 = vmatpush1.bf16.msra.mxu0 %v6863
        %9276 = vmatprep.subr.bf16.mxu0 0
        %9277 = vmatpush1.bf16.msra.mxu0 %v6864
        %9278 = vmatprep.subr.bf16.mxu0 0
        %9279 = vmatpush1.bf16.msra.mxu0 %v6865
        %9280 = vmatprep.subr.bf16.mxu0 0
        %9281 = vmatpush1.bf16.msra.mxu0 %v6866
        %9282 = vmatprep.subr.bf16.mxu0 0
        %9283 = vmatpush1.bf16.msra.mxu0 %v6867
        %9284 = vmatprep.subr.bf16.mxu0 0
        %9285 = vmatpush1.bf16.msra.mxu0 %v6868
        %9286 = vmatprep.subr.bf16.mxu0 0
        %9287 = vmatpush1.bf16.msra.mxu0 %v6869
        %9288 = vmatprep.subr.bf16.mxu0 0
        %9289 = vmatpush1.bf16.msra.mxu0 %v6870
        %9290 = vmatprep.subr.bf16.mxu0 0
        %9291 = vmatpush1.bf16.msra.mxu0 %v6871
        %9292 = vmatprep.subr.bf16.mxu0 0
        %9293 = vmatpush1.bf16.msra.mxu0 %v6872
        %9294 = vmatprep.subr.bf16.mxu0 0
        %9295 = vmatpush1.bf16.msra.mxu0 %v6873
        %9296 = vmatprep.subr.bf16.mxu0 0
        %9297 = vmatpush1.bf16.msra.mxu0 %v6874
        %9298 = vmatprep.subr.bf16.mxu0 0
        %9299 = vmatpush1.bf16.msra.mxu0 %v6875
        %9300 = vmatprep.mubr.bf16.mxu0 %v1564
        %9301 = vmatmul.mubr.bf16.gmra.mrb[0].mxu0 %v1563
        %v9302 = vpop.f32.mrb[0].mxu0
        %v9303 = vadd.f32 %v9263, %v9302
        %v9304 = vpop.f32.mrb[0].mxu0
        %v9305 = vpop.f32.mrb[0].mxu0
        %v9306 = vpop.f32.mrb[0].mxu0
        %9307 = vdwg.mxu0
        %9308 = vmatprep.subr.bf16.mxu0 0
        %9309 = vmatpush1.bf16.msra.mxu0 %v6876
        %9310 = vmatprep.subr.bf16.mxu0 0
        %9311 = vmatpush1.bf16.msra.mxu0 %v6877
        %9312 = vmatprep.subr.bf16.mxu0 0
        %9313 = vmatpush1.bf16.msra.mxu0 %v6878
        %9314 = vmatprep.subr.bf16.mxu0 0
        %9315 = vmatpush1.bf16.msra.mxu0 %v6879
        %9316 = vmatprep.subr.bf16.mxu0 0
        %9317 = vmatpush1.bf16.msra.mxu0 %v6880
        %9318 = vmatprep.subr.bf16.mxu0 0
        %9319 = vmatpush1.bf16.msra.mxu0 %v6881
        %9320 = vmatprep.subr.bf16.mxu0 0
        %9321 = vmatpush1.bf16.msra.mxu0 %v6882
        %9322 = vmatprep.subr.bf16.mxu0 0
        %9323 = vmatpush1.bf16.msra.mxu0 %v6883
        %9324 = vmatprep.subr.bf16.mxu0 0
        %9325 = vmatpush1.bf16.msra.mxu0 %v6884
        %9326 = vmatprep.subr.bf16.mxu0 0
        %9327 = vmatpush1.bf16.msra.mxu0 %v6885
        %9328 = vmatprep.subr.bf16.mxu0 0
        %9329 = vmatpush1.bf16.msra.mxu0 %v6886
        %9330 = vmatprep.subr.bf16.mxu0 0
        %9331 = vmatpush1.bf16.msra.mxu0 %v6887
        %9332 = vmatprep.subr.bf16.mxu0 0
        %9333 = vmatpush1.bf16.msra.mxu0 %v6888
        %9334 = vmatprep.subr.bf16.mxu0 0
        %9335 = vmatpush1.bf16.msra.mxu0 %v6889
        %9336 = vmatprep.subr.bf16.mxu0 0
        %9337 = vmatpush1.bf16.msra.mxu0 %v6890
        %9338 = vmatprep.subr.bf16.mxu0 0
        %9339 = vmatpush1.bf16.msra.mxu0 %v6891
        %9340 = vmatprep.mubr.bf16.mxu0 %v1566
        %9341 = vmatmul.mubr.bf16.gmra.mrb[0].mxu0 %v1565
        %v9342 = vpop.f32.mrb[0].mxu0
        %v9343 = vadd.f32 %v9303, %v9342
        %v9344 = vpop.f32.mrb[0].mxu0
        %v9345 = vpop.f32.mrb[0].mxu0
        %v9346 = vpop.f32.mrb[0].mxu0
        %9347 = vdwg.mxu0
        %9348 = vmatprep.subr.bf16.mxu0 0
        %9349 = vmatpush1.bf16.msra.mxu0 %v6892
        %9350 = vmatprep.subr.bf16.mxu0 0
        %9351 = vmatpush1.bf16.msra.mxu0 %v6893
        %9352 = vmatprep.subr.bf16.mxu0 0
        %9353 = vmatpush1.bf16.msra.mxu0 %v6894
        %9354 = vmatprep.subr.bf16.mxu0 0
        %9355 = vmatpush1.bf16.msra.mxu0 %v6895
        %9356 = vmatprep.subr.bf16.mxu0 0
        %9357 = vmatpush1.bf16.msra.mxu0 %v6896
        %9358 = vmatprep.subr.bf16.mxu0 0
        %9359 = vmatpush1.bf16.msra.mxu0 %v6897
        %9360 = vmatprep.subr.bf16.mxu0 0
        %9361 = vmatpush1.bf16.msra.mxu0 %v6898
        %9362 = vmatprep.subr.bf16.mxu0 0
        %9363 = vmatpush1.bf16.msra.mxu0 %v6899
        %9364 = vmatprep.subr.bf16.mxu0 0
        %9365 = vmatpush1.bf16.msra.mxu0 %v6900
        %9366 = vmatprep.subr.bf16.mxu0 0
        %9367 = vmatpush1.bf16.msra.mxu0 %v6901
        %9368 = vmatprep.subr.bf16.mxu0 0
        %9369 = vmatpush1.bf16.msra.mxu0 %v6902
        %9370 = vmatprep.subr.bf16.mxu0 0
        %9371 = vmatpush1.bf16.msra.mxu0 %v6903
        %9372 = vmatprep.subr.bf16.mxu0 0
        %9373 = vmatpush1.bf16.msra.mxu0 %v6904
        %9374 = vmatprep.subr.bf16.mxu0 0
        %9375 = vmatpush1.bf16.msra.mxu0 %v6905
        %9376 = vmatprep.subr.bf16.mxu0 0
        %9377 = vmatpush1.bf16.msra.mxu0 %v6906
        %9378 = vmatprep.subr.bf16.mxu0 0
        %9379 = vmatpush1.bf16.msra.mxu0 %v6907
        %9380 = vmatprep.mubr.bf16.mxu0 %v1568
        %9381 = vmatmul.mubr.bf16.gmra.mrb[0].mxu0 %v1567
        %v9382 = vpop.f32.mrb[0].mxu0
        %v9383 = vadd.f32 %v9343, %v9382
        %v9384 = vpop.f32.mrb[0].mxu0
        %v9385 = vpop.f32.mrb[0].mxu0
        %v9386 = vpop.f32.mrb[0].mxu0
        %9387 = vdwg.mxu0
        %9388 = vmatprep.subr.bf16.mxu0 0
        %9389 = vmatpush1.bf16.msra.mxu0 %v6908
        %9390 = vmatprep.subr.bf16.mxu0 0
        %9391 = vmatpush1.bf16.msra.mxu0 %v6909
        %9392 = vmatprep.subr.bf16.mxu0 0
        %9393 = vmatpush1.bf16.msra.mxu0 %v6910
        %9394 = vmatprep.subr.bf16.mxu0 0
        %9395 = vmatpush1.bf16.msra.mxu0 %v6911
        %9396 = vmatprep.subr.bf16.mxu0 0
        %9397 = vmatpush1.bf16.msra.mxu0 %v6912
        %9398 = vmatprep.subr.bf16.mxu0 0
        %9399 = vmatpush1.bf16.msra.mxu0 %v6913
        %9400 = vmatprep.subr.bf16.mxu0 0
        %9401 = vmatpush1.bf16.msra.mxu0 %v6914
        %9402 = vmatprep.subr.bf16.mxu0 0
        %9403 = vmatpush1.bf16.msra.mxu0 %v6915
        %9404 = vmatprep.subr.bf16.mxu0 0
        %9405 = vmatpush1.bf16.msra.mxu0 %v6916
        %9406 = vmatprep.subr.bf16.mxu0 0
        %9407 = vmatpush1.bf16.msra.mxu0 %v6917
        %9408 = vmatprep.subr.bf16.mxu0 0
        %9409 = vmatpush1.bf16.msra.mxu0 %v6918
        %9410 = vmatprep.subr.bf16.mxu0 0
        %9411 = vmatpush1.bf16.msra.mxu0 %v6919
        %9412 = vmatprep.subr.bf16.mxu0 0
        %9413 = vmatpush1.bf16.msra.mxu0 %v6920
        %9414 = vmatprep.subr.bf16.mxu0 0
        %9415 = vmatpush1.bf16.msra.mxu0 %v6921
        %9416 = vmatprep.subr.bf16.mxu0 0
        %9417 = vmatpush1.bf16.msra.mxu0 %v6922
        %9418 = vmatprep.subr.bf16.mxu0 0
        %9419 = vmatpush1.bf16.msra.mxu0 %v6923
        %9420 = vmatprep.mubr.bf16.mxu0 %v1570
        %9421 = vmatmul.mubr.bf16.gmra.mrb[0].mxu0 %v1569
        %v9422 = vpop.f32.mrb[0].mxu0
        %v9423 = vadd.f32 %v9383, %v9422
        %v9424 = vpop.f32.mrb[0].mxu0
        %v9425 = vpop.f32.mrb[0].mxu0
        %v9426 = vpop.f32.mrb[0].mxu0
        %9427 = vdwg.mxu0
        %9428 = vmatprep.subr.bf16.mxu0 0
        %9429 = vmatpush1.bf16.msra.mxu0 %v6924
        %9430 = vmatprep.subr.bf16.mxu0 0
        %9431 = vmatpush1.bf16.msra.mxu0 %v6925
        %9432 = vmatprep.subr.bf16.mxu0 0
        %9433 = vmatpush1.bf16.msra.mxu0 %v6926
        %9434 = vmatprep.subr.bf16.mxu0 0
        %9435 = vmatpush1.bf16.msra.mxu0 %v6927
        %9436 = vmatprep.subr.bf16.mxu0 0
        %9437 = vmatpush1.bf16.msra.mxu0 %v6928
        %9438 = vmatprep.subr.bf16.mxu0 0
        %9439 = vmatpush1.bf16.msra.mxu0 %v6929
        %9440 = vmatprep.subr.bf16.mxu0 0
        %9441 = vmatpush1.bf16.msra.mxu0 %v6930
        %9442 = vmatprep.subr.bf16.mxu0 0
        %9443 = vmatpush1.bf16.msra.mxu0 %v6931
        %9444 = vmatprep.subr.bf16.mxu0 0
        %9445 = vmatpush1.bf16.msra.mxu0 %v6932
        %9446 = vmatprep.subr.bf16.mxu0 0
        %9447 = vmatpush1.bf16.msra.mxu0 %v6933
        %9448 = vmatprep.subr.bf16.mxu0 0
        %9449 = vmatpush1.bf16.msra.mxu0 %v6934
        %9450 = vmatprep.subr.bf16.mxu0 0
        %9451 = vmatpush1.bf16.msra.mxu0 %v6935
        %9452 = vmatprep.subr.bf16.mxu0 0
        %9453 = vmatpush1.bf16.msra.mxu0 %v6936
        %9454 = vmatprep.subr.bf16.mxu0 0
        %9455 = vmatpush1.bf16.msra.mxu0 %v6937
        %9456 = vmatprep.subr.bf16.mxu0 0
        %9457 = vmatpush1.bf16.msra.mxu0 %v6938
        %9458 = vmatprep.subr.bf16.mxu0 0
        %9459 = vmatpush1.bf16.msra.mxu0 %v6939
        %9460 = vmatprep.mubr.bf16.mxu0 %v1572
        %9461 = vmatmul.mubr.bf16.gmra.mrb[0].mxu0 %v1571
        %v9462 = vpop.f32.mrb[0].mxu0
        %v9463 = vadd.f32 %v9423, %v9462
        %v9464 = vpop.f32.mrb[0].mxu0
        %v9465 = vpop.f32.mrb[0].mxu0
        %v9466 = vpop.f32.mrb[0].mxu0
        %9467 = vdwg.mxu0
        %9468 = vmatprep.subr.bf16.mxu0 0
        %9469 = vmatpush1.bf16.msra.mxu0 %v6940
        %9470 = vmatprep.subr.bf16.mxu0 0
        %9471 = vmatpush1.bf16.msra.mxu0 %v6941
        %9472 = vmatprep.subr.bf16.mxu0 0
        %9473 = vmatpush1.bf16.msra.mxu0 %v6942
        %9474 = vmatprep.subr.bf16.mxu0 0
        %9475 = vmatpush1.bf16.msra.mxu0 %v6943
        %9476 = vmatprep.subr.bf16.mxu0 0
        %9477 = vmatpush1.bf16.msra.mxu0 %v6944
        %9478 = vmatprep.subr.bf16.mxu0 0
        %9479 = vmatpush1.bf16.msra.mxu0 %v6945
        %9480 = vmatprep.subr.bf16.mxu0 0
        %9481 = vmatpush1.bf16.msra.mxu0 %v6946
        %9482 = vmatprep.subr.bf16.mxu0 0
        %9483 = vmatpush1.bf16.msra.mxu0 %v6947
        %9484 = vmatprep.subr.bf16.mxu0 0
        %9485 = vmatpush1.bf16.msra.mxu0 %v6948
        %9486 = vmatprep.subr.bf16.mxu0 0
        %9487 = vmatpush1.bf16.msra.mxu0 %v6949
        %9488 = vmatprep.subr.bf16.mxu0 0
        %9489 = vmatpush1.bf16.msra.mxu0 %v6950
        %9490 = vmatprep.subr.bf16.mxu0 0
        %9491 = vmatpush1.bf16.msra.mxu0 %v6951
        %9492 = vmatprep.subr.bf16.mxu0 0
        %9493 = vmatpush1.bf16.msra.mxu0 %v6952
        %9494 = vmatprep.subr.bf16.mxu0 0
        %9495 = vmatpush1.bf16.msra.mxu0 %v6953
        %9496 = vmatprep.subr.bf16.mxu0 0
        %9497 = vmatpush1.bf16.msra.mxu0 %v6954
        %9498 = vmatprep.subr.bf16.mxu0 0
        %9499 = vmatpush1.bf16.msra.mxu0 %v6955
        %9500 = vmatprep.mubr.bf16.mxu0 %v1574
        %9501 = vmatmul.mubr.bf16.gmra.mrb[0].mxu0 %v1573
        %v9502 = vpop.f32.mrb[0].mxu0
        %v9503 = vadd.f32 %v9463, %v9502
        %v9504 = vpop.f32.mrb[0].mxu0
        %v9505 = vpop.f32.mrb[0].mxu0
        %v9506 = vpop.f32.mrb[0].mxu0
        %9507 = vdwg.mxu0
        %9508 = vmatprep.subr.bf16.mxu0 0
        %9509 = vmatpush1.bf16.msra.mxu0 %v6956
        %9510 = vmatprep.subr.bf16.mxu0 0
        %9511 = vmatpush1.bf16.msra.mxu0 %v6957
        %9512 = vmatprep.subr.bf16.mxu0 0
        %9513 = vmatpush1.bf16.msra.mxu0 %v6958
        %9514 = vmatprep.subr.bf16.mxu0 0
        %9515 = vmatpush1.bf16.msra.mxu0 %v6959
        %9516 = vmatprep.subr.bf16.mxu0 0
        %9517 = vmatpush1.bf16.msra.mxu0 %v6960
        %9518 = vmatprep.subr.bf16.mxu0 0
        %9519 = vmatpush1.bf16.msra.mxu0 %v6961
        %9520 = vmatprep.subr.bf16.mxu0 0
        %9521 = vmatpush1.bf16.msra.mxu0 %v6962
        %9522 = vmatprep.subr.bf16.mxu0 0
        %9523 = vmatpush1.bf16.msra.mxu0 %v6963
        %9524 = vmatprep.subr.bf16.mxu0 0
        %9525 = vmatpush1.bf16.msra.mxu0 %v6964
        %9526 = vmatprep.subr.bf16.mxu0 0
        %9527 = vmatpush1.bf16.msra.mxu0 %v6965
        %9528 = vmatprep.subr.bf16.mxu0 0
        %9529 = vmatpush1.bf16.msra.mxu0 %v6966
        %9530 = vmatprep.subr.bf16.mxu0 0
        %9531 = vmatpush1.bf16.msra.mxu0 %v6967
        %9532 = vmatprep.subr.bf16.mxu0 0
        %9533 = vmatpush1.bf16.msra.mxu0 %v6968
        %9534 = vmatprep.subr.bf16.mxu0 0
        %9535 = vmatpush1.bf16.msra.mxu0 %v6969
        %9536 = vmatprep.subr.bf16.mxu0 0
        %9537 = vmatpush1.bf16.msra.mxu0 %v6970
        %9538 = vmatprep.subr.bf16.mxu0 0
        %9539 = vmatpush1.bf16.msra.mxu0 %v6971
        %9540 = vmatprep.mubr.bf16.mxu0 %v1576
        %9541 = vmatmul.mubr.bf16.gmra.mrb[0].mxu0 %v1575
        %v9542 = vpop.f32.mrb[0].mxu0
        %v9543 = vadd.f32 %v9503, %v9542
        %v9544 = vpop.f32.mrb[0].mxu0
        %v9545 = vpop.f32.mrb[0].mxu0
        %v9546 = vpop.f32.mrb[0].mxu0
        %9547 = vdwg.mxu0
        %9548 = vmatprep.subr.bf16.mxu0 0
        %9549 = vmatpush1.bf16.msra.mxu0 %v6972
        %9550 = vmatprep.subr.bf16.mxu0 0
        %9551 = vmatpush1.bf16.msra.mxu0 %v6973
        %9552 = vmatprep.subr.bf16.mxu0 0
        %9553 = vmatpush1.bf16.msra.mxu0 %v6974
        %9554 = vmatprep.subr.bf16.mxu0 0
        %9555 = vmatpush1.bf16.msra.mxu0 %v6975
        %9556 = vmatprep.subr.bf16.mxu0 0
        %9557 = vmatpush1.bf16.msra.mxu0 %v6976
        %9558 = vmatprep.subr.bf16.mxu0 0
        %9559 = vmatpush1.bf16.msra.mxu0 %v6977
        %9560 = vmatprep.subr.bf16.mxu0 0
        %9561 = vmatpush1.bf16.msra.mxu0 %v6978
        %9562 = vmatprep.subr.bf16.mxu0 0
        %9563 = vmatpush1.bf16.msra.mxu0 %v6979
        %9564 = vmatprep.subr.bf16.mxu0 0
        %9565 = vmatpush1.bf16.msra.mxu0 %v6980
        %9566 = vmatprep.subr.bf16.mxu0 0
        %9567 = vmatpush1.bf16.msra.mxu0 %v6981
        %9568 = vmatprep.subr.bf16.mxu0 0
        %9569 = vmatpush1.bf16.msra.mxu0 %v6982
        %9570 = vmatprep.subr.bf16.mxu0 0
        %9571 = vmatpush1.bf16.msra.mxu0 %v6983
        %9572 = vmatprep.subr.bf16.mxu0 0
        %9573 = vmatpush1.bf16.msra.mxu0 %v6984
        %9574 = vmatprep.subr.bf16.mxu0 0
        %9575 = vmatpush1.bf16.msra.mxu0 %v6985
        %9576 = vmatprep.subr.bf16.mxu0 0
        %9577 = vmatpush1.bf16.msra.mxu0 %v6986
        %9578 = vmatprep.subr.bf16.mxu0 0
        %9579 = vmatpush1.bf16.msra.mxu0 %v6987
        %9580 = vmatprep.mubr.bf16.mxu0 %v1578
        %9581 = vmatmul.mubr.bf16.gmra.mrb[0].mxu0 %v1577
        %v9582 = vpop.f32.mrb[0].mxu0
        %v9583 = vadd.f32 %v9543, %v9582
        %v9584 = vpop.f32.mrb[0].mxu0
        %v9585 = vpop.f32.mrb[0].mxu0
        %v9586 = vpop.f32.mrb[0].mxu0
        %9587 = vdwg.mxu0
        %9588 = vmatprep.subr.bf16.mxu0 0
        %9589 = vmatpush1.bf16.msra.mxu0 %v6988
        %9590 = vmatprep.subr.bf16.mxu0 0
        %9591 = vmatpush1.bf16.msra.mxu0 %v6989
        %9592 = vmatprep.subr.bf16.mxu0 0
        %9593 = vmatpush1.bf16.msra.mxu0 %v6990
        %9594 = vmatprep.subr.bf16.mxu0 0
        %9595 = vmatpush1.bf16.msra.mxu0 %v6991
        %9596 = vmatprep.subr.bf16.mxu0 0
        %9597 = vmatpush1.bf16.msra.mxu0 %v6992
        %9598 = vmatprep.subr.bf16.mxu0 0
        %9599 = vmatpush1.bf16.msra.mxu0 %v6993
        %9600 = vmatprep.subr.bf16.mxu0 0
        %9601 = vmatpush1.bf16.msra.mxu0 %v6994
        %9602 = vmatprep.subr.bf16.mxu0 0
        %9603 = vmatpush1.bf16.msra.mxu0 %v6995
        %9604 = vmatprep.subr.bf16.mxu0 0
        %9605 = vmatpush1.bf16.msra.mxu0 %v6996
        %9606 = vmatprep.subr.bf16.mxu0 0
        %9607 = vmatpush1.bf16.msra.mxu0 %v6997
        %9608 = vmatprep.subr.bf16.mxu0 0
        %9609 = vmatpush1.bf16.msra.mxu0 %v6998
        %9610 = vmatprep.subr.bf16.mxu0 0
        %9611 = vmatpush1.bf16.msra.mxu0 %v6999
        %9612 = vmatprep.subr.bf16.mxu0 0
        %9613 = vmatpush1.bf16.msra.mxu0 %v7000
        %9614 = vmatprep.subr.bf16.mxu0 0
        %9615 = vmatpush1.bf16.msra.mxu0 %v7001
        %9616 = vmatprep.subr.bf16.mxu0 0
        %9617 = vmatpush1.bf16.msra.mxu0 %v7002
        %9618 = vmatprep.subr.bf16.mxu0 0
        %9619 = vmatpush1.bf16.msra.mxu0 %v7003
        %9620 = vmatprep.mubr.bf16.mxu0 %v1580
        %9621 = vmatmul.mubr.bf16.gmra.mrb[0].mxu0 %v1579
        %v9622 = vpop.f32.mrb[0].mxu0
        %v9623 = vadd.f32 %v9583, %v9622
        %v9624 = vpop.f32.mrb[0].mxu0
        %v9625 = vpop.f32.mrb[0].mxu0
        %v9626 = vpop.f32.mrb[0].mxu0
        %9627 = vdwg.mxu0
        %9628 = vmatprep.subr.bf16.mxu0 0
        %9629 = vmatpush1.bf16.msra.mxu0 %v7004
        %9630 = vmatprep.subr.bf16.mxu0 0
        %9631 = vmatpush1.bf16.msra.mxu0 %v7005
        %9632 = vmatprep.subr.bf16.mxu0 0
        %9633 = vmatpush1.bf16.msra.mxu0 %v7006
        %9634 = vmatprep.subr.bf16.mxu0 0
        %9635 = vmatpush1.bf16.msra.mxu0 %v7007
        %9636 = vmatprep.subr.bf16.mxu0 0
        %9637 = vmatpush1.bf16.msra.mxu0 %v7008
        %9638 = vmatprep.subr.bf16.mxu0 0
        %9639 = vmatpush1.bf16.msra.mxu0 %v7009
        %9640 = vmatprep.subr.bf16.mxu0 0
        %9641 = vmatpush1.bf16.msra.mxu0 %v7010
        %9642 = vmatprep.subr.bf16.mxu0 0
        %9643 = vmatpush1.bf16.msra.mxu0 %v7011
        %9644 = vmatprep.subr.bf16.mxu0 0
        %9645 = vmatpush1.bf16.msra.mxu0 %v7012
        %9646 = vmatprep.subr.bf16.mxu0 0
        %9647 = vmatpush1.bf16.msra.mxu0 %v7013
        %9648 = vmatprep.subr.bf16.mxu0 0
        %9649 = vmatpush1.bf16.msra.mxu0 %v7014
        %9650 = vmatprep.subr.bf16.mxu0 0
        %9651 = vmatpush1.bf16.msra.mxu0 %v7015
        %9652 = vmatprep.subr.bf16.mxu0 0
        %9653 = vmatpush1.bf16.msra.mxu0 %v7016
        %9654 = vmatprep.subr.bf16.mxu0 0
        %9655 = vmatpush1.bf16.msra.mxu0 %v7017
        %9656 = vmatprep.subr.bf16.mxu0 0
        %9657 = vmatpush1.bf16.msra.mxu0 %v7018
        %9658 = vmatprep.subr.bf16.mxu0 0
        %9659 = vmatpush1.bf16.msra.mxu0 %v7019
        %9660 = vmatprep.mubr.bf16.mxu0 %v1582
        %9661 = vmatmul.mubr.bf16.gmra.mrb[0].mxu0 %v1581
        %v9662 = vpop.f32.mrb[0].mxu0
        %v9663 = vadd.f32 %v9623, %v9662
        %v9664 = vpop.f32.mrb[0].mxu0
        %v9665 = vpop.f32.mrb[0].mxu0
        %v9666 = vpop.f32.mrb[0].mxu0
        %9667 = vdwg.mxu0
        %9668 = vmatprep.subr.bf16.mxu0 0
        %9669 = vmatpush1.bf16.msra.mxu0 %v7020
        %9670 = vmatprep.subr.bf16.mxu0 0
        %9671 = vmatpush1.bf16.msra.mxu0 %v7021
        %9672 = vmatprep.subr.bf16.mxu0 0
        %9673 = vmatpush1.bf16.msra.mxu0 %v7022
        %9674 = vmatprep.subr.bf16.mxu0 0
        %9675 = vmatpush1.bf16.msra.mxu0 %v7023
        %9676 = vmatprep.subr.bf16.mxu0 0
        %9677 = vmatpush1.bf16.msra.mxu0 %v7024
        %9678 = vmatprep.subr.bf16.mxu0 0
        %9679 = vmatpush1.bf16.msra.mxu0 %v7025
        %9680 = vmatprep.subr.bf16.mxu0 0
        %9681 = vmatpush1.bf16.msra.mxu0 %v7026
        %9682 = vmatprep.subr.bf16.mxu0 0
        %9683 = vmatpush1.bf16.msra.mxu0 %v7027
        %9684 = vmatprep.subr.bf16.mxu0 0
        %9685 = vmatpush1.bf16.msra.mxu0 %v7028
        %9686 = vmatprep.subr.bf16.mxu0 0
        %9687 = vmatpush1.bf16.msra.mxu0 %v7029
        %9688 = vmatprep.subr.bf16.mxu0 0
        %9689 = vmatpush1.bf16.msra.mxu0 %v7030
        %9690 = vmatprep.subr.bf16.mxu0 0
        %9691 = vmatpush1.bf16.msra.mxu0 %v7031
        %9692 = vmatprep.subr.bf16.mxu0 0
        %9693 = vmatpush1.bf16.msra.mxu0 %v7032
        %9694 = vmatprep.subr.bf16.mxu0 0
        %9695 = vmatpush1.bf16.msra.mxu0 %v7033
        %9696 = vmatprep.subr.bf16.mxu0 0
        %9697 = vmatpush1.bf16.msra.mxu0 %v7034
        %9698 = vmatprep.subr.bf16.mxu0 0
        %9699 = vmatpush1.bf16.msra.mxu0 %v7035
        %9700 = vmatprep.mubr.bf16.mxu0 %v1584
        %9701 = vmatmul.mubr.bf16.gmra.mrb[0].mxu0 %v1583
        %v9702 = vpop.f32.mrb[0].mxu0
        %v9703 = vadd.f32 %v9663, %v9702
        %v9704 = vpop.f32.mrb[0].mxu0
        %v9705 = vpop.f32.mrb[0].mxu0
        %v9706 = vpop.f32.mrb[0].mxu0
        %9707 = vdwg.mxu0
        %9708 = vmatprep.subr.bf16.mxu0 0
        %9709 = vmatpush1.bf16.msra.mxu0 %v7036
        %9710 = vmatprep.subr.bf16.mxu0 0
        %9711 = vmatpush1.bf16.msra.mxu0 %v7037
        %9712 = vmatprep.subr.bf16.mxu0 0
        %9713 = vmatpush1.bf16.msra.mxu0 %v7038
        %9714 = vmatprep.subr.bf16.mxu0 0
        %9715 = vmatpush1.bf16.msra.mxu0 %v7039
        %9716 = vmatprep.subr.bf16.mxu0 0
        %9717 = vmatpush1.bf16.msra.mxu0 %v7040
        %9718 = vmatprep.subr.bf16.mxu0 0
        %9719 = vmatpush1.bf16.msra.mxu0 %v7041
        %9720 = vmatprep.subr.bf16.mxu0 0
        %9721 = vmatpush1.bf16.msra.mxu0 %v7042
        %9722 = vmatprep.subr.bf16.mxu0 0
        %9723 = vmatpush1.bf16.msra.mxu0 %v7043
        %9724 = vmatprep.subr.bf16.mxu0 0
        %9725 = vmatpush1.bf16.msra.mxu0 %v7044
        %9726 = vmatprep.subr.bf16.mxu0 0
        %9727 = vmatpush1.bf16.msra.mxu0 %v7045
        %9728 = vmatprep.subr.bf16.mxu0 0
        %9729 = vmatpush1.bf16.msra.mxu0 %v7046
        %9730 = vmatprep.subr.bf16.mxu0 0
        %9731 = vmatpush1.bf16.msra.mxu0 %v7047
        %9732 = vmatprep.subr.bf16.mxu0 0
        %9733 = vmatpush1.bf16.msra.mxu0 %v7048
        %9734 = vmatprep.subr.bf16.mxu0 0
        %9735 = vmatpush1.bf16.msra.mxu0 %v7049
        %9736 = vmatprep.subr.bf16.mxu0 0
        %9737 = vmatpush1.bf16.msra.mxu0 %v7050
        %9738 = vmatprep.subr.bf16.mxu0 0
        %9739 = vmatpush1.bf16.msra.mxu0 %v7051
        %9740 = vmatprep.mubr.bf16.mxu0 %v1586
        %9741 = vmatmul.mubr.bf16.gmra.mrb[0].mxu0 %v1585
        %v9742 = vpop.f32.mrb[0].mxu0
        %v9743 = vadd.f32 %v9703, %v9742
        %v9744 = vpop.f32.mrb[0].mxu0
        %v9745 = vpop.f32.mrb[0].mxu0
        %v9746 = vpop.f32.mrb[0].mxu0
        %9747 = vdwg.mxu0
        %9748 = vmatprep.subr.bf16.mxu0 0
        %9749 = vmatpush1.bf16.msra.mxu0 %v7052
        %9750 = vmatprep.subr.bf16.mxu0 0
        %9751 = vmatpush1.bf16.msra.mxu0 %v7053
        %9752 = vmatprep.subr.bf16.mxu0 0
        %9753 = vmatpush1.bf16.msra.mxu0 %v7054
        %9754 = vmatprep.subr.bf16.mxu0 0
        %9755 = vmatpush1.bf16.msra.mxu0 %v7055
        %9756 = vmatprep.subr.bf16.mxu0 0
        %9757 = vmatpush1.bf16.msra.mxu0 %v7056
        %9758 = vmatprep.subr.bf16.mxu0 0
        %9759 = vmatpush1.bf16.msra.mxu0 %v7057
        %9760 = vmatprep.subr.bf16.mxu0 0
        %9761 = vmatpush1.bf16.msra.mxu0 %v7058
        %9762 = vmatprep.subr.bf16.mxu0 0
        %9763 = vmatpush1.bf16.msra.mxu0 %v7059
        %9764 = vmatprep.subr.bf16.mxu0 0
        %9765 = vmatpush1.bf16.msra.mxu0 %v7060
        %9766 = vmatprep.subr.bf16.mxu0 0
        %9767 = vmatpush1.bf16.msra.mxu0 %v7061
        %9768 = vmatprep.subr.bf16.mxu0 0
        %9769 = vmatpush1.bf16.msra.mxu0 %v7062
        %9770 = vmatprep.subr.bf16.mxu0 0
        %9771 = vmatpush1.bf16.msra.mxu0 %v7063
        %9772 = vmatprep.subr.bf16.mxu0 0
        %9773 = vmatpush1.bf16.msra.mxu0 %v7064
        %9774 = vmatprep.subr.bf16.mxu0 0
        %9775 = vmatpush1.bf16.msra.mxu0 %v7065
        %9776 = vmatprep.subr.bf16.mxu0 0
        %9777 = vmatpush1.bf16.msra.mxu0 %v7066
        %9778 = vmatprep.subr.bf16.mxu0 0
        %9779 = vmatpush1.bf16.msra.mxu0 %v7067
        %9780 = vmatprep.mubr.bf16.mxu0 %v1588
        %9781 = vmatmul.mubr.bf16.gmra.mrb[0].mxu0 %v1587
        %v9782 = vpop.f32.mrb[0].mxu0
        %v9783 = vadd.f32 %v9743, %v9782
        %v9784 = vpop.f32.mrb[0].mxu0
        %v9785 = vpop.f32.mrb[0].mxu0
        %v9786 = vpop.f32.mrb[0].mxu0
        %9787 = vdwg.mxu0
        %9788 = vmatprep.subr.bf16.mxu0 0
        %9789 = vmatpush1.bf16.msra.mxu0 %v7068
        %9790 = vmatprep.subr.bf16.mxu0 0
        %9791 = vmatpush1.bf16.msra.mxu0 %v7069
        %9792 = vmatprep.subr.bf16.mxu0 0
        %9793 = vmatpush1.bf16.msra.mxu0 %v7070
        %9794 = vmatprep.subr.bf16.mxu0 0
        %9795 = vmatpush1.bf16.msra.mxu0 %v7071
        %9796 = vmatprep.subr.bf16.mxu0 0
        %9797 = vmatpush1.bf16.msra.mxu0 %v7072
        %9798 = vmatprep.subr.bf16.mxu0 0
        %9799 = vmatpush1.bf16.msra.mxu0 %v7073
        %9800 = vmatprep.subr.bf16.mxu0 0
        %9801 = vmatpush1.bf16.msra.mxu0 %v7074
        %9802 = vmatprep.subr.bf16.mxu0 0
        %9803 = vmatpush1.bf16.msra.mxu0 %v7075
        %9804 = vmatprep.subr.bf16.mxu0 0
        %9805 = vmatpush1.bf16.msra.mxu0 %v7076
        %9806 = vmatprep.subr.bf16.mxu0 0
        %9807 = vmatpush1.bf16.msra.mxu0 %v7077
        %9808 = vmatprep.subr.bf16.mxu0 0
        %9809 = vmatpush1.bf16.msra.mxu0 %v7078
        %9810 = vmatprep.subr.bf16.mxu0 0
        %9811 = vmatpush1.bf16.msra.mxu0 %v7079
        %9812 = vmatprep.subr.bf16.mxu0 0
        %9813 = vmatpush1.bf16.msra.mxu0 %v7080
        %9814 = vmatprep.subr.bf16.mxu0 0
        %9815 = vmatpush1.bf16.msra.mxu0 %v7081
        %9816 = vmatprep.subr.bf16.mxu0 0
        %9817 = vmatpush1.bf16.msra.mxu0 %v7082
        %9818 = vmatprep.subr.bf16.mxu0 0
        %9819 = vmatpush1.bf16.msra.mxu0 %v7083
        %9820 = vmatprep.mubr.bf16.mxu0 %v1590
        %9821 = vmatmul.mubr.bf16.gmra.mrb[0].mxu0 %v1589
        %v9822 = vpop.f32.mrb[0].mxu0
        %v9823 = vadd.f32 %v9783, %v9822
        %v9824 = vpop.f32.mrb[0].mxu0
        %v9825 = vpop.f32.mrb[0].mxu0
        %v9826 = vpop.f32.mrb[0].mxu0
        %9827 = vdwg.mxu0
        %v9828 = vadd.f32 %v3163, %v9823
        %9829 = vst [vmem:[#allocation2] sm:$0xff] %v9828
        %p9830 = scmp.eq.s32.totalorder %s27, 1
        // Predicated region
        $region61: #{tpu_custom_call.1} parent=39 // pred_check
          %p9831 = pneg %p9830
        $region62: #{tpu_custom_call.1} parent=39 // pred_check_branch
          %9833 = sbr.rel (%p9831) target = $region64
        $region63: #{tpu_custom_call.1} parent=39 // pred_region
          %v9834 = vld [vmem:[#allocation2] sm:$0xff]
          %v9835 = vld [vmem:[#allocation8] sm:$0x1]
          %v9837 = vlaneseq
          %v9838 = vshrl.u32 %v9837, 7
          %v9839 = vsub.s32 0, %v9838
          %v9840 = vrot.slane %v9835, %v9839
          %v9842 = vadd.f32 %v9834, %v9840
          %v9843 = vmax.f32 %v9842, 0.0
          %v9844 = vld [vmem:[%s3] sm:$0xff]
          %v9845 = vld [vmem:[%s3 + $0x8] sm:$0xff]
          %v9846 = vld [vmem:[%s3 + $0x10] sm:$0xff]
          %v9847 = vld [vmem:[%s3 + $0x18] sm:$0xff]
          %v9848 = vld [vmem:[%s3 + $0x20] sm:$0xff]
          %v9849 = vld [vmem:[%s3 + $0x28] sm:$0xff]
          %v9850 = vld [vmem:[%s3 + $0x30] sm:$0xff]
          %v9851 = vld [vmem:[%s3 + $0x38] sm:$0xff]
          %v9852 = vld [vmem:[%s3 + $0x40] sm:$0xff]
          %v9853 = vld [vmem:[%s3 + $0x48] sm:$0xff]
          %v9854 = vld [vmem:[%s3 + $0x50] sm:$0xff]
          %v9855 = vld [vmem:[%s3 + $0x58] sm:$0xff]
          %v9856 = vld [vmem:[%s3 + $0x60] sm:$0xff]
          %v9857 = vld [vmem:[%s3 + $0x68] sm:$0xff]
          %v9858 = vld [vmem:[%s3 + $0x70] sm:$0xff]
          %v9859 = vld [vmem:[%s3 + $0x78] sm:$0xff]
          %v9860 = vld [vmem:[#allocation9] sm:$0x1]
          %v9862 = vlaneseq
          %v9863 = vshrl.u32 %v9862, 7
          %v9864 = vsub.s32 0, %v9863
          %v9865 = vrot.slane %v9860, %v9864
          %9867 = vmatprep.subr.mxu0 0.0
          %9868 = vmatpush1.msra.mxu0 %v9844
          %9869 = vmatprep.subr.mxu0 0.0
          %9870 = vmatpush1.msra.mxu0 %v9845
          %9871 = vmatprep.subr.mxu0 0.0
          %9872 = vmatpush1.msra.mxu0 %v9846
          %9873 = vmatprep.subr.mxu0 0.0
          %9874 = vmatpush1.msra.mxu0 %v9847
          %9875 = vmatprep.subr.mxu0 0.0
          %9876 = vmatpush1.msra.mxu0 %v9848
          %9877 = vmatprep.subr.mxu0 0.0
          %9878 = vmatpush1.msra.mxu0 %v9849
          %9879 = vmatprep.subr.mxu0 0.0
          %9880 = vmatpush1.msra.mxu0 %v9850
          %9881 = vmatprep.subr.mxu0 0.0
          %9882 = vmatpush1.msra.mxu0 %v9851
          %9883 = vmatprep.subr.mxu0 0.0
          %9884 = vmatpush1.msra.mxu0 %v9852
          %9885 = vmatprep.subr.mxu0 0.0
          %9886 = vmatpush1.msra.mxu0 %v9853
          %9887 = vmatprep.subr.mxu0 0.0
          %9888 = vmatpush1.msra.mxu0 %v9854
          %9889 = vmatprep.subr.mxu0 0.0
          %9890 = vmatpush1.msra.mxu0 %v9855
          %9891 = vmatprep.subr.mxu0 0.0
          %9892 = vmatpush1.msra.mxu0 %v9856
          %9893 = vmatprep.subr.mxu0 0.0
          %9894 = vmatpush1.msra.mxu0 %v9857
          %9895 = vmatprep.subr.mxu0 0.0
          %9896 = vmatpush1.msra.mxu0 %v9858
          %9897 = vmatprep.subr.mxu0 0.0
          %9898 = vmatpush1.msra.mxu0 %v9859
          %9899 = vmatprep.subr.mxu0 0.0
          %9900 = vmatpush1.msra.mxu0 0.0
          %9901 = vmatprep.subr.mxu0 0.0
          %9902 = vmatpush1.msra.mxu0 0.0
          %9903 = vmatprep.subr.mxu0 0.0
          %9904 = vmatpush1.msra.mxu0 0.0
          %9905 = vmatprep.subr.mxu0 0.0
          %9906 = vmatpush1.msra.mxu0 0.0
          %9907 = vmatprep.subr.mxu0 0.0
          %9908 = vmatpush1.msra.mxu0 0.0
          %9909 = vmatprep.subr.mxu0 0.0
          %9910 = vmatpush1.msra.mxu0 0.0
          %9911 = vmatprep.subr.mxu0 0.0
          %9912 = vmatpush1.msra.mxu0 0.0
          %9913 = vmatprep.subr.mxu0 0.0
          %9914 = vmatpush1.msra.mxu0 0.0
          %9915 = vmatprep.subr.mxu0 0.0
          %9916 = vmatpush1.msra.mxu0 0.0
          %9917 = vmatprep.subr.mxu0 0.0
          %9918 = vmatpush1.msra.mxu0 0.0
          %9919 = vmatprep.subr.mxu0 0.0
          %9920 = vmatpush1.msra.mxu0 0.0
          %9921 = vmatprep.subr.mxu0 0.0
          %9922 = vmatpush1.msra.mxu0 0.0
          %9923 = vmatprep.subr.mxu0 0.0
          %9924 = vmatpush1.msra.mxu0 0.0
          %9925 = vmatprep.subr.mxu0 0.0
          %9926 = vmatpush1.msra.mxu0 0.0
          %9927 = vmatprep.subr.mxu0 0.0
          %9928 = vmatpush1.msra.mxu0 0.0
          %9929 = vmatprep.subr.mxu0 0.0
          %9930 = vmatpush1.msra.mxu0 0.0
          %9931 = vmatprep.mubr.f32.mxu0 0.0
          %9932 = vmatmul.mubr.f32.gmra.mrb[0].mxu0 %v9843
          %v9933 = vpop.f32.mrb[0].mxu0
          %v9934 = vadd.f32 %v9865, %v9933
          %v9935 = vpop.f32.mrb[0].mxu0
          %9936 = vdwg.mxu0
          %vm9937 = vcmask 64512
          %9938 = vst.msk [vmem:[#allocation11] sm:$0xff] %vm9937, %v9934
        $region64: #{tpu_custom_call.1} parent=39 // pred_fallthru
          _
        // Predicated region
        $region65: #{tpu_custom_call.1} parent=39 // pred_check
          %p9939 = pneg %p164
        $region66: #{tpu_custom_call.1} parent=39 // pred_check_branch
          %9941 = sbr.rel (%p9939) target = $region68
        $region67: #{tpu_custom_call.1} parent=39 // pred_region
          %s9942 = smul.u32 4, %s26
          %s9943 = ssub.s32 1, %s9942
          %s9944 = smul.u32 32, %s9943
          %s9946 = ssub.s32 128, %s9944
          %9947 = vsyncadd [#allocation5], %s9946
          %p9948 = scmp.ne.s32.totalorder 0, %s9944
          %s9949 = smul.addr %s9942, 32
          %s9950 = scalar_lea.hbm %s5, %s9949
          %s9951 = smul.u32 2, %s9943
          %s9952 = sshll.u32 [#allocation11], 4
          %s9953 = int_to_ptr.vmem [resolvable:$true] %s9952
          %s9954 = sshll.u32 %s9951, 4
          %9958 = dma.vmem_to_hbm [thread:$0]  (%p9948), %s9953, %s9954, %s9950, [#allocation5], 32, 32, 2
        $region68: #{tpu_custom_call.1} parent=39 // pred_fallthru
          _
        // Predicated region
        $region69: #{tpu_custom_call.1} parent=39 // pred_check
          %p9959 = pneg %p164
        $region70: #{tpu_custom_call.1} parent=39 // pred_check_branch
          %9961 = sbr.rel (%p9959) target = $region72
        $region71: #{tpu_custom_call.1} parent=39 // pred_region
          %9962 = dma.done [#allocation5], 128
        $region72: #{tpu_custom_call.1} parent=39 // pred_fallthru
          _
      $region40: #{tpu_custom_call.1} parent=5 // pred_fallthru
        _
      %p9963 = scmp.le.s32.totalorder 2, %s17
      // Predicated region
      $region73: #{tpu_custom_call.1} parent=5 // pred_check
        %p9964 = pneg %p9963
      $region74: #{tpu_custom_call.1} parent=5 // pred_check_branch
        %9966 = sbr.rel (%p9964) target = $region76
      $region75: #{tpu_custom_call.1} parent=5 // pred_region
        %s9967 = ssub.s32 %s17, 2
      $region76: #{tpu_custom_call.1} parent=5 // pred_fallthru
        _
    $region6: #{tpu_custom_call.1} parent=1 // loop_footer
      %s21 = sadd.s32 1, %s17
    $region7: #{tpu_custom_call.1} parent=1 // loop_footer_branch
      %16 = sbr.rel target = $region3
    $region8: #{tpu_custom_call.1} parent=1 // loop_exit
      _
    %9968 = vsyncpa [#allocation4], 1
    %s9969 = scalar_lea.sflag [#allocation4], 1
    %9970 = vsyncpa %s9969, 1
    %9971 = vsyncpa [#allocation7], 1
    %9972 = vsyncpa [#allocation10], 1
    %9973 = vsyncpa [#allocation5], 1
    %s9974 = scalar_lea.sflag [#allocation5], 1
    %9975 = vsyncpa %s9974, 1

</llo_original>
